<compile_context>
chip_gen: v7x
topology: tpu7x:2x2x1
jax: 0.10.0
libtpu: 0.0.40
codegen_flags: <defaults>
</compile_context>

<pallas_src>
import functools

import jax
import jax.numpy as jnp
from jax import lax
from jax.experimental import pallas as pl
from jax.experimental.pallas import tpu as pltpu

IGNORE = 255
LABEL_SHIFT = 256          # packed = flat_fv*256 + label  (labels in [0, 255])
BEV_SUB_DEFAULT = 8        # BEV tile = bev_sub*128 flat pixels (one i32 vreg/row)
MAX_GROUPS_PER_CHUNK = 32  # FV chunk = groups*128 points per grid step


def _ceil_div(a, b):
    return -(-a // b)


def _point_targets(fv_label_img, fv_pointcloud, bev_h, bev_w, res_scale):
    """Per FV point: flat BEV target index (-1 if invalid) and packed value."""
    B, _, H, W = fv_pointcloud.shape
    x = fv_pointcloud[:, 0].astype(jnp.float32)
    z = fv_pointcloud[:, 2].astype(jnp.float32)
    lab = fv_label_img[:, 0].astype(jnp.int32)

    # torch.round == round-half-to-even == jnp.round
    x_idx = jnp.round((x * -1.0) / res_scale + (bev_w // 2)).astype(jnp.int32)
    z_idx = jnp.round(z / res_scale).astype(jnp.int32)
    valid = ((x_idx >= 0) & (x_idx < bev_w) &
             (z_idx >= 0) & (z_idx < bev_h))

    # Row-major flat FV index -> deterministic "last valid point wins".
    # TODO(synk): labels are assumed to fit in [0, 255] (255 == ignore); larger
    # label ids would corrupt the 8-bit packing.
    flat_fv = jnp.arange(H * W, dtype=jnp.int32).reshape(1, H, W)
    packed = jnp.where(valid, flat_fv * LABEL_SHIFT + lab, -1)
    flat_bev = jnp.where(valid, z_idx * bev_w + x_idx, -1)
    return flat_bev.reshape(B, H * W), packed.reshape(B, H * W)


def _scatter_max_kernel(fbT_ref, pkT_ref, out_ref, acc_ref, *, bev_sub, groups):
    """One grid step: one FV chunk (groups*128 points) x one BEV tile.

    fbT_ref/pkT_ref: (1, 128, groups) int32 -- column g holds 128 FV points'
                     flat BEV targets / packed values (-1 == invalid/padding).
    out_ref:         (1, bev_sub, 128) int32 -- lane-dense flattened BEV tile.
    acc_ref:         (bev_sub, 128) int32 scratch -- running max of packed.
    """
    t = pl.program_id(1)          # BEV tile index
    f = pl.program_id(2)          # FV chunk index (reduction axis)
    n_f = pl.num_programs(2)

    @pl.when(f == 0)
    def _init():
        acc_ref[...] = jnp.full((bev_sub, 128), -1, dtype=jnp.int32)

    fbT = fbT_ref[0]              # (128, groups)
    pkT = pkT_ref[0]              # (128, groups)

    base = t * (bev_sub * 128)    # first flat BEV index of this tile
    lane = lax.broadcasted_iota(jnp.int32, (128, 128), 1)

    acc0 = acc_ref[...]
    row_acc = [acc0[r:r + 1, :] for r in range(bev_sub)]   # bev_sub x (1, 128)

    for g in range(groups):                       # static unroll
        fb_col = fbT[:, g:g + 1]                  # (128, 1) flat BEV targets
        pk_col = pkT[:, g:g + 1]                  # (128, 1) packed values
        rel = fb_col - base                       # tile-local target index
        for r in range(bev_sub):                  # static unroll
            # (128 points) x (128 BEV lanes) elementwise match -> packed or -1,
            # then max over the point (sublane) axis -> (1, 128).
            hit = jnp.where(rel == lane + (r * 128), pk_col, -1)
            row_acc[r] = jnp.maximum(row_acc[r],
                                     jnp.max(hit, axis=0, keepdims=True))

    new_acc = jnp.concatenate(row_acc, axis=0)    # (bev_sub, 128)
    acc_ref[...] = new_acc

    @pl.when(f == n_f - 1)
    def _finalize():
        out_ref[0] = jnp.where(new_acc >= 0,
                               jnp.bitwise_and(new_acc, LABEL_SHIFT - 1),
                               IGNORE).astype(jnp.int32)


def fv_pointcloud_to_bev(fv_label_img, fv_pointcloud, bev_image_shape, extents,
                         resolution, scale=1, *, bev_sub=BEV_SUB_DEFAULT,
                         max_groups=MAX_GROUPS_PER_CHUNK):
    """JAX/Pallas equivalent of _FvPointcloudToBev.forward.

    fv_label_img:  [B, 1, H_fv, W_fv]   int
    fv_pointcloud: [B, C>=3, H_fv, W_fv] float (channels: x, y, z, ...)
    returns:       [B, 1, bev_h, bev_w] int32
    """
    del extents  # only used in the original module to build unused grids
    bev_h, bev_w = int(bev_image_shape[0]), int(bev_image_shape[1])
    B, C, H, W = fv_pointcloud.shape
    assert C >= 3
    res_scale = float(resolution) * float(scale)

    flat_bev, packed = _point_targets(fv_label_img, fv_pointcloud,
                                      bev_h, bev_w, res_scale)

    # ---- FV points: pad, then put each group of 128 points on the sublane
    # axis (column g of a (128, groups) block). -------------------------------
    n_fv = H * W
    groups = max(1, min(max_groups, _ceil_div(n_fv, 128)))
    pts_per_chunk = groups * 128
    n_chunks = _ceil_div(n_fv, pts_per_chunk)
    n_pad = n_chunks * pts_per_chunk - n_fv
    if n_pad:
        flat_bev = jnp.pad(flat_bev, ((0, 0), (0, n_pad)), constant_values=-1)
        packed = jnp.pad(packed, ((0, 0), (0, n_pad)), constant_values=-1)

    def to_kernel_layout(a):
        return (a.reshape(B, n_chunks, groups, 128)
                 .transpose(0, 1, 3, 2)
                 .reshape(B, n_chunks * 128, groups))

    fbT = to_kernel_layout(flat_bev)
    pkT = to_kernel_layout(packed)

    # ---- BEV output: lane-dense flattened tiles of bev_sub*128 pixels. ------
    n_bev = bev_h * bev_w
    bev_tile = bev_sub * 128
    n_bev_tiles = _ceil_div(n_bev, bev_tile)

    kernel = functools.partial(_scatter_max_kernel,
                               bev_sub=bev_sub, groups=groups)

    out = pl.pallas_call(
        kernel,
        out_shape=jax.ShapeDtypeStruct((B, n_bev_tiles * bev_sub, 128),
                                       jnp.int32),
        grid_spec=pltpu.PrefetchScalarGridSpec(
            num_scalar_prefetch=0,
            grid=(B, n_bev_tiles, n_chunks),
            in_specs=[pl.BlockSpec((1, 128, groups), lambda b, t, f: (b, f, 0)),
                      pl.BlockSpec((1, 128, groups), lambda b, t, f: (b, f, 0))],
            out_specs=pl.BlockSpec((1, bev_sub, 128), lambda b, t, f: (b, t, 0)),
            scratch_shapes=[pltpu.VMEM((bev_sub, 128), jnp.int32)]),
        compiler_params=pltpu.CompilerParams(
            dimension_semantics=("parallel", "parallel", "arbitrary")),
    )(fbT, pkT)

    bev = out.reshape(B, n_bev_tiles * bev_tile)[:, :n_bev]
    return bev.reshape(B, 1, bev_h, bev_w).astype(jnp.int32)


def _reference_bev(fv_label_img, fv_pointcloud, bev_image_shape, resolution,
                   scale=1):
    """Pure-JAX reference with the same deterministic tie-break."""
    bev_h, bev_w = int(bev_image_shape[0]), int(bev_image_shape[1])
    B = fv_pointcloud.shape[0]
    n_bev = bev_h * bev_w
    flat_bev, packed = _point_targets(fv_label_img, fv_pointcloud, bev_h, bev_w,
                                      float(resolution) * float(scale))
    flat_bev = jnp.where(flat_bev < 0, n_bev, flat_bev)   # invalid -> spare bin
    best = jnp.full((B, n_bev + 1), -1, jnp.int32)
    b_idx = jnp.arange(B, dtype=jnp.int32)[:, None]
    best = best.at[b_idx, flat_bev].max(packed)[:, :n_bev]
    out = jnp.where(best >= 0, jnp.bitwise_and(best, LABEL_SHIFT - 1), IGNORE)
    return out.astype(jnp.int32).reshape(B, 1, bev_h, bev_w)


if __name__ == "__main__":
    # Small, deterministic example shapes.
    B, H_fv, W_fv = 2, 8, 128
    bev_h, bev_w = 16, 16
    resolution = 3.2
    scale = 1
    extents = (25.6, 0.0, -25.6, 51.2)   # (x1, z1, x2, z2)

    key = jax.random.PRNGKey(0)
    k1, k2, k3, k4 = jax.random.split(key, 4)
    x3d = jax.random.uniform(k1, (B, H_fv, W_fv), minval=-30.0, maxval=30.0)
    y3d = jax.random.uniform(k2, (B, H_fv, W_fv), minval=-2.0, maxval=2.0)
    z3d = jax.random.uniform(k3, (B, H_fv, W_fv), minval=-5.0, maxval=55.0)
    fv_pointcloud = jnp.stack([x3d, y3d, z3d], axis=1).astype(jnp.float32)
    fv_label_img = jax.random.randint(k4, (B, 1, H_fv, W_fv), 0, 20,
                                      dtype=jnp.int32)

    bev = fv_pointcloud_to_bev(fv_label_img, fv_pointcloud, (bev_h, bev_w),
                               extents, resolution, scale=scale)
    bev = jax.block_until_ready(bev)

    assert bev.shape == (B, 1, bev_h, bev_w)
    assert bev.dtype == jnp.int32
    # every output is either the ignore value or a scattered FV label
    assert bool(jnp.all((bev == IGNORE) | ((bev >= 0) & (bev < 20))))

    # Exact match against a pure-JAX scatter-max reference (same tie-break).
    ref = _reference_bev(fv_label_img, fv_pointcloud, (bev_h, bev_w),
                         resolution, scale=scale)
    assert bool(jnp.array_equal(bev, ref)), "kernel/reference mismatch"

    # TODO(synk): PyTorch leaves duplicate-index scatter order unspecified;
    # this kernel deterministically keeps the last valid FV point (row-major).
    print("KERNEL_OK")
</pallas_src>

<mosaic_0001>
module attributes {stable_mosaic.version = 11 : i64} {
  func.func @_scatter_max_kernel(%arg0: i32, %arg1: i32, %arg2: i32, %arg3: memref<1x128x8xi32, #tpu.memory_space<vmem>>, %arg4: memref<1x128x8xi32, #tpu.memory_space<vmem>>, %arg5: memref<1x8x128xi32, #tpu.memory_space<vmem>>, %arg6: memref<8x128xi32, #tpu.memory_space<vmem>>) attributes {dimension_semantics = [#tpu.dimension_semantics<parallel>, #tpu.dimension_semantics<parallel>, #tpu.dimension_semantics<arbitrary>], iteration_bounds = array<i64: 2, 1, 1>, scalar_prefetch = 0 : i64, scratch_operands = 1 : i64, tpu.core_type = #tpu.core_type<tc>, window_params = [{transform_indices = @transform_0, window_bounds = array<i64: 1, 128, 8>}, {transform_indices = @transform_1, window_bounds = array<i64: 1, 128, 8>}, {transform_indices = @transform_2, window_bounds = array<i64: 1, 8, 128>}]} {
    %c0_i32 = arith.constant 0 : i32
    %0 = arith.cmpi eq, %arg2, %c0_i32 : i32
    %1 = arith.extui %0 : i1 to i32
    %c0_i32_0 = arith.constant 0 : i32
    %2 = arith.cmpi ne, %1, %c0_i32_0 : i32
    scf.if %2 {
      %c-1_i32_195 = arith.constant -1 : i32
      %759 = vector.broadcast %c-1_i32_195 : i32 to vector<8x128xi32>
      %c0_196 = arith.constant 0 : index
      %c0_197 = arith.constant 0 : index
      %760 = vector.load %arg6[%c0_196, %c0_197] : memref<8x128xi32, #tpu.memory_space<vmem>>, vector<8x128xi32>
      tpu.vector_store %arg6[%c0_196, %c0_197], %759 {strides = array<i32>} : memref<8x128xi32, #tpu.memory_space<vmem>>, vector<8x128xi32>,
    } else {
    }
    %c0 = arith.constant 0 : index
    %c0_1 = arith.constant 0 : index
    %c0_2 = arith.constant 0 : index
    %3 = vector.load %arg3[%c0, %c0_1, %c0_2] : memref<1x128x8xi32, #tpu.memory_space<vmem>>, vector<1x128x8xi32>
    %4 = vector.shape_cast %3 : vector<1x128x8xi32> to vector<128x8xi32>
    %c0_3 = arith.constant 0 : index
    %c0_4 = arith.constant 0 : index
    %c0_5 = arith.constant 0 : index
    %5 = vector.load %arg4[%c0_3, %c0_4, %c0_5] : memref<1x128x8xi32, #tpu.memory_space<vmem>>, vector<1x128x8xi32>
    %6 = vector.shape_cast %5 : vector<1x128x8xi32> to vector<128x8xi32>
    %c1024_i32 = arith.constant 1024 : i32
    %7 = arith.muli %arg1, %c1024_i32 : i32
    %8 = tpu.iota {dimensions = array<i32: 1>} : vector<128x128xi32>
    %c0_6 = arith.constant 0 : index
    %c0_7 = arith.constant 0 : index
    %9 = vector.load %arg6[%c0_6, %c0_7] : memref<8x128xi32, #tpu.memory_space<vmem>>, vector<8x128xi32>
    %10 = vector.extract_strided_slice %9 {offsets = [0, 0], sizes = [1, 128], strides = [1, 1]} : vector<8x128xi32> to vector<1x128xi32>
    %11 = vector.extract_strided_slice %9 {offsets = [1, 0], sizes = [1, 128], strides = [1, 1]} : vector<8x128xi32> to vector<1x128xi32>
    %12 = vector.extract_strided_slice %9 {offsets = [2, 0], sizes = [1, 128], strides = [1, 1]} : vector<8x128xi32> to vector<1x128xi32>
    %13 = vector.extract_strided_slice %9 {offsets = [3, 0], sizes = [1, 128], strides = [1, 1]} : vector<8x128xi32> to vector<1x128xi32>
    %14 = vector.extract_strided_slice %9 {offsets = [4, 0], sizes = [1, 128], strides = [1, 1]} : vector<8x128xi32> to vector<1x128xi32>
    %15 = vector.extract_strided_slice %9 {offsets = [5, 0], sizes = [1, 128], strides = [1, 1]} : vector<8x128xi32> to vector<1x128xi32>
    %16 = vector.extract_strided_slice %9 {offsets = [6, 0], sizes = [1, 128], strides = [1, 1]} : vector<8x128xi32> to vector<1x128xi32>
    %17 = vector.extract_strided_slice %9 {offsets = [7, 0], sizes = [1, 128], strides = [1, 1]} : vector<8x128xi32> to vector<1x128xi32>
    %18 = vector.extract_strided_slice %4 {offsets = [0, 0], sizes = [128, 1], strides = [1, 1]} : vector<128x8xi32> to vector<128x1xi32>
    %19 = vector.extract_strided_slice %6 {offsets = [0, 0], sizes = [128, 1], strides = [1, 1]} : vector<128x8xi32> to vector<128x1xi32>
    %20 = vector.broadcast %7 : i32 to vector<128x1xi32>
    %21 = arith.subi %18, %20 : vector<128x1xi32>
    %c0_i32_8 = arith.constant 0 : i32
    %22 = vector.broadcast %c0_i32_8 : i32 to vector<128x128xi32>
    %23 = arith.addi %8, %22 : vector<128x128xi32>
    %24 = vector.broadcast %21 : vector<128x1xi32> to vector<128x128xi32>
    %25 = arith.cmpi eq, %24, %23 : vector<128x128xi32>
    %c-1_i32 = arith.constant -1 : i32
    %26 = vector.shape_cast %19 : vector<128x1xi32> to vector<128x1xi32>
    %27 = vector.broadcast %26 : vector<128x1xi32> to vector<128x128xi32>
    %28 = vector.broadcast %c-1_i32 : i32 to vector<128x128xi32>
    %29 = arith.select %25, %27, %28 : vector<128x128xi1>, vector<128x128xi32>
    %cst = arith.constant dense<-2147483648> : vector<128xi32>
    %30 = vector.multi_reduction <maxsi>, %29, %cst [0] : vector<128x128xi32> to vector<128xi32>
    %31 = vector.shape_cast %30 : vector<128xi32> to vector<1x128xi32>
    %32 = arith.maxsi %10, %31 : vector<1x128xi32>
    %c128_i32 = arith.constant 128 : i32
    %33 = vector.broadcast %c128_i32 : i32 to vector<128x128xi32>
    %34 = arith.addi %8, %33 : vector<128x128xi32>
    %35 = vector.broadcast %21 : vector<128x1xi32> to vector<128x128xi32>
    %36 = arith.cmpi eq, %35, %34 : vector<128x128xi32>
    %c-1_i32_9 = arith.constant -1 : i32
    %37 = vector.shape_cast %19 : vector<128x1xi32> to vector<128x1xi32>
    %38 = vector.broadcast %37 : vector<128x1xi32> to vector<128x128xi32>
    %39 = vector.broadcast %c-1_i32_9 : i32 to vector<128x128xi32>
    %40 = arith.select %36, %38, %39 : vector<128x128xi1>, vector<128x128xi32>
    %cst_10 = arith.constant dense<-2147483648> : vector<128xi32>
    %41 = vector.multi_reduction <maxsi>, %40, %cst_10 [0] : vector<128x128xi32> to vector<128xi32>
    %42 = vector.shape_cast %41 : vector<128xi32> to vector<1x128xi32>
    %43 = arith.maxsi %11, %42 : vector<1x128xi32>
    %c256_i32 = arith.constant 256 : i32
    %44 = vector.broadcast %c256_i32 : i32 to vector<128x128xi32>
    %45 = arith.addi %8, %44 : vector<128x128xi32>
    %46 = vector.broadcast %21 : vector<128x1xi32> to vector<128x128xi32>
    %47 = arith.cmpi eq, %46, %45 : vector<128x128xi32>
    %c-1_i32_11 = arith.constant -1 : i32
    %48 = vector.shape_cast %19 : vector<128x1xi32> to vector<128x1xi32>
    %49 = vector.broadcast %48 : vector<128x1xi32> to vector<128x128xi32>
    %50 = vector.broadcast %c-1_i32_11 : i32 to vector<128x128xi32>
    %51 = arith.select %47, %49, %50 : vector<128x128xi1>, vector<128x128xi32>
    %cst_12 = arith.constant dense<-2147483648> : vector<128xi32>
    %52 = vector.multi_reduction <maxsi>, %51, %cst_12 [0] : vector<128x128xi32> to vector<128xi32>
    %53 = vector.shape_cast %52 : vector<128xi32> to vector<1x128xi32>
    %54 = arith.maxsi %12, %53 : vector<1x128xi32>
    %c384_i32 = arith.constant 384 : i32
    %55 = vector.broadcast %c384_i32 : i32 to vector<128x128xi32>
    %56 = arith.addi %8, %55 : vector<128x128xi32>
    %57 = vector.broadcast %21 : vector<128x1xi32> to vector<128x128xi32>
    %58 = arith.cmpi eq, %57, %56 : vector<128x128xi32>
    %c-1_i32_13 = arith.constant -1 : i32
    %59 = vector.shape_cast %19 : vector<128x1xi32> to vector<128x1xi32>
    %60 = vector.broadcast %59 : vector<128x1xi32> to vector<128x128xi32>
    %61 = vector.broadcast %c-1_i32_13 : i32 to vector<128x128xi32>
    %62 = arith.select %58, %60, %61 : vector<128x128xi1>, vector<128x128xi32>
    %cst_14 = arith.constant dense<-2147483648> : vector<128xi32>
    %63 = vector.multi_reduction <maxsi>, %62, %cst_14 [0] : vector<128x128xi32> to vector<128xi32>
    %64 = vector.shape_cast %63 : vector<128xi32> to vector<1x128xi32>
    %65 = arith.maxsi %13, %64 : vector<1x128xi32>
    %c512_i32 = arith.constant 512 : i32
    %66 = vector.broadcast %c512_i32 : i32 to vector<128x128xi32>
    %67 = arith.addi %8, %66 : vector<128x128xi32>
    %68 = vector.broadcast %21 : vector<128x1xi32> to vector<128x128xi32>
    %69 = arith.cmpi eq, %68, %67 : vector<128x128xi32>
    %c-1_i32_15 = arith.constant -1 : i32
    %70 = vector.shape_cast %19 : vector<128x1xi32> to vector<128x1xi32>
    %71 = vector.broadcast %70 : vector<128x1xi32> to vector<128x128xi32>
    %72 = vector.broadcast %c-1_i32_15 : i32 to vector<128x128xi32>
    %73 = arith.select %69, %71, %72 : vector<128x128xi1>, vector<128x128xi32>
    %cst_16 = arith.constant dense<-2147483648> : vector<128xi32>
    %74 = vector.multi_reduction <maxsi>, %73, %cst_16 [0] : vector<128x128xi32> to vector<128xi32>
    %75 = vector.shape_cast %74 : vector<128xi32> to vector<1x128xi32>
    %76 = arith.maxsi %14, %75 : vector<1x128xi32>
    %c640_i32 = arith.constant 640 : i32
    %77 = vector.broadcast %c640_i32 : i32 to vector<128x128xi32>
    %78 = arith.addi %8, %77 : vector<128x128xi32>
    %79 = vector.broadcast %21 : vector<128x1xi32> to vector<128x128xi32>
    %80 = arith.cmpi eq, %79, %78 : vector<128x128xi32>
    %c-1_i32_17 = arith.constant -1 : i32
    %81 = vector.shape_cast %19 : vector<128x1xi32> to vector<128x1xi32>
    %82 = vector.broadcast %81 : vector<128x1xi32> to vector<128x128xi32>
    %83 = vector.broadcast %c-1_i32_17 : i32 to vector<128x128xi32>
    %84 = arith.select %80, %82, %83 : vector<128x128xi1>, vector<128x128xi32>
    %cst_18 = arith.constant dense<-2147483648> : vector<128xi32>
    %85 = vector.multi_reduction <maxsi>, %84, %cst_18 [0] : vector<128x128xi32> to vector<128xi32>
    %86 = vector.shape_cast %85 : vector<128xi32> to vector<1x128xi32>
    %87 = arith.maxsi %15, %86 : vector<1x128xi32>
    %c768_i32 = arith.constant 768 : i32
    %88 = vector.broadcast %c768_i32 : i32 to vector<128x128xi32>
    %89 = arith.addi %8, %88 : vector<128x128xi32>
    %90 = vector.broadcast %21 : vector<128x1xi32> to vector<128x128xi32>
    %91 = arith.cmpi eq, %90, %89 : vector<128x128xi32>
    %c-1_i32_19 = arith.constant -1 : i32
    %92 = vector.shape_cast %19 : vector<128x1xi32> to vector<128x1xi32>
    %93 = vector.broadcast %92 : vector<128x1xi32> to vector<128x128xi32>
    %94 = vector.broadcast %c-1_i32_19 : i32 to vector<128x128xi32>
    %95 = arith.select %91, %93, %94 : vector<128x128xi1>, vector<128x128xi32>
    %cst_20 = arith.constant dense<-2147483648> : vector<128xi32>
    %96 = vector.multi_reduction <maxsi>, %95, %cst_20 [0] : vector<128x128xi32> to vector<128xi32>
    %97 = vector.shape_cast %96 : vector<128xi32> to vector<1x128xi32>
    %98 = arith.maxsi %16, %97 : vector<1x128xi32>
    %c896_i32 = arith.constant 896 : i32
    %99 = vector.broadcast %c896_i32 : i32 to vector<128x128xi32>
    %100 = arith.addi %8, %99 : vector<128x128xi32>
    %101 = vector.broadcast %21 : vector<128x1xi32> to vector<128x128xi32>
    %102 = arith.cmpi eq, %101, %100 : vector<128x128xi32>
    %c-1_i32_21 = arith.constant -1 : i32
    %103 = vector.shape_cast %19 : vector<128x1xi32> to vector<128x1xi32>
    %104 = vector.broadcast %103 : vector<128x1xi32> to vector<128x128xi32>
    %105 = vector.broadcast %c-1_i32_21 : i32 to vector<128x128xi32>
    %106 = arith.select %102, %104, %105 : vector<128x128xi1>, vector<128x128xi32>
    %cst_22 = arith.constant dense<-2147483648> : vector<128xi32>
    %107 = vector.multi_reduction <maxsi>, %106, %cst_22 [0] : vector<128x128xi32> to vector<128xi32>
    %108 = vector.shape_cast %107 : vector<128xi32> to vector<1x128xi32>
    %109 = arith.maxsi %17, %108 : vector<1x128xi32>
    %110 = vector.extract_strided_slice %4 {offsets = [0, 1], sizes = [128, 1], strides = [1, 1]} : vector<128x8xi32> to vector<128x1xi32>
    %111 = vector.extract_strided_slice %6 {offsets = [0, 1], sizes = [128, 1], strides = [1, 1]} : vector<128x8xi32> to vector<128x1xi32>
    %112 = vector.broadcast %7 : i32 to vector<128x1xi32>
    %113 = arith.subi %110, %112 : vector<128x1xi32>
    %c0_i32_23 = arith.constant 0 : i32
    %114 = vector.broadcast %c0_i32_23 : i32 to vector<128x128xi32>
    %115 = arith.addi %8, %114 : vector<128x128xi32>
    %116 = vector.broadcast %113 : vector<128x1xi32> to vector<128x128xi32>
    %117 = arith.cmpi eq, %116, %115 : vector<128x128xi32>
    %c-1_i32_24 = arith.constant -1 : i32
    %118 = vector.shape_cast %111 : vector<128x1xi32> to vector<128x1xi32>
    %119 = vector.broadcast %118 : vector<128x1xi32> to vector<128x128xi32>
    %120 = vector.broadcast %c-1_i32_24 : i32 to vector<128x128xi32>
    %121 = arith.select %117, %119, %120 : vector<128x128xi1>, vector<128x128xi32>
    %cst_25 = arith.constant dense<-2147483648> : vector<128xi32>
    %122 = vector.multi_reduction <maxsi>, %121, %cst_25 [0] : vector<128x128xi32> to vector<128xi32>
    %123 = vector.shape_cast %122 : vector<128xi32> to vector<1x128xi32>
    %124 = arith.maxsi %32, %123 : vector<1x128xi32>
    %c128_i32_26 = arith.constant 128 : i32
    %125 = vector.broadcast %c128_i32_26 : i32 to vector<128x128xi32>
    %126 = arith.addi %8, %125 : vector<128x128xi32>
    %127 = vector.broadcast %113 : vector<128x1xi32> to vector<128x128xi32>
    %128 = arith.cmpi eq, %127, %126 : vector<128x128xi32>
    %c-1_i32_27 = arith.constant -1 : i32
    %129 = vector.shape_cast %111 : vector<128x1xi32> to vector<128x1xi32>
    %130 = vector.broadcast %129 : vector<128x1xi32> to vector<128x128xi32>
    %131 = vector.broadcast %c-1_i32_27 : i32 to vector<128x128xi32>
    %132 = arith.select %128, %130, %131 : vector<128x128xi1>, vector<128x128xi32>
    %cst_28 = arith.constant dense<-2147483648> : vector<128xi32>
    %133 = vector.multi_reduction <maxsi>, %132, %cst_28 [0] : vector<128x128xi32> to vector<128xi32>
    %134 = vector.shape_cast %133 : vector<128xi32> to vector<1x128xi32>
    %135 = arith.maxsi %43, %134 : vector<1x128xi32>
    %c256_i32_29 = arith.constant 256 : i32
    %136 = vector.broadcast %c256_i32_29 : i32 to vector<128x128xi32>
    %137 = arith.addi %8, %136 : vector<128x128xi32>
    %138 = vector.broadcast %113 : vector<128x1xi32> to vector<128x128xi32>
    %139 = arith.cmpi eq, %138, %137 : vector<128x128xi32>
    %c-1_i32_30 = arith.constant -1 : i32
    %140 = vector.shape_cast %111 : vector<128x1xi32> to vector<128x1xi32>
    %141 = vector.broadcast %140 : vector<128x1xi32> to vector<128x128xi32>
    %142 = vector.broadcast %c-1_i32_30 : i32 to vector<128x128xi32>
    %143 = arith.select %139, %141, %142 : vector<128x128xi1>, vector<128x128xi32>
    %cst_31 = arith.constant dense<-2147483648> : vector<128xi32>
    %144 = vector.multi_reduction <maxsi>, %143, %cst_31 [0] : vector<128x128xi32> to vector<128xi32>
    %145 = vector.shape_cast %144 : vector<128xi32> to vector<1x128xi32>
    %146 = arith.maxsi %54, %145 : vector<1x128xi32>
    %c384_i32_32 = arith.constant 384 : i32
    %147 = vector.broadcast %c384_i32_32 : i32 to vector<128x128xi32>
    %148 = arith.addi %8, %147 : vector<128x128xi32>
    %149 = vector.broadcast %113 : vector<128x1xi32> to vector<128x128xi32>
    %150 = arith.cmpi eq, %149, %148 : vector<128x128xi32>
    %c-1_i32_33 = arith.constant -1 : i32
    %151 = vector.shape_cast %111 : vector<128x1xi32> to vector<128x1xi32>
    %152 = vector.broadcast %151 : vector<128x1xi32> to vector<128x128xi32>
    %153 = vector.broadcast %c-1_i32_33 : i32 to vector<128x128xi32>
    %154 = arith.select %150, %152, %153 : vector<128x128xi1>, vector<128x128xi32>
    %cst_34 = arith.constant dense<-2147483648> : vector<128xi32>
    %155 = vector.multi_reduction <maxsi>, %154, %cst_34 [0] : vector<128x128xi32> to vector<128xi32>
    %156 = vector.shape_cast %155 : vector<128xi32> to vector<1x128xi32>
    %157 = arith.maxsi %65, %156 : vector<1x128xi32>
    %c512_i32_35 = arith.constant 512 : i32
    %158 = vector.broadcast %c512_i32_35 : i32 to vector<128x128xi32>
    %159 = arith.addi %8, %158 : vector<128x128xi32>
    %160 = vector.broadcast %113 : vector<128x1xi32> to vector<128x128xi32>
    %161 = arith.cmpi eq, %160, %159 : vector<128x128xi32>
    %c-1_i32_36 = arith.constant -1 : i32
    %162 = vector.shape_cast %111 : vector<128x1xi32> to vector<128x1xi32>
    %163 = vector.broadcast %162 : vector<128x1xi32> to vector<128x128xi32>
    %164 = vector.broadcast %c-1_i32_36 : i32 to vector<128x128xi32>
    %165 = arith.select %161, %163, %164 : vector<128x128xi1>, vector<128x128xi32>
    %cst_37 = arith.constant dense<-2147483648> : vector<128xi32>
    %166 = vector.multi_reduction <maxsi>, %165, %cst_37 [0] : vector<128x128xi32> to vector<128xi32>
    %167 = vector.shape_cast %166 : vector<128xi32> to vector<1x128xi32>
    %168 = arith.maxsi %76, %167 : vector<1x128xi32>
    %c640_i32_38 = arith.constant 640 : i32
    %169 = vector.broadcast %c640_i32_38 : i32 to vector<128x128xi32>
    %170 = arith.addi %8, %169 : vector<128x128xi32>
    %171 = vector.broadcast %113 : vector<128x1xi32> to vector<128x128xi32>
    %172 = arith.cmpi eq, %171, %170 : vector<128x128xi32>
    %c-1_i32_39 = arith.constant -1 : i32
    %173 = vector.shape_cast %111 : vector<128x1xi32> to vector<128x1xi32>
    %174 = vector.broadcast %173 : vector<128x1xi32> to vector<128x128xi32>
    %175 = vector.broadcast %c-1_i32_39 : i32 to vector<128x128xi32>
    %176 = arith.select %172, %174, %175 : vector<128x128xi1>, vector<128x128xi32>
    %cst_40 = arith.constant dense<-2147483648> : vector<128xi32>
    %177 = vector.multi_reduction <maxsi>, %176, %cst_40 [0] : vector<128x128xi32> to vector<128xi32>
    %178 = vector.shape_cast %177 : vector<128xi32> to vector<1x128xi32>
    %179 = arith.maxsi %87, %178 : vector<1x128xi32>
    %c768_i32_41 = arith.constant 768 : i32
    %180 = vector.broadcast %c768_i32_41 : i32 to vector<128x128xi32>
    %181 = arith.addi %8, %180 : vector<128x128xi32>
    %182 = vector.broadcast %113 : vector<128x1xi32> to vector<128x128xi32>
    %183 = arith.cmpi eq, %182, %181 : vector<128x128xi32>
    %c-1_i32_42 = arith.constant -1 : i32
    %184 = vector.shape_cast %111 : vector<128x1xi32> to vector<128x1xi32>
    %185 = vector.broadcast %184 : vector<128x1xi32> to vector<128x128xi32>
    %186 = vector.broadcast %c-1_i32_42 : i32 to vector<128x128xi32>
    %187 = arith.select %183, %185, %186 : vector<128x128xi1>, vector<128x128xi32>
    %cst_43 = arith.constant dense<-2147483648> : vector<128xi32>
    %188 = vector.multi_reduction <maxsi>, %187, %cst_43 [0] : vector<128x128xi32> to vector<128xi32>
    %189 = vector.shape_cast %188 : vector<128xi32> to vector<1x128xi32>
    %190 = arith.maxsi %98, %189 : vector<1x128xi32>
    %c896_i32_44 = arith.constant 896 : i32
    %191 = vector.broadcast %c896_i32_44 : i32 to vector<128x128xi32>
    %192 = arith.addi %8, %191 : vector<128x128xi32>
    %193 = vector.broadcast %113 : vector<128x1xi32> to vector<128x128xi32>
    %194 = arith.cmpi eq, %193, %192 : vector<128x128xi32>
    %c-1_i32_45 = arith.constant -1 : i32
    %195 = vector.shape_cast %111 : vector<128x1xi32> to vector<128x1xi32>
    %196 = vector.broadcast %195 : vector<128x1xi32> to vector<128x128xi32>
    %197 = vector.broadcast %c-1_i32_45 : i32 to vector<128x128xi32>
    %198 = arith.select %194, %196, %197 : vector<128x128xi1>, vector<128x128xi32>
    %cst_46 = arith.constant dense<-2147483648> : vector<128xi32>
    %199 = vector.multi_reduction <maxsi>, %198, %cst_46 [0] : vector<128x128xi32> to vector<128xi32>
    %200 = vector.shape_cast %199 : vector<128xi32> to vector<1x128xi32>
    %201 = arith.maxsi %109, %200 : vector<1x128xi32>
    %202 = vector.extract_strided_slice %4 {offsets = [0, 2], sizes = [128, 1], strides = [1, 1]} : vector<128x8xi32> to vector<128x1xi32>
    %203 = vector.extract_strided_slice %6 {offsets = [0, 2], sizes = [128, 1], strides = [1, 1]} : vector<128x8xi32> to vector<128x1xi32>
    %204 = vector.broadcast %7 : i32 to vector<128x1xi32>
    %205 = arith.subi %202, %204 : vector<128x1xi32>
    %c0_i32_47 = arith.constant 0 : i32
    %206 = vector.broadcast %c0_i32_47 : i32 to vector<128x128xi32>
    %207 = arith.addi %8, %206 : vector<128x128xi32>
    %208 = vector.broadcast %205 : vector<128x1xi32> to vector<128x128xi32>
    %209 = arith.cmpi eq, %208, %207 : vector<128x128xi32>
    %c-1_i32_48 = arith.constant -1 : i32
    %210 = vector.shape_cast %203 : vector<128x1xi32> to vector<128x1xi32>
    %211 = vector.broadcast %210 : vector<128x1xi32> to vector<128x128xi32>
    %212 = vector.broadcast %c-1_i32_48 : i32 to vector<128x128xi32>
    %213 = arith.select %209, %211, %212 : vector<128x128xi1>, vector<128x128xi32>
    %cst_49 = arith.constant dense<-2147483648> : vector<128xi32>
    %214 = vector.multi_reduction <maxsi>, %213, %cst_49 [0] : vector<128x128xi32> to vector<128xi32>
    %215 = vector.shape_cast %214 : vector<128xi32> to vector<1x128xi32>
    %216 = arith.maxsi %124, %215 : vector<1x128xi32>
    %c128_i32_50 = arith.constant 128 : i32
    %217 = vector.broadcast %c128_i32_50 : i32 to vector<128x128xi32>
    %218 = arith.addi %8, %217 : vector<128x128xi32>
    %219 = vector.broadcast %205 : vector<128x1xi32> to vector<128x128xi32>
    %220 = arith.cmpi eq, %219, %218 : vector<128x128xi32>
    %c-1_i32_51 = arith.constant -1 : i32
    %221 = vector.shape_cast %203 : vector<128x1xi32> to vector<128x1xi32>
    %222 = vector.broadcast %221 : vector<128x1xi32> to vector<128x128xi32>
    %223 = vector.broadcast %c-1_i32_51 : i32 to vector<128x128xi32>
    %224 = arith.select %220, %222, %223 : vector<128x128xi1>, vector<128x128xi32>
    %cst_52 = arith.constant dense<-2147483648> : vector<128xi32>
    %225 = vector.multi_reduction <maxsi>, %224, %cst_52 [0] : vector<128x128xi32> to vector<128xi32>
    %226 = vector.shape_cast %225 : vector<128xi32> to vector<1x128xi32>
    %227 = arith.maxsi %135, %226 : vector<1x128xi32>
    %c256_i32_53 = arith.constant 256 : i32
    %228 = vector.broadcast %c256_i32_53 : i32 to vector<128x128xi32>
    %229 = arith.addi %8, %228 : vector<128x128xi32>
    %230 = vector.broadcast %205 : vector<128x1xi32> to vector<128x128xi32>
    %231 = arith.cmpi eq, %230, %229 : vector<128x128xi32>
    %c-1_i32_54 = arith.constant -1 : i32
    %232 = vector.shape_cast %203 : vector<128x1xi32> to vector<128x1xi32>
    %233 = vector.broadcast %232 : vector<128x1xi32> to vector<128x128xi32>
    %234 = vector.broadcast %c-1_i32_54 : i32 to vector<128x128xi32>
    %235 = arith.select %231, %233, %234 : vector<128x128xi1>, vector<128x128xi32>
    %cst_55 = arith.constant dense<-2147483648> : vector<128xi32>
    %236 = vector.multi_reduction <maxsi>, %235, %cst_55 [0] : vector<128x128xi32> to vector<128xi32>
    %237 = vector.shape_cast %236 : vector<128xi32> to vector<1x128xi32>
    %238 = arith.maxsi %146, %237 : vector<1x128xi32>
    %c384_i32_56 = arith.constant 384 : i32
    %239 = vector.broadcast %c384_i32_56 : i32 to vector<128x128xi32>
    %240 = arith.addi %8, %239 : vector<128x128xi32>
    %241 = vector.broadcast %205 : vector<128x1xi32> to vector<128x128xi32>
    %242 = arith.cmpi eq, %241, %240 : vector<128x128xi32>
    %c-1_i32_57 = arith.constant -1 : i32
    %243 = vector.shape_cast %203 : vector<128x1xi32> to vector<128x1xi32>
    %244 = vector.broadcast %243 : vector<128x1xi32> to vector<128x128xi32>
    %245 = vector.broadcast %c-1_i32_57 : i32 to vector<128x128xi32>
    %246 = arith.select %242, %244, %245 : vector<128x128xi1>, vector<128x128xi32>
    %cst_58 = arith.constant dense<-2147483648> : vector<128xi32>
    %247 = vector.multi_reduction <maxsi>, %246, %cst_58 [0] : vector<128x128xi32> to vector<128xi32>
    %248 = vector.shape_cast %247 : vector<128xi32> to vector<1x128xi32>
    %249 = arith.maxsi %157, %248 : vector<1x128xi32>
    %c512_i32_59 = arith.constant 512 : i32
    %250 = vector.broadcast %c512_i32_59 : i32 to vector<128x128xi32>
    %251 = arith.addi %8, %250 : vector<128x128xi32>
    %252 = vector.broadcast %205 : vector<128x1xi32> to vector<128x128xi32>
    %253 = arith.cmpi eq, %252, %251 : vector<128x128xi32>
    %c-1_i32_60 = arith.constant -1 : i32
    %254 = vector.shape_cast %203 : vector<128x1xi32> to vector<128x1xi32>
    %255 = vector.broadcast %254 : vector<128x1xi32> to vector<128x128xi32>
    %256 = vector.broadcast %c-1_i32_60 : i32 to vector<128x128xi32>
    %257 = arith.select %253, %255, %256 : vector<128x128xi1>, vector<128x128xi32>
    %cst_61 = arith.constant dense<-2147483648> : vector<128xi32>
    %258 = vector.multi_reduction <maxsi>, %257, %cst_61 [0] : vector<128x128xi32> to vector<128xi32>
    %259 = vector.shape_cast %258 : vector<128xi32> to vector<1x128xi32>
    %260 = arith.maxsi %168, %259 : vector<1x128xi32>
    %c640_i32_62 = arith.constant 640 : i32
    %261 = vector.broadcast %c640_i32_62 : i32 to vector<128x128xi32>
    %262 = arith.addi %8, %261 : vector<128x128xi32>
    %263 = vector.broadcast %205 : vector<128x1xi32> to vector<128x128xi32>
    %264 = arith.cmpi eq, %263, %262 : vector<128x128xi32>
    %c-1_i32_63 = arith.constant -1 : i32
    %265 = vector.shape_cast %203 : vector<128x1xi32> to vector<128x1xi32>
    %266 = vector.broadcast %265 : vector<128x1xi32> to vector<128x128xi32>
    %267 = vector.broadcast %c-1_i32_63 : i32 to vector<128x128xi32>
    %268 = arith.select %264, %266, %267 : vector<128x128xi1>, vector<128x128xi32>
    %cst_64 = arith.constant dense<-2147483648> : vector<128xi32>
    %269 = vector.multi_reduction <maxsi>, %268, %cst_64 [0] : vector<128x128xi32> to vector<128xi32>
    %270 = vector.shape_cast %269 : vector<128xi32> to vector<1x128xi32>
    %271 = arith.maxsi %179, %270 : vector<1x128xi32>
    %c768_i32_65 = arith.constant 768 : i32
    %272 = vector.broadcast %c768_i32_65 : i32 to vector<128x128xi32>
    %273 = arith.addi %8, %272 : vector<128x128xi32>
    %274 = vector.broadcast %205 : vector<128x1xi32> to vector<128x128xi32>
    %275 = arith.cmpi eq, %274, %273 : vector<128x128xi32>
    %c-1_i32_66 = arith.constant -1 : i32
    %276 = vector.shape_cast %203 : vector<128x1xi32> to vector<128x1xi32>
    %277 = vector.broadcast %276 : vector<128x1xi32> to vector<128x128xi32>
    %278 = vector.broadcast %c-1_i32_66 : i32 to vector<128x128xi32>
    %279 = arith.select %275, %277, %278 : vector<128x128xi1>, vector<128x128xi32>
    %cst_67 = arith.constant dense<-2147483648> : vector<128xi32>
    %280 = vector.multi_reduction <maxsi>, %279, %cst_67 [0] : vector<128x128xi32> to vector<128xi32>
    %281 = vector.shape_cast %280 : vector<128xi32> to vector<1x128xi32>
    %282 = arith.maxsi %190, %281 : vector<1x128xi32>
    %c896_i32_68 = arith.constant 896 : i32
    %283 = vector.broadcast %c896_i32_68 : i32 to vector<128x128xi32>
    %284 = arith.addi %8, %283 : vector<128x128xi32>
    %285 = vector.broadcast %205 : vector<128x1xi32> to vector<128x128xi32>
    %286 = arith.cmpi eq, %285, %284 : vector<128x128xi32>
    %c-1_i32_69 = arith.constant -1 : i32
    %287 = vector.shape_cast %203 : vector<128x1xi32> to vector<128x1xi32>
    %288 = vector.broadcast %287 : vector<128x1xi32> to vector<128x128xi32>
    %289 = vector.broadcast %c-1_i32_69 : i32 to vector<128x128xi32>
    %290 = arith.select %286, %288, %289 : vector<128x128xi1>, vector<128x128xi32>
    %cst_70 = arith.constant dense<-2147483648> : vector<128xi32>
    %291 = vector.multi_reduction <maxsi>, %290, %cst_70 [0] : vector<128x128xi32> to vector<128xi32>
    %292 = vector.shape_cast %291 : vector<128xi32> to vector<1x128xi32>
    %293 = arith.maxsi %201, %292 : vector<1x128xi32>
    %294 = vector.extract_strided_slice %4 {offsets = [0, 3], sizes = [128, 1], strides = [1, 1]} : vector<128x8xi32> to vector<128x1xi32>
    %295 = vector.extract_strided_slice %6 {offsets = [0, 3], sizes = [128, 1], strides = [1, 1]} : vector<128x8xi32> to vector<128x1xi32>
    %296 = vector.broadcast %7 : i32 to vector<128x1xi32>
    %297 = arith.subi %294, %296 : vector<128x1xi32>
    %c0_i32_71 = arith.constant 0 : i32
    %298 = vector.broadcast %c0_i32_71 : i32 to vector<128x128xi32>
    %299 = arith.addi %8, %298 : vector<128x128xi32>
    %300 = vector.broadcast %297 : vector<128x1xi32> to vector<128x128xi32>
    %301 = arith.cmpi eq, %300, %299 : vector<128x128xi32>
    %c-1_i32_72 = arith.constant -1 : i32
    %302 = vector.shape_cast %295 : vector<128x1xi32> to vector<128x1xi32>
    %303 = vector.broadcast %302 : vector<128x1xi32> to vector<128x128xi32>
    %304 = vector.broadcast %c-1_i32_72 : i32 to vector<128x128xi32>
    %305 = arith.select %301, %303, %304 : vector<128x128xi1>, vector<128x128xi32>
    %cst_73 = arith.constant dense<-2147483648> : vector<128xi32>
    %306 = vector.multi_reduction <maxsi>, %305, %cst_73 [0] : vector<128x128xi32> to vector<128xi32>
    %307 = vector.shape_cast %306 : vector<128xi32> to vector<1x128xi32>
    %308 = arith.maxsi %216, %307 : vector<1x128xi32>
    %c128_i32_74 = arith.constant 128 : i32
    %309 = vector.broadcast %c128_i32_74 : i32 to vector<128x128xi32>
    %310 = arith.addi %8, %309 : vector<128x128xi32>
    %311 = vector.broadcast %297 : vector<128x1xi32> to vector<128x128xi32>
    %312 = arith.cmpi eq, %311, %310 : vector<128x128xi32>
    %c-1_i32_75 = arith.constant -1 : i32
    %313 = vector.shape_cast %295 : vector<128x1xi32> to vector<128x1xi32>
    %314 = vector.broadcast %313 : vector<128x1xi32> to vector<128x128xi32>
    %315 = vector.broadcast %c-1_i32_75 : i32 to vector<128x128xi32>
    %316 = arith.select %312, %314, %315 : vector<128x128xi1>, vector<128x128xi32>
    %cst_76 = arith.constant dense<-2147483648> : vector<128xi32>
    %317 = vector.multi_reduction <maxsi>, %316, %cst_76 [0] : vector<128x128xi32> to vector<128xi32>
    %318 = vector.shape_cast %317 : vector<128xi32> to vector<1x128xi32>
    %319 = arith.maxsi %227, %318 : vector<1x128xi32>
    %c256_i32_77 = arith.constant 256 : i32
    %320 = vector.broadcast %c256_i32_77 : i32 to vector<128x128xi32>
    %321 = arith.addi %8, %320 : vector<128x128xi32>
    %322 = vector.broadcast %297 : vector<128x1xi32> to vector<128x128xi32>
    %323 = arith.cmpi eq, %322, %321 : vector<128x128xi32>
    %c-1_i32_78 = arith.constant -1 : i32
    %324 = vector.shape_cast %295 : vector<128x1xi32> to vector<128x1xi32>
    %325 = vector.broadcast %324 : vector<128x1xi32> to vector<128x128xi32>
    %326 = vector.broadcast %c-1_i32_78 : i32 to vector<128x128xi32>
    %327 = arith.select %323, %325, %326 : vector<128x128xi1>, vector<128x128xi32>
    %cst_79 = arith.constant dense<-2147483648> : vector<128xi32>
    %328 = vector.multi_reduction <maxsi>, %327, %cst_79 [0] : vector<128x128xi32> to vector<128xi32>
    %329 = vector.shape_cast %328 : vector<128xi32> to vector<1x128xi32>
    %330 = arith.maxsi %238, %329 : vector<1x128xi32>
    %c384_i32_80 = arith.constant 384 : i32
    %331 = vector.broadcast %c384_i32_80 : i32 to vector<128x128xi32>
    %332 = arith.addi %8, %331 : vector<128x128xi32>
    %333 = vector.broadcast %297 : vector<128x1xi32> to vector<128x128xi32>
    %334 = arith.cmpi eq, %333, %332 : vector<128x128xi32>
    %c-1_i32_81 = arith.constant -1 : i32
    %335 = vector.shape_cast %295 : vector<128x1xi32> to vector<128x1xi32>
    %336 = vector.broadcast %335 : vector<128x1xi32> to vector<128x128xi32>
    %337 = vector.broadcast %c-1_i32_81 : i32 to vector<128x128xi32>
    %338 = arith.select %334, %336, %337 : vector<128x128xi1>, vector<128x128xi32>
    %cst_82 = arith.constant dense<-2147483648> : vector<128xi32>
    %339 = vector.multi_reduction <maxsi>, %338, %cst_82 [0] : vector<128x128xi32> to vector<128xi32>
    %340 = vector.shape_cast %339 : vector<128xi32> to vector<1x128xi32>
    %341 = arith.maxsi %249, %340 : vector<1x128xi32>
    %c512_i32_83 = arith.constant 512 : i32
    %342 = vector.broadcast %c512_i32_83 : i32 to vector<128x128xi32>
    %343 = arith.addi %8, %342 : vector<128x128xi32>
    %344 = vector.broadcast %297 : vector<128x1xi32> to vector<128x128xi32>
    %345 = arith.cmpi eq, %344, %343 : vector<128x128xi32>
    %c-1_i32_84 = arith.constant -1 : i32
    %346 = vector.shape_cast %295 : vector<128x1xi32> to vector<128x1xi32>
    %347 = vector.broadcast %346 : vector<128x1xi32> to vector<128x128xi32>
    %348 = vector.broadcast %c-1_i32_84 : i32 to vector<128x128xi32>
    %349 = arith.select %345, %347, %348 : vector<128x128xi1>, vector<128x128xi32>
    %cst_85 = arith.constant dense<-2147483648> : vector<128xi32>
    %350 = vector.multi_reduction <maxsi>, %349, %cst_85 [0] : vector<128x128xi32> to vector<128xi32>
    %351 = vector.shape_cast %350 : vector<128xi32> to vector<1x128xi32>
    %352 = arith.maxsi %260, %351 : vector<1x128xi32>
    %c640_i32_86 = arith.constant 640 : i32
    %353 = vector.broadcast %c640_i32_86 : i32 to vector<128x128xi32>
    %354 = arith.addi %8, %353 : vector<128x128xi32>
    %355 = vector.broadcast %297 : vector<128x1xi32> to vector<128x128xi32>
    %356 = arith.cmpi eq, %355, %354 : vector<128x128xi32>
    %c-1_i32_87 = arith.constant -1 : i32
    %357 = vector.shape_cast %295 : vector<128x1xi32> to vector<128x1xi32>
    %358 = vector.broadcast %357 : vector<128x1xi32> to vector<128x128xi32>
    %359 = vector.broadcast %c-1_i32_87 : i32 to vector<128x128xi32>
    %360 = arith.select %356, %358, %359 : vector<128x128xi1>, vector<128x128xi32>
    %cst_88 = arith.constant dense<-2147483648> : vector<128xi32>
    %361 = vector.multi_reduction <maxsi>, %360, %cst_88 [0] : vector<128x128xi32> to vector<128xi32>
    %362 = vector.shape_cast %361 : vector<128xi32> to vector<1x128xi32>
    %363 = arith.maxsi %271, %362 : vector<1x128xi32>
    %c768_i32_89 = arith.constant 768 : i32
    %364 = vector.broadcast %c768_i32_89 : i32 to vector<128x128xi32>
    %365 = arith.addi %8, %364 : vector<128x128xi32>
    %366 = vector.broadcast %297 : vector<128x1xi32> to vector<128x128xi32>
    %367 = arith.cmpi eq, %366, %365 : vector<128x128xi32>
    %c-1_i32_90 = arith.constant -1 : i32
    %368 = vector.shape_cast %295 : vector<128x1xi32> to vector<128x1xi32>
    %369 = vector.broadcast %368 : vector<128x1xi32> to vector<128x128xi32>
    %370 = vector.broadcast %c-1_i32_90 : i32 to vector<128x128xi32>
    %371 = arith.select %367, %369, %370 : vector<128x128xi1>, vector<128x128xi32>
    %cst_91 = arith.constant dense<-2147483648> : vector<128xi32>
    %372 = vector.multi_reduction <maxsi>, %371, %cst_91 [0] : vector<128x128xi32> to vector<128xi32>
    %373 = vector.shape_cast %372 : vector<128xi32> to vector<1x128xi32>
    %374 = arith.maxsi %282, %373 : vector<1x128xi32>
    %c896_i32_92 = arith.constant 896 : i32
    %375 = vector.broadcast %c896_i32_92 : i32 to vector<128x128xi32>
    %376 = arith.addi %8, %375 : vector<128x128xi32>
    %377 = vector.broadcast %297 : vector<128x1xi32> to vector<128x128xi32>
    %378 = arith.cmpi eq, %377, %376 : vector<128x128xi32>
    %c-1_i32_93 = arith.constant -1 : i32
    %379 = vector.shape_cast %295 : vector<128x1xi32> to vector<128x1xi32>
    %380 = vector.broadcast %379 : vector<128x1xi32> to vector<128x128xi32>
    %381 = vector.broadcast %c-1_i32_93 : i32 to vector<128x128xi32>
    %382 = arith.select %378, %380, %381 : vector<128x128xi1>, vector<128x128xi32>
    %cst_94 = arith.constant dense<-2147483648> : vector<128xi32>
    %383 = vector.multi_reduction <maxsi>, %382, %cst_94 [0] : vector<128x128xi32> to vector<128xi32>
    %384 = vector.shape_cast %383 : vector<128xi32> to vector<1x128xi32>
    %385 = arith.maxsi %293, %384 : vector<1x128xi32>
    %386 = vector.extract_strided_slice %4 {offsets = [0, 4], sizes = [128, 1], strides = [1, 1]} : vector<128x8xi32> to vector<128x1xi32>
    %387 = vector.extract_strided_slice %6 {offsets = [0, 4], sizes = [128, 1], strides = [1, 1]} : vector<128x8xi32> to vector<128x1xi32>
    %388 = vector.broadcast %7 : i32 to vector<128x1xi32>
    %389 = arith.subi %386, %388 : vector<128x1xi32>
    %c0_i32_95 = arith.constant 0 : i32
    %390 = vector.broadcast %c0_i32_95 : i32 to vector<128x128xi32>
    %391 = arith.addi %8, %390 : vector<128x128xi32>
    %392 = vector.broadcast %389 : vector<128x1xi32> to vector<128x128xi32>
    %393 = arith.cmpi eq, %392, %391 : vector<128x128xi32>
    %c-1_i32_96 = arith.constant -1 : i32
    %394 = vector.shape_cast %387 : vector<128x1xi32> to vector<128x1xi32>
    %395 = vector.broadcast %394 : vector<128x1xi32> to vector<128x128xi32>
    %396 = vector.broadcast %c-1_i32_96 : i32 to vector<128x128xi32>
    %397 = arith.select %393, %395, %396 : vector<128x128xi1>, vector<128x128xi32>
    %cst_97 = arith.constant dense<-2147483648> : vector<128xi32>
    %398 = vector.multi_reduction <maxsi>, %397, %cst_97 [0] : vector<128x128xi32> to vector<128xi32>
    %399 = vector.shape_cast %398 : vector<128xi32> to vector<1x128xi32>
    %400 = arith.maxsi %308, %399 : vector<1x128xi32>
    %c128_i32_98 = arith.constant 128 : i32
    %401 = vector.broadcast %c128_i32_98 : i32 to vector<128x128xi32>
    %402 = arith.addi %8, %401 : vector<128x128xi32>
    %403 = vector.broadcast %389 : vector<128x1xi32> to vector<128x128xi32>
    %404 = arith.cmpi eq, %403, %402 : vector<128x128xi32>
    %c-1_i32_99 = arith.constant -1 : i32
    %405 = vector.shape_cast %387 : vector<128x1xi32> to vector<128x1xi32>
    %406 = vector.broadcast %405 : vector<128x1xi32> to vector<128x128xi32>
    %407 = vector.broadcast %c-1_i32_99 : i32 to vector<128x128xi32>
    %408 = arith.select %404, %406, %407 : vector<128x128xi1>, vector<128x128xi32>
    %cst_100 = arith.constant dense<-2147483648> : vector<128xi32>
    %409 = vector.multi_reduction <maxsi>, %408, %cst_100 [0] : vector<128x128xi32> to vector<128xi32>
    %410 = vector.shape_cast %409 : vector<128xi32> to vector<1x128xi32>
    %411 = arith.maxsi %319, %410 : vector<1x128xi32>
    %c256_i32_101 = arith.constant 256 : i32
    %412 = vector.broadcast %c256_i32_101 : i32 to vector<128x128xi32>
    %413 = arith.addi %8, %412 : vector<128x128xi32>
    %414 = vector.broadcast %389 : vector<128x1xi32> to vector<128x128xi32>
    %415 = arith.cmpi eq, %414, %413 : vector<128x128xi32>
    %c-1_i32_102 = arith.constant -1 : i32
    %416 = vector.shape_cast %387 : vector<128x1xi32> to vector<128x1xi32>
    %417 = vector.broadcast %416 : vector<128x1xi32> to vector<128x128xi32>
    %418 = vector.broadcast %c-1_i32_102 : i32 to vector<128x128xi32>
    %419 = arith.select %415, %417, %418 : vector<128x128xi1>, vector<128x128xi32>
    %cst_103 = arith.constant dense<-2147483648> : vector<128xi32>
    %420 = vector.multi_reduction <maxsi>, %419, %cst_103 [0] : vector<128x128xi32> to vector<128xi32>
    %421 = vector.shape_cast %420 : vector<128xi32> to vector<1x128xi32>
    %422 = arith.maxsi %330, %421 : vector<1x128xi32>
    %c384_i32_104 = arith.constant 384 : i32
    %423 = vector.broadcast %c384_i32_104 : i32 to vector<128x128xi32>
    %424 = arith.addi %8, %423 : vector<128x128xi32>
    %425 = vector.broadcast %389 : vector<128x1xi32> to vector<128x128xi32>
    %426 = arith.cmpi eq, %425, %424 : vector<128x128xi32>
    %c-1_i32_105 = arith.constant -1 : i32
    %427 = vector.shape_cast %387 : vector<128x1xi32> to vector<128x1xi32>
    %428 = vector.broadcast %427 : vector<128x1xi32> to vector<128x128xi32>
    %429 = vector.broadcast %c-1_i32_105 : i32 to vector<128x128xi32>
    %430 = arith.select %426, %428, %429 : vector<128x128xi1>, vector<128x128xi32>
    %cst_106 = arith.constant dense<-2147483648> : vector<128xi32>
    %431 = vector.multi_reduction <maxsi>, %430, %cst_106 [0] : vector<128x128xi32> to vector<128xi32>
    %432 = vector.shape_cast %431 : vector<128xi32> to vector<1x128xi32>
    %433 = arith.maxsi %341, %432 : vector<1x128xi32>
    %c512_i32_107 = arith.constant 512 : i32
    %434 = vector.broadcast %c512_i32_107 : i32 to vector<128x128xi32>
    %435 = arith.addi %8, %434 : vector<128x128xi32>
    %436 = vector.broadcast %389 : vector<128x1xi32> to vector<128x128xi32>
    %437 = arith.cmpi eq, %436, %435 : vector<128x128xi32>
    %c-1_i32_108 = arith.constant -1 : i32
    %438 = vector.shape_cast %387 : vector<128x1xi32> to vector<128x1xi32>
    %439 = vector.broadcast %438 : vector<128x1xi32> to vector<128x128xi32>
    %440 = vector.broadcast %c-1_i32_108 : i32 to vector<128x128xi32>
    %441 = arith.select %437, %439, %440 : vector<128x128xi1>, vector<128x128xi32>
    %cst_109 = arith.constant dense<-2147483648> : vector<128xi32>
    %442 = vector.multi_reduction <maxsi>, %441, %cst_109 [0] : vector<128x128xi32> to vector<128xi32>
    %443 = vector.shape_cast %442 : vector<128xi32> to vector<1x128xi32>
    %444 = arith.maxsi %352, %443 : vector<1x128xi32>
    %c640_i32_110 = arith.constant 640 : i32
    %445 = vector.broadcast %c640_i32_110 : i32 to vector<128x128xi32>
    %446 = arith.addi %8, %445 : vector<128x128xi32>
    %447 = vector.broadcast %389 : vector<128x1xi32> to vector<128x128xi32>
    %448 = arith.cmpi eq, %447, %446 : vector<128x128xi32>
    %c-1_i32_111 = arith.constant -1 : i32
    %449 = vector.shape_cast %387 : vector<128x1xi32> to vector<128x1xi32>
    %450 = vector.broadcast %449 : vector<128x1xi32> to vector<128x128xi32>
    %451 = vector.broadcast %c-1_i32_111 : i32 to vector<128x128xi32>
    %452 = arith.select %448, %450, %451 : vector<128x128xi1>, vector<128x128xi32>
    %cst_112 = arith.constant dense<-2147483648> : vector<128xi32>
    %453 = vector.multi_reduction <maxsi>, %452, %cst_112 [0] : vector<128x128xi32> to vector<128xi32>
    %454 = vector.shape_cast %453 : vector<128xi32> to vector<1x128xi32>
    %455 = arith.maxsi %363, %454 : vector<1x128xi32>
    %c768_i32_113 = arith.constant 768 : i32
    %456 = vector.broadcast %c768_i32_113 : i32 to vector<128x128xi32>
    %457 = arith.addi %8, %456 : vector<128x128xi32>
    %458 = vector.broadcast %389 : vector<128x1xi32> to vector<128x128xi32>
    %459 = arith.cmpi eq, %458, %457 : vector<128x128xi32>
    %c-1_i32_114 = arith.constant -1 : i32
    %460 = vector.shape_cast %387 : vector<128x1xi32> to vector<128x1xi32>
    %461 = vector.broadcast %460 : vector<128x1xi32> to vector<128x128xi32>
    %462 = vector.broadcast %c-1_i32_114 : i32 to vector<128x128xi32>
    %463 = arith.select %459, %461, %462 : vector<128x128xi1>, vector<128x128xi32>
    %cst_115 = arith.constant dense<-2147483648> : vector<128xi32>
    %464 = vector.multi_reduction <maxsi>, %463, %cst_115 [0] : vector<128x128xi32> to vector<128xi32>
    %465 = vector.shape_cast %464 : vector<128xi32> to vector<1x128xi32>
    %466 = arith.maxsi %374, %465 : vector<1x128xi32>
    %c896_i32_116 = arith.constant 896 : i32
    %467 = vector.broadcast %c896_i32_116 : i32 to vector<128x128xi32>
    %468 = arith.addi %8, %467 : vector<128x128xi32>
    %469 = vector.broadcast %389 : vector<128x1xi32> to vector<128x128xi32>
    %470 = arith.cmpi eq, %469, %468 : vector<128x128xi32>
    %c-1_i32_117 = arith.constant -1 : i32
    %471 = vector.shape_cast %387 : vector<128x1xi32> to vector<128x1xi32>
    %472 = vector.broadcast %471 : vector<128x1xi32> to vector<128x128xi32>
    %473 = vector.broadcast %c-1_i32_117 : i32 to vector<128x128xi32>
    %474 = arith.select %470, %472, %473 : vector<128x128xi1>, vector<128x128xi32>
    %cst_118 = arith.constant dense<-2147483648> : vector<128xi32>
    %475 = vector.multi_reduction <maxsi>, %474, %cst_118 [0] : vector<128x128xi32> to vector<128xi32>
    %476 = vector.shape_cast %475 : vector<128xi32> to vector<1x128xi32>
    %477 = arith.maxsi %385, %476 : vector<1x128xi32>
    %478 = vector.extract_strided_slice %4 {offsets = [0, 5], sizes = [128, 1], strides = [1, 1]} : vector<128x8xi32> to vector<128x1xi32>
    %479 = vector.extract_strided_slice %6 {offsets = [0, 5], sizes = [128, 1], strides = [1, 1]} : vector<128x8xi32> to vector<128x1xi32>
    %480 = vector.broadcast %7 : i32 to vector<128x1xi32>
    %481 = arith.subi %478, %480 : vector<128x1xi32>
    %c0_i32_119 = arith.constant 0 : i32
    %482 = vector.broadcast %c0_i32_119 : i32 to vector<128x128xi32>
    %483 = arith.addi %8, %482 : vector<128x128xi32>
    %484 = vector.broadcast %481 : vector<128x1xi32> to vector<128x128xi32>
    %485 = arith.cmpi eq, %484, %483 : vector<128x128xi32>
    %c-1_i32_120 = arith.constant -1 : i32
    %486 = vector.shape_cast %479 : vector<128x1xi32> to vector<128x1xi32>
    %487 = vector.broadcast %486 : vector<128x1xi32> to vector<128x128xi32>
    %488 = vector.broadcast %c-1_i32_120 : i32 to vector<128x128xi32>
    %489 = arith.select %485, %487, %488 : vector<128x128xi1>, vector<128x128xi32>
    %cst_121 = arith.constant dense<-2147483648> : vector<128xi32>
    %490 = vector.multi_reduction <maxsi>, %489, %cst_121 [0] : vector<128x128xi32> to vector<128xi32>
    %491 = vector.shape_cast %490 : vector<128xi32> to vector<1x128xi32>
    %492 = arith.maxsi %400, %491 : vector<1x128xi32>
    %c128_i32_122 = arith.constant 128 : i32
    %493 = vector.broadcast %c128_i32_122 : i32 to vector<128x128xi32>
    %494 = arith.addi %8, %493 : vector<128x128xi32>
    %495 = vector.broadcast %481 : vector<128x1xi32> to vector<128x128xi32>
    %496 = arith.cmpi eq, %495, %494 : vector<128x128xi32>
    %c-1_i32_123 = arith.constant -1 : i32
    %497 = vector.shape_cast %479 : vector<128x1xi32> to vector<128x1xi32>
    %498 = vector.broadcast %497 : vector<128x1xi32> to vector<128x128xi32>
    %499 = vector.broadcast %c-1_i32_123 : i32 to vector<128x128xi32>
    %500 = arith.select %496, %498, %499 : vector<128x128xi1>, vector<128x128xi32>
    %cst_124 = arith.constant dense<-2147483648> : vector<128xi32>
    %501 = vector.multi_reduction <maxsi>, %500, %cst_124 [0] : vector<128x128xi32> to vector<128xi32>
    %502 = vector.shape_cast %501 : vector<128xi32> to vector<1x128xi32>
    %503 = arith.maxsi %411, %502 : vector<1x128xi32>
    %c256_i32_125 = arith.constant 256 : i32
    %504 = vector.broadcast %c256_i32_125 : i32 to vector<128x128xi32>
    %505 = arith.addi %8, %504 : vector<128x128xi32>
    %506 = vector.broadcast %481 : vector<128x1xi32> to vector<128x128xi32>
    %507 = arith.cmpi eq, %506, %505 : vector<128x128xi32>
    %c-1_i32_126 = arith.constant -1 : i32
    %508 = vector.shape_cast %479 : vector<128x1xi32> to vector<128x1xi32>
    %509 = vector.broadcast %508 : vector<128x1xi32> to vector<128x128xi32>
    %510 = vector.broadcast %c-1_i32_126 : i32 to vector<128x128xi32>
    %511 = arith.select %507, %509, %510 : vector<128x128xi1>, vector<128x128xi32>
    %cst_127 = arith.constant dense<-2147483648> : vector<128xi32>
    %512 = vector.multi_reduction <maxsi>, %511, %cst_127 [0] : vector<128x128xi32> to vector<128xi32>
    %513 = vector.shape_cast %512 : vector<128xi32> to vector<1x128xi32>
    %514 = arith.maxsi %422, %513 : vector<1x128xi32>
    %c384_i32_128 = arith.constant 384 : i32
    %515 = vector.broadcast %c384_i32_128 : i32 to vector<128x128xi32>
    %516 = arith.addi %8, %515 : vector<128x128xi32>
    %517 = vector.broadcast %481 : vector<128x1xi32> to vector<128x128xi32>
    %518 = arith.cmpi eq, %517, %516 : vector<128x128xi32>
    %c-1_i32_129 = arith.constant -1 : i32
    %519 = vector.shape_cast %479 : vector<128x1xi32> to vector<128x1xi32>
    %520 = vector.broadcast %519 : vector<128x1xi32> to vector<128x128xi32>
    %521 = vector.broadcast %c-1_i32_129 : i32 to vector<128x128xi32>
    %522 = arith.select %518, %520, %521 : vector<128x128xi1>, vector<128x128xi32>
    %cst_130 = arith.constant dense<-2147483648> : vector<128xi32>
    %523 = vector.multi_reduction <maxsi>, %522, %cst_130 [0] : vector<128x128xi32> to vector<128xi32>
    %524 = vector.shape_cast %523 : vector<128xi32> to vector<1x128xi32>
    %525 = arith.maxsi %433, %524 : vector<1x128xi32>
    %c512_i32_131 = arith.constant 512 : i32
    %526 = vector.broadcast %c512_i32_131 : i32 to vector<128x128xi32>
    %527 = arith.addi %8, %526 : vector<128x128xi32>
    %528 = vector.broadcast %481 : vector<128x1xi32> to vector<128x128xi32>
    %529 = arith.cmpi eq, %528, %527 : vector<128x128xi32>
    %c-1_i32_132 = arith.constant -1 : i32
    %530 = vector.shape_cast %479 : vector<128x1xi32> to vector<128x1xi32>
    %531 = vector.broadcast %530 : vector<128x1xi32> to vector<128x128xi32>
    %532 = vector.broadcast %c-1_i32_132 : i32 to vector<128x128xi32>
    %533 = arith.select %529, %531, %532 : vector<128x128xi1>, vector<128x128xi32>
    %cst_133 = arith.constant dense<-2147483648> : vector<128xi32>
    %534 = vector.multi_reduction <maxsi>, %533, %cst_133 [0] : vector<128x128xi32> to vector<128xi32>
    %535 = vector.shape_cast %534 : vector<128xi32> to vector<1x128xi32>
    %536 = arith.maxsi %444, %535 : vector<1x128xi32>
    %c640_i32_134 = arith.constant 640 : i32
    %537 = vector.broadcast %c640_i32_134 : i32 to vector<128x128xi32>
    %538 = arith.addi %8, %537 : vector<128x128xi32>
    %539 = vector.broadcast %481 : vector<128x1xi32> to vector<128x128xi32>
    %540 = arith.cmpi eq, %539, %538 : vector<128x128xi32>
    %c-1_i32_135 = arith.constant -1 : i32
    %541 = vector.shape_cast %479 : vector<128x1xi32> to vector<128x1xi32>
    %542 = vector.broadcast %541 : vector<128x1xi32> to vector<128x128xi32>
    %543 = vector.broadcast %c-1_i32_135 : i32 to vector<128x128xi32>
    %544 = arith.select %540, %542, %543 : vector<128x128xi1>, vector<128x128xi32>
    %cst_136 = arith.constant dense<-2147483648> : vector<128xi32>
    %545 = vector.multi_reduction <maxsi>, %544, %cst_136 [0] : vector<128x128xi32> to vector<128xi32>
    %546 = vector.shape_cast %545 : vector<128xi32> to vector<1x128xi32>
    %547 = arith.maxsi %455, %546 : vector<1x128xi32>
    %c768_i32_137 = arith.constant 768 : i32
    %548 = vector.broadcast %c768_i32_137 : i32 to vector<128x128xi32>
    %549 = arith.addi %8, %548 : vector<128x128xi32>
    %550 = vector.broadcast %481 : vector<128x1xi32> to vector<128x128xi32>
    %551 = arith.cmpi eq, %550, %549 : vector<128x128xi32>
    %c-1_i32_138 = arith.constant -1 : i32
    %552 = vector.shape_cast %479 : vector<128x1xi32> to vector<128x1xi32>
    %553 = vector.broadcast %552 : vector<128x1xi32> to vector<128x128xi32>
    %554 = vector.broadcast %c-1_i32_138 : i32 to vector<128x128xi32>
    %555 = arith.select %551, %553, %554 : vector<128x128xi1>, vector<128x128xi32>
    %cst_139 = arith.constant dense<-2147483648> : vector<128xi32>
    %556 = vector.multi_reduction <maxsi>, %555, %cst_139 [0] : vector<128x128xi32> to vector<128xi32>
    %557 = vector.shape_cast %556 : vector<128xi32> to vector<1x128xi32>
    %558 = arith.maxsi %466, %557 : vector<1x128xi32>
    %c896_i32_140 = arith.constant 896 : i32
    %559 = vector.broadcast %c896_i32_140 : i32 to vector<128x128xi32>
    %560 = arith.addi %8, %559 : vector<128x128xi32>
    %561 = vector.broadcast %481 : vector<128x1xi32> to vector<128x128xi32>
    %562 = arith.cmpi eq, %561, %560 : vector<128x128xi32>
    %c-1_i32_141 = arith.constant -1 : i32
    %563 = vector.shape_cast %479 : vector<128x1xi32> to vector<128x1xi32>
    %564 = vector.broadcast %563 : vector<128x1xi32> to vector<128x128xi32>
    %565 = vector.broadcast %c-1_i32_141 : i32 to vector<128x128xi32>
    %566 = arith.select %562, %564, %565 : vector<128x128xi1>, vector<128x128xi32>
    %cst_142 = arith.constant dense<-2147483648> : vector<128xi32>
    %567 = vector.multi_reduction <maxsi>, %566, %cst_142 [0] : vector<128x128xi32> to vector<128xi32>
    %568 = vector.shape_cast %567 : vector<128xi32> to vector<1x128xi32>
    %569 = arith.maxsi %477, %568 : vector<1x128xi32>
    %570 = vector.extract_strided_slice %4 {offsets = [0, 6], sizes = [128, 1], strides = [1, 1]} : vector<128x8xi32> to vector<128x1xi32>
    %571 = vector.extract_strided_slice %6 {offsets = [0, 6], sizes = [128, 1], strides = [1, 1]} : vector<128x8xi32> to vector<128x1xi32>
    %572 = vector.broadcast %7 : i32 to vector<128x1xi32>
    %573 = arith.subi %570, %572 : vector<128x1xi32>
    %c0_i32_143 = arith.constant 0 : i32
    %574 = vector.broadcast %c0_i32_143 : i32 to vector<128x128xi32>
    %575 = arith.addi %8, %574 : vector<128x128xi32>
    %576 = vector.broadcast %573 : vector<128x1xi32> to vector<128x128xi32>
    %577 = arith.cmpi eq, %576, %575 : vector<128x128xi32>
    %c-1_i32_144 = arith.constant -1 : i32
    %578 = vector.shape_cast %571 : vector<128x1xi32> to vector<128x1xi32>
    %579 = vector.broadcast %578 : vector<128x1xi32> to vector<128x128xi32>
    %580 = vector.broadcast %c-1_i32_144 : i32 to vector<128x128xi32>
    %581 = arith.select %577, %579, %580 : vector<128x128xi1>, vector<128x128xi32>
    %cst_145 = arith.constant dense<-2147483648> : vector<128xi32>
    %582 = vector.multi_reduction <maxsi>, %581, %cst_145 [0] : vector<128x128xi32> to vector<128xi32>
    %583 = vector.shape_cast %582 : vector<128xi32> to vector<1x128xi32>
    %584 = arith.maxsi %492, %583 : vector<1x128xi32>
    %c128_i32_146 = arith.constant 128 : i32
    %585 = vector.broadcast %c128_i32_146 : i32 to vector<128x128xi32>
    %586 = arith.addi %8, %585 : vector<128x128xi32>
    %587 = vector.broadcast %573 : vector<128x1xi32> to vector<128x128xi32>
    %588 = arith.cmpi eq, %587, %586 : vector<128x128xi32>
    %c-1_i32_147 = arith.constant -1 : i32
    %589 = vector.shape_cast %571 : vector<128x1xi32> to vector<128x1xi32>
    %590 = vector.broadcast %589 : vector<128x1xi32> to vector<128x128xi32>
    %591 = vector.broadcast %c-1_i32_147 : i32 to vector<128x128xi32>
    %592 = arith.select %588, %590, %591 : vector<128x128xi1>, vector<128x128xi32>
    %cst_148 = arith.constant dense<-2147483648> : vector<128xi32>
    %593 = vector.multi_reduction <maxsi>, %592, %cst_148 [0] : vector<128x128xi32> to vector<128xi32>
    %594 = vector.shape_cast %593 : vector<128xi32> to vector<1x128xi32>
    %595 = arith.maxsi %503, %594 : vector<1x128xi32>
    %c256_i32_149 = arith.constant 256 : i32
    %596 = vector.broadcast %c256_i32_149 : i32 to vector<128x128xi32>
    %597 = arith.addi %8, %596 : vector<128x128xi32>
    %598 = vector.broadcast %573 : vector<128x1xi32> to vector<128x128xi32>
    %599 = arith.cmpi eq, %598, %597 : vector<128x128xi32>
    %c-1_i32_150 = arith.constant -1 : i32
    %600 = vector.shape_cast %571 : vector<128x1xi32> to vector<128x1xi32>
    %601 = vector.broadcast %600 : vector<128x1xi32> to vector<128x128xi32>
    %602 = vector.broadcast %c-1_i32_150 : i32 to vector<128x128xi32>
    %603 = arith.select %599, %601, %602 : vector<128x128xi1>, vector<128x128xi32>
    %cst_151 = arith.constant dense<-2147483648> : vector<128xi32>
    %604 = vector.multi_reduction <maxsi>, %603, %cst_151 [0] : vector<128x128xi32> to vector<128xi32>
    %605 = vector.shape_cast %604 : vector<128xi32> to vector<1x128xi32>
    %606 = arith.maxsi %514, %605 : vector<1x128xi32>
    %c384_i32_152 = arith.constant 384 : i32
    %607 = vector.broadcast %c384_i32_152 : i32 to vector<128x128xi32>
    %608 = arith.addi %8, %607 : vector<128x128xi32>
    %609 = vector.broadcast %573 : vector<128x1xi32> to vector<128x128xi32>
    %610 = arith.cmpi eq, %609, %608 : vector<128x128xi32>
    %c-1_i32_153 = arith.constant -1 : i32
    %611 = vector.shape_cast %571 : vector<128x1xi32> to vector<128x1xi32>
    %612 = vector.broadcast %611 : vector<128x1xi32> to vector<128x128xi32>
    %613 = vector.broadcast %c-1_i32_153 : i32 to vector<128x128xi32>
    %614 = arith.select %610, %612, %613 : vector<128x128xi1>, vector<128x128xi32>
    %cst_154 = arith.constant dense<-2147483648> : vector<128xi32>
    %615 = vector.multi_reduction <maxsi>, %614, %cst_154 [0] : vector<128x128xi32> to vector<128xi32>
    %616 = vector.shape_cast %615 : vector<128xi32> to vector<1x128xi32>
    %617 = arith.maxsi %525, %616 : vector<1x128xi32>
    %c512_i32_155 = arith.constant 512 : i32
    %618 = vector.broadcast %c512_i32_155 : i32 to vector<128x128xi32>
    %619 = arith.addi %8, %618 : vector<128x128xi32>
    %620 = vector.broadcast %573 : vector<128x1xi32> to vector<128x128xi32>
    %621 = arith.cmpi eq, %620, %619 : vector<128x128xi32>
    %c-1_i32_156 = arith.constant -1 : i32
    %622 = vector.shape_cast %571 : vector<128x1xi32> to vector<128x1xi32>
    %623 = vector.broadcast %622 : vector<128x1xi32> to vector<128x128xi32>
    %624 = vector.broadcast %c-1_i32_156 : i32 to vector<128x128xi32>
    %625 = arith.select %621, %623, %624 : vector<128x128xi1>, vector<128x128xi32>
    %cst_157 = arith.constant dense<-2147483648> : vector<128xi32>
    %626 = vector.multi_reduction <maxsi>, %625, %cst_157 [0] : vector<128x128xi32> to vector<128xi32>
    %627 = vector.shape_cast %626 : vector<128xi32> to vector<1x128xi32>
    %628 = arith.maxsi %536, %627 : vector<1x128xi32>
    %c640_i32_158 = arith.constant 640 : i32
    %629 = vector.broadcast %c640_i32_158 : i32 to vector<128x128xi32>
    %630 = arith.addi %8, %629 : vector<128x128xi32>
    %631 = vector.broadcast %573 : vector<128x1xi32> to vector<128x128xi32>
    %632 = arith.cmpi eq, %631, %630 : vector<128x128xi32>
    %c-1_i32_159 = arith.constant -1 : i32
    %633 = vector.shape_cast %571 : vector<128x1xi32> to vector<128x1xi32>
    %634 = vector.broadcast %633 : vector<128x1xi32> to vector<128x128xi32>
    %635 = vector.broadcast %c-1_i32_159 : i32 to vector<128x128xi32>
    %636 = arith.select %632, %634, %635 : vector<128x128xi1>, vector<128x128xi32>
    %cst_160 = arith.constant dense<-2147483648> : vector<128xi32>
    %637 = vector.multi_reduction <maxsi>, %636, %cst_160 [0] : vector<128x128xi32> to vector<128xi32>
    %638 = vector.shape_cast %637 : vector<128xi32> to vector<1x128xi32>
    %639 = arith.maxsi %547, %638 : vector<1x128xi32>
    %c768_i32_161 = arith.constant 768 : i32
    %640 = vector.broadcast %c768_i32_161 : i32 to vector<128x128xi32>
    %641 = arith.addi %8, %640 : vector<128x128xi32>
    %642 = vector.broadcast %573 : vector<128x1xi32> to vector<128x128xi32>
    %643 = arith.cmpi eq, %642, %641 : vector<128x128xi32>
    %c-1_i32_162 = arith.constant -1 : i32
    %644 = vector.shape_cast %571 : vector<128x1xi32> to vector<128x1xi32>
    %645 = vector.broadcast %644 : vector<128x1xi32> to vector<128x128xi32>
    %646 = vector.broadcast %c-1_i32_162 : i32 to vector<128x128xi32>
    %647 = arith.select %643, %645, %646 : vector<128x128xi1>, vector<128x128xi32>
    %cst_163 = arith.constant dense<-2147483648> : vector<128xi32>
    %648 = vector.multi_reduction <maxsi>, %647, %cst_163 [0] : vector<128x128xi32> to vector<128xi32>
    %649 = vector.shape_cast %648 : vector<128xi32> to vector<1x128xi32>
    %650 = arith.maxsi %558, %649 : vector<1x128xi32>
    %c896_i32_164 = arith.constant 896 : i32
    %651 = vector.broadcast %c896_i32_164 : i32 to vector<128x128xi32>
    %652 = arith.addi %8, %651 : vector<128x128xi32>
    %653 = vector.broadcast %573 : vector<128x1xi32> to vector<128x128xi32>
    %654 = arith.cmpi eq, %653, %652 : vector<128x128xi32>
    %c-1_i32_165 = arith.constant -1 : i32
    %655 = vector.shape_cast %571 : vector<128x1xi32> to vector<128x1xi32>
    %656 = vector.broadcast %655 : vector<128x1xi32> to vector<128x128xi32>
    %657 = vector.broadcast %c-1_i32_165 : i32 to vector<128x128xi32>
    %658 = arith.select %654, %656, %657 : vector<128x128xi1>, vector<128x128xi32>
    %cst_166 = arith.constant dense<-2147483648> : vector<128xi32>
    %659 = vector.multi_reduction <maxsi>, %658, %cst_166 [0] : vector<128x128xi32> to vector<128xi32>
    %660 = vector.shape_cast %659 : vector<128xi32> to vector<1x128xi32>
    %661 = arith.maxsi %569, %660 : vector<1x128xi32>
    %662 = vector.extract_strided_slice %4 {offsets = [0, 7], sizes = [128, 1], strides = [1, 1]} : vector<128x8xi32> to vector<128x1xi32>
    %663 = vector.extract_strided_slice %6 {offsets = [0, 7], sizes = [128, 1], strides = [1, 1]} : vector<128x8xi32> to vector<128x1xi32>
    %664 = vector.broadcast %7 : i32 to vector<128x1xi32>
    %665 = arith.subi %662, %664 : vector<128x1xi32>
    %c0_i32_167 = arith.constant 0 : i32
    %666 = vector.broadcast %c0_i32_167 : i32 to vector<128x128xi32>
    %667 = arith.addi %8, %666 : vector<128x128xi32>
    %668 = vector.broadcast %665 : vector<128x1xi32> to vector<128x128xi32>
    %669 = arith.cmpi eq, %668, %667 : vector<128x128xi32>
    %c-1_i32_168 = arith.constant -1 : i32
    %670 = vector.shape_cast %663 : vector<128x1xi32> to vector<128x1xi32>
    %671 = vector.broadcast %670 : vector<128x1xi32> to vector<128x128xi32>
    %672 = vector.broadcast %c-1_i32_168 : i32 to vector<128x128xi32>
    %673 = arith.select %669, %671, %672 : vector<128x128xi1>, vector<128x128xi32>
    %cst_169 = arith.constant dense<-2147483648> : vector<128xi32>
    %674 = vector.multi_reduction <maxsi>, %673, %cst_169 [0] : vector<128x128xi32> to vector<128xi32>
    %675 = vector.shape_cast %674 : vector<128xi32> to vector<1x128xi32>
    %676 = arith.maxsi %584, %675 : vector<1x128xi32>
    %c128_i32_170 = arith.constant 128 : i32
    %677 = vector.broadcast %c128_i32_170 : i32 to vector<128x128xi32>
    %678 = arith.addi %8, %677 : vector<128x128xi32>
    %679 = vector.broadcast %665 : vector<128x1xi32> to vector<128x128xi32>
    %680 = arith.cmpi eq, %679, %678 : vector<128x128xi32>
    %c-1_i32_171 = arith.constant -1 : i32
    %681 = vector.shape_cast %663 : vector<128x1xi32> to vector<128x1xi32>
    %682 = vector.broadcast %681 : vector<128x1xi32> to vector<128x128xi32>
    %683 = vector.broadcast %c-1_i32_171 : i32 to vector<128x128xi32>
    %684 = arith.select %680, %682, %683 : vector<128x128xi1>, vector<128x128xi32>
    %cst_172 = arith.constant dense<-2147483648> : vector<128xi32>
    %685 = vector.multi_reduction <maxsi>, %684, %cst_172 [0] : vector<128x128xi32> to vector<128xi32>
    %686 = vector.shape_cast %685 : vector<128xi32> to vector<1x128xi32>
    %687 = arith.maxsi %595, %686 : vector<1x128xi32>
    %c256_i32_173 = arith.constant 256 : i32
    %688 = vector.broadcast %c256_i32_173 : i32 to vector<128x128xi32>
    %689 = arith.addi %8, %688 : vector<128x128xi32>
    %690 = vector.broadcast %665 : vector<128x1xi32> to vector<128x128xi32>
    %691 = arith.cmpi eq, %690, %689 : vector<128x128xi32>
    %c-1_i32_174 = arith.constant -1 : i32
    %692 = vector.shape_cast %663 : vector<128x1xi32> to vector<128x1xi32>
    %693 = vector.broadcast %692 : vector<128x1xi32> to vector<128x128xi32>
    %694 = vector.broadcast %c-1_i32_174 : i32 to vector<128x128xi32>
    %695 = arith.select %691, %693, %694 : vector<128x128xi1>, vector<128x128xi32>
    %cst_175 = arith.constant dense<-2147483648> : vector<128xi32>
    %696 = vector.multi_reduction <maxsi>, %695, %cst_175 [0] : vector<128x128xi32> to vector<128xi32>
    %697 = vector.shape_cast %696 : vector<128xi32> to vector<1x128xi32>
    %698 = arith.maxsi %606, %697 : vector<1x128xi32>
    %c384_i32_176 = arith.constant 384 : i32
    %699 = vector.broadcast %c384_i32_176 : i32 to vector<128x128xi32>
    %700 = arith.addi %8, %699 : vector<128x128xi32>
    %701 = vector.broadcast %665 : vector<128x1xi32> to vector<128x128xi32>
    %702 = arith.cmpi eq, %701, %700 : vector<128x128xi32>
    %c-1_i32_177 = arith.constant -1 : i32
    %703 = vector.shape_cast %663 : vector<128x1xi32> to vector<128x1xi32>
    %704 = vector.broadcast %703 : vector<128x1xi32> to vector<128x128xi32>
    %705 = vector.broadcast %c-1_i32_177 : i32 to vector<128x128xi32>
    %706 = arith.select %702, %704, %705 : vector<128x128xi1>, vector<128x128xi32>
    %cst_178 = arith.constant dense<-2147483648> : vector<128xi32>
    %707 = vector.multi_reduction <maxsi>, %706, %cst_178 [0] : vector<128x128xi32> to vector<128xi32>
    %708 = vector.shape_cast %707 : vector<128xi32> to vector<1x128xi32>
    %709 = arith.maxsi %617, %708 : vector<1x128xi32>
    %c512_i32_179 = arith.constant 512 : i32
    %710 = vector.broadcast %c512_i32_179 : i32 to vector<128x128xi32>
    %711 = arith.addi %8, %710 : vector<128x128xi32>
    %712 = vector.broadcast %665 : vector<128x1xi32> to vector<128x128xi32>
    %713 = arith.cmpi eq, %712, %711 : vector<128x128xi32>
    %c-1_i32_180 = arith.constant -1 : i32
    %714 = vector.shape_cast %663 : vector<128x1xi32> to vector<128x1xi32>
    %715 = vector.broadcast %714 : vector<128x1xi32> to vector<128x128xi32>
    %716 = vector.broadcast %c-1_i32_180 : i32 to vector<128x128xi32>
    %717 = arith.select %713, %715, %716 : vector<128x128xi1>, vector<128x128xi32>
    %cst_181 = arith.constant dense<-2147483648> : vector<128xi32>
    %718 = vector.multi_reduction <maxsi>, %717, %cst_181 [0] : vector<128x128xi32> to vector<128xi32>
    %719 = vector.shape_cast %718 : vector<128xi32> to vector<1x128xi32>
    %720 = arith.maxsi %628, %719 : vector<1x128xi32>
    %c640_i32_182 = arith.constant 640 : i32
    %721 = vector.broadcast %c640_i32_182 : i32 to vector<128x128xi32>
    %722 = arith.addi %8, %721 : vector<128x128xi32>
    %723 = vector.broadcast %665 : vector<128x1xi32> to vector<128x128xi32>
    %724 = arith.cmpi eq, %723, %722 : vector<128x128xi32>
    %c-1_i32_183 = arith.constant -1 : i32
    %725 = vector.shape_cast %663 : vector<128x1xi32> to vector<128x1xi32>
    %726 = vector.broadcast %725 : vector<128x1xi32> to vector<128x128xi32>
    %727 = vector.broadcast %c-1_i32_183 : i32 to vector<128x128xi32>
    %728 = arith.select %724, %726, %727 : vector<128x128xi1>, vector<128x128xi32>
    %cst_184 = arith.constant dense<-2147483648> : vector<128xi32>
    %729 = vector.multi_reduction <maxsi>, %728, %cst_184 [0] : vector<128x128xi32> to vector<128xi32>
    %730 = vector.shape_cast %729 : vector<128xi32> to vector<1x128xi32>
    %731 = arith.maxsi %639, %730 : vector<1x128xi32>
    %c768_i32_185 = arith.constant 768 : i32
    %732 = vector.broadcast %c768_i32_185 : i32 to vector<128x128xi32>
    %733 = arith.addi %8, %732 : vector<128x128xi32>
    %734 = vector.broadcast %665 : vector<128x1xi32> to vector<128x128xi32>
    %735 = arith.cmpi eq, %734, %733 : vector<128x128xi32>
    %c-1_i32_186 = arith.constant -1 : i32
    %736 = vector.shape_cast %663 : vector<128x1xi32> to vector<128x1xi32>
    %737 = vector.broadcast %736 : vector<128x1xi32> to vector<128x128xi32>
    %738 = vector.broadcast %c-1_i32_186 : i32 to vector<128x128xi32>
    %739 = arith.select %735, %737, %738 : vector<128x128xi1>, vector<128x128xi32>
    %cst_187 = arith.constant dense<-2147483648> : vector<128xi32>
    %740 = vector.multi_reduction <maxsi>, %739, %cst_187 [0] : vector<128x128xi32> to vector<128xi32>
    %741 = vector.shape_cast %740 : vector<128xi32> to vector<1x128xi32>
    %742 = arith.maxsi %650, %741 : vector<1x128xi32>
    %c896_i32_188 = arith.constant 896 : i32
    %743 = vector.broadcast %c896_i32_188 : i32 to vector<128x128xi32>
    %744 = arith.addi %8, %743 : vector<128x128xi32>
    %745 = vector.broadcast %665 : vector<128x1xi32> to vector<128x128xi32>
    %746 = arith.cmpi eq, %745, %744 : vector<128x128xi32>
    %c-1_i32_189 = arith.constant -1 : i32
    %747 = vector.shape_cast %663 : vector<128x1xi32> to vector<128x1xi32>
    %748 = vector.broadcast %747 : vector<128x1xi32> to vector<128x128xi32>
    %749 = vector.broadcast %c-1_i32_189 : i32 to vector<128x128xi32>
    %750 = arith.select %746, %748, %749 : vector<128x128xi1>, vector<128x128xi32>
    %cst_190 = arith.constant dense<-2147483648> : vector<128xi32>
    %751 = vector.multi_reduction <maxsi>, %750, %cst_190 [0] : vector<128x128xi32> to vector<128xi32>
    %752 = vector.shape_cast %751 : vector<128xi32> to vector<1x128xi32>
    %753 = arith.maxsi %661, %752 : vector<1x128xi32>
    %754 = tpu.concatenate %676, %687, %698, %709, %720, %731, %742, %753 in 0 : vector<1x128xi32>, vector<1x128xi32>, vector<1x128xi32>, vector<1x128xi32>, vector<1x128xi32>, vector<1x128xi32>, vector<1x128xi32>, vector<1x128xi32> -> vector<8x128xi32>
    %c0_191 = arith.constant 0 : index
    %c0_192 = arith.constant 0 : index
    %755 = vector.load %arg6[%c0_191, %c0_192] : memref<8x128xi32, #tpu.memory_space<vmem>>, vector<8x128xi32>
    tpu.vector_store %arg6[%c0_191, %c0_192], %754 {strides = array<i32>} : memref<8x128xi32, #tpu.memory_space<vmem>>, vector<8x128xi32>,
    %c0_i32_193 = arith.constant 0 : i32
    %756 = arith.cmpi eq, %arg2, %c0_i32_193 : i32
    %757 = arith.extui %756 : i1 to i32
    %c0_i32_194 = arith.constant 0 : i32
    %758 = arith.cmpi ne, %757, %c0_i32_194 : i32
    scf.if %758 {
      %c0_i32_195 = arith.constant 0 : i32
      %759 = vector.broadcast %c0_i32_195 : i32 to vector<8x128xi32>
      %760 = arith.cmpi sge, %754, %759 : vector<8x128xi32>
      %c255_i32 = arith.constant 255 : i32
      %761 = vector.broadcast %c255_i32 : i32 to vector<8x128xi32>
      %762 = arith.andi %754, %761 : vector<8x128xi32>
      %c255_i32_196 = arith.constant 255 : i32
      %763 = vector.broadcast %c255_i32_196 : i32 to vector<8x128xi32>
      %764 = arith.select %760, %762, %763 : vector<8x128xi1>, vector<8x128xi32>
      %c0_197 = arith.constant 0 : index
      %c0_198 = arith.constant 0 : index
      %c0_199 = arith.constant 0 : index
      %765 = vector.load %arg5[%c0_197, %c0_198, %c0_199] : memref<1x8x128xi32, #tpu.memory_space<vmem>>, vector<1x8x128xi32>
      %766 = vector.shape_cast %765 : vector<1x8x128xi32> to vector<8x128xi32>
      %767 = vector.shape_cast %764 : vector<8x128xi32> to vector<1x8x128xi32>
      tpu.vector_store %arg5[%c0_197, %c0_198, %c0_199], %767 {strides = array<i32>} : memref<1x8x128xi32, #tpu.memory_space<vmem>>, vector<1x8x128xi32>,
    } else {
    }
    return
  }
  func.func @transform_0(%arg0: i32, %arg1: i32, %arg2: i32) -> (i32, i32, i32) {
    %c0_i32 = arith.constant 0 : i32
    %c0_i32_0 = arith.constant 0 : i32
    return %arg0, %arg2, %c0_i32 : i32, i32, i32
  }
  func.func @transform_1(%arg0: i32, %arg1: i32, %arg2: i32) -> (i32, i32, i32) {
    %c0_i32 = arith.constant 0 : i32
    %c0_i32_0 = arith.constant 0 : i32
    return %arg0, %arg2, %c0_i32 : i32, i32, i32
  }
  func.func @transform_2(%arg0: i32, %arg1: i32, %arg2: i32) -> (i32, i32, i32) {
    %c0_i32 = arith.constant 0 : i32
    %c0_i32_0 = arith.constant 0 : i32
    return %arg0, %arg1, %c0_i32 : i32, i32, i32
  }
}

</mosaic_0001>

<llo_original>
// kernel: tpu_custom_call.1
$region0: #{tpu_custom_call.1}
  #allocation0 [shape = 'u32[]', space=smem, size = 0x4, offset = 0x4, fixed_abs, tag = 'smem constant byte address 0x4 - core index']
  #allocation1 [shape = 'u32[144,128]{1,0:T(1,128)}', space=vmem, size = 0x12000, scoped, tag = 'internal scratch']
  #allocation2 [shape = 's32[8,128]{1,0:T(8,128)}', space=vmem, size = 0x1000, scoped, tag = 'scratch operand']
  %s0 = inlined_call_operand.vmem [shape: s32[2,128,8], index: 0, kind: input, shape index: {}]
  %s1 = inlined_call_operand.vmem [shape: s32[2,128,8], index: 1, kind: input, shape index: {}]
  %s2 = inlined_call_operand.hbm [shape: s32[2,8,128], index: 2, kind: output, shape index: {}]
  %s3 = sld [smem:[#allocation0]]
  $region49: #{tpu_custom_call.1} parent=0
    _
  %s5 = ssub.s32 1, %s3
  %s6 = scalar_select 0, %s5, %s3
  $region1: #{tpu_custom_call.1} parent=0
    #allocation3 [shape = 'u8[8192]{0}', space=vmem, size = 0x2000, scoped, tag = 'output window, operand 0']
    #allocation4 [shape = 's32[2]{0}', space=sflag, size = 0x8, scoped, tag = 'scoped memory for tpu_custom_call.1']
    %7 = vsyncpa [#allocation4], 0
    %s8 = scalar_lea.sflag [#allocation4], 1
    %9 = vsyncpa %s8, 0
    loop: start=0, step=1, limit=4
    $region2: #{tpu_custom_call.1} parent=1 // loop_pre_header
      _
    $region3: #{tpu_custom_call.1} parent=1 // loop_header
      %s11 = sphi 0, %s15
      %p12 = scmp.ge.s32.totalorder %s11, 4
      %s18 = sphi 0, %s37
      %s19 = sphi 0, %s33
      %s20 = sphi 0, %s29
      %s21 = sphi 0, %s18
      %s22 = sphi 0, %s19
      %s23 = sphi 0, %s20
      %s24 = sphi 0, %s21
      %s25 = sphi 0, %s22
      %s26 = sphi 0, %s23
      %s42 = sphi 0, %s44
      %s45 = sphi 0, %s42
      %s46 = sphi 0, %s45
      %s62 = sphi 0, %s46
      %s70 = sphi 0, %s72
      %s73 = sphi 0, %s70
      %s74 = sphi 0, %s73
      %s90 = sphi 0, %s74
      %s98 = sphi 0, %s100
      %s101 = sphi 0, %s98
      %s102 = sphi 0, %s101
      %s118 = sphi 0, %s102
    $region4: #{tpu_custom_call.1} parent=1 // loop_header_branch
      %14 = sbr.rel (%p12) target = $region8
    $region5: #{tpu_custom_call.1} parent=1 // loop_body
      %s16 = ssub.s32 %s11, 1
      %s17 = ssub.s32 %s11, 2
      %s27 = sadd.s32 1, %s20
      %p28 = scmp.ge.s32.totalorder %s27, 1
      %s29 = scalar_select %p28, 0, %s27
      %s30 = sadd.s32 1, %s19
      %s31 = scalar_select %p28, %s30, %s19
      %p32 = scmp.ge.s32.totalorder %s31, 1
      %s33 = scalar_select %p32, 0, %s31
      %s34 = sadd.s32 1, %s18
      %s35 = scalar_select %p32, %s34, %s18
      %p36 = scmp.ge.s32.totalorder %s35, 2
      %s37 = scalar_select %p36, 0, %s35
      %s38 = ssub.s32 %s18, %s37
      %s39 = ssub.s32 %s20, %s29
      %s40 = sor.u32 %s38, %s39
      %p41 = scmp.eq.s32.totalorder %s40, 0
      %s43 = sadd.s32 %s42, 1
      %s44 = scalar_select %p41, %s42, %s43
      %p47 = pneg %p41
      %p48 = scmp.eq.s32.totalorder %s11, 1
      %p49 = por %p47, %p48
      %p50 = scmp.ne.s32.totalorder %s42, %s45
      %p51 = scmp.eq.s32.totalorder %s11, 0
      %p52 = por %p50, %p51
      %p53 = scmp.ne.s32.totalorder %s42, %s45
      %p54 = scmp.eq.s32.totalorder %s16, 1
      %p55 = por %p53, %p54
      %p56 = scmp.ne.s32.totalorder %s45, %s46
      %p57 = scmp.eq.s32.totalorder %s16, 0
      %p58 = por %p56, %p57
      %p59 = scmp.ne.s32.totalorder %s45, %s46
      %p60 = scmp.eq.s32.totalorder %s17, 1
      %p61 = por %p59, %p60
      %p63 = scmp.ne.s32.totalorder %s46, %s62
      %p64 = scmp.eq.s32.totalorder %s17, 0
      %p65 = por %p63, %p64
      %s66 = ssub.s32 %s18, %s37
      %s67 = ssub.s32 %s20, %s29
      %s68 = sor.u32 %s66, %s67
      %p69 = scmp.eq.s32.totalorder %s68, 0
      %s71 = sadd.s32 %s70, 1
      %s72 = scalar_select %p69, %s70, %s71
      %p75 = pneg %p69
      %p76 = scmp.eq.s32.totalorder %s11, 1
      %p77 = por %p75, %p76
      %p78 = scmp.ne.s32.totalorder %s70, %s73
      %p79 = scmp.eq.s32.totalorder %s11, 0
      %p80 = por %p78, %p79
      %p81 = scmp.ne.s32.totalorder %s70, %s73
      %p82 = scmp.eq.s32.totalorder %s16, 1
      %p83 = por %p81, %p82
      %p84 = scmp.ne.s32.totalorder %s73, %s74
      %p85 = scmp.eq.s32.totalorder %s16, 0
      %p86 = por %p84, %p85
      %p87 = scmp.ne.s32.totalorder %s73, %s74
      %p88 = scmp.eq.s32.totalorder %s17, 1
      %p89 = por %p87, %p88
      %p91 = scmp.ne.s32.totalorder %s74, %s90
      %p92 = scmp.eq.s32.totalorder %s17, 0
      %p93 = por %p91, %p92
      %s94 = ssub.s32 %s18, %s37
      %s95 = ssub.s32 %s19, %s33
      %s96 = sor.u32 %s94, %s95
      %p97 = scmp.eq.s32.totalorder %s96, 0
      %s99 = sadd.s32 %s98, 1
      %s100 = scalar_select %p97, %s98, %s99
      %p103 = pneg %p97
      %p104 = scmp.eq.s32.totalorder %s11, 1
      %p105 = por %p103, %p104
      %p106 = scmp.ne.s32.totalorder %s98, %s101
      %p107 = scmp.eq.s32.totalorder %s11, 0
      %p108 = por %p106, %p107
      %p109 = scmp.ne.s32.totalorder %s98, %s101
      %p110 = scmp.eq.s32.totalorder %s16, 1
      %p111 = por %p109, %p110
      %p112 = scmp.ne.s32.totalorder %s101, %s102
      %p113 = scmp.eq.s32.totalorder %s16, 0
      %p114 = por %p112, %p113
      %p115 = scmp.ne.s32.totalorder %s101, %s102
      %p116 = scmp.eq.s32.totalorder %s17, 1
      %p117 = por %p115, %p116
      %p119 = scmp.ne.s32.totalorder %s102, %s118
      %p120 = scmp.eq.s32.totalorder %s17, 0
      %p121 = por %p119, %p120
      %p122 = scmp.le.s32.totalorder 1, %s11
      %p123 = scmp.lt.s32.totalorder %s11, 3
      %p124 = pnand %p122, %p123
      %p125 = pneg %p124
      // Predicated region
      $region9: #{tpu_custom_call.1} parent=5 // pred_check
        _
      $region10: #{tpu_custom_call.1} parent=5 // pred_check_branch
        %127 = sbr.rel (%p124) target = $region12
      $region11: #{tpu_custom_call.1} parent=5 // pred_region
        %s128 = ssub.s32 %s11, 1
      $region12: #{tpu_custom_call.1} parent=5 // pred_fallthru
        _
      %p129 = scmp.lt.s32.totalorder %s11, 2
      // Predicated region
      $region13: #{tpu_custom_call.1} parent=5 // pred_check
        %p130 = pneg %p129
      $region14: #{tpu_custom_call.1} parent=5 // pred_check_branch
        %132 = sbr.rel (%p130) target = $region16
      $region15: #{tpu_custom_call.1} parent=5 // pred_region
        // Predicated region
        $region17: #{tpu_custom_call.1} parent=15 // pred_check
          %p133 = pneg %p52
        $region18: #{tpu_custom_call.1} parent=15 // pred_check_branch
          %135 = sbr.rel (%p133) target = $region20
        $region19: #{tpu_custom_call.1} parent=15 // pred_region
          %s136 = smul.u32 16, %s20
          %p137 = scmp.lt.s32.totalorder %s18, 1
          %s138 = scalar_select %p137, %s18, 1
          %p139 = scmp.lt.s32.totalorder %s136, 15
          %s140 = scalar_select %p139, %s136, 15
          %s141 = smul.addr %s138, 16
          %s142 = sadd.s32 %s140, %s141
          %s143 = smul.addr %s142, 8
          %s144 = scalar_lea.vmem %s0, %s143
          %s145 = smul.u32 16, %s20
        $region20: #{tpu_custom_call.1} parent=15 // pred_fallthru
          _
        // Predicated region
        $region21: #{tpu_custom_call.1} parent=15 // pred_check
          %p146 = pneg %p80
        $region22: #{tpu_custom_call.1} parent=15 // pred_check_branch
          %148 = sbr.rel (%p146) target = $region24
        $region23: #{tpu_custom_call.1} parent=15 // pred_region
          %s149 = smul.u32 16, %s20
          %p150 = scmp.lt.s32.totalorder %s18, 1
          %s151 = scalar_select %p150, %s18, 1
          %p152 = scmp.lt.s32.totalorder %s149, 15
          %s153 = scalar_select %p152, %s149, 15
          %s154 = smul.addr %s151, 16
          %s155 = sadd.s32 %s153, %s154
          %s156 = smul.addr %s155, 8
          %s157 = scalar_lea.vmem %s1, %s156
          %s158 = smul.u32 16, %s20
        $region24: #{tpu_custom_call.1} parent=15 // pred_fallthru
          _
      $region16: #{tpu_custom_call.1} parent=5 // pred_fallthru
        _
      %p159 = scmp.le.s32.totalorder 1, %s11
      %p160 = scmp.lt.s32.totalorder %s11, 3
      %p161 = pnand %p159, %p160
      %p162 = pneg %p161
      // Predicated region
      $region25: #{tpu_custom_call.1} parent=5 // pred_check
        _
      $region26: #{tpu_custom_call.1} parent=5 // pred_check_branch
        %164 = sbr.rel (%p161) target = $region28
      $region27: #{tpu_custom_call.1} parent=5 // pred_region
        %s165 = ssub.s32 %s11, 1
        %s166 = smul.u32 16, %s23
        %p167 = scmp.lt.s32.totalorder %s21, 1
        %s168 = scalar_select %p167, %s21, 1
        %p169 = scmp.lt.s32.totalorder %s166, 15
        %s170 = scalar_select %p169, %s166, 15
        %s171 = smul.addr %s168, 16
        %s172 = sadd.s32 %s170, %s171
        %s173 = smul.addr %s172, 8
        %s174 = scalar_lea.vmem %s0, %s173
        %p175 = pneg %p58
        %p176 = pneg %p55
        %s177 = smul.u32 16, %s23
        %p178 = scmp.lt.s32.totalorder %s21, 1
        %s179 = scalar_select %p178, %s21, 1
        %p180 = scmp.lt.s32.totalorder %s177, 15
        %s181 = scalar_select %p180, %s177, 15
        %s182 = smul.addr %s179, 16
        %s183 = sadd.s32 %s181, %s182
        %s184 = smul.addr %s183, 8
        %s185 = scalar_lea.vmem %s1, %s184
        %p186 = pneg %p86
        %p187 = pneg %p83
        %p188 = pneg %p114
        %p189 = pneg %p111
        %s190 = sand.u32 %s101, 1
        %s191 = scalar_lea.sflag [#allocation4], %s190
        %s192 = sand.u32 %s101, 1
        %s193 = smul.addr %s192, 8
        %s194 = scalar_lea.vmem [#allocation3], %s193
        %s195 = smul.u32 16, %s23
        %p196 = scmp.lt.s32.totalorder %s21, 1
        %s197 = scalar_select %p196, %s21, 1
        %p198 = scmp.lt.s32.totalorder %s195, 15
        %s199 = scalar_select %p198, %s195, 15
        %s200 = smul.addr %s197, 16
        %s201 = sadd.s32 %s199, %s200
        %s202 = smul.addr %s201, 8
        %s203 = scalar_lea.vmem %s0, %s202
        %s204 = smul.u32 16, %s23
        %s205 = smul.u32 16, %s23
        %p206 = scmp.lt.s32.totalorder %s21, 1
        %s207 = scalar_select %p206, %s21, 1
        %p208 = scmp.lt.s32.totalorder %s205, 15
        %s209 = scalar_select %p208, %s205, 15
        %s210 = smul.addr %s207, 16
        %s211 = sadd.s32 %s209, %s210
        %s212 = smul.addr %s211, 8
        %s213 = scalar_lea.vmem %s1, %s212
        %s214 = smul.u32 16, %s23
        %p215 = scmp.eq.s32.totalorder %s23, 0
        // Predicated region
        $region29: #{tpu_custom_call.1} parent=27 // pred_check
          %p216 = pneg %p215
        $region30: #{tpu_custom_call.1} parent=27 // pred_check_branch
          %218 = sbr.rel (%p216) target = $region32
        $region31: #{tpu_custom_call.1} parent=27 // pred_region
          %219 = vst [vmem:[#allocation2] sm:$0xff] 4294967295
        $region32: #{tpu_custom_call.1} parent=27 // pred_fallthru
          _
        %v220 = vld [vmem:[%s203] sm:$0xff]
        %v221 = vld [vmem:[%s203 + $0x8] sm:$0xff]
        %v222 = vld [vmem:[%s203 + $0x10] sm:$0xff]
        %v223 = vld [vmem:[%s203 + $0x18] sm:$0xff]
        %v224 = vld [vmem:[%s203 + $0x20] sm:$0xff]
        %v225 = vld [vmem:[%s203 + $0x28] sm:$0xff]
        %v226 = vld [vmem:[%s203 + $0x30] sm:$0xff]
        %v227 = vld [vmem:[%s203 + $0x38] sm:$0xff]
        %v228 = vld [vmem:[%s203 + $0x40] sm:$0xff]
        %v229 = vld [vmem:[%s203 + $0x48] sm:$0xff]
        %v230 = vld [vmem:[%s203 + $0x50] sm:$0xff]
        %v231 = vld [vmem:[%s203 + $0x58] sm:$0xff]
        %v232 = vld [vmem:[%s203 + $0x60] sm:$0xff]
        %v233 = vld [vmem:[%s203 + $0x68] sm:$0xff]
        %v234 = vld [vmem:[%s203 + $0x70] sm:$0xff]
        %v235 = vld [vmem:[%s203 + $0x78] sm:$0xff]
        %v236 = vld [vmem:[%s213] sm:$0xff]
        %v237 = vld [vmem:[%s213 + $0x8] sm:$0xff]
        %v238 = vld [vmem:[%s213 + $0x10] sm:$0xff]
        %v239 = vld [vmem:[%s213 + $0x18] sm:$0xff]
        %v240 = vld [vmem:[%s213 + $0x20] sm:$0xff]
        %v241 = vld [vmem:[%s213 + $0x28] sm:$0xff]
        %v242 = vld [vmem:[%s213 + $0x30] sm:$0xff]
        %v243 = vld [vmem:[%s213 + $0x38] sm:$0xff]
        %v244 = vld [vmem:[%s213 + $0x40] sm:$0xff]
        %v245 = vld [vmem:[%s213 + $0x48] sm:$0xff]
        %v246 = vld [vmem:[%s213 + $0x50] sm:$0xff]
        %v247 = vld [vmem:[%s213 + $0x58] sm:$0xff]
        %v248 = vld [vmem:[%s213 + $0x60] sm:$0xff]
        %v249 = vld [vmem:[%s213 + $0x68] sm:$0xff]
        %v250 = vld [vmem:[%s213 + $0x70] sm:$0xff]
        %v251 = vld [vmem:[%s213 + $0x78] sm:$0xff]
        %s252 = smul.u32 %s22, 1024
        %v253 = vlaneseq
        %v254 = vand.u32 %v253, 127
        %v255 = vld [vmem:[#allocation2] sm:$0xff]
        %v256 = vstv %s252
        %v257 = vsub.s32 %v220, %v256
        %v258 = vsub.s32 %v221, %v256
        %v259 = vsub.s32 %v222, %v256
        %v260 = vsub.s32 %v223, %v256
        %v261 = vsub.s32 %v224, %v256
        %v262 = vsub.s32 %v225, %v256
        %v263 = vsub.s32 %v226, %v256
        %v264 = vsub.s32 %v227, %v256
        %v265 = vsub.s32 %v228, %v256
        %v266 = vsub.s32 %v229, %v256
        %v267 = vsub.s32 %v230, %v256
        %v268 = vsub.s32 %v231, %v256
        %v269 = vsub.s32 %v232, %v256
        %v270 = vsub.s32 %v233, %v256
        %v271 = vsub.s32 %v234, %v256
        %v272 = vsub.s32 %v235, %v256
        %273 = vset.pattern.permute.xlu0 0
        %274 = vperm.xlu0 %273, %v257
        %v275 = vpop.permute.xlu0 %274
        %276 = vset.pattern.permute.xlu0 0
        %277 = vperm.xlu0 %276, %v258
        %v278 = vpop.permute.xlu0 %277
        %279 = vset.pattern.permute.xlu0 0
        %280 = vperm.xlu0 %279, %v259
        %v281 = vpop.permute.xlu0 %280
        %282 = vset.pattern.permute.xlu0 0
        %283 = vperm.xlu0 %282, %v260
        %v284 = vpop.permute.xlu0 %283
        %285 = vset.pattern.permute.xlu0 0
        %286 = vperm.xlu0 %285, %v261
        %v287 = vpop.permute.xlu0 %286
        %288 = vset.pattern.permute.xlu0 0
        %289 = vperm.xlu0 %288, %v262
        %v290 = vpop.permute.xlu0 %289
        %291 = vset.pattern.permute.xlu0 0
        %292 = vperm.xlu0 %291, %v263
        %v293 = vpop.permute.xlu0 %292
        %294 = vset.pattern.permute.xlu0 0
        %295 = vperm.xlu0 %294, %v264
        %v296 = vpop.permute.xlu0 %295
        %297 = vset.pattern.permute.xlu0 0
        %298 = vperm.xlu0 %297, %v265
        %v299 = vpop.permute.xlu0 %298
        %300 = vset.pattern.permute.xlu0 0
        %301 = vperm.xlu0 %300, %v266
        %v302 = vpop.permute.xlu0 %301
        %303 = vset.pattern.permute.xlu0 0
        %304 = vperm.xlu0 %303, %v267
        %v305 = vpop.permute.xlu0 %304
        %306 = vset.pattern.permute.xlu0 0
        %307 = vperm.xlu0 %306, %v268
        %v308 = vpop.permute.xlu0 %307
        %309 = vset.pattern.permute.xlu0 0
        %310 = vperm.xlu0 %309, %v269
        %v311 = vpop.permute.xlu0 %310
        %312 = vset.pattern.permute.xlu0 0
        %313 = vperm.xlu0 %312, %v270
        %v314 = vpop.permute.xlu0 %313
        %315 = vset.pattern.permute.xlu0 0
        %316 = vperm.xlu0 %315, %v271
        %v317 = vpop.permute.xlu0 %316
        %318 = vset.pattern.permute.xlu0 0
        %319 = vperm.xlu0 %318, %v272
        %v320 = vpop.permute.xlu0 %319
        %vm321 = vcmp.eq.s32.totalorder %v275, %v254
        %vm322 = vcmp.eq.s32.totalorder %v278, %v254
        %vm323 = vcmp.eq.s32.totalorder %v281, %v254
        %vm324 = vcmp.eq.s32.totalorder %v284, %v254
        %vm325 = vcmp.eq.s32.totalorder %v287, %v254
        %vm326 = vcmp.eq.s32.totalorder %v290, %v254
        %vm327 = vcmp.eq.s32.totalorder %v293, %v254
        %vm328 = vcmp.eq.s32.totalorder %v296, %v254
        %vm329 = vcmp.eq.s32.totalorder %v299, %v254
        %vm330 = vcmp.eq.s32.totalorder %v302, %v254
        %vm331 = vcmp.eq.s32.totalorder %v305, %v254
        %vm332 = vcmp.eq.s32.totalorder %v308, %v254
        %vm333 = vcmp.eq.s32.totalorder %v311, %v254
        %vm334 = vcmp.eq.s32.totalorder %v314, %v254
        %vm335 = vcmp.eq.s32.totalorder %v317, %v254
        %vm336 = vcmp.eq.s32.totalorder %v320, %v254
        %337 = vset.pattern.permute.xlu0 0
        %338 = vperm.xlu0 %337, %v236
        %v339 = vpop.permute.xlu0 %338
        %340 = vset.pattern.permute.xlu0 0
        %341 = vperm.xlu0 %340, %v237
        %v342 = vpop.permute.xlu0 %341
        %343 = vset.pattern.permute.xlu0 0
        %344 = vperm.xlu0 %343, %v238
        %v345 = vpop.permute.xlu0 %344
        %346 = vset.pattern.permute.xlu0 0
        %347 = vperm.xlu0 %346, %v239
        %v348 = vpop.permute.xlu0 %347
        %349 = vset.pattern.permute.xlu0 0
        %350 = vperm.xlu0 %349, %v240
        %v351 = vpop.permute.xlu0 %350
        %352 = vset.pattern.permute.xlu0 0
        %353 = vperm.xlu0 %352, %v241
        %v354 = vpop.permute.xlu0 %353
        %355 = vset.pattern.permute.xlu0 0
        %356 = vperm.xlu0 %355, %v242
        %v357 = vpop.permute.xlu0 %356
        %358 = vset.pattern.permute.xlu0 0
        %359 = vperm.xlu0 %358, %v243
        %v360 = vpop.permute.xlu0 %359
        %361 = vset.pattern.permute.xlu0 0
        %362 = vperm.xlu0 %361, %v244
        %v363 = vpop.permute.xlu0 %362
        %364 = vset.pattern.permute.xlu0 0
        %365 = vperm.xlu0 %364, %v245
        %v366 = vpop.permute.xlu0 %365
        %367 = vset.pattern.permute.xlu0 0
        %368 = vperm.xlu0 %367, %v246
        %v369 = vpop.permute.xlu0 %368
        %370 = vset.pattern.permute.xlu0 0
        %371 = vperm.xlu0 %370, %v247
        %v372 = vpop.permute.xlu0 %371
        %373 = vset.pattern.permute.xlu0 0
        %374 = vperm.xlu0 %373, %v248
        %v375 = vpop.permute.xlu0 %374
        %376 = vset.pattern.permute.xlu0 0
        %377 = vperm.xlu0 %376, %v249
        %v378 = vpop.permute.xlu0 %377
        %379 = vset.pattern.permute.xlu0 0
        %380 = vperm.xlu0 %379, %v250
        %v381 = vpop.permute.xlu0 %380
        %382 = vset.pattern.permute.xlu0 0
        %383 = vperm.xlu0 %382, %v251
        %v384 = vpop.permute.xlu0 %383
        %v385 = vsel %vm321, %v339, 4294967295
        %v386 = vsel %vm322, %v342, 4294967295
        %v387 = vsel %vm323, %v345, 4294967295
        %v388 = vsel %vm324, %v348, 4294967295
        %v389 = vsel %vm325, %v351, 4294967295
        %v390 = vsel %vm326, %v354, 4294967295
        %v391 = vsel %vm327, %v357, 4294967295
        %v392 = vsel %vm328, %v360, 4294967295
        %v393 = vsel %vm329, %v363, 4294967295
        %v394 = vsel %vm330, %v366, 4294967295
        %v395 = vsel %vm331, %v369, 4294967295
        %v396 = vsel %vm332, %v372, 4294967295
        %v397 = vsel %vm333, %v375, 4294967295
        %v398 = vsel %vm334, %v378, 4294967295
        %v399 = vsel %vm335, %v381, 4294967295
        %v400 = vsel %vm336, %v384, 4294967295
        %vm401 = vcmp.gt.s32.totalorder %v385, %v389
        %v402 = vsel %vm401, %v385, %v389
        %vm403 = vcmp.gt.s32.totalorder %v386, %v390
        %v404 = vsel %vm403, %v386, %v390
        %vm405 = vcmp.gt.s32.totalorder %v387, %v391
        %v406 = vsel %vm405, %v387, %v391
        %vm407 = vcmp.gt.s32.totalorder %v388, %v392
        %v408 = vsel %vm407, %v388, %v392
        %vm409 = vcmp.gt.s32.totalorder %v402, %v393
        %v410 = vsel %vm409, %v402, %v393
        %vm411 = vcmp.gt.s32.totalorder %v404, %v394
        %v412 = vsel %vm411, %v404, %v394
        %vm413 = vcmp.gt.s32.totalorder %v406, %v395
        %v414 = vsel %vm413, %v406, %v395
        %vm415 = vcmp.gt.s32.totalorder %v408, %v396
        %v416 = vsel %vm415, %v408, %v396
        %vm417 = vcmp.gt.s32.totalorder %v410, %v397
        %v418 = vsel %vm417, %v410, %v397
        %vm419 = vcmp.gt.s32.totalorder %v412, %v398
        %v420 = vsel %vm419, %v412, %v398
        %vm421 = vcmp.gt.s32.totalorder %v414, %v399
        %v422 = vsel %vm421, %v414, %v399
        %vm423 = vcmp.gt.s32.totalorder %v416, %v400
        %v424 = vsel %vm423, %v416, %v400
        %vm425 = vcmp.gt.s32.totalorder %v418, %v420
        %v426 = vsel %vm425, %v418, %v420
        %vm427 = vcmp.gt.s32.totalorder %v422, %v424
        %v428 = vsel %vm427, %v422, %v424
        %vm429 = vcmp.gt.s32.totalorder %v426, %v428
        %v430 = vsel %vm429, %v426, %v428
        %v431 = vrot.slane %v430, 4
        %vm432 = vcmp.gt.s32.totalorder %v430, %v431
        %v433 = vsel %vm432, %v430, %v431
        %v434 = vrot.slane %v433, 2
        %vm435 = vcmp.gt.s32.totalorder %v433, %v434
        %v436 = vsel %vm435, %v433, %v434
        %v437 = vrot.slane %v436, 1
        %vm438 = vcmp.gt.s32.totalorder %v436, %v437
        %v439 = vsel %vm438, %v436, %v437
        %vm440 = vcmp.gt.s32.totalorder %v255, %v439
        %v441 = vsel %vm440, %v255, %v439
        %v442 = vadd.s32 %v254, 128
        %vm443 = vcmp.eq.s32.totalorder %v275, %v442
        %vm444 = vcmp.eq.s32.totalorder %v278, %v442
        %vm445 = vcmp.eq.s32.totalorder %v281, %v442
        %vm446 = vcmp.eq.s32.totalorder %v284, %v442
        %vm447 = vcmp.eq.s32.totalorder %v287, %v442
        %vm448 = vcmp.eq.s32.totalorder %v290, %v442
        %vm449 = vcmp.eq.s32.totalorder %v293, %v442
        %vm450 = vcmp.eq.s32.totalorder %v296, %v442
        %vm451 = vcmp.eq.s32.totalorder %v299, %v442
        %vm452 = vcmp.eq.s32.totalorder %v302, %v442
        %vm453 = vcmp.eq.s32.totalorder %v305, %v442
        %vm454 = vcmp.eq.s32.totalorder %v308, %v442
        %vm455 = vcmp.eq.s32.totalorder %v311, %v442
        %vm456 = vcmp.eq.s32.totalorder %v314, %v442
        %vm457 = vcmp.eq.s32.totalorder %v317, %v442
        %vm458 = vcmp.eq.s32.totalorder %v320, %v442
        %v459 = vsel %vm443, %v339, 4294967295
        %v460 = vsel %vm444, %v342, 4294967295
        %v461 = vsel %vm445, %v345, 4294967295
        %v462 = vsel %vm446, %v348, 4294967295
        %v463 = vsel %vm447, %v351, 4294967295
        %v464 = vsel %vm448, %v354, 4294967295
        %v465 = vsel %vm449, %v357, 4294967295
        %v466 = vsel %vm450, %v360, 4294967295
        %v467 = vsel %vm451, %v363, 4294967295
        %v468 = vsel %vm452, %v366, 4294967295
        %v469 = vsel %vm453, %v369, 4294967295
        %v470 = vsel %vm454, %v372, 4294967295
        %v471 = vsel %vm455, %v375, 4294967295
        %v472 = vsel %vm456, %v378, 4294967295
        %v473 = vsel %vm457, %v381, 4294967295
        %v474 = vsel %vm458, %v384, 4294967295
        %vm475 = vcmp.gt.s32.totalorder %v459, %v463
        %v476 = vsel %vm475, %v459, %v463
        %vm477 = vcmp.gt.s32.totalorder %v460, %v464
        %v478 = vsel %vm477, %v460, %v464
        %vm479 = vcmp.gt.s32.totalorder %v461, %v465
        %v480 = vsel %vm479, %v461, %v465
        %vm481 = vcmp.gt.s32.totalorder %v462, %v466
        %v482 = vsel %vm481, %v462, %v466
        %vm483 = vcmp.gt.s32.totalorder %v476, %v467
        %v484 = vsel %vm483, %v476, %v467
        %vm485 = vcmp.gt.s32.totalorder %v478, %v468
        %v486 = vsel %vm485, %v478, %v468
        %vm487 = vcmp.gt.s32.totalorder %v480, %v469
        %v488 = vsel %vm487, %v480, %v469
        %vm489 = vcmp.gt.s32.totalorder %v482, %v470
        %v490 = vsel %vm489, %v482, %v470
        %vm491 = vcmp.gt.s32.totalorder %v484, %v471
        %v492 = vsel %vm491, %v484, %v471
        %vm493 = vcmp.gt.s32.totalorder %v486, %v472
        %v494 = vsel %vm493, %v486, %v472
        %vm495 = vcmp.gt.s32.totalorder %v488, %v473
        %v496 = vsel %vm495, %v488, %v473
        %vm497 = vcmp.gt.s32.totalorder %v490, %v474
        %v498 = vsel %vm497, %v490, %v474
        %vm499 = vcmp.gt.s32.totalorder %v492, %v494
        %v500 = vsel %vm499, %v492, %v494
        %vm501 = vcmp.gt.s32.totalorder %v496, %v498
        %v502 = vsel %vm501, %v496, %v498
        %vm503 = vcmp.gt.s32.totalorder %v500, %v502
        %v504 = vsel %vm503, %v500, %v502
        %v505 = vrot.slane %v504, 4
        %vm506 = vcmp.gt.s32.totalorder %v504, %v505
        %v507 = vsel %vm506, %v504, %v505
        %v508 = vrot.slane %v507, 2
        %vm509 = vcmp.gt.s32.totalorder %v507, %v508
        %v510 = vsel %vm509, %v507, %v508
        %v511 = vrot.slane %v510, 1
        %vm512 = vcmp.gt.s32.totalorder %v510, %v511
        %v513 = vsel %vm512, %v510, %v511
        %vm514 = vcmp.gt.s32.totalorder %v255, %v513
        %v515 = vsel %vm514, %v255, %v513
        %v516 = vadd.s32 %v254, 256
        %vm517 = vcmp.eq.s32.totalorder %v275, %v516
        %vm518 = vcmp.eq.s32.totalorder %v278, %v516
        %vm519 = vcmp.eq.s32.totalorder %v281, %v516
        %vm520 = vcmp.eq.s32.totalorder %v284, %v516
        %vm521 = vcmp.eq.s32.totalorder %v287, %v516
        %vm522 = vcmp.eq.s32.totalorder %v290, %v516
        %vm523 = vcmp.eq.s32.totalorder %v293, %v516
        %vm524 = vcmp.eq.s32.totalorder %v296, %v516
        %vm525 = vcmp.eq.s32.totalorder %v299, %v516
        %vm526 = vcmp.eq.s32.totalorder %v302, %v516
        %vm527 = vcmp.eq.s32.totalorder %v305, %v516
        %vm528 = vcmp.eq.s32.totalorder %v308, %v516
        %vm529 = vcmp.eq.s32.totalorder %v311, %v516
        %vm530 = vcmp.eq.s32.totalorder %v314, %v516
        %vm531 = vcmp.eq.s32.totalorder %v317, %v516
        %vm532 = vcmp.eq.s32.totalorder %v320, %v516
        %v533 = vsel %vm517, %v339, 4294967295
        %v534 = vsel %vm518, %v342, 4294967295
        %v535 = vsel %vm519, %v345, 4294967295
        %v536 = vsel %vm520, %v348, 4294967295
        %v537 = vsel %vm521, %v351, 4294967295
        %v538 = vsel %vm522, %v354, 4294967295
        %v539 = vsel %vm523, %v357, 4294967295
        %v540 = vsel %vm524, %v360, 4294967295
        %v541 = vsel %vm525, %v363, 4294967295
        %v542 = vsel %vm526, %v366, 4294967295
        %v543 = vsel %vm527, %v369, 4294967295
        %v544 = vsel %vm528, %v372, 4294967295
        %v545 = vsel %vm529, %v375, 4294967295
        %v546 = vsel %vm530, %v378, 4294967295
        %v547 = vsel %vm531, %v381, 4294967295
        %v548 = vsel %vm532, %v384, 4294967295
        %vm549 = vcmp.gt.s32.totalorder %v533, %v537
        %v550 = vsel %vm549, %v533, %v537
        %vm551 = vcmp.gt.s32.totalorder %v534, %v538
        %v552 = vsel %vm551, %v534, %v538
        %vm553 = vcmp.gt.s32.totalorder %v535, %v539
        %v554 = vsel %vm553, %v535, %v539
        %vm555 = vcmp.gt.s32.totalorder %v536, %v540
        %v556 = vsel %vm555, %v536, %v540
        %vm557 = vcmp.gt.s32.totalorder %v550, %v541
        %v558 = vsel %vm557, %v550, %v541
        %vm559 = vcmp.gt.s32.totalorder %v552, %v542
        %v560 = vsel %vm559, %v552, %v542
        %vm561 = vcmp.gt.s32.totalorder %v554, %v543
        %v562 = vsel %vm561, %v554, %v543
        %vm563 = vcmp.gt.s32.totalorder %v556, %v544
        %v564 = vsel %vm563, %v556, %v544
        %vm565 = vcmp.gt.s32.totalorder %v558, %v545
        %v566 = vsel %vm565, %v558, %v545
        %vm567 = vcmp.gt.s32.totalorder %v560, %v546
        %v568 = vsel %vm567, %v560, %v546
        %vm569 = vcmp.gt.s32.totalorder %v562, %v547
        %v570 = vsel %vm569, %v562, %v547
        %vm571 = vcmp.gt.s32.totalorder %v564, %v548
        %v572 = vsel %vm571, %v564, %v548
        %vm573 = vcmp.gt.s32.totalorder %v566, %v568
        %v574 = vsel %vm573, %v566, %v568
        %vm575 = vcmp.gt.s32.totalorder %v570, %v572
        %v576 = vsel %vm575, %v570, %v572
        %vm577 = vcmp.gt.s32.totalorder %v574, %v576
        %v578 = vsel %vm577, %v574, %v576
        %v579 = vrot.slane %v578, 4
        %vm580 = vcmp.gt.s32.totalorder %v578, %v579
        %v581 = vsel %vm580, %v578, %v579
        %v582 = vrot.slane %v581, 2
        %vm583 = vcmp.gt.s32.totalorder %v581, %v582
        %v584 = vsel %vm583, %v581, %v582
        %v585 = vrot.slane %v584, 1
        %vm586 = vcmp.gt.s32.totalorder %v584, %v585
        %v587 = vsel %vm586, %v584, %v585
        %vm588 = vcmp.gt.s32.totalorder %v255, %v587
        %v589 = vsel %vm588, %v255, %v587
        %v590 = vadd.s32 %v254, 384
        %vm591 = vcmp.eq.s32.totalorder %v275, %v590
        %vm592 = vcmp.eq.s32.totalorder %v278, %v590
        %vm593 = vcmp.eq.s32.totalorder %v281, %v590
        %vm594 = vcmp.eq.s32.totalorder %v284, %v590
        %vm595 = vcmp.eq.s32.totalorder %v287, %v590
        %vm596 = vcmp.eq.s32.totalorder %v290, %v590
        %vm597 = vcmp.eq.s32.totalorder %v293, %v590
        %vm598 = vcmp.eq.s32.totalorder %v296, %v590
        %vm599 = vcmp.eq.s32.totalorder %v299, %v590
        %vm600 = vcmp.eq.s32.totalorder %v302, %v590
        %vm601 = vcmp.eq.s32.totalorder %v305, %v590
        %vm602 = vcmp.eq.s32.totalorder %v308, %v590
        %vm603 = vcmp.eq.s32.totalorder %v311, %v590
        %vm604 = vcmp.eq.s32.totalorder %v314, %v590
        %vm605 = vcmp.eq.s32.totalorder %v317, %v590
        %vm606 = vcmp.eq.s32.totalorder %v320, %v590
        %v607 = vsel %vm591, %v339, 4294967295
        %v608 = vsel %vm592, %v342, 4294967295
        %v609 = vsel %vm593, %v345, 4294967295
        %v610 = vsel %vm594, %v348, 4294967295
        %v611 = vsel %vm595, %v351, 4294967295
        %v612 = vsel %vm596, %v354, 4294967295
        %v613 = vsel %vm597, %v357, 4294967295
        %v614 = vsel %vm598, %v360, 4294967295
        %v615 = vsel %vm599, %v363, 4294967295
        %v616 = vsel %vm600, %v366, 4294967295
        %v617 = vsel %vm601, %v369, 4294967295
        %v618 = vsel %vm602, %v372, 4294967295
        %v619 = vsel %vm603, %v375, 4294967295
        %v620 = vsel %vm604, %v378, 4294967295
        %v621 = vsel %vm605, %v381, 4294967295
        %v622 = vsel %vm606, %v384, 4294967295
        %vm623 = vcmp.gt.s32.totalorder %v607, %v611
        %v624 = vsel %vm623, %v607, %v611
        %vm625 = vcmp.gt.s32.totalorder %v608, %v612
        %v626 = vsel %vm625, %v608, %v612
        %vm627 = vcmp.gt.s32.totalorder %v609, %v613
        %v628 = vsel %vm627, %v609, %v613
        %vm629 = vcmp.gt.s32.totalorder %v610, %v614
        %v630 = vsel %vm629, %v610, %v614
        %vm631 = vcmp.gt.s32.totalorder %v624, %v615
        %v632 = vsel %vm631, %v624, %v615
        %vm633 = vcmp.gt.s32.totalorder %v626, %v616
        %v634 = vsel %vm633, %v626, %v616
        %vm635 = vcmp.gt.s32.totalorder %v628, %v617
        %v636 = vsel %vm635, %v628, %v617
        %vm637 = vcmp.gt.s32.totalorder %v630, %v618
        %v638 = vsel %vm637, %v630, %v618
        %vm639 = vcmp.gt.s32.totalorder %v632, %v619
        %v640 = vsel %vm639, %v632, %v619
        %vm641 = vcmp.gt.s32.totalorder %v634, %v620
        %v642 = vsel %vm641, %v634, %v620
        %vm643 = vcmp.gt.s32.totalorder %v636, %v621
        %v644 = vsel %vm643, %v636, %v621
        %vm645 = vcmp.gt.s32.totalorder %v638, %v622
        %v646 = vsel %vm645, %v638, %v622
        %vm647 = vcmp.gt.s32.totalorder %v640, %v642
        %v648 = vsel %vm647, %v640, %v642
        %vm649 = vcmp.gt.s32.totalorder %v644, %v646
        %v650 = vsel %vm649, %v644, %v646
        %vm651 = vcmp.gt.s32.totalorder %v648, %v650
        %v652 = vsel %vm651, %v648, %v650
        %v653 = vrot.slane %v652, 4
        %vm654 = vcmp.gt.s32.totalorder %v652, %v653
        %v655 = vsel %vm654, %v652, %v653
        %v656 = vrot.slane %v655, 2
        %vm657 = vcmp.gt.s32.totalorder %v655, %v656
        %v658 = vsel %vm657, %v655, %v656
        %v659 = vrot.slane %v658, 1
        %vm660 = vcmp.gt.s32.totalorder %v658, %v659
        %v661 = vsel %vm660, %v658, %v659
        %vm662 = vcmp.gt.s32.totalorder %v255, %v661
        %v663 = vsel %vm662, %v255, %v661
        %v664 = vadd.s32 %v254, 512
        %vm665 = vcmp.eq.s32.totalorder %v275, %v664
        %vm666 = vcmp.eq.s32.totalorder %v278, %v664
        %vm667 = vcmp.eq.s32.totalorder %v281, %v664
        %vm668 = vcmp.eq.s32.totalorder %v284, %v664
        %vm669 = vcmp.eq.s32.totalorder %v287, %v664
        %vm670 = vcmp.eq.s32.totalorder %v290, %v664
        %vm671 = vcmp.eq.s32.totalorder %v293, %v664
        %vm672 = vcmp.eq.s32.totalorder %v296, %v664
        %vm673 = vcmp.eq.s32.totalorder %v299, %v664
        %vm674 = vcmp.eq.s32.totalorder %v302, %v664
        %vm675 = vcmp.eq.s32.totalorder %v305, %v664
        %vm676 = vcmp.eq.s32.totalorder %v308, %v664
        %vm677 = vcmp.eq.s32.totalorder %v311, %v664
        %vm678 = vcmp.eq.s32.totalorder %v314, %v664
        %vm679 = vcmp.eq.s32.totalorder %v317, %v664
        %vm680 = vcmp.eq.s32.totalorder %v320, %v664
        %v681 = vsel %vm665, %v339, 4294967295
        %v682 = vsel %vm666, %v342, 4294967295
        %v683 = vsel %vm667, %v345, 4294967295
        %v684 = vsel %vm668, %v348, 4294967295
        %v685 = vsel %vm669, %v351, 4294967295
        %v686 = vsel %vm670, %v354, 4294967295
        %v687 = vsel %vm671, %v357, 4294967295
        %v688 = vsel %vm672, %v360, 4294967295
        %v689 = vsel %vm673, %v363, 4294967295
        %v690 = vsel %vm674, %v366, 4294967295
        %v691 = vsel %vm675, %v369, 4294967295
        %v692 = vsel %vm676, %v372, 4294967295
        %v693 = vsel %vm677, %v375, 4294967295
        %v694 = vsel %vm678, %v378, 4294967295
        %v695 = vsel %vm679, %v381, 4294967295
        %v696 = vsel %vm680, %v384, 4294967295
        %vm697 = vcmp.gt.s32.totalorder %v681, %v685
        %v698 = vsel %vm697, %v681, %v685
        %vm699 = vcmp.gt.s32.totalorder %v682, %v686
        %v700 = vsel %vm699, %v682, %v686
        %vm701 = vcmp.gt.s32.totalorder %v683, %v687
        %v702 = vsel %vm701, %v683, %v687
        %vm703 = vcmp.gt.s32.totalorder %v684, %v688
        %v704 = vsel %vm703, %v684, %v688
        %vm705 = vcmp.gt.s32.totalorder %v698, %v689
        %v706 = vsel %vm705, %v698, %v689
        %vm707 = vcmp.gt.s32.totalorder %v700, %v690
        %v708 = vsel %vm707, %v700, %v690
        %vm709 = vcmp.gt.s32.totalorder %v702, %v691
        %v710 = vsel %vm709, %v702, %v691
        %vm711 = vcmp.gt.s32.totalorder %v704, %v692
        %v712 = vsel %vm711, %v704, %v692
        %vm713 = vcmp.gt.s32.totalorder %v706, %v693
        %v714 = vsel %vm713, %v706, %v693
        %vm715 = vcmp.gt.s32.totalorder %v708, %v694
        %v716 = vsel %vm715, %v708, %v694
        %vm717 = vcmp.gt.s32.totalorder %v710, %v695
        %v718 = vsel %vm717, %v710, %v695
        %vm719 = vcmp.gt.s32.totalorder %v712, %v696
        %v720 = vsel %vm719, %v712, %v696
        %vm721 = vcmp.gt.s32.totalorder %v714, %v716
        %v722 = vsel %vm721, %v714, %v716
        %vm723 = vcmp.gt.s32.totalorder %v718, %v720
        %v724 = vsel %vm723, %v718, %v720
        %vm725 = vcmp.gt.s32.totalorder %v722, %v724
        %v726 = vsel %vm725, %v722, %v724
        %v727 = vrot.slane %v726, 4
        %vm728 = vcmp.gt.s32.totalorder %v726, %v727
        %v729 = vsel %vm728, %v726, %v727
        %v730 = vrot.slane %v729, 2
        %vm731 = vcmp.gt.s32.totalorder %v729, %v730
        %v732 = vsel %vm731, %v729, %v730
        %v733 = vrot.slane %v732, 1
        %vm734 = vcmp.gt.s32.totalorder %v732, %v733
        %v735 = vsel %vm734, %v732, %v733
        %vm736 = vcmp.gt.s32.totalorder %v255, %v735
        %v737 = vsel %vm736, %v255, %v735
        %v738 = vadd.s32 %v254, 640
        %vm739 = vcmp.eq.s32.totalorder %v275, %v738
        %vm740 = vcmp.eq.s32.totalorder %v278, %v738
        %vm741 = vcmp.eq.s32.totalorder %v281, %v738
        %vm742 = vcmp.eq.s32.totalorder %v284, %v738
        %vm743 = vcmp.eq.s32.totalorder %v287, %v738
        %vm744 = vcmp.eq.s32.totalorder %v290, %v738
        %vm745 = vcmp.eq.s32.totalorder %v293, %v738
        %vm746 = vcmp.eq.s32.totalorder %v296, %v738
        %vm747 = vcmp.eq.s32.totalorder %v299, %v738
        %vm748 = vcmp.eq.s32.totalorder %v302, %v738
        %vm749 = vcmp.eq.s32.totalorder %v305, %v738
        %vm750 = vcmp.eq.s32.totalorder %v308, %v738
        %vm751 = vcmp.eq.s32.totalorder %v311, %v738
        %vm752 = vcmp.eq.s32.totalorder %v314, %v738
        %vm753 = vcmp.eq.s32.totalorder %v317, %v738
        %vm754 = vcmp.eq.s32.totalorder %v320, %v738
        %v755 = vsel %vm739, %v339, 4294967295
        %v756 = vsel %vm740, %v342, 4294967295
        %v757 = vsel %vm741, %v345, 4294967295
        %v758 = vsel %vm742, %v348, 4294967295
        %v759 = vsel %vm743, %v351, 4294967295
        %v760 = vsel %vm744, %v354, 4294967295
        %v761 = vsel %vm745, %v357, 4294967295
        %v762 = vsel %vm746, %v360, 4294967295
        %v763 = vsel %vm747, %v363, 4294967295
        %v764 = vsel %vm748, %v366, 4294967295
        %v765 = vsel %vm749, %v369, 4294967295
        %v766 = vsel %vm750, %v372, 4294967295
        %v767 = vsel %vm751, %v375, 4294967295
        %v768 = vsel %vm752, %v378, 4294967295
        %v769 = vsel %vm753, %v381, 4294967295
        %v770 = vsel %vm754, %v384, 4294967295
        %vm771 = vcmp.gt.s32.totalorder %v755, %v759
        %v772 = vsel %vm771, %v755, %v759
        %vm773 = vcmp.gt.s32.totalorder %v756, %v760
        %v774 = vsel %vm773, %v756, %v760
        %vm775 = vcmp.gt.s32.totalorder %v757, %v761
        %v776 = vsel %vm775, %v757, %v761
        %vm777 = vcmp.gt.s32.totalorder %v758, %v762
        %v778 = vsel %vm777, %v758, %v762
        %vm779 = vcmp.gt.s32.totalorder %v772, %v763
        %v780 = vsel %vm779, %v772, %v763
        %vm781 = vcmp.gt.s32.totalorder %v774, %v764
        %v782 = vsel %vm781, %v774, %v764
        %vm783 = vcmp.gt.s32.totalorder %v776, %v765
        %v784 = vsel %vm783, %v776, %v765
        %vm785 = vcmp.gt.s32.totalorder %v778, %v766
        %v786 = vsel %vm785, %v778, %v766
        %vm787 = vcmp.gt.s32.totalorder %v780, %v767
        %v788 = vsel %vm787, %v780, %v767
        %vm789 = vcmp.gt.s32.totalorder %v782, %v768
        %v790 = vsel %vm789, %v782, %v768
        %vm791 = vcmp.gt.s32.totalorder %v784, %v769
        %v792 = vsel %vm791, %v784, %v769
        %vm793 = vcmp.gt.s32.totalorder %v786, %v770
        %v794 = vsel %vm793, %v786, %v770
        %vm795 = vcmp.gt.s32.totalorder %v788, %v790
        %v796 = vsel %vm795, %v788, %v790
        %vm797 = vcmp.gt.s32.totalorder %v792, %v794
        %v798 = vsel %vm797, %v792, %v794
        %vm799 = vcmp.gt.s32.totalorder %v796, %v798
        %v800 = vsel %vm799, %v796, %v798
        %v801 = vrot.slane %v800, 4
        %vm802 = vcmp.gt.s32.totalorder %v800, %v801
        %v803 = vsel %vm802, %v800, %v801
        %v804 = vrot.slane %v803, 2
        %vm805 = vcmp.gt.s32.totalorder %v803, %v804
        %v806 = vsel %vm805, %v803, %v804
        %v807 = vrot.slane %v806, 1
        %vm808 = vcmp.gt.s32.totalorder %v806, %v807
        %v809 = vsel %vm808, %v806, %v807
        %vm810 = vcmp.gt.s32.totalorder %v255, %v809
        %v811 = vsel %vm810, %v255, %v809
        %v812 = vadd.s32 %v254, 768
        %vm813 = vcmp.eq.s32.totalorder %v275, %v812
        %vm814 = vcmp.eq.s32.totalorder %v278, %v812
        %vm815 = vcmp.eq.s32.totalorder %v281, %v812
        %vm816 = vcmp.eq.s32.totalorder %v284, %v812
        %vm817 = vcmp.eq.s32.totalorder %v287, %v812
        %vm818 = vcmp.eq.s32.totalorder %v290, %v812
        %vm819 = vcmp.eq.s32.totalorder %v293, %v812
        %vm820 = vcmp.eq.s32.totalorder %v296, %v812
        %vm821 = vcmp.eq.s32.totalorder %v299, %v812
        %vm822 = vcmp.eq.s32.totalorder %v302, %v812
        %vm823 = vcmp.eq.s32.totalorder %v305, %v812
        %vm824 = vcmp.eq.s32.totalorder %v308, %v812
        %vm825 = vcmp.eq.s32.totalorder %v311, %v812
        %vm826 = vcmp.eq.s32.totalorder %v314, %v812
        %vm827 = vcmp.eq.s32.totalorder %v317, %v812
        %vm828 = vcmp.eq.s32.totalorder %v320, %v812
        %v829 = vsel %vm813, %v339, 4294967295
        %v830 = vsel %vm814, %v342, 4294967295
        %v831 = vsel %vm815, %v345, 4294967295
        %v832 = vsel %vm816, %v348, 4294967295
        %v833 = vsel %vm817, %v351, 4294967295
        %v834 = vsel %vm818, %v354, 4294967295
        %v835 = vsel %vm819, %v357, 4294967295
        %v836 = vsel %vm820, %v360, 4294967295
        %v837 = vsel %vm821, %v363, 4294967295
        %v838 = vsel %vm822, %v366, 4294967295
        %v839 = vsel %vm823, %v369, 4294967295
        %v840 = vsel %vm824, %v372, 4294967295
        %v841 = vsel %vm825, %v375, 4294967295
        %v842 = vsel %vm826, %v378, 4294967295
        %v843 = vsel %vm827, %v381, 4294967295
        %v844 = vsel %vm828, %v384, 4294967295
        %vm845 = vcmp.gt.s32.totalorder %v829, %v833
        %v846 = vsel %vm845, %v829, %v833
        %vm847 = vcmp.gt.s32.totalorder %v830, %v834
        %v848 = vsel %vm847, %v830, %v834
        %vm849 = vcmp.gt.s32.totalorder %v831, %v835
        %v850 = vsel %vm849, %v831, %v835
        %vm851 = vcmp.gt.s32.totalorder %v832, %v836
        %v852 = vsel %vm851, %v832, %v836
        %vm853 = vcmp.gt.s32.totalorder %v846, %v837
        %v854 = vsel %vm853, %v846, %v837
        %vm855 = vcmp.gt.s32.totalorder %v848, %v838
        %v856 = vsel %vm855, %v848, %v838
        %vm857 = vcmp.gt.s32.totalorder %v850, %v839
        %v858 = vsel %vm857, %v850, %v839
        %vm859 = vcmp.gt.s32.totalorder %v852, %v840
        %v860 = vsel %vm859, %v852, %v840
        %vm861 = vcmp.gt.s32.totalorder %v854, %v841
        %v862 = vsel %vm861, %v854, %v841
        %vm863 = vcmp.gt.s32.totalorder %v856, %v842
        %v864 = vsel %vm863, %v856, %v842
        %vm865 = vcmp.gt.s32.totalorder %v858, %v843
        %v866 = vsel %vm865, %v858, %v843
        %vm867 = vcmp.gt.s32.totalorder %v860, %v844
        %v868 = vsel %vm867, %v860, %v844
        %vm869 = vcmp.gt.s32.totalorder %v862, %v864
        %v870 = vsel %vm869, %v862, %v864
        %vm871 = vcmp.gt.s32.totalorder %v866, %v868
        %v872 = vsel %vm871, %v866, %v868
        %vm873 = vcmp.gt.s32.totalorder %v870, %v872
        %v874 = vsel %vm873, %v870, %v872
        %v875 = vrot.slane %v874, 4
        %vm876 = vcmp.gt.s32.totalorder %v874, %v875
        %v877 = vsel %vm876, %v874, %v875
        %v878 = vrot.slane %v877, 2
        %vm879 = vcmp.gt.s32.totalorder %v877, %v878
        %v880 = vsel %vm879, %v877, %v878
        %v881 = vrot.slane %v880, 1
        %vm882 = vcmp.gt.s32.totalorder %v880, %v881
        %v883 = vsel %vm882, %v880, %v881
        %vm884 = vcmp.gt.s32.totalorder %v255, %v883
        %v885 = vsel %vm884, %v255, %v883
        %v886 = vadd.s32 %v254, 896
        %vm887 = vcmp.eq.s32.totalorder %v275, %v886
        %vm888 = vcmp.eq.s32.totalorder %v278, %v886
        %vm889 = vcmp.eq.s32.totalorder %v281, %v886
        %vm890 = vcmp.eq.s32.totalorder %v284, %v886
        %vm891 = vcmp.eq.s32.totalorder %v287, %v886
        %vm892 = vcmp.eq.s32.totalorder %v290, %v886
        %vm893 = vcmp.eq.s32.totalorder %v293, %v886
        %vm894 = vcmp.eq.s32.totalorder %v296, %v886
        %vm895 = vcmp.eq.s32.totalorder %v299, %v886
        %vm896 = vcmp.eq.s32.totalorder %v302, %v886
        %vm897 = vcmp.eq.s32.totalorder %v305, %v886
        %vm898 = vcmp.eq.s32.totalorder %v308, %v886
        %vm899 = vcmp.eq.s32.totalorder %v311, %v886
        %vm900 = vcmp.eq.s32.totalorder %v314, %v886
        %vm901 = vcmp.eq.s32.totalorder %v317, %v886
        %vm902 = vcmp.eq.s32.totalorder %v320, %v886
        %v903 = vsel %vm887, %v339, 4294967295
        %v904 = vsel %vm888, %v342, 4294967295
        %v905 = vsel %vm889, %v345, 4294967295
        %v906 = vsel %vm890, %v348, 4294967295
        %v907 = vsel %vm891, %v351, 4294967295
        %v908 = vsel %vm892, %v354, 4294967295
        %v909 = vsel %vm893, %v357, 4294967295
        %v910 = vsel %vm894, %v360, 4294967295
        %v911 = vsel %vm895, %v363, 4294967295
        %v912 = vsel %vm896, %v366, 4294967295
        %v913 = vsel %vm897, %v369, 4294967295
        %v914 = vsel %vm898, %v372, 4294967295
        %v915 = vsel %vm899, %v375, 4294967295
        %v916 = vsel %vm900, %v378, 4294967295
        %v917 = vsel %vm901, %v381, 4294967295
        %v918 = vsel %vm902, %v384, 4294967295
        %vm919 = vcmp.gt.s32.totalorder %v903, %v907
        %v920 = vsel %vm919, %v903, %v907
        %vm921 = vcmp.gt.s32.totalorder %v904, %v908
        %v922 = vsel %vm921, %v904, %v908
        %vm923 = vcmp.gt.s32.totalorder %v905, %v909
        %v924 = vsel %vm923, %v905, %v909
        %vm925 = vcmp.gt.s32.totalorder %v906, %v910
        %v926 = vsel %vm925, %v906, %v910
        %vm927 = vcmp.gt.s32.totalorder %v920, %v911
        %v928 = vsel %vm927, %v920, %v911
        %vm929 = vcmp.gt.s32.totalorder %v922, %v912
        %v930 = vsel %vm929, %v922, %v912
        %vm931 = vcmp.gt.s32.totalorder %v924, %v913
        %v932 = vsel %vm931, %v924, %v913
        %vm933 = vcmp.gt.s32.totalorder %v926, %v914
        %v934 = vsel %vm933, %v926, %v914
        %vm935 = vcmp.gt.s32.totalorder %v928, %v915
        %v936 = vsel %vm935, %v928, %v915
        %vm937 = vcmp.gt.s32.totalorder %v930, %v916
        %v938 = vsel %vm937, %v930, %v916
        %vm939 = vcmp.gt.s32.totalorder %v932, %v917
        %v940 = vsel %vm939, %v932, %v917
        %vm941 = vcmp.gt.s32.totalorder %v934, %v918
        %v942 = vsel %vm941, %v934, %v918
        %vm943 = vcmp.gt.s32.totalorder %v936, %v938
        %v944 = vsel %vm943, %v936, %v938
        %vm945 = vcmp.gt.s32.totalorder %v940, %v942
        %v946 = vsel %vm945, %v940, %v942
        %vm947 = vcmp.gt.s32.totalorder %v944, %v946
        %v948 = vsel %vm947, %v944, %v946
        %v949 = vrot.slane %v948, 4
        %vm950 = vcmp.gt.s32.totalorder %v948, %v949
        %v951 = vsel %vm950, %v948, %v949
        %v952 = vrot.slane %v951, 2
        %vm953 = vcmp.gt.s32.totalorder %v951, %v952
        %v954 = vsel %vm953, %v951, %v952
        %v955 = vrot.slane %v954, 1
        %vm956 = vcmp.gt.s32.totalorder %v954, %v955
        %v957 = vsel %vm956, %v954, %v955
        %vm958 = vcmp.gt.s32.totalorder %v255, %v957
        %v959 = vsel %vm958, %v255, %v957
        %960 = vset.pattern.permute.xlu0 1
        %961 = vperm.xlu0 %960, %v257
        %v962 = vpop.permute.xlu0 %961
        %963 = vset.pattern.permute.xlu0 1
        %964 = vperm.xlu0 %963, %v258
        %v965 = vpop.permute.xlu0 %964
        %966 = vset.pattern.permute.xlu0 1
        %967 = vperm.xlu0 %966, %v259
        %v968 = vpop.permute.xlu0 %967
        %969 = vset.pattern.permute.xlu0 1
        %970 = vperm.xlu0 %969, %v260
        %v971 = vpop.permute.xlu0 %970
        %972 = vset.pattern.permute.xlu0 1
        %973 = vperm.xlu0 %972, %v261
        %v974 = vpop.permute.xlu0 %973
        %975 = vset.pattern.permute.xlu0 1
        %976 = vperm.xlu0 %975, %v262
        %v977 = vpop.permute.xlu0 %976
        %978 = vset.pattern.permute.xlu0 1
        %979 = vperm.xlu0 %978, %v263
        %v980 = vpop.permute.xlu0 %979
        %981 = vset.pattern.permute.xlu0 1
        %982 = vperm.xlu0 %981, %v264
        %v983 = vpop.permute.xlu0 %982
        %984 = vset.pattern.permute.xlu0 1
        %985 = vperm.xlu0 %984, %v265
        %v986 = vpop.permute.xlu0 %985
        %987 = vset.pattern.permute.xlu0 1
        %988 = vperm.xlu0 %987, %v266
        %v989 = vpop.permute.xlu0 %988
        %990 = vset.pattern.permute.xlu0 1
        %991 = vperm.xlu0 %990, %v267
        %v992 = vpop.permute.xlu0 %991
        %993 = vset.pattern.permute.xlu0 1
        %994 = vperm.xlu0 %993, %v268
        %v995 = vpop.permute.xlu0 %994
        %996 = vset.pattern.permute.xlu0 1
        %997 = vperm.xlu0 %996, %v269
        %v998 = vpop.permute.xlu0 %997
        %999 = vset.pattern.permute.xlu0 1
        %1000 = vperm.xlu0 %999, %v270
        %v1001 = vpop.permute.xlu0 %1000
        %1002 = vset.pattern.permute.xlu0 1
        %1003 = vperm.xlu0 %1002, %v271
        %v1004 = vpop.permute.xlu0 %1003
        %1005 = vset.pattern.permute.xlu0 1
        %1006 = vperm.xlu0 %1005, %v272
        %v1007 = vpop.permute.xlu0 %1006
        %vm1008 = vcmp.eq.s32.totalorder %v962, %v254
        %vm1009 = vcmp.eq.s32.totalorder %v965, %v254
        %vm1010 = vcmp.eq.s32.totalorder %v968, %v254
        %vm1011 = vcmp.eq.s32.totalorder %v971, %v254
        %vm1012 = vcmp.eq.s32.totalorder %v974, %v254
        %vm1013 = vcmp.eq.s32.totalorder %v977, %v254
        %vm1014 = vcmp.eq.s32.totalorder %v980, %v254
        %vm1015 = vcmp.eq.s32.totalorder %v983, %v254
        %vm1016 = vcmp.eq.s32.totalorder %v986, %v254
        %vm1017 = vcmp.eq.s32.totalorder %v989, %v254
        %vm1018 = vcmp.eq.s32.totalorder %v992, %v254
        %vm1019 = vcmp.eq.s32.totalorder %v995, %v254
        %vm1020 = vcmp.eq.s32.totalorder %v998, %v254
        %vm1021 = vcmp.eq.s32.totalorder %v1001, %v254
        %vm1022 = vcmp.eq.s32.totalorder %v1004, %v254
        %vm1023 = vcmp.eq.s32.totalorder %v1007, %v254
        %1024 = vset.pattern.permute.xlu0 1
        %1025 = vperm.xlu0 %1024, %v236
        %v1026 = vpop.permute.xlu0 %1025
        %1027 = vset.pattern.permute.xlu0 1
        %1028 = vperm.xlu0 %1027, %v237
        %v1029 = vpop.permute.xlu0 %1028
        %1030 = vset.pattern.permute.xlu0 1
        %1031 = vperm.xlu0 %1030, %v238
        %v1032 = vpop.permute.xlu0 %1031
        %1033 = vset.pattern.permute.xlu0 1
        %1034 = vperm.xlu0 %1033, %v239
        %v1035 = vpop.permute.xlu0 %1034
        %1036 = vset.pattern.permute.xlu0 1
        %1037 = vperm.xlu0 %1036, %v240
        %v1038 = vpop.permute.xlu0 %1037
        %1039 = vset.pattern.permute.xlu0 1
        %1040 = vperm.xlu0 %1039, %v241
        %v1041 = vpop.permute.xlu0 %1040
        %1042 = vset.pattern.permute.xlu0 1
        %1043 = vperm.xlu0 %1042, %v242
        %v1044 = vpop.permute.xlu0 %1043
        %1045 = vset.pattern.permute.xlu0 1
        %1046 = vperm.xlu0 %1045, %v243
        %v1047 = vpop.permute.xlu0 %1046
        %1048 = vset.pattern.permute.xlu0 1
        %1049 = vperm.xlu0 %1048, %v244
        %v1050 = vpop.permute.xlu0 %1049
        %1051 = vset.pattern.permute.xlu0 1
        %1052 = vperm.xlu0 %1051, %v245
        %v1053 = vpop.permute.xlu0 %1052
        %1054 = vset.pattern.permute.xlu0 1
        %1055 = vperm.xlu0 %1054, %v246
        %v1056 = vpop.permute.xlu0 %1055
        %1057 = vset.pattern.permute.xlu0 1
        %1058 = vperm.xlu0 %1057, %v247
        %v1059 = vpop.permute.xlu0 %1058
        %1060 = vset.pattern.permute.xlu0 1
        %1061 = vperm.xlu0 %1060, %v248
        %v1062 = vpop.permute.xlu0 %1061
        %1063 = vset.pattern.permute.xlu0 1
        %1064 = vperm.xlu0 %1063, %v249
        %v1065 = vpop.permute.xlu0 %1064
        %1066 = vset.pattern.permute.xlu0 1
        %1067 = vperm.xlu0 %1066, %v250
        %v1068 = vpop.permute.xlu0 %1067
        %1069 = vset.pattern.permute.xlu0 1
        %1070 = vperm.xlu0 %1069, %v251
        %v1071 = vpop.permute.xlu0 %1070
        %v1072 = vsel %vm1008, %v1026, 4294967295
        %v1073 = vsel %vm1009, %v1029, 4294967295
        %v1074 = vsel %vm1010, %v1032, 4294967295
        %v1075 = vsel %vm1011, %v1035, 4294967295
        %v1076 = vsel %vm1012, %v1038, 4294967295
        %v1077 = vsel %vm1013, %v1041, 4294967295
        %v1078 = vsel %vm1014, %v1044, 4294967295
        %v1079 = vsel %vm1015, %v1047, 4294967295
        %v1080 = vsel %vm1016, %v1050, 4294967295
        %v1081 = vsel %vm1017, %v1053, 4294967295
        %v1082 = vsel %vm1018, %v1056, 4294967295
        %v1083 = vsel %vm1019, %v1059, 4294967295
        %v1084 = vsel %vm1020, %v1062, 4294967295
        %v1085 = vsel %vm1021, %v1065, 4294967295
        %v1086 = vsel %vm1022, %v1068, 4294967295
        %v1087 = vsel %vm1023, %v1071, 4294967295
        %vm1088 = vcmp.gt.s32.totalorder %v1072, %v1076
        %v1089 = vsel %vm1088, %v1072, %v1076
        %vm1090 = vcmp.gt.s32.totalorder %v1073, %v1077
        %v1091 = vsel %vm1090, %v1073, %v1077
        %vm1092 = vcmp.gt.s32.totalorder %v1074, %v1078
        %v1093 = vsel %vm1092, %v1074, %v1078
        %vm1094 = vcmp.gt.s32.totalorder %v1075, %v1079
        %v1095 = vsel %vm1094, %v1075, %v1079
        %vm1096 = vcmp.gt.s32.totalorder %v1089, %v1080
        %v1097 = vsel %vm1096, %v1089, %v1080
        %vm1098 = vcmp.gt.s32.totalorder %v1091, %v1081
        %v1099 = vsel %vm1098, %v1091, %v1081
        %vm1100 = vcmp.gt.s32.totalorder %v1093, %v1082
        %v1101 = vsel %vm1100, %v1093, %v1082
        %vm1102 = vcmp.gt.s32.totalorder %v1095, %v1083
        %v1103 = vsel %vm1102, %v1095, %v1083
        %vm1104 = vcmp.gt.s32.totalorder %v1097, %v1084
        %v1105 = vsel %vm1104, %v1097, %v1084
        %vm1106 = vcmp.gt.s32.totalorder %v1099, %v1085
        %v1107 = vsel %vm1106, %v1099, %v1085
        %vm1108 = vcmp.gt.s32.totalorder %v1101, %v1086
        %v1109 = vsel %vm1108, %v1101, %v1086
        %vm1110 = vcmp.gt.s32.totalorder %v1103, %v1087
        %v1111 = vsel %vm1110, %v1103, %v1087
        %vm1112 = vcmp.gt.s32.totalorder %v1105, %v1107
        %v1113 = vsel %vm1112, %v1105, %v1107
        %vm1114 = vcmp.gt.s32.totalorder %v1109, %v1111
        %v1115 = vsel %vm1114, %v1109, %v1111
        %vm1116 = vcmp.gt.s32.totalorder %v1113, %v1115
        %v1117 = vsel %vm1116, %v1113, %v1115
        %v1118 = vrot.slane %v1117, 4
        %vm1119 = vcmp.gt.s32.totalorder %v1117, %v1118
        %v1120 = vsel %vm1119, %v1117, %v1118
        %v1121 = vrot.slane %v1120, 2
        %vm1122 = vcmp.gt.s32.totalorder %v1120, %v1121
        %v1123 = vsel %vm1122, %v1120, %v1121
        %v1124 = vrot.slane %v1123, 1
        %vm1125 = vcmp.gt.s32.totalorder %v1123, %v1124
        %v1126 = vsel %vm1125, %v1123, %v1124
        %vm1127 = vcmp.gt.s32.totalorder %v441, %v1126
        %v1128 = vsel %vm1127, %v441, %v1126
        %vm1129 = vcmp.eq.s32.totalorder %v962, %v442
        %vm1130 = vcmp.eq.s32.totalorder %v965, %v442
        %vm1131 = vcmp.eq.s32.totalorder %v968, %v442
        %vm1132 = vcmp.eq.s32.totalorder %v971, %v442
        %vm1133 = vcmp.eq.s32.totalorder %v974, %v442
        %vm1134 = vcmp.eq.s32.totalorder %v977, %v442
        %vm1135 = vcmp.eq.s32.totalorder %v980, %v442
        %vm1136 = vcmp.eq.s32.totalorder %v983, %v442
        %vm1137 = vcmp.eq.s32.totalorder %v986, %v442
        %vm1138 = vcmp.eq.s32.totalorder %v989, %v442
        %vm1139 = vcmp.eq.s32.totalorder %v992, %v442
        %vm1140 = vcmp.eq.s32.totalorder %v995, %v442
        %vm1141 = vcmp.eq.s32.totalorder %v998, %v442
        %vm1142 = vcmp.eq.s32.totalorder %v1001, %v442
        %vm1143 = vcmp.eq.s32.totalorder %v1004, %v442
        %vm1144 = vcmp.eq.s32.totalorder %v1007, %v442
        %v1145 = vsel %vm1129, %v1026, 4294967295
        %v1146 = vsel %vm1130, %v1029, 4294967295
        %v1147 = vsel %vm1131, %v1032, 4294967295
        %v1148 = vsel %vm1132, %v1035, 4294967295
        %v1149 = vsel %vm1133, %v1038, 4294967295
        %v1150 = vsel %vm1134, %v1041, 4294967295
        %v1151 = vsel %vm1135, %v1044, 4294967295
        %v1152 = vsel %vm1136, %v1047, 4294967295
        %v1153 = vsel %vm1137, %v1050, 4294967295
        %v1154 = vsel %vm1138, %v1053, 4294967295
        %v1155 = vsel %vm1139, %v1056, 4294967295
        %v1156 = vsel %vm1140, %v1059, 4294967295
        %v1157 = vsel %vm1141, %v1062, 4294967295
        %v1158 = vsel %vm1142, %v1065, 4294967295
        %v1159 = vsel %vm1143, %v1068, 4294967295
        %v1160 = vsel %vm1144, %v1071, 4294967295
        %vm1161 = vcmp.gt.s32.totalorder %v1145, %v1149
        %v1162 = vsel %vm1161, %v1145, %v1149
        %vm1163 = vcmp.gt.s32.totalorder %v1146, %v1150
        %v1164 = vsel %vm1163, %v1146, %v1150
        %vm1165 = vcmp.gt.s32.totalorder %v1147, %v1151
        %v1166 = vsel %vm1165, %v1147, %v1151
        %vm1167 = vcmp.gt.s32.totalorder %v1148, %v1152
        %v1168 = vsel %vm1167, %v1148, %v1152
        %vm1169 = vcmp.gt.s32.totalorder %v1162, %v1153
        %v1170 = vsel %vm1169, %v1162, %v1153
        %vm1171 = vcmp.gt.s32.totalorder %v1164, %v1154
        %v1172 = vsel %vm1171, %v1164, %v1154
        %vm1173 = vcmp.gt.s32.totalorder %v1166, %v1155
        %v1174 = vsel %vm1173, %v1166, %v1155
        %vm1175 = vcmp.gt.s32.totalorder %v1168, %v1156
        %v1176 = vsel %vm1175, %v1168, %v1156
        %vm1177 = vcmp.gt.s32.totalorder %v1170, %v1157
        %v1178 = vsel %vm1177, %v1170, %v1157
        %vm1179 = vcmp.gt.s32.totalorder %v1172, %v1158
        %v1180 = vsel %vm1179, %v1172, %v1158
        %vm1181 = vcmp.gt.s32.totalorder %v1174, %v1159
        %v1182 = vsel %vm1181, %v1174, %v1159
        %vm1183 = vcmp.gt.s32.totalorder %v1176, %v1160
        %v1184 = vsel %vm1183, %v1176, %v1160
        %vm1185 = vcmp.gt.s32.totalorder %v1178, %v1180
        %v1186 = vsel %vm1185, %v1178, %v1180
        %vm1187 = vcmp.gt.s32.totalorder %v1182, %v1184
        %v1188 = vsel %vm1187, %v1182, %v1184
        %vm1189 = vcmp.gt.s32.totalorder %v1186, %v1188
        %v1190 = vsel %vm1189, %v1186, %v1188
        %v1191 = vrot.slane %v1190, 4
        %vm1192 = vcmp.gt.s32.totalorder %v1190, %v1191
        %v1193 = vsel %vm1192, %v1190, %v1191
        %v1194 = vrot.slane %v1193, 2
        %vm1195 = vcmp.gt.s32.totalorder %v1193, %v1194
        %v1196 = vsel %vm1195, %v1193, %v1194
        %v1197 = vrot.slane %v1196, 1
        %vm1198 = vcmp.gt.s32.totalorder %v1196, %v1197
        %v1199 = vsel %vm1198, %v1196, %v1197
        %vm1200 = vcmp.gt.s32.totalorder %v515, %v1199
        %v1201 = vsel %vm1200, %v515, %v1199
        %vm1202 = vcmp.eq.s32.totalorder %v962, %v516
        %vm1203 = vcmp.eq.s32.totalorder %v965, %v516
        %vm1204 = vcmp.eq.s32.totalorder %v968, %v516
        %vm1205 = vcmp.eq.s32.totalorder %v971, %v516
        %vm1206 = vcmp.eq.s32.totalorder %v974, %v516
        %vm1207 = vcmp.eq.s32.totalorder %v977, %v516
        %vm1208 = vcmp.eq.s32.totalorder %v980, %v516
        %vm1209 = vcmp.eq.s32.totalorder %v983, %v516
        %vm1210 = vcmp.eq.s32.totalorder %v986, %v516
        %vm1211 = vcmp.eq.s32.totalorder %v989, %v516
        %vm1212 = vcmp.eq.s32.totalorder %v992, %v516
        %vm1213 = vcmp.eq.s32.totalorder %v995, %v516
        %vm1214 = vcmp.eq.s32.totalorder %v998, %v516
        %vm1215 = vcmp.eq.s32.totalorder %v1001, %v516
        %vm1216 = vcmp.eq.s32.totalorder %v1004, %v516
        %vm1217 = vcmp.eq.s32.totalorder %v1007, %v516
        %v1218 = vsel %vm1202, %v1026, 4294967295
        %v1219 = vsel %vm1203, %v1029, 4294967295
        %v1220 = vsel %vm1204, %v1032, 4294967295
        %v1221 = vsel %vm1205, %v1035, 4294967295
        %v1222 = vsel %vm1206, %v1038, 4294967295
        %v1223 = vsel %vm1207, %v1041, 4294967295
        %v1224 = vsel %vm1208, %v1044, 4294967295
        %v1225 = vsel %vm1209, %v1047, 4294967295
        %v1226 = vsel %vm1210, %v1050, 4294967295
        %v1227 = vsel %vm1211, %v1053, 4294967295
        %v1228 = vsel %vm1212, %v1056, 4294967295
        %v1229 = vsel %vm1213, %v1059, 4294967295
        %v1230 = vsel %vm1214, %v1062, 4294967295
        %v1231 = vsel %vm1215, %v1065, 4294967295
        %v1232 = vsel %vm1216, %v1068, 4294967295
        %v1233 = vsel %vm1217, %v1071, 4294967295
        %vm1234 = vcmp.gt.s32.totalorder %v1218, %v1222
        %v1235 = vsel %vm1234, %v1218, %v1222
        %vm1236 = vcmp.gt.s32.totalorder %v1219, %v1223
        %v1237 = vsel %vm1236, %v1219, %v1223
        %vm1238 = vcmp.gt.s32.totalorder %v1220, %v1224
        %v1239 = vsel %vm1238, %v1220, %v1224
        %vm1240 = vcmp.gt.s32.totalorder %v1221, %v1225
        %v1241 = vsel %vm1240, %v1221, %v1225
        %vm1242 = vcmp.gt.s32.totalorder %v1235, %v1226
        %v1243 = vsel %vm1242, %v1235, %v1226
        %vm1244 = vcmp.gt.s32.totalorder %v1237, %v1227
        %v1245 = vsel %vm1244, %v1237, %v1227
        %vm1246 = vcmp.gt.s32.totalorder %v1239, %v1228
        %v1247 = vsel %vm1246, %v1239, %v1228
        %vm1248 = vcmp.gt.s32.totalorder %v1241, %v1229
        %v1249 = vsel %vm1248, %v1241, %v1229
        %vm1250 = vcmp.gt.s32.totalorder %v1243, %v1230
        %v1251 = vsel %vm1250, %v1243, %v1230
        %vm1252 = vcmp.gt.s32.totalorder %v1245, %v1231
        %v1253 = vsel %vm1252, %v1245, %v1231
        %vm1254 = vcmp.gt.s32.totalorder %v1247, %v1232
        %v1255 = vsel %vm1254, %v1247, %v1232
        %vm1256 = vcmp.gt.s32.totalorder %v1249, %v1233
        %v1257 = vsel %vm1256, %v1249, %v1233
        %vm1258 = vcmp.gt.s32.totalorder %v1251, %v1253
        %v1259 = vsel %vm1258, %v1251, %v1253
        %vm1260 = vcmp.gt.s32.totalorder %v1255, %v1257
        %v1261 = vsel %vm1260, %v1255, %v1257
        %vm1262 = vcmp.gt.s32.totalorder %v1259, %v1261
        %v1263 = vsel %vm1262, %v1259, %v1261
        %v1264 = vrot.slane %v1263, 4
        %vm1265 = vcmp.gt.s32.totalorder %v1263, %v1264
        %v1266 = vsel %vm1265, %v1263, %v1264
        %v1267 = vrot.slane %v1266, 2
        %vm1268 = vcmp.gt.s32.totalorder %v1266, %v1267
        %v1269 = vsel %vm1268, %v1266, %v1267
        %v1270 = vrot.slane %v1269, 1
        %vm1271 = vcmp.gt.s32.totalorder %v1269, %v1270
        %v1272 = vsel %vm1271, %v1269, %v1270
        %vm1273 = vcmp.gt.s32.totalorder %v589, %v1272
        %v1274 = vsel %vm1273, %v589, %v1272
        %vm1275 = vcmp.eq.s32.totalorder %v962, %v590
        %vm1276 = vcmp.eq.s32.totalorder %v965, %v590
        %vm1277 = vcmp.eq.s32.totalorder %v968, %v590
        %vm1278 = vcmp.eq.s32.totalorder %v971, %v590
        %vm1279 = vcmp.eq.s32.totalorder %v974, %v590
        %vm1280 = vcmp.eq.s32.totalorder %v977, %v590
        %vm1281 = vcmp.eq.s32.totalorder %v980, %v590
        %vm1282 = vcmp.eq.s32.totalorder %v983, %v590
        %vm1283 = vcmp.eq.s32.totalorder %v986, %v590
        %vm1284 = vcmp.eq.s32.totalorder %v989, %v590
        %vm1285 = vcmp.eq.s32.totalorder %v992, %v590
        %vm1286 = vcmp.eq.s32.totalorder %v995, %v590
        %vm1287 = vcmp.eq.s32.totalorder %v998, %v590
        %vm1288 = vcmp.eq.s32.totalorder %v1001, %v590
        %vm1289 = vcmp.eq.s32.totalorder %v1004, %v590
        %vm1290 = vcmp.eq.s32.totalorder %v1007, %v590
        %v1291 = vsel %vm1275, %v1026, 4294967295
        %v1292 = vsel %vm1276, %v1029, 4294967295
        %v1293 = vsel %vm1277, %v1032, 4294967295
        %v1294 = vsel %vm1278, %v1035, 4294967295
        %v1295 = vsel %vm1279, %v1038, 4294967295
        %v1296 = vsel %vm1280, %v1041, 4294967295
        %v1297 = vsel %vm1281, %v1044, 4294967295
        %v1298 = vsel %vm1282, %v1047, 4294967295
        %v1299 = vsel %vm1283, %v1050, 4294967295
        %v1300 = vsel %vm1284, %v1053, 4294967295
        %v1301 = vsel %vm1285, %v1056, 4294967295
        %v1302 = vsel %vm1286, %v1059, 4294967295
        %v1303 = vsel %vm1287, %v1062, 4294967295
        %v1304 = vsel %vm1288, %v1065, 4294967295
        %v1305 = vsel %vm1289, %v1068, 4294967295
        %v1306 = vsel %vm1290, %v1071, 4294967295
        %vm1307 = vcmp.gt.s32.totalorder %v1291, %v1295
        %v1308 = vsel %vm1307, %v1291, %v1295
        %vm1309 = vcmp.gt.s32.totalorder %v1292, %v1296
        %v1310 = vsel %vm1309, %v1292, %v1296
        %vm1311 = vcmp.gt.s32.totalorder %v1293, %v1297
        %v1312 = vsel %vm1311, %v1293, %v1297
        %vm1313 = vcmp.gt.s32.totalorder %v1294, %v1298
        %v1314 = vsel %vm1313, %v1294, %v1298
        %vm1315 = vcmp.gt.s32.totalorder %v1308, %v1299
        %v1316 = vsel %vm1315, %v1308, %v1299
        %vm1317 = vcmp.gt.s32.totalorder %v1310, %v1300
        %v1318 = vsel %vm1317, %v1310, %v1300
        %vm1319 = vcmp.gt.s32.totalorder %v1312, %v1301
        %v1320 = vsel %vm1319, %v1312, %v1301
        %vm1321 = vcmp.gt.s32.totalorder %v1314, %v1302
        %v1322 = vsel %vm1321, %v1314, %v1302
        %vm1323 = vcmp.gt.s32.totalorder %v1316, %v1303
        %v1324 = vsel %vm1323, %v1316, %v1303
        %vm1325 = vcmp.gt.s32.totalorder %v1318, %v1304
        %v1326 = vsel %vm1325, %v1318, %v1304
        %vm1327 = vcmp.gt.s32.totalorder %v1320, %v1305
        %v1328 = vsel %vm1327, %v1320, %v1305
        %vm1329 = vcmp.gt.s32.totalorder %v1322, %v1306
        %v1330 = vsel %vm1329, %v1322, %v1306
        %vm1331 = vcmp.gt.s32.totalorder %v1324, %v1326
        %v1332 = vsel %vm1331, %v1324, %v1326
        %vm1333 = vcmp.gt.s32.totalorder %v1328, %v1330
        %v1334 = vsel %vm1333, %v1328, %v1330
        %vm1335 = vcmp.gt.s32.totalorder %v1332, %v1334
        %v1336 = vsel %vm1335, %v1332, %v1334
        %v1337 = vrot.slane %v1336, 4
        %vm1338 = vcmp.gt.s32.totalorder %v1336, %v1337
        %v1339 = vsel %vm1338, %v1336, %v1337
        %v1340 = vrot.slane %v1339, 2
        %vm1341 = vcmp.gt.s32.totalorder %v1339, %v1340
        %v1342 = vsel %vm1341, %v1339, %v1340
        %v1343 = vrot.slane %v1342, 1
        %vm1344 = vcmp.gt.s32.totalorder %v1342, %v1343
        %v1345 = vsel %vm1344, %v1342, %v1343
        %vm1346 = vcmp.gt.s32.totalorder %v663, %v1345
        %v1347 = vsel %vm1346, %v663, %v1345
        %vm1348 = vcmp.eq.s32.totalorder %v962, %v664
        %vm1349 = vcmp.eq.s32.totalorder %v965, %v664
        %vm1350 = vcmp.eq.s32.totalorder %v968, %v664
        %vm1351 = vcmp.eq.s32.totalorder %v971, %v664
        %vm1352 = vcmp.eq.s32.totalorder %v974, %v664
        %vm1353 = vcmp.eq.s32.totalorder %v977, %v664
        %vm1354 = vcmp.eq.s32.totalorder %v980, %v664
        %vm1355 = vcmp.eq.s32.totalorder %v983, %v664
        %vm1356 = vcmp.eq.s32.totalorder %v986, %v664
        %vm1357 = vcmp.eq.s32.totalorder %v989, %v664
        %vm1358 = vcmp.eq.s32.totalorder %v992, %v664
        %vm1359 = vcmp.eq.s32.totalorder %v995, %v664
        %vm1360 = vcmp.eq.s32.totalorder %v998, %v664
        %vm1361 = vcmp.eq.s32.totalorder %v1001, %v664
        %vm1362 = vcmp.eq.s32.totalorder %v1004, %v664
        %vm1363 = vcmp.eq.s32.totalorder %v1007, %v664
        %v1364 = vsel %vm1348, %v1026, 4294967295
        %v1365 = vsel %vm1349, %v1029, 4294967295
        %v1366 = vsel %vm1350, %v1032, 4294967295
        %v1367 = vsel %vm1351, %v1035, 4294967295
        %v1368 = vsel %vm1352, %v1038, 4294967295
        %v1369 = vsel %vm1353, %v1041, 4294967295
        %v1370 = vsel %vm1354, %v1044, 4294967295
        %v1371 = vsel %vm1355, %v1047, 4294967295
        %v1372 = vsel %vm1356, %v1050, 4294967295
        %v1373 = vsel %vm1357, %v1053, 4294967295
        %v1374 = vsel %vm1358, %v1056, 4294967295
        %v1375 = vsel %vm1359, %v1059, 4294967295
        %v1376 = vsel %vm1360, %v1062, 4294967295
        %v1377 = vsel %vm1361, %v1065, 4294967295
        %v1378 = vsel %vm1362, %v1068, 4294967295
        %v1379 = vsel %vm1363, %v1071, 4294967295
        %vm1380 = vcmp.gt.s32.totalorder %v1364, %v1368
        %v1381 = vsel %vm1380, %v1364, %v1368
        %vm1382 = vcmp.gt.s32.totalorder %v1365, %v1369
        %v1383 = vsel %vm1382, %v1365, %v1369
        %vm1384 = vcmp.gt.s32.totalorder %v1366, %v1370
        %v1385 = vsel %vm1384, %v1366, %v1370
        %vm1386 = vcmp.gt.s32.totalorder %v1367, %v1371
        %v1387 = vsel %vm1386, %v1367, %v1371
        %vm1388 = vcmp.gt.s32.totalorder %v1381, %v1372
        %v1389 = vsel %vm1388, %v1381, %v1372
        %vm1390 = vcmp.gt.s32.totalorder %v1383, %v1373
        %v1391 = vsel %vm1390, %v1383, %v1373
        %vm1392 = vcmp.gt.s32.totalorder %v1385, %v1374
        %v1393 = vsel %vm1392, %v1385, %v1374
        %vm1394 = vcmp.gt.s32.totalorder %v1387, %v1375
        %v1395 = vsel %vm1394, %v1387, %v1375
        %vm1396 = vcmp.gt.s32.totalorder %v1389, %v1376
        %v1397 = vsel %vm1396, %v1389, %v1376
        %vm1398 = vcmp.gt.s32.totalorder %v1391, %v1377
        %v1399 = vsel %vm1398, %v1391, %v1377
        %vm1400 = vcmp.gt.s32.totalorder %v1393, %v1378
        %v1401 = vsel %vm1400, %v1393, %v1378
        %vm1402 = vcmp.gt.s32.totalorder %v1395, %v1379
        %v1403 = vsel %vm1402, %v1395, %v1379
        %vm1404 = vcmp.gt.s32.totalorder %v1397, %v1399
        %v1405 = vsel %vm1404, %v1397, %v1399
        %vm1406 = vcmp.gt.s32.totalorder %v1401, %v1403
        %v1407 = vsel %vm1406, %v1401, %v1403
        %vm1408 = vcmp.gt.s32.totalorder %v1405, %v1407
        %v1409 = vsel %vm1408, %v1405, %v1407
        %v1410 = vrot.slane %v1409, 4
        %vm1411 = vcmp.gt.s32.totalorder %v1409, %v1410
        %v1412 = vsel %vm1411, %v1409, %v1410
        %v1413 = vrot.slane %v1412, 2
        %vm1414 = vcmp.gt.s32.totalorder %v1412, %v1413
        %v1415 = vsel %vm1414, %v1412, %v1413
        %v1416 = vrot.slane %v1415, 1
        %vm1417 = vcmp.gt.s32.totalorder %v1415, %v1416
        %v1418 = vsel %vm1417, %v1415, %v1416
        %vm1419 = vcmp.gt.s32.totalorder %v737, %v1418
        %v1420 = vsel %vm1419, %v737, %v1418
        %vm1421 = vcmp.eq.s32.totalorder %v962, %v738
        %vm1422 = vcmp.eq.s32.totalorder %v965, %v738
        %vm1423 = vcmp.eq.s32.totalorder %v968, %v738
        %vm1424 = vcmp.eq.s32.totalorder %v971, %v738
        %vm1425 = vcmp.eq.s32.totalorder %v974, %v738
        %vm1426 = vcmp.eq.s32.totalorder %v977, %v738
        %vm1427 = vcmp.eq.s32.totalorder %v980, %v738
        %vm1428 = vcmp.eq.s32.totalorder %v983, %v738
        %vm1429 = vcmp.eq.s32.totalorder %v986, %v738
        %vm1430 = vcmp.eq.s32.totalorder %v989, %v738
        %vm1431 = vcmp.eq.s32.totalorder %v992, %v738
        %vm1432 = vcmp.eq.s32.totalorder %v995, %v738
        %vm1433 = vcmp.eq.s32.totalorder %v998, %v738
        %vm1434 = vcmp.eq.s32.totalorder %v1001, %v738
        %vm1435 = vcmp.eq.s32.totalorder %v1004, %v738
        %vm1436 = vcmp.eq.s32.totalorder %v1007, %v738
        %v1437 = vsel %vm1421, %v1026, 4294967295
        %v1438 = vsel %vm1422, %v1029, 4294967295
        %v1439 = vsel %vm1423, %v1032, 4294967295
        %v1440 = vsel %vm1424, %v1035, 4294967295
        %v1441 = vsel %vm1425, %v1038, 4294967295
        %v1442 = vsel %vm1426, %v1041, 4294967295
        %v1443 = vsel %vm1427, %v1044, 4294967295
        %v1444 = vsel %vm1428, %v1047, 4294967295
        %v1445 = vsel %vm1429, %v1050, 4294967295
        %v1446 = vsel %vm1430, %v1053, 4294967295
        %v1447 = vsel %vm1431, %v1056, 4294967295
        %v1448 = vsel %vm1432, %v1059, 4294967295
        %v1449 = vsel %vm1433, %v1062, 4294967295
        %v1450 = vsel %vm1434, %v1065, 4294967295
        %v1451 = vsel %vm1435, %v1068, 4294967295
        %v1452 = vsel %vm1436, %v1071, 4294967295
        %vm1453 = vcmp.gt.s32.totalorder %v1437, %v1441
        %v1454 = vsel %vm1453, %v1437, %v1441
        %vm1455 = vcmp.gt.s32.totalorder %v1438, %v1442
        %v1456 = vsel %vm1455, %v1438, %v1442
        %vm1457 = vcmp.gt.s32.totalorder %v1439, %v1443
        %v1458 = vsel %vm1457, %v1439, %v1443
        %vm1459 = vcmp.gt.s32.totalorder %v1440, %v1444
        %v1460 = vsel %vm1459, %v1440, %v1444
        %vm1461 = vcmp.gt.s32.totalorder %v1454, %v1445
        %v1462 = vsel %vm1461, %v1454, %v1445
        %vm1463 = vcmp.gt.s32.totalorder %v1456, %v1446
        %v1464 = vsel %vm1463, %v1456, %v1446
        %vm1465 = vcmp.gt.s32.totalorder %v1458, %v1447
        %v1466 = vsel %vm1465, %v1458, %v1447
        %vm1467 = vcmp.gt.s32.totalorder %v1460, %v1448
        %v1468 = vsel %vm1467, %v1460, %v1448
        %vm1469 = vcmp.gt.s32.totalorder %v1462, %v1449
        %v1470 = vsel %vm1469, %v1462, %v1449
        %vm1471 = vcmp.gt.s32.totalorder %v1464, %v1450
        %v1472 = vsel %vm1471, %v1464, %v1450
        %vm1473 = vcmp.gt.s32.totalorder %v1466, %v1451
        %v1474 = vsel %vm1473, %v1466, %v1451
        %vm1475 = vcmp.gt.s32.totalorder %v1468, %v1452
        %v1476 = vsel %vm1475, %v1468, %v1452
        %vm1477 = vcmp.gt.s32.totalorder %v1470, %v1472
        %v1478 = vsel %vm1477, %v1470, %v1472
        %vm1479 = vcmp.gt.s32.totalorder %v1474, %v1476
        %v1480 = vsel %vm1479, %v1474, %v1476
        %vm1481 = vcmp.gt.s32.totalorder %v1478, %v1480
        %v1482 = vsel %vm1481, %v1478, %v1480
        %v1483 = vrot.slane %v1482, 4
        %vm1484 = vcmp.gt.s32.totalorder %v1482, %v1483
        %v1485 = vsel %vm1484, %v1482, %v1483
        %v1486 = vrot.slane %v1485, 2
        %vm1487 = vcmp.gt.s32.totalorder %v1485, %v1486
        %v1488 = vsel %vm1487, %v1485, %v1486
        %v1489 = vrot.slane %v1488, 1
        %vm1490 = vcmp.gt.s32.totalorder %v1488, %v1489
        %v1491 = vsel %vm1490, %v1488, %v1489
        %vm1492 = vcmp.gt.s32.totalorder %v811, %v1491
        %v1493 = vsel %vm1492, %v811, %v1491
        %vm1494 = vcmp.eq.s32.totalorder %v962, %v812
        %vm1495 = vcmp.eq.s32.totalorder %v965, %v812
        %vm1496 = vcmp.eq.s32.totalorder %v968, %v812
        %vm1497 = vcmp.eq.s32.totalorder %v971, %v812
        %vm1498 = vcmp.eq.s32.totalorder %v974, %v812
        %vm1499 = vcmp.eq.s32.totalorder %v977, %v812
        %vm1500 = vcmp.eq.s32.totalorder %v980, %v812
        %vm1501 = vcmp.eq.s32.totalorder %v983, %v812
        %vm1502 = vcmp.eq.s32.totalorder %v986, %v812
        %vm1503 = vcmp.eq.s32.totalorder %v989, %v812
        %vm1504 = vcmp.eq.s32.totalorder %v992, %v812
        %vm1505 = vcmp.eq.s32.totalorder %v995, %v812
        %vm1506 = vcmp.eq.s32.totalorder %v998, %v812
        %vm1507 = vcmp.eq.s32.totalorder %v1001, %v812
        %vm1508 = vcmp.eq.s32.totalorder %v1004, %v812
        %vm1509 = vcmp.eq.s32.totalorder %v1007, %v812
        %v1510 = vsel %vm1494, %v1026, 4294967295
        %v1511 = vsel %vm1495, %v1029, 4294967295
        %v1512 = vsel %vm1496, %v1032, 4294967295
        %v1513 = vsel %vm1497, %v1035, 4294967295
        %v1514 = vsel %vm1498, %v1038, 4294967295
        %v1515 = vsel %vm1499, %v1041, 4294967295
        %v1516 = vsel %vm1500, %v1044, 4294967295
        %v1517 = vsel %vm1501, %v1047, 4294967295
        %v1518 = vsel %vm1502, %v1050, 4294967295
        %v1519 = vsel %vm1503, %v1053, 4294967295
        %v1520 = vsel %vm1504, %v1056, 4294967295
        %v1521 = vsel %vm1505, %v1059, 4294967295
        %v1522 = vsel %vm1506, %v1062, 4294967295
        %v1523 = vsel %vm1507, %v1065, 4294967295
        %v1524 = vsel %vm1508, %v1068, 4294967295
        %v1525 = vsel %vm1509, %v1071, 4294967295
        %vm1526 = vcmp.gt.s32.totalorder %v1510, %v1514
        %v1527 = vsel %vm1526, %v1510, %v1514
        %vm1528 = vcmp.gt.s32.totalorder %v1511, %v1515
        %v1529 = vsel %vm1528, %v1511, %v1515
        %vm1530 = vcmp.gt.s32.totalorder %v1512, %v1516
        %v1531 = vsel %vm1530, %v1512, %v1516
        %vm1532 = vcmp.gt.s32.totalorder %v1513, %v1517
        %v1533 = vsel %vm1532, %v1513, %v1517
        %vm1534 = vcmp.gt.s32.totalorder %v1527, %v1518
        %v1535 = vsel %vm1534, %v1527, %v1518
        %vm1536 = vcmp.gt.s32.totalorder %v1529, %v1519
        %v1537 = vsel %vm1536, %v1529, %v1519
        %vm1538 = vcmp.gt.s32.totalorder %v1531, %v1520
        %v1539 = vsel %vm1538, %v1531, %v1520
        %vm1540 = vcmp.gt.s32.totalorder %v1533, %v1521
        %v1541 = vsel %vm1540, %v1533, %v1521
        %vm1542 = vcmp.gt.s32.totalorder %v1535, %v1522
        %v1543 = vsel %vm1542, %v1535, %v1522
        %vm1544 = vcmp.gt.s32.totalorder %v1537, %v1523
        %v1545 = vsel %vm1544, %v1537, %v1523
        %vm1546 = vcmp.gt.s32.totalorder %v1539, %v1524
        %v1547 = vsel %vm1546, %v1539, %v1524
        %vm1548 = vcmp.gt.s32.totalorder %v1541, %v1525
        %v1549 = vsel %vm1548, %v1541, %v1525
        %vm1550 = vcmp.gt.s32.totalorder %v1543, %v1545
        %v1551 = vsel %vm1550, %v1543, %v1545
        %vm1552 = vcmp.gt.s32.totalorder %v1547, %v1549
        %v1553 = vsel %vm1552, %v1547, %v1549
        %vm1554 = vcmp.gt.s32.totalorder %v1551, %v1553
        %v1555 = vsel %vm1554, %v1551, %v1553
        %v1556 = vrot.slane %v1555, 4
        %vm1557 = vcmp.gt.s32.totalorder %v1555, %v1556
        %v1558 = vsel %vm1557, %v1555, %v1556
        %v1559 = vrot.slane %v1558, 2
        %vm1560 = vcmp.gt.s32.totalorder %v1558, %v1559
        %v1561 = vsel %vm1560, %v1558, %v1559
        %v1562 = vrot.slane %v1561, 1
        %vm1563 = vcmp.gt.s32.totalorder %v1561, %v1562
        %v1564 = vsel %vm1563, %v1561, %v1562
        %vm1565 = vcmp.gt.s32.totalorder %v885, %v1564
        %v1566 = vsel %vm1565, %v885, %v1564
        %vm1567 = vcmp.eq.s32.totalorder %v962, %v886
        %vm1568 = vcmp.eq.s32.totalorder %v965, %v886
        %vm1569 = vcmp.eq.s32.totalorder %v968, %v886
        %vm1570 = vcmp.eq.s32.totalorder %v971, %v886
        %vm1571 = vcmp.eq.s32.totalorder %v974, %v886
        %vm1572 = vcmp.eq.s32.totalorder %v977, %v886
        %vm1573 = vcmp.eq.s32.totalorder %v980, %v886
        %vm1574 = vcmp.eq.s32.totalorder %v983, %v886
        %vm1575 = vcmp.eq.s32.totalorder %v986, %v886
        %vm1576 = vcmp.eq.s32.totalorder %v989, %v886
        %vm1577 = vcmp.eq.s32.totalorder %v992, %v886
        %vm1578 = vcmp.eq.s32.totalorder %v995, %v886
        %vm1579 = vcmp.eq.s32.totalorder %v998, %v886
        %vm1580 = vcmp.eq.s32.totalorder %v1001, %v886
        %vm1581 = vcmp.eq.s32.totalorder %v1004, %v886
        %vm1582 = vcmp.eq.s32.totalorder %v1007, %v886
        %v1583 = vsel %vm1567, %v1026, 4294967295
        %v1584 = vsel %vm1568, %v1029, 4294967295
        %v1585 = vsel %vm1569, %v1032, 4294967295
        %v1586 = vsel %vm1570, %v1035, 4294967295
        %v1587 = vsel %vm1571, %v1038, 4294967295
        %v1588 = vsel %vm1572, %v1041, 4294967295
        %v1589 = vsel %vm1573, %v1044, 4294967295
        %v1590 = vsel %vm1574, %v1047, 4294967295
        %v1591 = vsel %vm1575, %v1050, 4294967295
        %v1592 = vsel %vm1576, %v1053, 4294967295
        %v1593 = vsel %vm1577, %v1056, 4294967295
        %v1594 = vsel %vm1578, %v1059, 4294967295
        %v1595 = vsel %vm1579, %v1062, 4294967295
        %v1596 = vsel %vm1580, %v1065, 4294967295
        %v1597 = vsel %vm1581, %v1068, 4294967295
        %v1598 = vsel %vm1582, %v1071, 4294967295
        %vm1599 = vcmp.gt.s32.totalorder %v1583, %v1587
        %v1600 = vsel %vm1599, %v1583, %v1587
        %vm1601 = vcmp.gt.s32.totalorder %v1584, %v1588
        %v1602 = vsel %vm1601, %v1584, %v1588
        %vm1603 = vcmp.gt.s32.totalorder %v1585, %v1589
        %v1604 = vsel %vm1603, %v1585, %v1589
        %vm1605 = vcmp.gt.s32.totalorder %v1586, %v1590
        %v1606 = vsel %vm1605, %v1586, %v1590
        %vm1607 = vcmp.gt.s32.totalorder %v1600, %v1591
        %v1608 = vsel %vm1607, %v1600, %v1591
        %vm1609 = vcmp.gt.s32.totalorder %v1602, %v1592
        %v1610 = vsel %vm1609, %v1602, %v1592
        %vm1611 = vcmp.gt.s32.totalorder %v1604, %v1593
        %v1612 = vsel %vm1611, %v1604, %v1593
        %vm1613 = vcmp.gt.s32.totalorder %v1606, %v1594
        %v1614 = vsel %vm1613, %v1606, %v1594
        %vm1615 = vcmp.gt.s32.totalorder %v1608, %v1595
        %v1616 = vsel %vm1615, %v1608, %v1595
        %vm1617 = vcmp.gt.s32.totalorder %v1610, %v1596
        %v1618 = vsel %vm1617, %v1610, %v1596
        %vm1619 = vcmp.gt.s32.totalorder %v1612, %v1597
        %v1620 = vsel %vm1619, %v1612, %v1597
        %vm1621 = vcmp.gt.s32.totalorder %v1614, %v1598
        %v1622 = vsel %vm1621, %v1614, %v1598
        %vm1623 = vcmp.gt.s32.totalorder %v1616, %v1618
        %v1624 = vsel %vm1623, %v1616, %v1618
        %vm1625 = vcmp.gt.s32.totalorder %v1620, %v1622
        %v1626 = vsel %vm1625, %v1620, %v1622
        %vm1627 = vcmp.gt.s32.totalorder %v1624, %v1626
        %v1628 = vsel %vm1627, %v1624, %v1626
        %v1629 = vrot.slane %v1628, 4
        %vm1630 = vcmp.gt.s32.totalorder %v1628, %v1629
        %v1631 = vsel %vm1630, %v1628, %v1629
        %v1632 = vrot.slane %v1631, 2
        %vm1633 = vcmp.gt.s32.totalorder %v1631, %v1632
        %v1634 = vsel %vm1633, %v1631, %v1632
        %v1635 = vrot.slane %v1634, 1
        %vm1636 = vcmp.gt.s32.totalorder %v1634, %v1635
        %v1637 = vsel %vm1636, %v1634, %v1635
        %vm1638 = vcmp.gt.s32.totalorder %v959, %v1637
        %v1639 = vsel %vm1638, %v959, %v1637
        %1640 = vset.pattern.permute.xlu0 2
        %1641 = vperm.xlu0 %1640, %v257
        %v1642 = vpop.permute.xlu0 %1641
        %1643 = vset.pattern.permute.xlu0 2
        %1644 = vperm.xlu0 %1643, %v258
        %v1645 = vpop.permute.xlu0 %1644
        %1646 = vset.pattern.permute.xlu0 2
        %1647 = vperm.xlu0 %1646, %v259
        %v1648 = vpop.permute.xlu0 %1647
        %1649 = vset.pattern.permute.xlu0 2
        %1650 = vperm.xlu0 %1649, %v260
        %v1651 = vpop.permute.xlu0 %1650
        %1652 = vset.pattern.permute.xlu0 2
        %1653 = vperm.xlu0 %1652, %v261
        %v1654 = vpop.permute.xlu0 %1653
        %1655 = vset.pattern.permute.xlu0 2
        %1656 = vperm.xlu0 %1655, %v262
        %v1657 = vpop.permute.xlu0 %1656
        %1658 = vset.pattern.permute.xlu0 2
        %1659 = vperm.xlu0 %1658, %v263
        %v1660 = vpop.permute.xlu0 %1659
        %1661 = vset.pattern.permute.xlu0 2
        %1662 = vperm.xlu0 %1661, %v264
        %v1663 = vpop.permute.xlu0 %1662
        %1664 = vset.pattern.permute.xlu0 2
        %1665 = vperm.xlu0 %1664, %v265
        %v1666 = vpop.permute.xlu0 %1665
        %1667 = vset.pattern.permute.xlu0 2
        %1668 = vperm.xlu0 %1667, %v266
        %v1669 = vpop.permute.xlu0 %1668
        %1670 = vset.pattern.permute.xlu0 2
        %1671 = vperm.xlu0 %1670, %v267
        %v1672 = vpop.permute.xlu0 %1671
        %1673 = vset.pattern.permute.xlu0 2
        %1674 = vperm.xlu0 %1673, %v268
        %v1675 = vpop.permute.xlu0 %1674
        %1676 = vset.pattern.permute.xlu0 2
        %1677 = vperm.xlu0 %1676, %v269
        %v1678 = vpop.permute.xlu0 %1677
        %1679 = vset.pattern.permute.xlu0 2
        %1680 = vperm.xlu0 %1679, %v270
        %v1681 = vpop.permute.xlu0 %1680
        %1682 = vset.pattern.permute.xlu0 2
        %1683 = vperm.xlu0 %1682, %v271
        %v1684 = vpop.permute.xlu0 %1683
        %1685 = vset.pattern.permute.xlu0 2
        %1686 = vperm.xlu0 %1685, %v272
        %v1687 = vpop.permute.xlu0 %1686
        %vm1688 = vcmp.eq.s32.totalorder %v1642, %v254
        %vm1689 = vcmp.eq.s32.totalorder %v1645, %v254
        %vm1690 = vcmp.eq.s32.totalorder %v1648, %v254
        %vm1691 = vcmp.eq.s32.totalorder %v1651, %v254
        %vm1692 = vcmp.eq.s32.totalorder %v1654, %v254
        %vm1693 = vcmp.eq.s32.totalorder %v1657, %v254
        %vm1694 = vcmp.eq.s32.totalorder %v1660, %v254
        %vm1695 = vcmp.eq.s32.totalorder %v1663, %v254
        %vm1696 = vcmp.eq.s32.totalorder %v1666, %v254
        %vm1697 = vcmp.eq.s32.totalorder %v1669, %v254
        %vm1698 = vcmp.eq.s32.totalorder %v1672, %v254
        %vm1699 = vcmp.eq.s32.totalorder %v1675, %v254
        %vm1700 = vcmp.eq.s32.totalorder %v1678, %v254
        %vm1701 = vcmp.eq.s32.totalorder %v1681, %v254
        %vm1702 = vcmp.eq.s32.totalorder %v1684, %v254
        %vm1703 = vcmp.eq.s32.totalorder %v1687, %v254
        %1704 = vset.pattern.permute.xlu0 2
        %1705 = vperm.xlu0 %1704, %v236
        %v1706 = vpop.permute.xlu0 %1705
        %1707 = vset.pattern.permute.xlu0 2
        %1708 = vperm.xlu0 %1707, %v237
        %v1709 = vpop.permute.xlu0 %1708
        %1710 = vset.pattern.permute.xlu0 2
        %1711 = vperm.xlu0 %1710, %v238
        %v1712 = vpop.permute.xlu0 %1711
        %1713 = vset.pattern.permute.xlu0 2
        %1714 = vperm.xlu0 %1713, %v239
        %v1715 = vpop.permute.xlu0 %1714
        %1716 = vset.pattern.permute.xlu0 2
        %1717 = vperm.xlu0 %1716, %v240
        %v1718 = vpop.permute.xlu0 %1717
        %1719 = vset.pattern.permute.xlu0 2
        %1720 = vperm.xlu0 %1719, %v241
        %v1721 = vpop.permute.xlu0 %1720
        %1722 = vset.pattern.permute.xlu0 2
        %1723 = vperm.xlu0 %1722, %v242
        %v1724 = vpop.permute.xlu0 %1723
        %1725 = vset.pattern.permute.xlu0 2
        %1726 = vperm.xlu0 %1725, %v243
        %v1727 = vpop.permute.xlu0 %1726
        %1728 = vset.pattern.permute.xlu0 2
        %1729 = vperm.xlu0 %1728, %v244
        %v1730 = vpop.permute.xlu0 %1729
        %1731 = vset.pattern.permute.xlu0 2
        %1732 = vperm.xlu0 %1731, %v245
        %v1733 = vpop.permute.xlu0 %1732
        %1734 = vset.pattern.permute.xlu0 2
        %1735 = vperm.xlu0 %1734, %v246
        %v1736 = vpop.permute.xlu0 %1735
        %1737 = vset.pattern.permute.xlu0 2
        %1738 = vperm.xlu0 %1737, %v247
        %v1739 = vpop.permute.xlu0 %1738
        %1740 = vset.pattern.permute.xlu0 2
        %1741 = vperm.xlu0 %1740, %v248
        %v1742 = vpop.permute.xlu0 %1741
        %1743 = vset.pattern.permute.xlu0 2
        %1744 = vperm.xlu0 %1743, %v249
        %v1745 = vpop.permute.xlu0 %1744
        %1746 = vset.pattern.permute.xlu0 2
        %1747 = vperm.xlu0 %1746, %v250
        %v1748 = vpop.permute.xlu0 %1747
        %1749 = vset.pattern.permute.xlu0 2
        %1750 = vperm.xlu0 %1749, %v251
        %v1751 = vpop.permute.xlu0 %1750
        %v1752 = vsel %vm1688, %v1706, 4294967295
        %v1753 = vsel %vm1689, %v1709, 4294967295
        %v1754 = vsel %vm1690, %v1712, 4294967295
        %v1755 = vsel %vm1691, %v1715, 4294967295
        %v1756 = vsel %vm1692, %v1718, 4294967295
        %v1757 = vsel %vm1693, %v1721, 4294967295
        %v1758 = vsel %vm1694, %v1724, 4294967295
        %v1759 = vsel %vm1695, %v1727, 4294967295
        %v1760 = vsel %vm1696, %v1730, 4294967295
        %v1761 = vsel %vm1697, %v1733, 4294967295
        %v1762 = vsel %vm1698, %v1736, 4294967295
        %v1763 = vsel %vm1699, %v1739, 4294967295
        %v1764 = vsel %vm1700, %v1742, 4294967295
        %v1765 = vsel %vm1701, %v1745, 4294967295
        %v1766 = vsel %vm1702, %v1748, 4294967295
        %v1767 = vsel %vm1703, %v1751, 4294967295
        %vm1768 = vcmp.gt.s32.totalorder %v1752, %v1756
        %v1769 = vsel %vm1768, %v1752, %v1756
        %vm1770 = vcmp.gt.s32.totalorder %v1753, %v1757
        %v1771 = vsel %vm1770, %v1753, %v1757
        %vm1772 = vcmp.gt.s32.totalorder %v1754, %v1758
        %v1773 = vsel %vm1772, %v1754, %v1758
        %vm1774 = vcmp.gt.s32.totalorder %v1755, %v1759
        %v1775 = vsel %vm1774, %v1755, %v1759
        %vm1776 = vcmp.gt.s32.totalorder %v1769, %v1760
        %v1777 = vsel %vm1776, %v1769, %v1760
        %vm1778 = vcmp.gt.s32.totalorder %v1771, %v1761
        %v1779 = vsel %vm1778, %v1771, %v1761
        %vm1780 = vcmp.gt.s32.totalorder %v1773, %v1762
        %v1781 = vsel %vm1780, %v1773, %v1762
        %vm1782 = vcmp.gt.s32.totalorder %v1775, %v1763
        %v1783 = vsel %vm1782, %v1775, %v1763
        %vm1784 = vcmp.gt.s32.totalorder %v1777, %v1764
        %v1785 = vsel %vm1784, %v1777, %v1764
        %vm1786 = vcmp.gt.s32.totalorder %v1779, %v1765
        %v1787 = vsel %vm1786, %v1779, %v1765
        %vm1788 = vcmp.gt.s32.totalorder %v1781, %v1766
        %v1789 = vsel %vm1788, %v1781, %v1766
        %vm1790 = vcmp.gt.s32.totalorder %v1783, %v1767
        %v1791 = vsel %vm1790, %v1783, %v1767
        %vm1792 = vcmp.gt.s32.totalorder %v1785, %v1787
        %v1793 = vsel %vm1792, %v1785, %v1787
        %vm1794 = vcmp.gt.s32.totalorder %v1789, %v1791
        %v1795 = vsel %vm1794, %v1789, %v1791
        %vm1796 = vcmp.gt.s32.totalorder %v1793, %v1795
        %v1797 = vsel %vm1796, %v1793, %v1795
        %v1798 = vrot.slane %v1797, 4
        %vm1799 = vcmp.gt.s32.totalorder %v1797, %v1798
        %v1800 = vsel %vm1799, %v1797, %v1798
        %v1801 = vrot.slane %v1800, 2
        %vm1802 = vcmp.gt.s32.totalorder %v1800, %v1801
        %v1803 = vsel %vm1802, %v1800, %v1801
        %v1804 = vrot.slane %v1803, 1
        %vm1805 = vcmp.gt.s32.totalorder %v1803, %v1804
        %v1806 = vsel %vm1805, %v1803, %v1804
        %vm1807 = vcmp.gt.s32.totalorder %v1128, %v1806
        %v1808 = vsel %vm1807, %v1128, %v1806
        %vm1809 = vcmp.eq.s32.totalorder %v1642, %v442
        %vm1810 = vcmp.eq.s32.totalorder %v1645, %v442
        %vm1811 = vcmp.eq.s32.totalorder %v1648, %v442
        %vm1812 = vcmp.eq.s32.totalorder %v1651, %v442
        %vm1813 = vcmp.eq.s32.totalorder %v1654, %v442
        %vm1814 = vcmp.eq.s32.totalorder %v1657, %v442
        %vm1815 = vcmp.eq.s32.totalorder %v1660, %v442
        %vm1816 = vcmp.eq.s32.totalorder %v1663, %v442
        %vm1817 = vcmp.eq.s32.totalorder %v1666, %v442
        %vm1818 = vcmp.eq.s32.totalorder %v1669, %v442
        %vm1819 = vcmp.eq.s32.totalorder %v1672, %v442
        %vm1820 = vcmp.eq.s32.totalorder %v1675, %v442
        %vm1821 = vcmp.eq.s32.totalorder %v1678, %v442
        %vm1822 = vcmp.eq.s32.totalorder %v1681, %v442
        %vm1823 = vcmp.eq.s32.totalorder %v1684, %v442
        %vm1824 = vcmp.eq.s32.totalorder %v1687, %v442
        %v1825 = vsel %vm1809, %v1706, 4294967295
        %v1826 = vsel %vm1810, %v1709, 4294967295
        %v1827 = vsel %vm1811, %v1712, 4294967295
        %v1828 = vsel %vm1812, %v1715, 4294967295
        %v1829 = vsel %vm1813, %v1718, 4294967295
        %v1830 = vsel %vm1814, %v1721, 4294967295
        %v1831 = vsel %vm1815, %v1724, 4294967295
        %v1832 = vsel %vm1816, %v1727, 4294967295
        %v1833 = vsel %vm1817, %v1730, 4294967295
        %v1834 = vsel %vm1818, %v1733, 4294967295
        %v1835 = vsel %vm1819, %v1736, 4294967295
        %v1836 = vsel %vm1820, %v1739, 4294967295
        %v1837 = vsel %vm1821, %v1742, 4294967295
        %v1838 = vsel %vm1822, %v1745, 4294967295
        %v1839 = vsel %vm1823, %v1748, 4294967295
        %v1840 = vsel %vm1824, %v1751, 4294967295
        %vm1841 = vcmp.gt.s32.totalorder %v1825, %v1829
        %v1842 = vsel %vm1841, %v1825, %v1829
        %vm1843 = vcmp.gt.s32.totalorder %v1826, %v1830
        %v1844 = vsel %vm1843, %v1826, %v1830
        %vm1845 = vcmp.gt.s32.totalorder %v1827, %v1831
        %v1846 = vsel %vm1845, %v1827, %v1831
        %vm1847 = vcmp.gt.s32.totalorder %v1828, %v1832
        %v1848 = vsel %vm1847, %v1828, %v1832
        %vm1849 = vcmp.gt.s32.totalorder %v1842, %v1833
        %v1850 = vsel %vm1849, %v1842, %v1833
        %vm1851 = vcmp.gt.s32.totalorder %v1844, %v1834
        %v1852 = vsel %vm1851, %v1844, %v1834
        %vm1853 = vcmp.gt.s32.totalorder %v1846, %v1835
        %v1854 = vsel %vm1853, %v1846, %v1835
        %vm1855 = vcmp.gt.s32.totalorder %v1848, %v1836
        %v1856 = vsel %vm1855, %v1848, %v1836
        %vm1857 = vcmp.gt.s32.totalorder %v1850, %v1837
        %v1858 = vsel %vm1857, %v1850, %v1837
        %vm1859 = vcmp.gt.s32.totalorder %v1852, %v1838
        %v1860 = vsel %vm1859, %v1852, %v1838
        %vm1861 = vcmp.gt.s32.totalorder %v1854, %v1839
        %v1862 = vsel %vm1861, %v1854, %v1839
        %vm1863 = vcmp.gt.s32.totalorder %v1856, %v1840
        %v1864 = vsel %vm1863, %v1856, %v1840
        %vm1865 = vcmp.gt.s32.totalorder %v1858, %v1860
        %v1866 = vsel %vm1865, %v1858, %v1860
        %vm1867 = vcmp.gt.s32.totalorder %v1862, %v1864
        %v1868 = vsel %vm1867, %v1862, %v1864
        %vm1869 = vcmp.gt.s32.totalorder %v1866, %v1868
        %v1870 = vsel %vm1869, %v1866, %v1868
        %v1871 = vrot.slane %v1870, 4
        %vm1872 = vcmp.gt.s32.totalorder %v1870, %v1871
        %v1873 = vsel %vm1872, %v1870, %v1871
        %v1874 = vrot.slane %v1873, 2
        %vm1875 = vcmp.gt.s32.totalorder %v1873, %v1874
        %v1876 = vsel %vm1875, %v1873, %v1874
        %v1877 = vrot.slane %v1876, 1
        %vm1878 = vcmp.gt.s32.totalorder %v1876, %v1877
        %v1879 = vsel %vm1878, %v1876, %v1877
        %vm1880 = vcmp.gt.s32.totalorder %v1201, %v1879
        %v1881 = vsel %vm1880, %v1201, %v1879
        %vm1882 = vcmp.eq.s32.totalorder %v1642, %v516
        %vm1883 = vcmp.eq.s32.totalorder %v1645, %v516
        %vm1884 = vcmp.eq.s32.totalorder %v1648, %v516
        %vm1885 = vcmp.eq.s32.totalorder %v1651, %v516
        %vm1886 = vcmp.eq.s32.totalorder %v1654, %v516
        %vm1887 = vcmp.eq.s32.totalorder %v1657, %v516
        %vm1888 = vcmp.eq.s32.totalorder %v1660, %v516
        %vm1889 = vcmp.eq.s32.totalorder %v1663, %v516
        %vm1890 = vcmp.eq.s32.totalorder %v1666, %v516
        %vm1891 = vcmp.eq.s32.totalorder %v1669, %v516
        %vm1892 = vcmp.eq.s32.totalorder %v1672, %v516
        %vm1893 = vcmp.eq.s32.totalorder %v1675, %v516
        %vm1894 = vcmp.eq.s32.totalorder %v1678, %v516
        %vm1895 = vcmp.eq.s32.totalorder %v1681, %v516
        %vm1896 = vcmp.eq.s32.totalorder %v1684, %v516
        %vm1897 = vcmp.eq.s32.totalorder %v1687, %v516
        %v1898 = vsel %vm1882, %v1706, 4294967295
        %v1899 = vsel %vm1883, %v1709, 4294967295
        %v1900 = vsel %vm1884, %v1712, 4294967295
        %v1901 = vsel %vm1885, %v1715, 4294967295
        %v1902 = vsel %vm1886, %v1718, 4294967295
        %v1903 = vsel %vm1887, %v1721, 4294967295
        %v1904 = vsel %vm1888, %v1724, 4294967295
        %v1905 = vsel %vm1889, %v1727, 4294967295
        %v1906 = vsel %vm1890, %v1730, 4294967295
        %v1907 = vsel %vm1891, %v1733, 4294967295
        %v1908 = vsel %vm1892, %v1736, 4294967295
        %v1909 = vsel %vm1893, %v1739, 4294967295
        %v1910 = vsel %vm1894, %v1742, 4294967295
        %v1911 = vsel %vm1895, %v1745, 4294967295
        %v1912 = vsel %vm1896, %v1748, 4294967295
        %v1913 = vsel %vm1897, %v1751, 4294967295
        %vm1914 = vcmp.gt.s32.totalorder %v1898, %v1902
        %v1915 = vsel %vm1914, %v1898, %v1902
        %vm1916 = vcmp.gt.s32.totalorder %v1899, %v1903
        %v1917 = vsel %vm1916, %v1899, %v1903
        %vm1918 = vcmp.gt.s32.totalorder %v1900, %v1904
        %v1919 = vsel %vm1918, %v1900, %v1904
        %vm1920 = vcmp.gt.s32.totalorder %v1901, %v1905
        %v1921 = vsel %vm1920, %v1901, %v1905
        %vm1922 = vcmp.gt.s32.totalorder %v1915, %v1906
        %v1923 = vsel %vm1922, %v1915, %v1906
        %vm1924 = vcmp.gt.s32.totalorder %v1917, %v1907
        %v1925 = vsel %vm1924, %v1917, %v1907
        %vm1926 = vcmp.gt.s32.totalorder %v1919, %v1908
        %v1927 = vsel %vm1926, %v1919, %v1908
        %vm1928 = vcmp.gt.s32.totalorder %v1921, %v1909
        %v1929 = vsel %vm1928, %v1921, %v1909
        %vm1930 = vcmp.gt.s32.totalorder %v1923, %v1910
        %v1931 = vsel %vm1930, %v1923, %v1910
        %vm1932 = vcmp.gt.s32.totalorder %v1925, %v1911
        %v1933 = vsel %vm1932, %v1925, %v1911
        %vm1934 = vcmp.gt.s32.totalorder %v1927, %v1912
        %v1935 = vsel %vm1934, %v1927, %v1912
        %vm1936 = vcmp.gt.s32.totalorder %v1929, %v1913
        %v1937 = vsel %vm1936, %v1929, %v1913
        %vm1938 = vcmp.gt.s32.totalorder %v1931, %v1933
        %v1939 = vsel %vm1938, %v1931, %v1933
        %vm1940 = vcmp.gt.s32.totalorder %v1935, %v1937
        %v1941 = vsel %vm1940, %v1935, %v1937
        %vm1942 = vcmp.gt.s32.totalorder %v1939, %v1941
        %v1943 = vsel %vm1942, %v1939, %v1941
        %v1944 = vrot.slane %v1943, 4
        %vm1945 = vcmp.gt.s32.totalorder %v1943, %v1944
        %v1946 = vsel %vm1945, %v1943, %v1944
        %v1947 = vrot.slane %v1946, 2
        %vm1948 = vcmp.gt.s32.totalorder %v1946, %v1947
        %v1949 = vsel %vm1948, %v1946, %v1947
        %v1950 = vrot.slane %v1949, 1
        %vm1951 = vcmp.gt.s32.totalorder %v1949, %v1950
        %v1952 = vsel %vm1951, %v1949, %v1950
        %vm1953 = vcmp.gt.s32.totalorder %v1274, %v1952
        %v1954 = vsel %vm1953, %v1274, %v1952
        %vm1955 = vcmp.eq.s32.totalorder %v1642, %v590
        %vm1956 = vcmp.eq.s32.totalorder %v1645, %v590
        %vm1957 = vcmp.eq.s32.totalorder %v1648, %v590
        %vm1958 = vcmp.eq.s32.totalorder %v1651, %v590
        %vm1959 = vcmp.eq.s32.totalorder %v1654, %v590
        %vm1960 = vcmp.eq.s32.totalorder %v1657, %v590
        %vm1961 = vcmp.eq.s32.totalorder %v1660, %v590
        %vm1962 = vcmp.eq.s32.totalorder %v1663, %v590
        %vm1963 = vcmp.eq.s32.totalorder %v1666, %v590
        %vm1964 = vcmp.eq.s32.totalorder %v1669, %v590
        %vm1965 = vcmp.eq.s32.totalorder %v1672, %v590
        %vm1966 = vcmp.eq.s32.totalorder %v1675, %v590
        %vm1967 = vcmp.eq.s32.totalorder %v1678, %v590
        %vm1968 = vcmp.eq.s32.totalorder %v1681, %v590
        %vm1969 = vcmp.eq.s32.totalorder %v1684, %v590
        %vm1970 = vcmp.eq.s32.totalorder %v1687, %v590
        %v1971 = vsel %vm1955, %v1706, 4294967295
        %v1972 = vsel %vm1956, %v1709, 4294967295
        %v1973 = vsel %vm1957, %v1712, 4294967295
        %v1974 = vsel %vm1958, %v1715, 4294967295
        %v1975 = vsel %vm1959, %v1718, 4294967295
        %v1976 = vsel %vm1960, %v1721, 4294967295
        %v1977 = vsel %vm1961, %v1724, 4294967295
        %v1978 = vsel %vm1962, %v1727, 4294967295
        %v1979 = vsel %vm1963, %v1730, 4294967295
        %v1980 = vsel %vm1964, %v1733, 4294967295
        %v1981 = vsel %vm1965, %v1736, 4294967295
        %v1982 = vsel %vm1966, %v1739, 4294967295
        %v1983 = vsel %vm1967, %v1742, 4294967295
        %v1984 = vsel %vm1968, %v1745, 4294967295
        %v1985 = vsel %vm1969, %v1748, 4294967295
        %v1986 = vsel %vm1970, %v1751, 4294967295
        %vm1987 = vcmp.gt.s32.totalorder %v1971, %v1975
        %v1988 = vsel %vm1987, %v1971, %v1975
        %vm1989 = vcmp.gt.s32.totalorder %v1972, %v1976
        %v1990 = vsel %vm1989, %v1972, %v1976
        %vm1991 = vcmp.gt.s32.totalorder %v1973, %v1977
        %v1992 = vsel %vm1991, %v1973, %v1977
        %vm1993 = vcmp.gt.s32.totalorder %v1974, %v1978
        %v1994 = vsel %vm1993, %v1974, %v1978
        %vm1995 = vcmp.gt.s32.totalorder %v1988, %v1979
        %v1996 = vsel %vm1995, %v1988, %v1979
        %vm1997 = vcmp.gt.s32.totalorder %v1990, %v1980
        %v1998 = vsel %vm1997, %v1990, %v1980
        %vm1999 = vcmp.gt.s32.totalorder %v1992, %v1981
        %v2000 = vsel %vm1999, %v1992, %v1981
        %vm2001 = vcmp.gt.s32.totalorder %v1994, %v1982
        %v2002 = vsel %vm2001, %v1994, %v1982
        %vm2003 = vcmp.gt.s32.totalorder %v1996, %v1983
        %v2004 = vsel %vm2003, %v1996, %v1983
        %vm2005 = vcmp.gt.s32.totalorder %v1998, %v1984
        %v2006 = vsel %vm2005, %v1998, %v1984
        %vm2007 = vcmp.gt.s32.totalorder %v2000, %v1985
        %v2008 = vsel %vm2007, %v2000, %v1985
        %vm2009 = vcmp.gt.s32.totalorder %v2002, %v1986
        %v2010 = vsel %vm2009, %v2002, %v1986
        %vm2011 = vcmp.gt.s32.totalorder %v2004, %v2006
        %v2012 = vsel %vm2011, %v2004, %v2006
        %vm2013 = vcmp.gt.s32.totalorder %v2008, %v2010
        %v2014 = vsel %vm2013, %v2008, %v2010
        %vm2015 = vcmp.gt.s32.totalorder %v2012, %v2014
        %v2016 = vsel %vm2015, %v2012, %v2014
        %v2017 = vrot.slane %v2016, 4
        %vm2018 = vcmp.gt.s32.totalorder %v2016, %v2017
        %v2019 = vsel %vm2018, %v2016, %v2017
        %v2020 = vrot.slane %v2019, 2
        %vm2021 = vcmp.gt.s32.totalorder %v2019, %v2020
        %v2022 = vsel %vm2021, %v2019, %v2020
        %v2023 = vrot.slane %v2022, 1
        %vm2024 = vcmp.gt.s32.totalorder %v2022, %v2023
        %v2025 = vsel %vm2024, %v2022, %v2023
        %vm2026 = vcmp.gt.s32.totalorder %v1347, %v2025
        %v2027 = vsel %vm2026, %v1347, %v2025
        %vm2028 = vcmp.eq.s32.totalorder %v1642, %v664
        %vm2029 = vcmp.eq.s32.totalorder %v1645, %v664
        %vm2030 = vcmp.eq.s32.totalorder %v1648, %v664
        %vm2031 = vcmp.eq.s32.totalorder %v1651, %v664
        %vm2032 = vcmp.eq.s32.totalorder %v1654, %v664
        %vm2033 = vcmp.eq.s32.totalorder %v1657, %v664
        %vm2034 = vcmp.eq.s32.totalorder %v1660, %v664
        %vm2035 = vcmp.eq.s32.totalorder %v1663, %v664
        %vm2036 = vcmp.eq.s32.totalorder %v1666, %v664
        %vm2037 = vcmp.eq.s32.totalorder %v1669, %v664
        %vm2038 = vcmp.eq.s32.totalorder %v1672, %v664
        %vm2039 = vcmp.eq.s32.totalorder %v1675, %v664
        %vm2040 = vcmp.eq.s32.totalorder %v1678, %v664
        %vm2041 = vcmp.eq.s32.totalorder %v1681, %v664
        %vm2042 = vcmp.eq.s32.totalorder %v1684, %v664
        %vm2043 = vcmp.eq.s32.totalorder %v1687, %v664
        %v2044 = vsel %vm2028, %v1706, 4294967295
        %v2045 = vsel %vm2029, %v1709, 4294967295
        %v2046 = vsel %vm2030, %v1712, 4294967295
        %v2047 = vsel %vm2031, %v1715, 4294967295
        %v2048 = vsel %vm2032, %v1718, 4294967295
        %v2049 = vsel %vm2033, %v1721, 4294967295
        %v2050 = vsel %vm2034, %v1724, 4294967295
        %v2051 = vsel %vm2035, %v1727, 4294967295
        %v2052 = vsel %vm2036, %v1730, 4294967295
        %v2053 = vsel %vm2037, %v1733, 4294967295
        %v2054 = vsel %vm2038, %v1736, 4294967295
        %v2055 = vsel %vm2039, %v1739, 4294967295
        %v2056 = vsel %vm2040, %v1742, 4294967295
        %v2057 = vsel %vm2041, %v1745, 4294967295
        %v2058 = vsel %vm2042, %v1748, 4294967295
        %v2059 = vsel %vm2043, %v1751, 4294967295
        %vm2060 = vcmp.gt.s32.totalorder %v2044, %v2048
        %v2061 = vsel %vm2060, %v2044, %v2048
        %vm2062 = vcmp.gt.s32.totalorder %v2045, %v2049
        %v2063 = vsel %vm2062, %v2045, %v2049
        %vm2064 = vcmp.gt.s32.totalorder %v2046, %v2050
        %v2065 = vsel %vm2064, %v2046, %v2050
        %vm2066 = vcmp.gt.s32.totalorder %v2047, %v2051
        %v2067 = vsel %vm2066, %v2047, %v2051
        %vm2068 = vcmp.gt.s32.totalorder %v2061, %v2052
        %v2069 = vsel %vm2068, %v2061, %v2052
        %vm2070 = vcmp.gt.s32.totalorder %v2063, %v2053
        %v2071 = vsel %vm2070, %v2063, %v2053
        %vm2072 = vcmp.gt.s32.totalorder %v2065, %v2054
        %v2073 = vsel %vm2072, %v2065, %v2054
        %vm2074 = vcmp.gt.s32.totalorder %v2067, %v2055
        %v2075 = vsel %vm2074, %v2067, %v2055
        %vm2076 = vcmp.gt.s32.totalorder %v2069, %v2056
        %v2077 = vsel %vm2076, %v2069, %v2056
        %vm2078 = vcmp.gt.s32.totalorder %v2071, %v2057
        %v2079 = vsel %vm2078, %v2071, %v2057
        %vm2080 = vcmp.gt.s32.totalorder %v2073, %v2058
        %v2081 = vsel %vm2080, %v2073, %v2058
        %vm2082 = vcmp.gt.s32.totalorder %v2075, %v2059
        %v2083 = vsel %vm2082, %v2075, %v2059
        %vm2084 = vcmp.gt.s32.totalorder %v2077, %v2079
        %v2085 = vsel %vm2084, %v2077, %v2079
        %vm2086 = vcmp.gt.s32.totalorder %v2081, %v2083
        %v2087 = vsel %vm2086, %v2081, %v2083
        %vm2088 = vcmp.gt.s32.totalorder %v2085, %v2087
        %v2089 = vsel %vm2088, %v2085, %v2087
        %v2090 = vrot.slane %v2089, 4
        %vm2091 = vcmp.gt.s32.totalorder %v2089, %v2090
        %v2092 = vsel %vm2091, %v2089, %v2090
        %v2093 = vrot.slane %v2092, 2
        %vm2094 = vcmp.gt.s32.totalorder %v2092, %v2093
        %v2095 = vsel %vm2094, %v2092, %v2093
        %v2096 = vrot.slane %v2095, 1
        %vm2097 = vcmp.gt.s32.totalorder %v2095, %v2096
        %v2098 = vsel %vm2097, %v2095, %v2096
        %vm2099 = vcmp.gt.s32.totalorder %v1420, %v2098
        %v2100 = vsel %vm2099, %v1420, %v2098
        %vm2101 = vcmp.eq.s32.totalorder %v1642, %v738
        %vm2102 = vcmp.eq.s32.totalorder %v1645, %v738
        %vm2103 = vcmp.eq.s32.totalorder %v1648, %v738
        %vm2104 = vcmp.eq.s32.totalorder %v1651, %v738
        %vm2105 = vcmp.eq.s32.totalorder %v1654, %v738
        %vm2106 = vcmp.eq.s32.totalorder %v1657, %v738
        %vm2107 = vcmp.eq.s32.totalorder %v1660, %v738
        %vm2108 = vcmp.eq.s32.totalorder %v1663, %v738
        %vm2109 = vcmp.eq.s32.totalorder %v1666, %v738
        %vm2110 = vcmp.eq.s32.totalorder %v1669, %v738
        %vm2111 = vcmp.eq.s32.totalorder %v1672, %v738
        %vm2112 = vcmp.eq.s32.totalorder %v1675, %v738
        %vm2113 = vcmp.eq.s32.totalorder %v1678, %v738
        %vm2114 = vcmp.eq.s32.totalorder %v1681, %v738
        %vm2115 = vcmp.eq.s32.totalorder %v1684, %v738
        %vm2116 = vcmp.eq.s32.totalorder %v1687, %v738
        %v2117 = vsel %vm2101, %v1706, 4294967295
        %v2118 = vsel %vm2102, %v1709, 4294967295
        %v2119 = vsel %vm2103, %v1712, 4294967295
        %v2120 = vsel %vm2104, %v1715, 4294967295
        %v2121 = vsel %vm2105, %v1718, 4294967295
        %v2122 = vsel %vm2106, %v1721, 4294967295
        %v2123 = vsel %vm2107, %v1724, 4294967295
        %v2124 = vsel %vm2108, %v1727, 4294967295
        %v2125 = vsel %vm2109, %v1730, 4294967295
        %v2126 = vsel %vm2110, %v1733, 4294967295
        %v2127 = vsel %vm2111, %v1736, 4294967295
        %v2128 = vsel %vm2112, %v1739, 4294967295
        %v2129 = vsel %vm2113, %v1742, 4294967295
        %v2130 = vsel %vm2114, %v1745, 4294967295
        %v2131 = vsel %vm2115, %v1748, 4294967295
        %v2132 = vsel %vm2116, %v1751, 4294967295
        %vm2133 = vcmp.gt.s32.totalorder %v2117, %v2121
        %v2134 = vsel %vm2133, %v2117, %v2121
        %vm2135 = vcmp.gt.s32.totalorder %v2118, %v2122
        %v2136 = vsel %vm2135, %v2118, %v2122
        %vm2137 = vcmp.gt.s32.totalorder %v2119, %v2123
        %v2138 = vsel %vm2137, %v2119, %v2123
        %vm2139 = vcmp.gt.s32.totalorder %v2120, %v2124
        %v2140 = vsel %vm2139, %v2120, %v2124
        %vm2141 = vcmp.gt.s32.totalorder %v2134, %v2125
        %v2142 = vsel %vm2141, %v2134, %v2125
        %vm2143 = vcmp.gt.s32.totalorder %v2136, %v2126
        %v2144 = vsel %vm2143, %v2136, %v2126
        %vm2145 = vcmp.gt.s32.totalorder %v2138, %v2127
        %v2146 = vsel %vm2145, %v2138, %v2127
        %vm2147 = vcmp.gt.s32.totalorder %v2140, %v2128
        %v2148 = vsel %vm2147, %v2140, %v2128
        %vm2149 = vcmp.gt.s32.totalorder %v2142, %v2129
        %v2150 = vsel %vm2149, %v2142, %v2129
        %vm2151 = vcmp.gt.s32.totalorder %v2144, %v2130
        %v2152 = vsel %vm2151, %v2144, %v2130
        %vm2153 = vcmp.gt.s32.totalorder %v2146, %v2131
        %v2154 = vsel %vm2153, %v2146, %v2131
        %vm2155 = vcmp.gt.s32.totalorder %v2148, %v2132
        %v2156 = vsel %vm2155, %v2148, %v2132
        %vm2157 = vcmp.gt.s32.totalorder %v2150, %v2152
        %v2158 = vsel %vm2157, %v2150, %v2152
        %vm2159 = vcmp.gt.s32.totalorder %v2154, %v2156
        %v2160 = vsel %vm2159, %v2154, %v2156
        %vm2161 = vcmp.gt.s32.totalorder %v2158, %v2160
        %v2162 = vsel %vm2161, %v2158, %v2160
        %v2163 = vrot.slane %v2162, 4
        %vm2164 = vcmp.gt.s32.totalorder %v2162, %v2163
        %v2165 = vsel %vm2164, %v2162, %v2163
        %v2166 = vrot.slane %v2165, 2
        %vm2167 = vcmp.gt.s32.totalorder %v2165, %v2166
        %v2168 = vsel %vm2167, %v2165, %v2166
        %v2169 = vrot.slane %v2168, 1
        %vm2170 = vcmp.gt.s32.totalorder %v2168, %v2169
        %v2171 = vsel %vm2170, %v2168, %v2169
        %vm2172 = vcmp.gt.s32.totalorder %v1493, %v2171
        %v2173 = vsel %vm2172, %v1493, %v2171
        %vm2174 = vcmp.eq.s32.totalorder %v1642, %v812
        %vm2175 = vcmp.eq.s32.totalorder %v1645, %v812
        %vm2176 = vcmp.eq.s32.totalorder %v1648, %v812
        %vm2177 = vcmp.eq.s32.totalorder %v1651, %v812
        %vm2178 = vcmp.eq.s32.totalorder %v1654, %v812
        %vm2179 = vcmp.eq.s32.totalorder %v1657, %v812
        %vm2180 = vcmp.eq.s32.totalorder %v1660, %v812
        %vm2181 = vcmp.eq.s32.totalorder %v1663, %v812
        %vm2182 = vcmp.eq.s32.totalorder %v1666, %v812
        %vm2183 = vcmp.eq.s32.totalorder %v1669, %v812
        %vm2184 = vcmp.eq.s32.totalorder %v1672, %v812
        %vm2185 = vcmp.eq.s32.totalorder %v1675, %v812
        %vm2186 = vcmp.eq.s32.totalorder %v1678, %v812
        %vm2187 = vcmp.eq.s32.totalorder %v1681, %v812
        %vm2188 = vcmp.eq.s32.totalorder %v1684, %v812
        %vm2189 = vcmp.eq.s32.totalorder %v1687, %v812
        %v2190 = vsel %vm2174, %v1706, 4294967295
        %v2191 = vsel %vm2175, %v1709, 4294967295
        %v2192 = vsel %vm2176, %v1712, 4294967295
        %v2193 = vsel %vm2177, %v1715, 4294967295
        %v2194 = vsel %vm2178, %v1718, 4294967295
        %v2195 = vsel %vm2179, %v1721, 4294967295
        %v2196 = vsel %vm2180, %v1724, 4294967295
        %v2197 = vsel %vm2181, %v1727, 4294967295
        %v2198 = vsel %vm2182, %v1730, 4294967295
        %v2199 = vsel %vm2183, %v1733, 4294967295
        %v2200 = vsel %vm2184, %v1736, 4294967295
        %v2201 = vsel %vm2185, %v1739, 4294967295
        %v2202 = vsel %vm2186, %v1742, 4294967295
        %v2203 = vsel %vm2187, %v1745, 4294967295
        %v2204 = vsel %vm2188, %v1748, 4294967295
        %v2205 = vsel %vm2189, %v1751, 4294967295
        %vm2206 = vcmp.gt.s32.totalorder %v2190, %v2194
        %v2207 = vsel %vm2206, %v2190, %v2194
        %vm2208 = vcmp.gt.s32.totalorder %v2191, %v2195
        %v2209 = vsel %vm2208, %v2191, %v2195
        %vm2210 = vcmp.gt.s32.totalorder %v2192, %v2196
        %v2211 = vsel %vm2210, %v2192, %v2196
        %vm2212 = vcmp.gt.s32.totalorder %v2193, %v2197
        %v2213 = vsel %vm2212, %v2193, %v2197
        %vm2214 = vcmp.gt.s32.totalorder %v2207, %v2198
        %v2215 = vsel %vm2214, %v2207, %v2198
        %vm2216 = vcmp.gt.s32.totalorder %v2209, %v2199
        %v2217 = vsel %vm2216, %v2209, %v2199
        %vm2218 = vcmp.gt.s32.totalorder %v2211, %v2200
        %v2219 = vsel %vm2218, %v2211, %v2200
        %vm2220 = vcmp.gt.s32.totalorder %v2213, %v2201
        %v2221 = vsel %vm2220, %v2213, %v2201
        %vm2222 = vcmp.gt.s32.totalorder %v2215, %v2202
        %v2223 = vsel %vm2222, %v2215, %v2202
        %vm2224 = vcmp.gt.s32.totalorder %v2217, %v2203
        %v2225 = vsel %vm2224, %v2217, %v2203
        %vm2226 = vcmp.gt.s32.totalorder %v2219, %v2204
        %v2227 = vsel %vm2226, %v2219, %v2204
        %vm2228 = vcmp.gt.s32.totalorder %v2221, %v2205
        %v2229 = vsel %vm2228, %v2221, %v2205
        %vm2230 = vcmp.gt.s32.totalorder %v2223, %v2225
        %v2231 = vsel %vm2230, %v2223, %v2225
        %vm2232 = vcmp.gt.s32.totalorder %v2227, %v2229
        %v2233 = vsel %vm2232, %v2227, %v2229
        %vm2234 = vcmp.gt.s32.totalorder %v2231, %v2233
        %v2235 = vsel %vm2234, %v2231, %v2233
        %v2236 = vrot.slane %v2235, 4
        %vm2237 = vcmp.gt.s32.totalorder %v2235, %v2236
        %v2238 = vsel %vm2237, %v2235, %v2236
        %v2239 = vrot.slane %v2238, 2
        %vm2240 = vcmp.gt.s32.totalorder %v2238, %v2239
        %v2241 = vsel %vm2240, %v2238, %v2239
        %v2242 = vrot.slane %v2241, 1
        %vm2243 = vcmp.gt.s32.totalorder %v2241, %v2242
        %v2244 = vsel %vm2243, %v2241, %v2242
        %vm2245 = vcmp.gt.s32.totalorder %v1566, %v2244
        %v2246 = vsel %vm2245, %v1566, %v2244
        %vm2247 = vcmp.eq.s32.totalorder %v1642, %v886
        %vm2248 = vcmp.eq.s32.totalorder %v1645, %v886
        %vm2249 = vcmp.eq.s32.totalorder %v1648, %v886
        %vm2250 = vcmp.eq.s32.totalorder %v1651, %v886
        %vm2251 = vcmp.eq.s32.totalorder %v1654, %v886
        %vm2252 = vcmp.eq.s32.totalorder %v1657, %v886
        %vm2253 = vcmp.eq.s32.totalorder %v1660, %v886
        %vm2254 = vcmp.eq.s32.totalorder %v1663, %v886
        %vm2255 = vcmp.eq.s32.totalorder %v1666, %v886
        %vm2256 = vcmp.eq.s32.totalorder %v1669, %v886
        %vm2257 = vcmp.eq.s32.totalorder %v1672, %v886
        %vm2258 = vcmp.eq.s32.totalorder %v1675, %v886
        %vm2259 = vcmp.eq.s32.totalorder %v1678, %v886
        %vm2260 = vcmp.eq.s32.totalorder %v1681, %v886
        %vm2261 = vcmp.eq.s32.totalorder %v1684, %v886
        %vm2262 = vcmp.eq.s32.totalorder %v1687, %v886
        %v2263 = vsel %vm2247, %v1706, 4294967295
        %v2264 = vsel %vm2248, %v1709, 4294967295
        %v2265 = vsel %vm2249, %v1712, 4294967295
        %v2266 = vsel %vm2250, %v1715, 4294967295
        %v2267 = vsel %vm2251, %v1718, 4294967295
        %v2268 = vsel %vm2252, %v1721, 4294967295
        %v2269 = vsel %vm2253, %v1724, 4294967295
        %v2270 = vsel %vm2254, %v1727, 4294967295
        %v2271 = vsel %vm2255, %v1730, 4294967295
        %v2272 = vsel %vm2256, %v1733, 4294967295
        %v2273 = vsel %vm2257, %v1736, 4294967295
        %v2274 = vsel %vm2258, %v1739, 4294967295
        %v2275 = vsel %vm2259, %v1742, 4294967295
        %v2276 = vsel %vm2260, %v1745, 4294967295
        %v2277 = vsel %vm2261, %v1748, 4294967295
        %v2278 = vsel %vm2262, %v1751, 4294967295
        %vm2279 = vcmp.gt.s32.totalorder %v2263, %v2267
        %v2280 = vsel %vm2279, %v2263, %v2267
        %vm2281 = vcmp.gt.s32.totalorder %v2264, %v2268
        %v2282 = vsel %vm2281, %v2264, %v2268
        %vm2283 = vcmp.gt.s32.totalorder %v2265, %v2269
        %v2284 = vsel %vm2283, %v2265, %v2269
        %vm2285 = vcmp.gt.s32.totalorder %v2266, %v2270
        %v2286 = vsel %vm2285, %v2266, %v2270
        %vm2287 = vcmp.gt.s32.totalorder %v2280, %v2271
        %v2288 = vsel %vm2287, %v2280, %v2271
        %vm2289 = vcmp.gt.s32.totalorder %v2282, %v2272
        %v2290 = vsel %vm2289, %v2282, %v2272
        %vm2291 = vcmp.gt.s32.totalorder %v2284, %v2273
        %v2292 = vsel %vm2291, %v2284, %v2273
        %vm2293 = vcmp.gt.s32.totalorder %v2286, %v2274
        %v2294 = vsel %vm2293, %v2286, %v2274
        %vm2295 = vcmp.gt.s32.totalorder %v2288, %v2275
        %v2296 = vsel %vm2295, %v2288, %v2275
        %vm2297 = vcmp.gt.s32.totalorder %v2290, %v2276
        %v2298 = vsel %vm2297, %v2290, %v2276
        %vm2299 = vcmp.gt.s32.totalorder %v2292, %v2277
        %v2300 = vsel %vm2299, %v2292, %v2277
        %vm2301 = vcmp.gt.s32.totalorder %v2294, %v2278
        %v2302 = vsel %vm2301, %v2294, %v2278
        %vm2303 = vcmp.gt.s32.totalorder %v2296, %v2298
        %v2304 = vsel %vm2303, %v2296, %v2298
        %vm2305 = vcmp.gt.s32.totalorder %v2300, %v2302
        %v2306 = vsel %vm2305, %v2300, %v2302
        %vm2307 = vcmp.gt.s32.totalorder %v2304, %v2306
        %v2308 = vsel %vm2307, %v2304, %v2306
        %v2309 = vrot.slane %v2308, 4
        %vm2310 = vcmp.gt.s32.totalorder %v2308, %v2309
        %v2311 = vsel %vm2310, %v2308, %v2309
        %v2312 = vrot.slane %v2311, 2
        %vm2313 = vcmp.gt.s32.totalorder %v2311, %v2312
        %v2314 = vsel %vm2313, %v2311, %v2312
        %v2315 = vrot.slane %v2314, 1
        %vm2316 = vcmp.gt.s32.totalorder %v2314, %v2315
        %v2317 = vsel %vm2316, %v2314, %v2315
        %vm2318 = vcmp.gt.s32.totalorder %v1639, %v2317
        %v2319 = vsel %vm2318, %v1639, %v2317
        %2320 = vset.pattern.permute.xlu0 3
        %2321 = vperm.xlu0 %2320, %v257
        %v2322 = vpop.permute.xlu0 %2321
        %2323 = vset.pattern.permute.xlu0 3
        %2324 = vperm.xlu0 %2323, %v258
        %v2325 = vpop.permute.xlu0 %2324
        %2326 = vset.pattern.permute.xlu0 3
        %2327 = vperm.xlu0 %2326, %v259
        %v2328 = vpop.permute.xlu0 %2327
        %2329 = vset.pattern.permute.xlu0 3
        %2330 = vperm.xlu0 %2329, %v260
        %v2331 = vpop.permute.xlu0 %2330
        %2332 = vset.pattern.permute.xlu0 3
        %2333 = vperm.xlu0 %2332, %v261
        %v2334 = vpop.permute.xlu0 %2333
        %2335 = vset.pattern.permute.xlu0 3
        %2336 = vperm.xlu0 %2335, %v262
        %v2337 = vpop.permute.xlu0 %2336
        %2338 = vset.pattern.permute.xlu0 3
        %2339 = vperm.xlu0 %2338, %v263
        %v2340 = vpop.permute.xlu0 %2339
        %2341 = vset.pattern.permute.xlu0 3
        %2342 = vperm.xlu0 %2341, %v264
        %v2343 = vpop.permute.xlu0 %2342
        %2344 = vset.pattern.permute.xlu0 3
        %2345 = vperm.xlu0 %2344, %v265
        %v2346 = vpop.permute.xlu0 %2345
        %2347 = vset.pattern.permute.xlu0 3
        %2348 = vperm.xlu0 %2347, %v266
        %v2349 = vpop.permute.xlu0 %2348
        %2350 = vset.pattern.permute.xlu0 3
        %2351 = vperm.xlu0 %2350, %v267
        %v2352 = vpop.permute.xlu0 %2351
        %2353 = vset.pattern.permute.xlu0 3
        %2354 = vperm.xlu0 %2353, %v268
        %v2355 = vpop.permute.xlu0 %2354
        %2356 = vset.pattern.permute.xlu0 3
        %2357 = vperm.xlu0 %2356, %v269
        %v2358 = vpop.permute.xlu0 %2357
        %2359 = vset.pattern.permute.xlu0 3
        %2360 = vperm.xlu0 %2359, %v270
        %v2361 = vpop.permute.xlu0 %2360
        %2362 = vset.pattern.permute.xlu0 3
        %2363 = vperm.xlu0 %2362, %v271
        %v2364 = vpop.permute.xlu0 %2363
        %2365 = vset.pattern.permute.xlu0 3
        %2366 = vperm.xlu0 %2365, %v272
        %v2367 = vpop.permute.xlu0 %2366
        %vm2368 = vcmp.eq.s32.totalorder %v2322, %v254
        %vm2369 = vcmp.eq.s32.totalorder %v2325, %v254
        %vm2370 = vcmp.eq.s32.totalorder %v2328, %v254
        %vm2371 = vcmp.eq.s32.totalorder %v2331, %v254
        %vm2372 = vcmp.eq.s32.totalorder %v2334, %v254
        %vm2373 = vcmp.eq.s32.totalorder %v2337, %v254
        %vm2374 = vcmp.eq.s32.totalorder %v2340, %v254
        %vm2375 = vcmp.eq.s32.totalorder %v2343, %v254
        %vm2376 = vcmp.eq.s32.totalorder %v2346, %v254
        %vm2377 = vcmp.eq.s32.totalorder %v2349, %v254
        %vm2378 = vcmp.eq.s32.totalorder %v2352, %v254
        %vm2379 = vcmp.eq.s32.totalorder %v2355, %v254
        %vm2380 = vcmp.eq.s32.totalorder %v2358, %v254
        %vm2381 = vcmp.eq.s32.totalorder %v2361, %v254
        %vm2382 = vcmp.eq.s32.totalorder %v2364, %v254
        %vm2383 = vcmp.eq.s32.totalorder %v2367, %v254
        %2384 = vset.pattern.permute.xlu0 3
        %2385 = vperm.xlu0 %2384, %v236
        %v2386 = vpop.permute.xlu0 %2385
        %2387 = vset.pattern.permute.xlu0 3
        %2388 = vperm.xlu0 %2387, %v237
        %v2389 = vpop.permute.xlu0 %2388
        %2390 = vset.pattern.permute.xlu0 3
        %2391 = vperm.xlu0 %2390, %v238
        %v2392 = vpop.permute.xlu0 %2391
        %2393 = vset.pattern.permute.xlu0 3
        %2394 = vperm.xlu0 %2393, %v239
        %v2395 = vpop.permute.xlu0 %2394
        %2396 = vset.pattern.permute.xlu0 3
        %2397 = vperm.xlu0 %2396, %v240
        %v2398 = vpop.permute.xlu0 %2397
        %2399 = vset.pattern.permute.xlu0 3
        %2400 = vperm.xlu0 %2399, %v241
        %v2401 = vpop.permute.xlu0 %2400
        %2402 = vset.pattern.permute.xlu0 3
        %2403 = vperm.xlu0 %2402, %v242
        %v2404 = vpop.permute.xlu0 %2403
        %2405 = vset.pattern.permute.xlu0 3
        %2406 = vperm.xlu0 %2405, %v243
        %v2407 = vpop.permute.xlu0 %2406
        %2408 = vset.pattern.permute.xlu0 3
        %2409 = vperm.xlu0 %2408, %v244
        %v2410 = vpop.permute.xlu0 %2409
        %2411 = vset.pattern.permute.xlu0 3
        %2412 = vperm.xlu0 %2411, %v245
        %v2413 = vpop.permute.xlu0 %2412
        %2414 = vset.pattern.permute.xlu0 3
        %2415 = vperm.xlu0 %2414, %v246
        %v2416 = vpop.permute.xlu0 %2415
        %2417 = vset.pattern.permute.xlu0 3
        %2418 = vperm.xlu0 %2417, %v247
        %v2419 = vpop.permute.xlu0 %2418
        %2420 = vset.pattern.permute.xlu0 3
        %2421 = vperm.xlu0 %2420, %v248
        %v2422 = vpop.permute.xlu0 %2421
        %2423 = vset.pattern.permute.xlu0 3
        %2424 = vperm.xlu0 %2423, %v249
        %v2425 = vpop.permute.xlu0 %2424
        %2426 = vset.pattern.permute.xlu0 3
        %2427 = vperm.xlu0 %2426, %v250
        %v2428 = vpop.permute.xlu0 %2427
        %2429 = vset.pattern.permute.xlu0 3
        %2430 = vperm.xlu0 %2429, %v251
        %v2431 = vpop.permute.xlu0 %2430
        %v2432 = vsel %vm2368, %v2386, 4294967295
        %v2433 = vsel %vm2369, %v2389, 4294967295
        %v2434 = vsel %vm2370, %v2392, 4294967295
        %v2435 = vsel %vm2371, %v2395, 4294967295
        %v2436 = vsel %vm2372, %v2398, 4294967295
        %v2437 = vsel %vm2373, %v2401, 4294967295
        %v2438 = vsel %vm2374, %v2404, 4294967295
        %v2439 = vsel %vm2375, %v2407, 4294967295
        %v2440 = vsel %vm2376, %v2410, 4294967295
        %v2441 = vsel %vm2377, %v2413, 4294967295
        %v2442 = vsel %vm2378, %v2416, 4294967295
        %v2443 = vsel %vm2379, %v2419, 4294967295
        %v2444 = vsel %vm2380, %v2422, 4294967295
        %v2445 = vsel %vm2381, %v2425, 4294967295
        %v2446 = vsel %vm2382, %v2428, 4294967295
        %v2447 = vsel %vm2383, %v2431, 4294967295
        %vm2448 = vcmp.gt.s32.totalorder %v2432, %v2436
        %v2449 = vsel %vm2448, %v2432, %v2436
        %vm2450 = vcmp.gt.s32.totalorder %v2433, %v2437
        %v2451 = vsel %vm2450, %v2433, %v2437
        %vm2452 = vcmp.gt.s32.totalorder %v2434, %v2438
        %v2453 = vsel %vm2452, %v2434, %v2438
        %vm2454 = vcmp.gt.s32.totalorder %v2435, %v2439
        %v2455 = vsel %vm2454, %v2435, %v2439
        %vm2456 = vcmp.gt.s32.totalorder %v2449, %v2440
        %v2457 = vsel %vm2456, %v2449, %v2440
        %vm2458 = vcmp.gt.s32.totalorder %v2451, %v2441
        %v2459 = vsel %vm2458, %v2451, %v2441
        %vm2460 = vcmp.gt.s32.totalorder %v2453, %v2442
        %v2461 = vsel %vm2460, %v2453, %v2442
        %vm2462 = vcmp.gt.s32.totalorder %v2455, %v2443
        %v2463 = vsel %vm2462, %v2455, %v2443
        %vm2464 = vcmp.gt.s32.totalorder %v2457, %v2444
        %v2465 = vsel %vm2464, %v2457, %v2444
        %vm2466 = vcmp.gt.s32.totalorder %v2459, %v2445
        %v2467 = vsel %vm2466, %v2459, %v2445
        %vm2468 = vcmp.gt.s32.totalorder %v2461, %v2446
        %v2469 = vsel %vm2468, %v2461, %v2446
        %vm2470 = vcmp.gt.s32.totalorder %v2463, %v2447
        %v2471 = vsel %vm2470, %v2463, %v2447
        %vm2472 = vcmp.gt.s32.totalorder %v2465, %v2467
        %v2473 = vsel %vm2472, %v2465, %v2467
        %vm2474 = vcmp.gt.s32.totalorder %v2469, %v2471
        %v2475 = vsel %vm2474, %v2469, %v2471
        %vm2476 = vcmp.gt.s32.totalorder %v2473, %v2475
        %v2477 = vsel %vm2476, %v2473, %v2475
        %v2478 = vrot.slane %v2477, 4
        %vm2479 = vcmp.gt.s32.totalorder %v2477, %v2478
        %v2480 = vsel %vm2479, %v2477, %v2478
        %v2481 = vrot.slane %v2480, 2
        %vm2482 = vcmp.gt.s32.totalorder %v2480, %v2481
        %v2483 = vsel %vm2482, %v2480, %v2481
        %v2484 = vrot.slane %v2483, 1
        %vm2485 = vcmp.gt.s32.totalorder %v2483, %v2484
        %v2486 = vsel %vm2485, %v2483, %v2484
        %vm2487 = vcmp.gt.s32.totalorder %v1808, %v2486
        %v2488 = vsel %vm2487, %v1808, %v2486
        %vm2489 = vcmp.eq.s32.totalorder %v2322, %v442
        %vm2490 = vcmp.eq.s32.totalorder %v2325, %v442
        %vm2491 = vcmp.eq.s32.totalorder %v2328, %v442
        %vm2492 = vcmp.eq.s32.totalorder %v2331, %v442
        %vm2493 = vcmp.eq.s32.totalorder %v2334, %v442
        %vm2494 = vcmp.eq.s32.totalorder %v2337, %v442
        %vm2495 = vcmp.eq.s32.totalorder %v2340, %v442
        %vm2496 = vcmp.eq.s32.totalorder %v2343, %v442
        %vm2497 = vcmp.eq.s32.totalorder %v2346, %v442
        %vm2498 = vcmp.eq.s32.totalorder %v2349, %v442
        %vm2499 = vcmp.eq.s32.totalorder %v2352, %v442
        %vm2500 = vcmp.eq.s32.totalorder %v2355, %v442
        %vm2501 = vcmp.eq.s32.totalorder %v2358, %v442
        %vm2502 = vcmp.eq.s32.totalorder %v2361, %v442
        %vm2503 = vcmp.eq.s32.totalorder %v2364, %v442
        %vm2504 = vcmp.eq.s32.totalorder %v2367, %v442
        %v2505 = vsel %vm2489, %v2386, 4294967295
        %v2506 = vsel %vm2490, %v2389, 4294967295
        %v2507 = vsel %vm2491, %v2392, 4294967295
        %v2508 = vsel %vm2492, %v2395, 4294967295
        %v2509 = vsel %vm2493, %v2398, 4294967295
        %v2510 = vsel %vm2494, %v2401, 4294967295
        %v2511 = vsel %vm2495, %v2404, 4294967295
        %v2512 = vsel %vm2496, %v2407, 4294967295
        %v2513 = vsel %vm2497, %v2410, 4294967295
        %v2514 = vsel %vm2498, %v2413, 4294967295
        %v2515 = vsel %vm2499, %v2416, 4294967295
        %v2516 = vsel %vm2500, %v2419, 4294967295
        %v2517 = vsel %vm2501, %v2422, 4294967295
        %v2518 = vsel %vm2502, %v2425, 4294967295
        %v2519 = vsel %vm2503, %v2428, 4294967295
        %v2520 = vsel %vm2504, %v2431, 4294967295
        %vm2521 = vcmp.gt.s32.totalorder %v2505, %v2509
        %v2522 = vsel %vm2521, %v2505, %v2509
        %vm2523 = vcmp.gt.s32.totalorder %v2506, %v2510
        %v2524 = vsel %vm2523, %v2506, %v2510
        %vm2525 = vcmp.gt.s32.totalorder %v2507, %v2511
        %v2526 = vsel %vm2525, %v2507, %v2511
        %vm2527 = vcmp.gt.s32.totalorder %v2508, %v2512
        %v2528 = vsel %vm2527, %v2508, %v2512
        %vm2529 = vcmp.gt.s32.totalorder %v2522, %v2513
        %v2530 = vsel %vm2529, %v2522, %v2513
        %vm2531 = vcmp.gt.s32.totalorder %v2524, %v2514
        %v2532 = vsel %vm2531, %v2524, %v2514
        %vm2533 = vcmp.gt.s32.totalorder %v2526, %v2515
        %v2534 = vsel %vm2533, %v2526, %v2515
        %vm2535 = vcmp.gt.s32.totalorder %v2528, %v2516
        %v2536 = vsel %vm2535, %v2528, %v2516
        %vm2537 = vcmp.gt.s32.totalorder %v2530, %v2517
        %v2538 = vsel %vm2537, %v2530, %v2517
        %vm2539 = vcmp.gt.s32.totalorder %v2532, %v2518
        %v2540 = vsel %vm2539, %v2532, %v2518
        %vm2541 = vcmp.gt.s32.totalorder %v2534, %v2519
        %v2542 = vsel %vm2541, %v2534, %v2519
        %vm2543 = vcmp.gt.s32.totalorder %v2536, %v2520
        %v2544 = vsel %vm2543, %v2536, %v2520
        %vm2545 = vcmp.gt.s32.totalorder %v2538, %v2540
        %v2546 = vsel %vm2545, %v2538, %v2540
        %vm2547 = vcmp.gt.s32.totalorder %v2542, %v2544
        %v2548 = vsel %vm2547, %v2542, %v2544
        %vm2549 = vcmp.gt.s32.totalorder %v2546, %v2548
        %v2550 = vsel %vm2549, %v2546, %v2548
        %v2551 = vrot.slane %v2550, 4
        %vm2552 = vcmp.gt.s32.totalorder %v2550, %v2551
        %v2553 = vsel %vm2552, %v2550, %v2551
        %v2554 = vrot.slane %v2553, 2
        %vm2555 = vcmp.gt.s32.totalorder %v2553, %v2554
        %v2556 = vsel %vm2555, %v2553, %v2554
        %v2557 = vrot.slane %v2556, 1
        %vm2558 = vcmp.gt.s32.totalorder %v2556, %v2557
        %v2559 = vsel %vm2558, %v2556, %v2557
        %vm2560 = vcmp.gt.s32.totalorder %v1881, %v2559
        %v2561 = vsel %vm2560, %v1881, %v2559
        %vm2562 = vcmp.eq.s32.totalorder %v2322, %v516
        %vm2563 = vcmp.eq.s32.totalorder %v2325, %v516
        %vm2564 = vcmp.eq.s32.totalorder %v2328, %v516
        %vm2565 = vcmp.eq.s32.totalorder %v2331, %v516
        %vm2566 = vcmp.eq.s32.totalorder %v2334, %v516
        %vm2567 = vcmp.eq.s32.totalorder %v2337, %v516
        %vm2568 = vcmp.eq.s32.totalorder %v2340, %v516
        %vm2569 = vcmp.eq.s32.totalorder %v2343, %v516
        %vm2570 = vcmp.eq.s32.totalorder %v2346, %v516
        %vm2571 = vcmp.eq.s32.totalorder %v2349, %v516
        %vm2572 = vcmp.eq.s32.totalorder %v2352, %v516
        %vm2573 = vcmp.eq.s32.totalorder %v2355, %v516
        %vm2574 = vcmp.eq.s32.totalorder %v2358, %v516
        %vm2575 = vcmp.eq.s32.totalorder %v2361, %v516
        %vm2576 = vcmp.eq.s32.totalorder %v2364, %v516
        %vm2577 = vcmp.eq.s32.totalorder %v2367, %v516
        %v2578 = vsel %vm2562, %v2386, 4294967295
        %v2579 = vsel %vm2563, %v2389, 4294967295
        %v2580 = vsel %vm2564, %v2392, 4294967295
        %v2581 = vsel %vm2565, %v2395, 4294967295
        %v2582 = vsel %vm2566, %v2398, 4294967295
        %v2583 = vsel %vm2567, %v2401, 4294967295
        %v2584 = vsel %vm2568, %v2404, 4294967295
        %v2585 = vsel %vm2569, %v2407, 4294967295
        %v2586 = vsel %vm2570, %v2410, 4294967295
        %v2587 = vsel %vm2571, %v2413, 4294967295
        %v2588 = vsel %vm2572, %v2416, 4294967295
        %v2589 = vsel %vm2573, %v2419, 4294967295
        %v2590 = vsel %vm2574, %v2422, 4294967295
        %v2591 = vsel %vm2575, %v2425, 4294967295
        %v2592 = vsel %vm2576, %v2428, 4294967295
        %v2593 = vsel %vm2577, %v2431, 4294967295
        %vm2594 = vcmp.gt.s32.totalorder %v2578, %v2582
        %v2595 = vsel %vm2594, %v2578, %v2582
        %vm2596 = vcmp.gt.s32.totalorder %v2579, %v2583
        %v2597 = vsel %vm2596, %v2579, %v2583
        %vm2598 = vcmp.gt.s32.totalorder %v2580, %v2584
        %v2599 = vsel %vm2598, %v2580, %v2584
        %vm2600 = vcmp.gt.s32.totalorder %v2581, %v2585
        %v2601 = vsel %vm2600, %v2581, %v2585
        %vm2602 = vcmp.gt.s32.totalorder %v2595, %v2586
        %v2603 = vsel %vm2602, %v2595, %v2586
        %vm2604 = vcmp.gt.s32.totalorder %v2597, %v2587
        %v2605 = vsel %vm2604, %v2597, %v2587
        %vm2606 = vcmp.gt.s32.totalorder %v2599, %v2588
        %v2607 = vsel %vm2606, %v2599, %v2588
        %vm2608 = vcmp.gt.s32.totalorder %v2601, %v2589
        %v2609 = vsel %vm2608, %v2601, %v2589
        %vm2610 = vcmp.gt.s32.totalorder %v2603, %v2590
        %v2611 = vsel %vm2610, %v2603, %v2590
        %vm2612 = vcmp.gt.s32.totalorder %v2605, %v2591
        %v2613 = vsel %vm2612, %v2605, %v2591
        %vm2614 = vcmp.gt.s32.totalorder %v2607, %v2592
        %v2615 = vsel %vm2614, %v2607, %v2592
        %vm2616 = vcmp.gt.s32.totalorder %v2609, %v2593
        %v2617 = vsel %vm2616, %v2609, %v2593
        %vm2618 = vcmp.gt.s32.totalorder %v2611, %v2613
        %v2619 = vsel %vm2618, %v2611, %v2613
        %vm2620 = vcmp.gt.s32.totalorder %v2615, %v2617
        %v2621 = vsel %vm2620, %v2615, %v2617
        %vm2622 = vcmp.gt.s32.totalorder %v2619, %v2621
        %v2623 = vsel %vm2622, %v2619, %v2621
        %v2624 = vrot.slane %v2623, 4
        %vm2625 = vcmp.gt.s32.totalorder %v2623, %v2624
        %v2626 = vsel %vm2625, %v2623, %v2624
        %v2627 = vrot.slane %v2626, 2
        %vm2628 = vcmp.gt.s32.totalorder %v2626, %v2627
        %v2629 = vsel %vm2628, %v2626, %v2627
        %v2630 = vrot.slane %v2629, 1
        %vm2631 = vcmp.gt.s32.totalorder %v2629, %v2630
        %v2632 = vsel %vm2631, %v2629, %v2630
        %vm2633 = vcmp.gt.s32.totalorder %v1954, %v2632
        %v2634 = vsel %vm2633, %v1954, %v2632
        %vm2635 = vcmp.eq.s32.totalorder %v2322, %v590
        %vm2636 = vcmp.eq.s32.totalorder %v2325, %v590
        %vm2637 = vcmp.eq.s32.totalorder %v2328, %v590
        %vm2638 = vcmp.eq.s32.totalorder %v2331, %v590
        %vm2639 = vcmp.eq.s32.totalorder %v2334, %v590
        %vm2640 = vcmp.eq.s32.totalorder %v2337, %v590
        %vm2641 = vcmp.eq.s32.totalorder %v2340, %v590
        %vm2642 = vcmp.eq.s32.totalorder %v2343, %v590
        %vm2643 = vcmp.eq.s32.totalorder %v2346, %v590
        %vm2644 = vcmp.eq.s32.totalorder %v2349, %v590
        %vm2645 = vcmp.eq.s32.totalorder %v2352, %v590
        %vm2646 = vcmp.eq.s32.totalorder %v2355, %v590
        %vm2647 = vcmp.eq.s32.totalorder %v2358, %v590
        %vm2648 = vcmp.eq.s32.totalorder %v2361, %v590
        %vm2649 = vcmp.eq.s32.totalorder %v2364, %v590
        %vm2650 = vcmp.eq.s32.totalorder %v2367, %v590
        %v2651 = vsel %vm2635, %v2386, 4294967295
        %v2652 = vsel %vm2636, %v2389, 4294967295
        %v2653 = vsel %vm2637, %v2392, 4294967295
        %v2654 = vsel %vm2638, %v2395, 4294967295
        %v2655 = vsel %vm2639, %v2398, 4294967295
        %v2656 = vsel %vm2640, %v2401, 4294967295
        %v2657 = vsel %vm2641, %v2404, 4294967295
        %v2658 = vsel %vm2642, %v2407, 4294967295
        %v2659 = vsel %vm2643, %v2410, 4294967295
        %v2660 = vsel %vm2644, %v2413, 4294967295
        %v2661 = vsel %vm2645, %v2416, 4294967295
        %v2662 = vsel %vm2646, %v2419, 4294967295
        %v2663 = vsel %vm2647, %v2422, 4294967295
        %v2664 = vsel %vm2648, %v2425, 4294967295
        %v2665 = vsel %vm2649, %v2428, 4294967295
        %v2666 = vsel %vm2650, %v2431, 4294967295
        %vm2667 = vcmp.gt.s32.totalorder %v2651, %v2655
        %v2668 = vsel %vm2667, %v2651, %v2655
        %vm2669 = vcmp.gt.s32.totalorder %v2652, %v2656
        %v2670 = vsel %vm2669, %v2652, %v2656
        %vm2671 = vcmp.gt.s32.totalorder %v2653, %v2657
        %v2672 = vsel %vm2671, %v2653, %v2657
        %vm2673 = vcmp.gt.s32.totalorder %v2654, %v2658
        %v2674 = vsel %vm2673, %v2654, %v2658
        %vm2675 = vcmp.gt.s32.totalorder %v2668, %v2659
        %v2676 = vsel %vm2675, %v2668, %v2659
        %vm2677 = vcmp.gt.s32.totalorder %v2670, %v2660
        %v2678 = vsel %vm2677, %v2670, %v2660
        %vm2679 = vcmp.gt.s32.totalorder %v2672, %v2661
        %v2680 = vsel %vm2679, %v2672, %v2661
        %vm2681 = vcmp.gt.s32.totalorder %v2674, %v2662
        %v2682 = vsel %vm2681, %v2674, %v2662
        %vm2683 = vcmp.gt.s32.totalorder %v2676, %v2663
        %v2684 = vsel %vm2683, %v2676, %v2663
        %vm2685 = vcmp.gt.s32.totalorder %v2678, %v2664
        %v2686 = vsel %vm2685, %v2678, %v2664
        %vm2687 = vcmp.gt.s32.totalorder %v2680, %v2665
        %v2688 = vsel %vm2687, %v2680, %v2665
        %vm2689 = vcmp.gt.s32.totalorder %v2682, %v2666
        %v2690 = vsel %vm2689, %v2682, %v2666
        %vm2691 = vcmp.gt.s32.totalorder %v2684, %v2686
        %v2692 = vsel %vm2691, %v2684, %v2686
        %vm2693 = vcmp.gt.s32.totalorder %v2688, %v2690
        %v2694 = vsel %vm2693, %v2688, %v2690
        %vm2695 = vcmp.gt.s32.totalorder %v2692, %v2694
        %v2696 = vsel %vm2695, %v2692, %v2694
        %v2697 = vrot.slane %v2696, 4
        %vm2698 = vcmp.gt.s32.totalorder %v2696, %v2697
        %v2699 = vsel %vm2698, %v2696, %v2697
        %v2700 = vrot.slane %v2699, 2
        %vm2701 = vcmp.gt.s32.totalorder %v2699, %v2700
        %v2702 = vsel %vm2701, %v2699, %v2700
        %v2703 = vrot.slane %v2702, 1
        %vm2704 = vcmp.gt.s32.totalorder %v2702, %v2703
        %v2705 = vsel %vm2704, %v2702, %v2703
        %vm2706 = vcmp.gt.s32.totalorder %v2027, %v2705
        %v2707 = vsel %vm2706, %v2027, %v2705
        %vm2708 = vcmp.eq.s32.totalorder %v2322, %v664
        %vm2709 = vcmp.eq.s32.totalorder %v2325, %v664
        %vm2710 = vcmp.eq.s32.totalorder %v2328, %v664
        %vm2711 = vcmp.eq.s32.totalorder %v2331, %v664
        %vm2712 = vcmp.eq.s32.totalorder %v2334, %v664
        %vm2713 = vcmp.eq.s32.totalorder %v2337, %v664
        %vm2714 = vcmp.eq.s32.totalorder %v2340, %v664
        %vm2715 = vcmp.eq.s32.totalorder %v2343, %v664
        %vm2716 = vcmp.eq.s32.totalorder %v2346, %v664
        %vm2717 = vcmp.eq.s32.totalorder %v2349, %v664
        %vm2718 = vcmp.eq.s32.totalorder %v2352, %v664
        %vm2719 = vcmp.eq.s32.totalorder %v2355, %v664
        %vm2720 = vcmp.eq.s32.totalorder %v2358, %v664
        %vm2721 = vcmp.eq.s32.totalorder %v2361, %v664
        %vm2722 = vcmp.eq.s32.totalorder %v2364, %v664
        %vm2723 = vcmp.eq.s32.totalorder %v2367, %v664
        %v2724 = vsel %vm2708, %v2386, 4294967295
        %v2725 = vsel %vm2709, %v2389, 4294967295
        %v2726 = vsel %vm2710, %v2392, 4294967295
        %v2727 = vsel %vm2711, %v2395, 4294967295
        %v2728 = vsel %vm2712, %v2398, 4294967295
        %v2729 = vsel %vm2713, %v2401, 4294967295
        %v2730 = vsel %vm2714, %v2404, 4294967295
        %v2731 = vsel %vm2715, %v2407, 4294967295
        %v2732 = vsel %vm2716, %v2410, 4294967295
        %v2733 = vsel %vm2717, %v2413, 4294967295
        %v2734 = vsel %vm2718, %v2416, 4294967295
        %v2735 = vsel %vm2719, %v2419, 4294967295
        %v2736 = vsel %vm2720, %v2422, 4294967295
        %v2737 = vsel %vm2721, %v2425, 4294967295
        %v2738 = vsel %vm2722, %v2428, 4294967295
        %v2739 = vsel %vm2723, %v2431, 4294967295
        %vm2740 = vcmp.gt.s32.totalorder %v2724, %v2728
        %v2741 = vsel %vm2740, %v2724, %v2728
        %vm2742 = vcmp.gt.s32.totalorder %v2725, %v2729
        %v2743 = vsel %vm2742, %v2725, %v2729
        %vm2744 = vcmp.gt.s32.totalorder %v2726, %v2730
        %v2745 = vsel %vm2744, %v2726, %v2730
        %vm2746 = vcmp.gt.s32.totalorder %v2727, %v2731
        %v2747 = vsel %vm2746, %v2727, %v2731
        %vm2748 = vcmp.gt.s32.totalorder %v2741, %v2732
        %v2749 = vsel %vm2748, %v2741, %v2732
        %vm2750 = vcmp.gt.s32.totalorder %v2743, %v2733
        %v2751 = vsel %vm2750, %v2743, %v2733
        %vm2752 = vcmp.gt.s32.totalorder %v2745, %v2734
        %v2753 = vsel %vm2752, %v2745, %v2734
        %vm2754 = vcmp.gt.s32.totalorder %v2747, %v2735
        %v2755 = vsel %vm2754, %v2747, %v2735
        %vm2756 = vcmp.gt.s32.totalorder %v2749, %v2736
        %v2757 = vsel %vm2756, %v2749, %v2736
        %vm2758 = vcmp.gt.s32.totalorder %v2751, %v2737
        %v2759 = vsel %vm2758, %v2751, %v2737
        %vm2760 = vcmp.gt.s32.totalorder %v2753, %v2738
        %v2761 = vsel %vm2760, %v2753, %v2738
        %vm2762 = vcmp.gt.s32.totalorder %v2755, %v2739
        %v2763 = vsel %vm2762, %v2755, %v2739
        %vm2764 = vcmp.gt.s32.totalorder %v2757, %v2759
        %v2765 = vsel %vm2764, %v2757, %v2759
        %vm2766 = vcmp.gt.s32.totalorder %v2761, %v2763
        %v2767 = vsel %vm2766, %v2761, %v2763
        %vm2768 = vcmp.gt.s32.totalorder %v2765, %v2767
        %v2769 = vsel %vm2768, %v2765, %v2767
        %v2770 = vrot.slane %v2769, 4
        %vm2771 = vcmp.gt.s32.totalorder %v2769, %v2770
        %v2772 = vsel %vm2771, %v2769, %v2770
        %v2773 = vrot.slane %v2772, 2
        %vm2774 = vcmp.gt.s32.totalorder %v2772, %v2773
        %v2775 = vsel %vm2774, %v2772, %v2773
        %v2776 = vrot.slane %v2775, 1
        %vm2777 = vcmp.gt.s32.totalorder %v2775, %v2776
        %v2778 = vsel %vm2777, %v2775, %v2776
        %vm2779 = vcmp.gt.s32.totalorder %v2100, %v2778
        %v2780 = vsel %vm2779, %v2100, %v2778
        %vm2781 = vcmp.eq.s32.totalorder %v2322, %v738
        %vm2782 = vcmp.eq.s32.totalorder %v2325, %v738
        %vm2783 = vcmp.eq.s32.totalorder %v2328, %v738
        %vm2784 = vcmp.eq.s32.totalorder %v2331, %v738
        %vm2785 = vcmp.eq.s32.totalorder %v2334, %v738
        %vm2786 = vcmp.eq.s32.totalorder %v2337, %v738
        %vm2787 = vcmp.eq.s32.totalorder %v2340, %v738
        %vm2788 = vcmp.eq.s32.totalorder %v2343, %v738
        %vm2789 = vcmp.eq.s32.totalorder %v2346, %v738
        %vm2790 = vcmp.eq.s32.totalorder %v2349, %v738
        %vm2791 = vcmp.eq.s32.totalorder %v2352, %v738
        %vm2792 = vcmp.eq.s32.totalorder %v2355, %v738
        %vm2793 = vcmp.eq.s32.totalorder %v2358, %v738
        %vm2794 = vcmp.eq.s32.totalorder %v2361, %v738
        %vm2795 = vcmp.eq.s32.totalorder %v2364, %v738
        %vm2796 = vcmp.eq.s32.totalorder %v2367, %v738
        %v2797 = vsel %vm2781, %v2386, 4294967295
        %v2798 = vsel %vm2782, %v2389, 4294967295
        %v2799 = vsel %vm2783, %v2392, 4294967295
        %v2800 = vsel %vm2784, %v2395, 4294967295
        %v2801 = vsel %vm2785, %v2398, 4294967295
        %v2802 = vsel %vm2786, %v2401, 4294967295
        %v2803 = vsel %vm2787, %v2404, 4294967295
        %v2804 = vsel %vm2788, %v2407, 4294967295
        %v2805 = vsel %vm2789, %v2410, 4294967295
        %v2806 = vsel %vm2790, %v2413, 4294967295
        %v2807 = vsel %vm2791, %v2416, 4294967295
        %v2808 = vsel %vm2792, %v2419, 4294967295
        %v2809 = vsel %vm2793, %v2422, 4294967295
        %v2810 = vsel %vm2794, %v2425, 4294967295
        %v2811 = vsel %vm2795, %v2428, 4294967295
        %v2812 = vsel %vm2796, %v2431, 4294967295
        %vm2813 = vcmp.gt.s32.totalorder %v2797, %v2801
        %v2814 = vsel %vm2813, %v2797, %v2801
        %vm2815 = vcmp.gt.s32.totalorder %v2798, %v2802
        %v2816 = vsel %vm2815, %v2798, %v2802
        %vm2817 = vcmp.gt.s32.totalorder %v2799, %v2803
        %v2818 = vsel %vm2817, %v2799, %v2803
        %vm2819 = vcmp.gt.s32.totalorder %v2800, %v2804
        %v2820 = vsel %vm2819, %v2800, %v2804
        %vm2821 = vcmp.gt.s32.totalorder %v2814, %v2805
        %v2822 = vsel %vm2821, %v2814, %v2805
        %vm2823 = vcmp.gt.s32.totalorder %v2816, %v2806
        %v2824 = vsel %vm2823, %v2816, %v2806
        %vm2825 = vcmp.gt.s32.totalorder %v2818, %v2807
        %v2826 = vsel %vm2825, %v2818, %v2807
        %vm2827 = vcmp.gt.s32.totalorder %v2820, %v2808
        %v2828 = vsel %vm2827, %v2820, %v2808
        %vm2829 = vcmp.gt.s32.totalorder %v2822, %v2809
        %v2830 = vsel %vm2829, %v2822, %v2809
        %vm2831 = vcmp.gt.s32.totalorder %v2824, %v2810
        %v2832 = vsel %vm2831, %v2824, %v2810
        %vm2833 = vcmp.gt.s32.totalorder %v2826, %v2811
        %v2834 = vsel %vm2833, %v2826, %v2811
        %vm2835 = vcmp.gt.s32.totalorder %v2828, %v2812
        %v2836 = vsel %vm2835, %v2828, %v2812
        %vm2837 = vcmp.gt.s32.totalorder %v2830, %v2832
        %v2838 = vsel %vm2837, %v2830, %v2832
        %vm2839 = vcmp.gt.s32.totalorder %v2834, %v2836
        %v2840 = vsel %vm2839, %v2834, %v2836
        %vm2841 = vcmp.gt.s32.totalorder %v2838, %v2840
        %v2842 = vsel %vm2841, %v2838, %v2840
        %v2843 = vrot.slane %v2842, 4
        %vm2844 = vcmp.gt.s32.totalorder %v2842, %v2843
        %v2845 = vsel %vm2844, %v2842, %v2843
        %v2846 = vrot.slane %v2845, 2
        %vm2847 = vcmp.gt.s32.totalorder %v2845, %v2846
        %v2848 = vsel %vm2847, %v2845, %v2846
        %v2849 = vrot.slane %v2848, 1
        %vm2850 = vcmp.gt.s32.totalorder %v2848, %v2849
        %v2851 = vsel %vm2850, %v2848, %v2849
        %vm2852 = vcmp.gt.s32.totalorder %v2173, %v2851
        %v2853 = vsel %vm2852, %v2173, %v2851
        %vm2854 = vcmp.eq.s32.totalorder %v2322, %v812
        %vm2855 = vcmp.eq.s32.totalorder %v2325, %v812
        %vm2856 = vcmp.eq.s32.totalorder %v2328, %v812
        %vm2857 = vcmp.eq.s32.totalorder %v2331, %v812
        %vm2858 = vcmp.eq.s32.totalorder %v2334, %v812
        %vm2859 = vcmp.eq.s32.totalorder %v2337, %v812
        %vm2860 = vcmp.eq.s32.totalorder %v2340, %v812
        %vm2861 = vcmp.eq.s32.totalorder %v2343, %v812
        %vm2862 = vcmp.eq.s32.totalorder %v2346, %v812
        %vm2863 = vcmp.eq.s32.totalorder %v2349, %v812
        %vm2864 = vcmp.eq.s32.totalorder %v2352, %v812
        %vm2865 = vcmp.eq.s32.totalorder %v2355, %v812
        %vm2866 = vcmp.eq.s32.totalorder %v2358, %v812
        %vm2867 = vcmp.eq.s32.totalorder %v2361, %v812
        %vm2868 = vcmp.eq.s32.totalorder %v2364, %v812
        %vm2869 = vcmp.eq.s32.totalorder %v2367, %v812
        %v2870 = vsel %vm2854, %v2386, 4294967295
        %v2871 = vsel %vm2855, %v2389, 4294967295
        %v2872 = vsel %vm2856, %v2392, 4294967295
        %v2873 = vsel %vm2857, %v2395, 4294967295
        %v2874 = vsel %vm2858, %v2398, 4294967295
        %v2875 = vsel %vm2859, %v2401, 4294967295
        %v2876 = vsel %vm2860, %v2404, 4294967295
        %v2877 = vsel %vm2861, %v2407, 4294967295
        %v2878 = vsel %vm2862, %v2410, 4294967295
        %v2879 = vsel %vm2863, %v2413, 4294967295
        %v2880 = vsel %vm2864, %v2416, 4294967295
        %v2881 = vsel %vm2865, %v2419, 4294967295
        %v2882 = vsel %vm2866, %v2422, 4294967295
        %v2883 = vsel %vm2867, %v2425, 4294967295
        %v2884 = vsel %vm2868, %v2428, 4294967295
        %v2885 = vsel %vm2869, %v2431, 4294967295
        %vm2886 = vcmp.gt.s32.totalorder %v2870, %v2874
        %v2887 = vsel %vm2886, %v2870, %v2874
        %vm2888 = vcmp.gt.s32.totalorder %v2871, %v2875
        %v2889 = vsel %vm2888, %v2871, %v2875
        %vm2890 = vcmp.gt.s32.totalorder %v2872, %v2876
        %v2891 = vsel %vm2890, %v2872, %v2876
        %vm2892 = vcmp.gt.s32.totalorder %v2873, %v2877
        %v2893 = vsel %vm2892, %v2873, %v2877
        %vm2894 = vcmp.gt.s32.totalorder %v2887, %v2878
        %v2895 = vsel %vm2894, %v2887, %v2878
        %vm2896 = vcmp.gt.s32.totalorder %v2889, %v2879
        %v2897 = vsel %vm2896, %v2889, %v2879
        %vm2898 = vcmp.gt.s32.totalorder %v2891, %v2880
        %v2899 = vsel %vm2898, %v2891, %v2880
        %vm2900 = vcmp.gt.s32.totalorder %v2893, %v2881
        %v2901 = vsel %vm2900, %v2893, %v2881
        %vm2902 = vcmp.gt.s32.totalorder %v2895, %v2882
        %v2903 = vsel %vm2902, %v2895, %v2882
        %vm2904 = vcmp.gt.s32.totalorder %v2897, %v2883
        %v2905 = vsel %vm2904, %v2897, %v2883
        %vm2906 = vcmp.gt.s32.totalorder %v2899, %v2884
        %v2907 = vsel %vm2906, %v2899, %v2884
        %vm2908 = vcmp.gt.s32.totalorder %v2901, %v2885
        %v2909 = vsel %vm2908, %v2901, %v2885
        %vm2910 = vcmp.gt.s32.totalorder %v2903, %v2905
        %v2911 = vsel %vm2910, %v2903, %v2905
        %vm2912 = vcmp.gt.s32.totalorder %v2907, %v2909
        %v2913 = vsel %vm2912, %v2907, %v2909
        %vm2914 = vcmp.gt.s32.totalorder %v2911, %v2913
        %v2915 = vsel %vm2914, %v2911, %v2913
        %v2916 = vrot.slane %v2915, 4
        %vm2917 = vcmp.gt.s32.totalorder %v2915, %v2916
        %v2918 = vsel %vm2917, %v2915, %v2916
        %v2919 = vrot.slane %v2918, 2
        %vm2920 = vcmp.gt.s32.totalorder %v2918, %v2919
        %v2921 = vsel %vm2920, %v2918, %v2919
        %v2922 = vrot.slane %v2921, 1
        %vm2923 = vcmp.gt.s32.totalorder %v2921, %v2922
        %v2924 = vsel %vm2923, %v2921, %v2922
        %vm2925 = vcmp.gt.s32.totalorder %v2246, %v2924
        %v2926 = vsel %vm2925, %v2246, %v2924
        %vm2927 = vcmp.eq.s32.totalorder %v2322, %v886
        %vm2928 = vcmp.eq.s32.totalorder %v2325, %v886
        %vm2929 = vcmp.eq.s32.totalorder %v2328, %v886
        %vm2930 = vcmp.eq.s32.totalorder %v2331, %v886
        %vm2931 = vcmp.eq.s32.totalorder %v2334, %v886
        %vm2932 = vcmp.eq.s32.totalorder %v2337, %v886
        %vm2933 = vcmp.eq.s32.totalorder %v2340, %v886
        %vm2934 = vcmp.eq.s32.totalorder %v2343, %v886
        %vm2935 = vcmp.eq.s32.totalorder %v2346, %v886
        %vm2936 = vcmp.eq.s32.totalorder %v2349, %v886
        %vm2937 = vcmp.eq.s32.totalorder %v2352, %v886
        %vm2938 = vcmp.eq.s32.totalorder %v2355, %v886
        %vm2939 = vcmp.eq.s32.totalorder %v2358, %v886
        %vm2940 = vcmp.eq.s32.totalorder %v2361, %v886
        %vm2941 = vcmp.eq.s32.totalorder %v2364, %v886
        %vm2942 = vcmp.eq.s32.totalorder %v2367, %v886
        %v2943 = vsel %vm2927, %v2386, 4294967295
        %v2944 = vsel %vm2928, %v2389, 4294967295
        %v2945 = vsel %vm2929, %v2392, 4294967295
        %v2946 = vsel %vm2930, %v2395, 4294967295
        %v2947 = vsel %vm2931, %v2398, 4294967295
        %v2948 = vsel %vm2932, %v2401, 4294967295
        %v2949 = vsel %vm2933, %v2404, 4294967295
        %v2950 = vsel %vm2934, %v2407, 4294967295
        %v2951 = vsel %vm2935, %v2410, 4294967295
        %v2952 = vsel %vm2936, %v2413, 4294967295
        %v2953 = vsel %vm2937, %v2416, 4294967295
        %v2954 = vsel %vm2938, %v2419, 4294967295
        %v2955 = vsel %vm2939, %v2422, 4294967295
        %v2956 = vsel %vm2940, %v2425, 4294967295
        %v2957 = vsel %vm2941, %v2428, 4294967295
        %v2958 = vsel %vm2942, %v2431, 4294967295
        %vm2959 = vcmp.gt.s32.totalorder %v2943, %v2947
        %v2960 = vsel %vm2959, %v2943, %v2947
        %vm2961 = vcmp.gt.s32.totalorder %v2944, %v2948
        %v2962 = vsel %vm2961, %v2944, %v2948
        %vm2963 = vcmp.gt.s32.totalorder %v2945, %v2949
        %v2964 = vsel %vm2963, %v2945, %v2949
        %vm2965 = vcmp.gt.s32.totalorder %v2946, %v2950
        %v2966 = vsel %vm2965, %v2946, %v2950
        %vm2967 = vcmp.gt.s32.totalorder %v2960, %v2951
        %v2968 = vsel %vm2967, %v2960, %v2951
        %vm2969 = vcmp.gt.s32.totalorder %v2962, %v2952
        %v2970 = vsel %vm2969, %v2962, %v2952
        %vm2971 = vcmp.gt.s32.totalorder %v2964, %v2953
        %v2972 = vsel %vm2971, %v2964, %v2953
        %vm2973 = vcmp.gt.s32.totalorder %v2966, %v2954
        %v2974 = vsel %vm2973, %v2966, %v2954
        %vm2975 = vcmp.gt.s32.totalorder %v2968, %v2955
        %v2976 = vsel %vm2975, %v2968, %v2955
        %vm2977 = vcmp.gt.s32.totalorder %v2970, %v2956
        %v2978 = vsel %vm2977, %v2970, %v2956
        %vm2979 = vcmp.gt.s32.totalorder %v2972, %v2957
        %v2980 = vsel %vm2979, %v2972, %v2957
        %vm2981 = vcmp.gt.s32.totalorder %v2974, %v2958
        %v2982 = vsel %vm2981, %v2974, %v2958
        %vm2983 = vcmp.gt.s32.totalorder %v2976, %v2978
        %v2984 = vsel %vm2983, %v2976, %v2978
        %vm2985 = vcmp.gt.s32.totalorder %v2980, %v2982
        %v2986 = vsel %vm2985, %v2980, %v2982
        %vm2987 = vcmp.gt.s32.totalorder %v2984, %v2986
        %v2988 = vsel %vm2987, %v2984, %v2986
        %v2989 = vrot.slane %v2988, 4
        %vm2990 = vcmp.gt.s32.totalorder %v2988, %v2989
        %v2991 = vsel %vm2990, %v2988, %v2989
        %v2992 = vrot.slane %v2991, 2
        %vm2993 = vcmp.gt.s32.totalorder %v2991, %v2992
        %v2994 = vsel %vm2993, %v2991, %v2992
        %v2995 = vrot.slane %v2994, 1
        %vm2996 = vcmp.gt.s32.totalorder %v2994, %v2995
        %v2997 = vsel %vm2996, %v2994, %v2995
        %vm2998 = vcmp.gt.s32.totalorder %v2319, %v2997
        %v2999 = vsel %vm2998, %v2319, %v2997
        %3000 = vset.pattern.permute.xlu0 4
        %3001 = vperm.xlu0 %3000, %v257
        %v3002 = vpop.permute.xlu0 %3001
        %3003 = vset.pattern.permute.xlu0 4
        %3004 = vperm.xlu0 %3003, %v258
        %v3005 = vpop.permute.xlu0 %3004
        %3006 = vset.pattern.permute.xlu0 4
        %3007 = vperm.xlu0 %3006, %v259
        %v3008 = vpop.permute.xlu0 %3007
        %3009 = vset.pattern.permute.xlu0 4
        %3010 = vperm.xlu0 %3009, %v260
        %v3011 = vpop.permute.xlu0 %3010
        %3012 = vset.pattern.permute.xlu0 4
        %3013 = vperm.xlu0 %3012, %v261
        %v3014 = vpop.permute.xlu0 %3013
        %3015 = vset.pattern.permute.xlu0 4
        %3016 = vperm.xlu0 %3015, %v262
        %v3017 = vpop.permute.xlu0 %3016
        %3018 = vset.pattern.permute.xlu0 4
        %3019 = vperm.xlu0 %3018, %v263
        %v3020 = vpop.permute.xlu0 %3019
        %3021 = vset.pattern.permute.xlu0 4
        %3022 = vperm.xlu0 %3021, %v264
        %v3023 = vpop.permute.xlu0 %3022
        %3024 = vset.pattern.permute.xlu0 4
        %3025 = vperm.xlu0 %3024, %v265
        %v3026 = vpop.permute.xlu0 %3025
        %3027 = vset.pattern.permute.xlu0 4
        %3028 = vperm.xlu0 %3027, %v266
        %v3029 = vpop.permute.xlu0 %3028
        %3030 = vset.pattern.permute.xlu0 4
        %3031 = vperm.xlu0 %3030, %v267
        %v3032 = vpop.permute.xlu0 %3031
        %3033 = vset.pattern.permute.xlu0 4
        %3034 = vperm.xlu0 %3033, %v268
        %v3035 = vpop.permute.xlu0 %3034
        %3036 = vset.pattern.permute.xlu0 4
        %3037 = vperm.xlu0 %3036, %v269
        %v3038 = vpop.permute.xlu0 %3037
        %3039 = vset.pattern.permute.xlu0 4
        %3040 = vperm.xlu0 %3039, %v270
        %v3041 = vpop.permute.xlu0 %3040
        %3042 = vset.pattern.permute.xlu0 4
        %3043 = vperm.xlu0 %3042, %v271
        %v3044 = vpop.permute.xlu0 %3043
        %3045 = vset.pattern.permute.xlu0 4
        %3046 = vperm.xlu0 %3045, %v272
        %v3047 = vpop.permute.xlu0 %3046
        %vm3048 = vcmp.eq.s32.totalorder %v3002, %v254
        %vm3049 = vcmp.eq.s32.totalorder %v3005, %v254
        %vm3050 = vcmp.eq.s32.totalorder %v3008, %v254
        %vm3051 = vcmp.eq.s32.totalorder %v3011, %v254
        %vm3052 = vcmp.eq.s32.totalorder %v3014, %v254
        %vm3053 = vcmp.eq.s32.totalorder %v3017, %v254
        %vm3054 = vcmp.eq.s32.totalorder %v3020, %v254
        %vm3055 = vcmp.eq.s32.totalorder %v3023, %v254
        %vm3056 = vcmp.eq.s32.totalorder %v3026, %v254
        %vm3057 = vcmp.eq.s32.totalorder %v3029, %v254
        %vm3058 = vcmp.eq.s32.totalorder %v3032, %v254
        %vm3059 = vcmp.eq.s32.totalorder %v3035, %v254
        %vm3060 = vcmp.eq.s32.totalorder %v3038, %v254
        %vm3061 = vcmp.eq.s32.totalorder %v3041, %v254
        %vm3062 = vcmp.eq.s32.totalorder %v3044, %v254
        %vm3063 = vcmp.eq.s32.totalorder %v3047, %v254
        %3064 = vset.pattern.permute.xlu0 4
        %3065 = vperm.xlu0 %3064, %v236
        %v3066 = vpop.permute.xlu0 %3065
        %3067 = vset.pattern.permute.xlu0 4
        %3068 = vperm.xlu0 %3067, %v237
        %v3069 = vpop.permute.xlu0 %3068
        %3070 = vset.pattern.permute.xlu0 4
        %3071 = vperm.xlu0 %3070, %v238
        %v3072 = vpop.permute.xlu0 %3071
        %3073 = vset.pattern.permute.xlu0 4
        %3074 = vperm.xlu0 %3073, %v239
        %v3075 = vpop.permute.xlu0 %3074
        %3076 = vset.pattern.permute.xlu0 4
        %3077 = vperm.xlu0 %3076, %v240
        %v3078 = vpop.permute.xlu0 %3077
        %3079 = vset.pattern.permute.xlu0 4
        %3080 = vperm.xlu0 %3079, %v241
        %v3081 = vpop.permute.xlu0 %3080
        %3082 = vset.pattern.permute.xlu0 4
        %3083 = vperm.xlu0 %3082, %v242
        %v3084 = vpop.permute.xlu0 %3083
        %3085 = vset.pattern.permute.xlu0 4
        %3086 = vperm.xlu0 %3085, %v243
        %v3087 = vpop.permute.xlu0 %3086
        %3088 = vset.pattern.permute.xlu0 4
        %3089 = vperm.xlu0 %3088, %v244
        %v3090 = vpop.permute.xlu0 %3089
        %3091 = vset.pattern.permute.xlu0 4
        %3092 = vperm.xlu0 %3091, %v245
        %v3093 = vpop.permute.xlu0 %3092
        %3094 = vset.pattern.permute.xlu0 4
        %3095 = vperm.xlu0 %3094, %v246
        %v3096 = vpop.permute.xlu0 %3095
        %3097 = vset.pattern.permute.xlu0 4
        %3098 = vperm.xlu0 %3097, %v247
        %v3099 = vpop.permute.xlu0 %3098
        %3100 = vset.pattern.permute.xlu0 4
        %3101 = vperm.xlu0 %3100, %v248
        %v3102 = vpop.permute.xlu0 %3101
        %3103 = vset.pattern.permute.xlu0 4
        %3104 = vperm.xlu0 %3103, %v249
        %v3105 = vpop.permute.xlu0 %3104
        %3106 = vset.pattern.permute.xlu0 4
        %3107 = vperm.xlu0 %3106, %v250
        %v3108 = vpop.permute.xlu0 %3107
        %3109 = vset.pattern.permute.xlu0 4
        %3110 = vperm.xlu0 %3109, %v251
        %v3111 = vpop.permute.xlu0 %3110
        %v3112 = vsel %vm3048, %v3066, 4294967295
        %v3113 = vsel %vm3049, %v3069, 4294967295
        %v3114 = vsel %vm3050, %v3072, 4294967295
        %v3115 = vsel %vm3051, %v3075, 4294967295
        %v3116 = vsel %vm3052, %v3078, 4294967295
        %v3117 = vsel %vm3053, %v3081, 4294967295
        %v3118 = vsel %vm3054, %v3084, 4294967295
        %v3119 = vsel %vm3055, %v3087, 4294967295
        %v3120 = vsel %vm3056, %v3090, 4294967295
        %v3121 = vsel %vm3057, %v3093, 4294967295
        %v3122 = vsel %vm3058, %v3096, 4294967295
        %v3123 = vsel %vm3059, %v3099, 4294967295
        %v3124 = vsel %vm3060, %v3102, 4294967295
        %v3125 = vsel %vm3061, %v3105, 4294967295
        %v3126 = vsel %vm3062, %v3108, 4294967295
        %v3127 = vsel %vm3063, %v3111, 4294967295
        %vm3128 = vcmp.gt.s32.totalorder %v3112, %v3116
        %v3129 = vsel %vm3128, %v3112, %v3116
        %vm3130 = vcmp.gt.s32.totalorder %v3113, %v3117
        %v3131 = vsel %vm3130, %v3113, %v3117
        %vm3132 = vcmp.gt.s32.totalorder %v3114, %v3118
        %v3133 = vsel %vm3132, %v3114, %v3118
        %vm3134 = vcmp.gt.s32.totalorder %v3115, %v3119
        %v3135 = vsel %vm3134, %v3115, %v3119
        %vm3136 = vcmp.gt.s32.totalorder %v3129, %v3120
        %v3137 = vsel %vm3136, %v3129, %v3120
        %vm3138 = vcmp.gt.s32.totalorder %v3131, %v3121
        %v3139 = vsel %vm3138, %v3131, %v3121
        %vm3140 = vcmp.gt.s32.totalorder %v3133, %v3122
        %v3141 = vsel %vm3140, %v3133, %v3122
        %vm3142 = vcmp.gt.s32.totalorder %v3135, %v3123
        %v3143 = vsel %vm3142, %v3135, %v3123
        %vm3144 = vcmp.gt.s32.totalorder %v3137, %v3124
        %v3145 = vsel %vm3144, %v3137, %v3124
        %vm3146 = vcmp.gt.s32.totalorder %v3139, %v3125
        %v3147 = vsel %vm3146, %v3139, %v3125
        %vm3148 = vcmp.gt.s32.totalorder %v3141, %v3126
        %v3149 = vsel %vm3148, %v3141, %v3126
        %vm3150 = vcmp.gt.s32.totalorder %v3143, %v3127
        %v3151 = vsel %vm3150, %v3143, %v3127
        %vm3152 = vcmp.gt.s32.totalorder %v3145, %v3147
        %v3153 = vsel %vm3152, %v3145, %v3147
        %vm3154 = vcmp.gt.s32.totalorder %v3149, %v3151
        %v3155 = vsel %vm3154, %v3149, %v3151
        %vm3156 = vcmp.gt.s32.totalorder %v3153, %v3155
        %v3157 = vsel %vm3156, %v3153, %v3155
        %v3158 = vrot.slane %v3157, 4
        %vm3159 = vcmp.gt.s32.totalorder %v3157, %v3158
        %v3160 = vsel %vm3159, %v3157, %v3158
        %v3161 = vrot.slane %v3160, 2
        %vm3162 = vcmp.gt.s32.totalorder %v3160, %v3161
        %v3163 = vsel %vm3162, %v3160, %v3161
        %v3164 = vrot.slane %v3163, 1
        %vm3165 = vcmp.gt.s32.totalorder %v3163, %v3164
        %v3166 = vsel %vm3165, %v3163, %v3164
        %vm3167 = vcmp.gt.s32.totalorder %v2488, %v3166
        %v3168 = vsel %vm3167, %v2488, %v3166
        %vm3169 = vcmp.eq.s32.totalorder %v3002, %v442
        %vm3170 = vcmp.eq.s32.totalorder %v3005, %v442
        %vm3171 = vcmp.eq.s32.totalorder %v3008, %v442
        %vm3172 = vcmp.eq.s32.totalorder %v3011, %v442
        %vm3173 = vcmp.eq.s32.totalorder %v3014, %v442
        %vm3174 = vcmp.eq.s32.totalorder %v3017, %v442
        %vm3175 = vcmp.eq.s32.totalorder %v3020, %v442
        %vm3176 = vcmp.eq.s32.totalorder %v3023, %v442
        %vm3177 = vcmp.eq.s32.totalorder %v3026, %v442
        %vm3178 = vcmp.eq.s32.totalorder %v3029, %v442
        %vm3179 = vcmp.eq.s32.totalorder %v3032, %v442
        %vm3180 = vcmp.eq.s32.totalorder %v3035, %v442
        %vm3181 = vcmp.eq.s32.totalorder %v3038, %v442
        %vm3182 = vcmp.eq.s32.totalorder %v3041, %v442
        %vm3183 = vcmp.eq.s32.totalorder %v3044, %v442
        %vm3184 = vcmp.eq.s32.totalorder %v3047, %v442
        %v3185 = vsel %vm3169, %v3066, 4294967295
        %v3186 = vsel %vm3170, %v3069, 4294967295
        %v3187 = vsel %vm3171, %v3072, 4294967295
        %v3188 = vsel %vm3172, %v3075, 4294967295
        %v3189 = vsel %vm3173, %v3078, 4294967295
        %v3190 = vsel %vm3174, %v3081, 4294967295
        %v3191 = vsel %vm3175, %v3084, 4294967295
        %v3192 = vsel %vm3176, %v3087, 4294967295
        %v3193 = vsel %vm3177, %v3090, 4294967295
        %v3194 = vsel %vm3178, %v3093, 4294967295
        %v3195 = vsel %vm3179, %v3096, 4294967295
        %v3196 = vsel %vm3180, %v3099, 4294967295
        %v3197 = vsel %vm3181, %v3102, 4294967295
        %v3198 = vsel %vm3182, %v3105, 4294967295
        %v3199 = vsel %vm3183, %v3108, 4294967295
        %v3200 = vsel %vm3184, %v3111, 4294967295
        %vm3201 = vcmp.gt.s32.totalorder %v3185, %v3189
        %v3202 = vsel %vm3201, %v3185, %v3189
        %vm3203 = vcmp.gt.s32.totalorder %v3186, %v3190
        %v3204 = vsel %vm3203, %v3186, %v3190
        %vm3205 = vcmp.gt.s32.totalorder %v3187, %v3191
        %v3206 = vsel %vm3205, %v3187, %v3191
        %vm3207 = vcmp.gt.s32.totalorder %v3188, %v3192
        %v3208 = vsel %vm3207, %v3188, %v3192
        %vm3209 = vcmp.gt.s32.totalorder %v3202, %v3193
        %v3210 = vsel %vm3209, %v3202, %v3193
        %vm3211 = vcmp.gt.s32.totalorder %v3204, %v3194
        %v3212 = vsel %vm3211, %v3204, %v3194
        %vm3213 = vcmp.gt.s32.totalorder %v3206, %v3195
        %v3214 = vsel %vm3213, %v3206, %v3195
        %vm3215 = vcmp.gt.s32.totalorder %v3208, %v3196
        %v3216 = vsel %vm3215, %v3208, %v3196
        %vm3217 = vcmp.gt.s32.totalorder %v3210, %v3197
        %v3218 = vsel %vm3217, %v3210, %v3197
        %vm3219 = vcmp.gt.s32.totalorder %v3212, %v3198
        %v3220 = vsel %vm3219, %v3212, %v3198
        %vm3221 = vcmp.gt.s32.totalorder %v3214, %v3199
        %v3222 = vsel %vm3221, %v3214, %v3199
        %vm3223 = vcmp.gt.s32.totalorder %v3216, %v3200
        %v3224 = vsel %vm3223, %v3216, %v3200
        %vm3225 = vcmp.gt.s32.totalorder %v3218, %v3220
        %v3226 = vsel %vm3225, %v3218, %v3220
        %vm3227 = vcmp.gt.s32.totalorder %v3222, %v3224
        %v3228 = vsel %vm3227, %v3222, %v3224
        %vm3229 = vcmp.gt.s32.totalorder %v3226, %v3228
        %v3230 = vsel %vm3229, %v3226, %v3228
        %v3231 = vrot.slane %v3230, 4
        %vm3232 = vcmp.gt.s32.totalorder %v3230, %v3231
        %v3233 = vsel %vm3232, %v3230, %v3231
        %v3234 = vrot.slane %v3233, 2
        %vm3235 = vcmp.gt.s32.totalorder %v3233, %v3234
        %v3236 = vsel %vm3235, %v3233, %v3234
        %v3237 = vrot.slane %v3236, 1
        %vm3238 = vcmp.gt.s32.totalorder %v3236, %v3237
        %v3239 = vsel %vm3238, %v3236, %v3237
        %vm3240 = vcmp.gt.s32.totalorder %v2561, %v3239
        %v3241 = vsel %vm3240, %v2561, %v3239
        %vm3242 = vcmp.eq.s32.totalorder %v3002, %v516
        %vm3243 = vcmp.eq.s32.totalorder %v3005, %v516
        %vm3244 = vcmp.eq.s32.totalorder %v3008, %v516
        %vm3245 = vcmp.eq.s32.totalorder %v3011, %v516
        %vm3246 = vcmp.eq.s32.totalorder %v3014, %v516
        %vm3247 = vcmp.eq.s32.totalorder %v3017, %v516
        %vm3248 = vcmp.eq.s32.totalorder %v3020, %v516
        %vm3249 = vcmp.eq.s32.totalorder %v3023, %v516
        %vm3250 = vcmp.eq.s32.totalorder %v3026, %v516
        %vm3251 = vcmp.eq.s32.totalorder %v3029, %v516
        %vm3252 = vcmp.eq.s32.totalorder %v3032, %v516
        %vm3253 = vcmp.eq.s32.totalorder %v3035, %v516
        %vm3254 = vcmp.eq.s32.totalorder %v3038, %v516
        %vm3255 = vcmp.eq.s32.totalorder %v3041, %v516
        %vm3256 = vcmp.eq.s32.totalorder %v3044, %v516
        %vm3257 = vcmp.eq.s32.totalorder %v3047, %v516
        %v3258 = vsel %vm3242, %v3066, 4294967295
        %v3259 = vsel %vm3243, %v3069, 4294967295
        %v3260 = vsel %vm3244, %v3072, 4294967295
        %v3261 = vsel %vm3245, %v3075, 4294967295
        %v3262 = vsel %vm3246, %v3078, 4294967295
        %v3263 = vsel %vm3247, %v3081, 4294967295
        %v3264 = vsel %vm3248, %v3084, 4294967295
        %v3265 = vsel %vm3249, %v3087, 4294967295
        %v3266 = vsel %vm3250, %v3090, 4294967295
        %v3267 = vsel %vm3251, %v3093, 4294967295
        %v3268 = vsel %vm3252, %v3096, 4294967295
        %v3269 = vsel %vm3253, %v3099, 4294967295
        %v3270 = vsel %vm3254, %v3102, 4294967295
        %v3271 = vsel %vm3255, %v3105, 4294967295
        %v3272 = vsel %vm3256, %v3108, 4294967295
        %v3273 = vsel %vm3257, %v3111, 4294967295
        %vm3274 = vcmp.gt.s32.totalorder %v3258, %v3262
        %v3275 = vsel %vm3274, %v3258, %v3262
        %vm3276 = vcmp.gt.s32.totalorder %v3259, %v3263
        %v3277 = vsel %vm3276, %v3259, %v3263
        %vm3278 = vcmp.gt.s32.totalorder %v3260, %v3264
        %v3279 = vsel %vm3278, %v3260, %v3264
        %vm3280 = vcmp.gt.s32.totalorder %v3261, %v3265
        %v3281 = vsel %vm3280, %v3261, %v3265
        %vm3282 = vcmp.gt.s32.totalorder %v3275, %v3266
        %v3283 = vsel %vm3282, %v3275, %v3266
        %vm3284 = vcmp.gt.s32.totalorder %v3277, %v3267
        %v3285 = vsel %vm3284, %v3277, %v3267
        %vm3286 = vcmp.gt.s32.totalorder %v3279, %v3268
        %v3287 = vsel %vm3286, %v3279, %v3268
        %vm3288 = vcmp.gt.s32.totalorder %v3281, %v3269
        %v3289 = vsel %vm3288, %v3281, %v3269
        %vm3290 = vcmp.gt.s32.totalorder %v3283, %v3270
        %v3291 = vsel %vm3290, %v3283, %v3270
        %vm3292 = vcmp.gt.s32.totalorder %v3285, %v3271
        %v3293 = vsel %vm3292, %v3285, %v3271
        %vm3294 = vcmp.gt.s32.totalorder %v3287, %v3272
        %v3295 = vsel %vm3294, %v3287, %v3272
        %vm3296 = vcmp.gt.s32.totalorder %v3289, %v3273
        %v3297 = vsel %vm3296, %v3289, %v3273
        %vm3298 = vcmp.gt.s32.totalorder %v3291, %v3293
        %v3299 = vsel %vm3298, %v3291, %v3293
        %vm3300 = vcmp.gt.s32.totalorder %v3295, %v3297
        %v3301 = vsel %vm3300, %v3295, %v3297
        %vm3302 = vcmp.gt.s32.totalorder %v3299, %v3301
        %v3303 = vsel %vm3302, %v3299, %v3301
        %v3304 = vrot.slane %v3303, 4
        %vm3305 = vcmp.gt.s32.totalorder %v3303, %v3304
        %v3306 = vsel %vm3305, %v3303, %v3304
        %v3307 = vrot.slane %v3306, 2
        %vm3308 = vcmp.gt.s32.totalorder %v3306, %v3307
        %v3309 = vsel %vm3308, %v3306, %v3307
        %v3310 = vrot.slane %v3309, 1
        %vm3311 = vcmp.gt.s32.totalorder %v3309, %v3310
        %v3312 = vsel %vm3311, %v3309, %v3310
        %vm3313 = vcmp.gt.s32.totalorder %v2634, %v3312
        %v3314 = vsel %vm3313, %v2634, %v3312
        %vm3315 = vcmp.eq.s32.totalorder %v3002, %v590
        %vm3316 = vcmp.eq.s32.totalorder %v3005, %v590
        %vm3317 = vcmp.eq.s32.totalorder %v3008, %v590
        %vm3318 = vcmp.eq.s32.totalorder %v3011, %v590
        %vm3319 = vcmp.eq.s32.totalorder %v3014, %v590
        %vm3320 = vcmp.eq.s32.totalorder %v3017, %v590
        %vm3321 = vcmp.eq.s32.totalorder %v3020, %v590
        %vm3322 = vcmp.eq.s32.totalorder %v3023, %v590
        %vm3323 = vcmp.eq.s32.totalorder %v3026, %v590
        %vm3324 = vcmp.eq.s32.totalorder %v3029, %v590
        %vm3325 = vcmp.eq.s32.totalorder %v3032, %v590
        %vm3326 = vcmp.eq.s32.totalorder %v3035, %v590
        %vm3327 = vcmp.eq.s32.totalorder %v3038, %v590
        %vm3328 = vcmp.eq.s32.totalorder %v3041, %v590
        %vm3329 = vcmp.eq.s32.totalorder %v3044, %v590
        %vm3330 = vcmp.eq.s32.totalorder %v3047, %v590
        %v3331 = vsel %vm3315, %v3066, 4294967295
        %v3332 = vsel %vm3316, %v3069, 4294967295
        %v3333 = vsel %vm3317, %v3072, 4294967295
        %v3334 = vsel %vm3318, %v3075, 4294967295
        %v3335 = vsel %vm3319, %v3078, 4294967295
        %v3336 = vsel %vm3320, %v3081, 4294967295
        %v3337 = vsel %vm3321, %v3084, 4294967295
        %v3338 = vsel %vm3322, %v3087, 4294967295
        %v3339 = vsel %vm3323, %v3090, 4294967295
        %v3340 = vsel %vm3324, %v3093, 4294967295
        %v3341 = vsel %vm3325, %v3096, 4294967295
        %v3342 = vsel %vm3326, %v3099, 4294967295
        %v3343 = vsel %vm3327, %v3102, 4294967295
        %v3344 = vsel %vm3328, %v3105, 4294967295
        %v3345 = vsel %vm3329, %v3108, 4294967295
        %v3346 = vsel %vm3330, %v3111, 4294967295
        %vm3347 = vcmp.gt.s32.totalorder %v3331, %v3335
        %v3348 = vsel %vm3347, %v3331, %v3335
        %vm3349 = vcmp.gt.s32.totalorder %v3332, %v3336
        %v3350 = vsel %vm3349, %v3332, %v3336
        %vm3351 = vcmp.gt.s32.totalorder %v3333, %v3337
        %v3352 = vsel %vm3351, %v3333, %v3337
        %vm3353 = vcmp.gt.s32.totalorder %v3334, %v3338
        %v3354 = vsel %vm3353, %v3334, %v3338
        %vm3355 = vcmp.gt.s32.totalorder %v3348, %v3339
        %v3356 = vsel %vm3355, %v3348, %v3339
        %vm3357 = vcmp.gt.s32.totalorder %v3350, %v3340
        %v3358 = vsel %vm3357, %v3350, %v3340
        %vm3359 = vcmp.gt.s32.totalorder %v3352, %v3341
        %v3360 = vsel %vm3359, %v3352, %v3341
        %vm3361 = vcmp.gt.s32.totalorder %v3354, %v3342
        %v3362 = vsel %vm3361, %v3354, %v3342
        %vm3363 = vcmp.gt.s32.totalorder %v3356, %v3343
        %v3364 = vsel %vm3363, %v3356, %v3343
        %vm3365 = vcmp.gt.s32.totalorder %v3358, %v3344
        %v3366 = vsel %vm3365, %v3358, %v3344
        %vm3367 = vcmp.gt.s32.totalorder %v3360, %v3345
        %v3368 = vsel %vm3367, %v3360, %v3345
        %vm3369 = vcmp.gt.s32.totalorder %v3362, %v3346
        %v3370 = vsel %vm3369, %v3362, %v3346
        %vm3371 = vcmp.gt.s32.totalorder %v3364, %v3366
        %v3372 = vsel %vm3371, %v3364, %v3366
        %vm3373 = vcmp.gt.s32.totalorder %v3368, %v3370
        %v3374 = vsel %vm3373, %v3368, %v3370
        %vm3375 = vcmp.gt.s32.totalorder %v3372, %v3374
        %v3376 = vsel %vm3375, %v3372, %v3374
        %v3377 = vrot.slane %v3376, 4
        %vm3378 = vcmp.gt.s32.totalorder %v3376, %v3377
        %v3379 = vsel %vm3378, %v3376, %v3377
        %v3380 = vrot.slane %v3379, 2
        %vm3381 = vcmp.gt.s32.totalorder %v3379, %v3380
        %v3382 = vsel %vm3381, %v3379, %v3380
        %v3383 = vrot.slane %v3382, 1
        %vm3384 = vcmp.gt.s32.totalorder %v3382, %v3383
        %v3385 = vsel %vm3384, %v3382, %v3383
        %vm3386 = vcmp.gt.s32.totalorder %v2707, %v3385
        %v3387 = vsel %vm3386, %v2707, %v3385
        %vm3388 = vcmp.eq.s32.totalorder %v3002, %v664
        %vm3389 = vcmp.eq.s32.totalorder %v3005, %v664
        %vm3390 = vcmp.eq.s32.totalorder %v3008, %v664
        %vm3391 = vcmp.eq.s32.totalorder %v3011, %v664
        %vm3392 = vcmp.eq.s32.totalorder %v3014, %v664
        %vm3393 = vcmp.eq.s32.totalorder %v3017, %v664
        %vm3394 = vcmp.eq.s32.totalorder %v3020, %v664
        %vm3395 = vcmp.eq.s32.totalorder %v3023, %v664
        %vm3396 = vcmp.eq.s32.totalorder %v3026, %v664
        %vm3397 = vcmp.eq.s32.totalorder %v3029, %v664
        %vm3398 = vcmp.eq.s32.totalorder %v3032, %v664
        %vm3399 = vcmp.eq.s32.totalorder %v3035, %v664
        %vm3400 = vcmp.eq.s32.totalorder %v3038, %v664
        %vm3401 = vcmp.eq.s32.totalorder %v3041, %v664
        %vm3402 = vcmp.eq.s32.totalorder %v3044, %v664
        %vm3403 = vcmp.eq.s32.totalorder %v3047, %v664
        %v3404 = vsel %vm3388, %v3066, 4294967295
        %v3405 = vsel %vm3389, %v3069, 4294967295
        %v3406 = vsel %vm3390, %v3072, 4294967295
        %v3407 = vsel %vm3391, %v3075, 4294967295
        %v3408 = vsel %vm3392, %v3078, 4294967295
        %v3409 = vsel %vm3393, %v3081, 4294967295
        %v3410 = vsel %vm3394, %v3084, 4294967295
        %v3411 = vsel %vm3395, %v3087, 4294967295
        %v3412 = vsel %vm3396, %v3090, 4294967295
        %v3413 = vsel %vm3397, %v3093, 4294967295
        %v3414 = vsel %vm3398, %v3096, 4294967295
        %v3415 = vsel %vm3399, %v3099, 4294967295
        %v3416 = vsel %vm3400, %v3102, 4294967295
        %v3417 = vsel %vm3401, %v3105, 4294967295
        %v3418 = vsel %vm3402, %v3108, 4294967295
        %v3419 = vsel %vm3403, %v3111, 4294967295
        %vm3420 = vcmp.gt.s32.totalorder %v3404, %v3408
        %v3421 = vsel %vm3420, %v3404, %v3408
        %vm3422 = vcmp.gt.s32.totalorder %v3405, %v3409
        %v3423 = vsel %vm3422, %v3405, %v3409
        %vm3424 = vcmp.gt.s32.totalorder %v3406, %v3410
        %v3425 = vsel %vm3424, %v3406, %v3410
        %vm3426 = vcmp.gt.s32.totalorder %v3407, %v3411
        %v3427 = vsel %vm3426, %v3407, %v3411
        %vm3428 = vcmp.gt.s32.totalorder %v3421, %v3412
        %v3429 = vsel %vm3428, %v3421, %v3412
        %vm3430 = vcmp.gt.s32.totalorder %v3423, %v3413
        %v3431 = vsel %vm3430, %v3423, %v3413
        %vm3432 = vcmp.gt.s32.totalorder %v3425, %v3414
        %v3433 = vsel %vm3432, %v3425, %v3414
        %vm3434 = vcmp.gt.s32.totalorder %v3427, %v3415
        %v3435 = vsel %vm3434, %v3427, %v3415
        %vm3436 = vcmp.gt.s32.totalorder %v3429, %v3416
        %v3437 = vsel %vm3436, %v3429, %v3416
        %vm3438 = vcmp.gt.s32.totalorder %v3431, %v3417
        %v3439 = vsel %vm3438, %v3431, %v3417
        %vm3440 = vcmp.gt.s32.totalorder %v3433, %v3418
        %v3441 = vsel %vm3440, %v3433, %v3418
        %vm3442 = vcmp.gt.s32.totalorder %v3435, %v3419
        %v3443 = vsel %vm3442, %v3435, %v3419
        %vm3444 = vcmp.gt.s32.totalorder %v3437, %v3439
        %v3445 = vsel %vm3444, %v3437, %v3439
        %vm3446 = vcmp.gt.s32.totalorder %v3441, %v3443
        %v3447 = vsel %vm3446, %v3441, %v3443
        %vm3448 = vcmp.gt.s32.totalorder %v3445, %v3447
        %v3449 = vsel %vm3448, %v3445, %v3447
        %v3450 = vrot.slane %v3449, 4
        %vm3451 = vcmp.gt.s32.totalorder %v3449, %v3450
        %v3452 = vsel %vm3451, %v3449, %v3450
        %v3453 = vrot.slane %v3452, 2
        %vm3454 = vcmp.gt.s32.totalorder %v3452, %v3453
        %v3455 = vsel %vm3454, %v3452, %v3453
        %v3456 = vrot.slane %v3455, 1
        %vm3457 = vcmp.gt.s32.totalorder %v3455, %v3456
        %v3458 = vsel %vm3457, %v3455, %v3456
        %vm3459 = vcmp.gt.s32.totalorder %v2780, %v3458
        %v3460 = vsel %vm3459, %v2780, %v3458
        %vm3461 = vcmp.eq.s32.totalorder %v3002, %v738
        %vm3462 = vcmp.eq.s32.totalorder %v3005, %v738
        %vm3463 = vcmp.eq.s32.totalorder %v3008, %v738
        %vm3464 = vcmp.eq.s32.totalorder %v3011, %v738
        %vm3465 = vcmp.eq.s32.totalorder %v3014, %v738
        %vm3466 = vcmp.eq.s32.totalorder %v3017, %v738
        %vm3467 = vcmp.eq.s32.totalorder %v3020, %v738
        %vm3468 = vcmp.eq.s32.totalorder %v3023, %v738
        %vm3469 = vcmp.eq.s32.totalorder %v3026, %v738
        %vm3470 = vcmp.eq.s32.totalorder %v3029, %v738
        %vm3471 = vcmp.eq.s32.totalorder %v3032, %v738
        %vm3472 = vcmp.eq.s32.totalorder %v3035, %v738
        %vm3473 = vcmp.eq.s32.totalorder %v3038, %v738
        %vm3474 = vcmp.eq.s32.totalorder %v3041, %v738
        %vm3475 = vcmp.eq.s32.totalorder %v3044, %v738
        %vm3476 = vcmp.eq.s32.totalorder %v3047, %v738
        %v3477 = vsel %vm3461, %v3066, 4294967295
        %v3478 = vsel %vm3462, %v3069, 4294967295
        %v3479 = vsel %vm3463, %v3072, 4294967295
        %v3480 = vsel %vm3464, %v3075, 4294967295
        %v3481 = vsel %vm3465, %v3078, 4294967295
        %v3482 = vsel %vm3466, %v3081, 4294967295
        %v3483 = vsel %vm3467, %v3084, 4294967295
        %v3484 = vsel %vm3468, %v3087, 4294967295
        %v3485 = vsel %vm3469, %v3090, 4294967295
        %v3486 = vsel %vm3470, %v3093, 4294967295
        %v3487 = vsel %vm3471, %v3096, 4294967295
        %v3488 = vsel %vm3472, %v3099, 4294967295
        %v3489 = vsel %vm3473, %v3102, 4294967295
        %v3490 = vsel %vm3474, %v3105, 4294967295
        %v3491 = vsel %vm3475, %v3108, 4294967295
        %v3492 = vsel %vm3476, %v3111, 4294967295
        %vm3493 = vcmp.gt.s32.totalorder %v3477, %v3481
        %v3494 = vsel %vm3493, %v3477, %v3481
        %vm3495 = vcmp.gt.s32.totalorder %v3478, %v3482
        %v3496 = vsel %vm3495, %v3478, %v3482
        %vm3497 = vcmp.gt.s32.totalorder %v3479, %v3483
        %v3498 = vsel %vm3497, %v3479, %v3483
        %vm3499 = vcmp.gt.s32.totalorder %v3480, %v3484
        %v3500 = vsel %vm3499, %v3480, %v3484
        %vm3501 = vcmp.gt.s32.totalorder %v3494, %v3485
        %v3502 = vsel %vm3501, %v3494, %v3485
        %vm3503 = vcmp.gt.s32.totalorder %v3496, %v3486
        %v3504 = vsel %vm3503, %v3496, %v3486
        %vm3505 = vcmp.gt.s32.totalorder %v3498, %v3487
        %v3506 = vsel %vm3505, %v3498, %v3487
        %vm3507 = vcmp.gt.s32.totalorder %v3500, %v3488
        %v3508 = vsel %vm3507, %v3500, %v3488
        %vm3509 = vcmp.gt.s32.totalorder %v3502, %v3489
        %v3510 = vsel %vm3509, %v3502, %v3489
        %vm3511 = vcmp.gt.s32.totalorder %v3504, %v3490
        %v3512 = vsel %vm3511, %v3504, %v3490
        %vm3513 = vcmp.gt.s32.totalorder %v3506, %v3491
        %v3514 = vsel %vm3513, %v3506, %v3491
        %vm3515 = vcmp.gt.s32.totalorder %v3508, %v3492
        %v3516 = vsel %vm3515, %v3508, %v3492
        %vm3517 = vcmp.gt.s32.totalorder %v3510, %v3512
        %v3518 = vsel %vm3517, %v3510, %v3512
        %vm3519 = vcmp.gt.s32.totalorder %v3514, %v3516
        %v3520 = vsel %vm3519, %v3514, %v3516
        %vm3521 = vcmp.gt.s32.totalorder %v3518, %v3520
        %v3522 = vsel %vm3521, %v3518, %v3520
        %v3523 = vrot.slane %v3522, 4
        %vm3524 = vcmp.gt.s32.totalorder %v3522, %v3523
        %v3525 = vsel %vm3524, %v3522, %v3523
        %v3526 = vrot.slane %v3525, 2
        %vm3527 = vcmp.gt.s32.totalorder %v3525, %v3526
        %v3528 = vsel %vm3527, %v3525, %v3526
        %v3529 = vrot.slane %v3528, 1
        %vm3530 = vcmp.gt.s32.totalorder %v3528, %v3529
        %v3531 = vsel %vm3530, %v3528, %v3529
        %vm3532 = vcmp.gt.s32.totalorder %v2853, %v3531
        %v3533 = vsel %vm3532, %v2853, %v3531
        %vm3534 = vcmp.eq.s32.totalorder %v3002, %v812
        %vm3535 = vcmp.eq.s32.totalorder %v3005, %v812
        %vm3536 = vcmp.eq.s32.totalorder %v3008, %v812
        %vm3537 = vcmp.eq.s32.totalorder %v3011, %v812
        %vm3538 = vcmp.eq.s32.totalorder %v3014, %v812
        %vm3539 = vcmp.eq.s32.totalorder %v3017, %v812
        %vm3540 = vcmp.eq.s32.totalorder %v3020, %v812
        %vm3541 = vcmp.eq.s32.totalorder %v3023, %v812
        %vm3542 = vcmp.eq.s32.totalorder %v3026, %v812
        %vm3543 = vcmp.eq.s32.totalorder %v3029, %v812
        %vm3544 = vcmp.eq.s32.totalorder %v3032, %v812
        %vm3545 = vcmp.eq.s32.totalorder %v3035, %v812
        %vm3546 = vcmp.eq.s32.totalorder %v3038, %v812
        %vm3547 = vcmp.eq.s32.totalorder %v3041, %v812
        %vm3548 = vcmp.eq.s32.totalorder %v3044, %v812
        %vm3549 = vcmp.eq.s32.totalorder %v3047, %v812
        %v3550 = vsel %vm3534, %v3066, 4294967295
        %v3551 = vsel %vm3535, %v3069, 4294967295
        %v3552 = vsel %vm3536, %v3072, 4294967295
        %v3553 = vsel %vm3537, %v3075, 4294967295
        %v3554 = vsel %vm3538, %v3078, 4294967295
        %v3555 = vsel %vm3539, %v3081, 4294967295
        %v3556 = vsel %vm3540, %v3084, 4294967295
        %v3557 = vsel %vm3541, %v3087, 4294967295
        %v3558 = vsel %vm3542, %v3090, 4294967295
        %v3559 = vsel %vm3543, %v3093, 4294967295
        %v3560 = vsel %vm3544, %v3096, 4294967295
        %v3561 = vsel %vm3545, %v3099, 4294967295
        %v3562 = vsel %vm3546, %v3102, 4294967295
        %v3563 = vsel %vm3547, %v3105, 4294967295
        %v3564 = vsel %vm3548, %v3108, 4294967295
        %v3565 = vsel %vm3549, %v3111, 4294967295
        %vm3566 = vcmp.gt.s32.totalorder %v3550, %v3554
        %v3567 = vsel %vm3566, %v3550, %v3554
        %vm3568 = vcmp.gt.s32.totalorder %v3551, %v3555
        %v3569 = vsel %vm3568, %v3551, %v3555
        %vm3570 = vcmp.gt.s32.totalorder %v3552, %v3556
        %v3571 = vsel %vm3570, %v3552, %v3556
        %vm3572 = vcmp.gt.s32.totalorder %v3553, %v3557
        %v3573 = vsel %vm3572, %v3553, %v3557
        %vm3574 = vcmp.gt.s32.totalorder %v3567, %v3558
        %v3575 = vsel %vm3574, %v3567, %v3558
        %vm3576 = vcmp.gt.s32.totalorder %v3569, %v3559
        %v3577 = vsel %vm3576, %v3569, %v3559
        %vm3578 = vcmp.gt.s32.totalorder %v3571, %v3560
        %v3579 = vsel %vm3578, %v3571, %v3560
        %vm3580 = vcmp.gt.s32.totalorder %v3573, %v3561
        %v3581 = vsel %vm3580, %v3573, %v3561
        %vm3582 = vcmp.gt.s32.totalorder %v3575, %v3562
        %v3583 = vsel %vm3582, %v3575, %v3562
        %vm3584 = vcmp.gt.s32.totalorder %v3577, %v3563
        %v3585 = vsel %vm3584, %v3577, %v3563
        %vm3586 = vcmp.gt.s32.totalorder %v3579, %v3564
        %v3587 = vsel %vm3586, %v3579, %v3564
        %vm3588 = vcmp.gt.s32.totalorder %v3581, %v3565
        %v3589 = vsel %vm3588, %v3581, %v3565
        %vm3590 = vcmp.gt.s32.totalorder %v3583, %v3585
        %v3591 = vsel %vm3590, %v3583, %v3585
        %vm3592 = vcmp.gt.s32.totalorder %v3587, %v3589
        %v3593 = vsel %vm3592, %v3587, %v3589
        %vm3594 = vcmp.gt.s32.totalorder %v3591, %v3593
        %v3595 = vsel %vm3594, %v3591, %v3593
        %v3596 = vrot.slane %v3595, 4
        %vm3597 = vcmp.gt.s32.totalorder %v3595, %v3596
        %v3598 = vsel %vm3597, %v3595, %v3596
        %v3599 = vrot.slane %v3598, 2
        %vm3600 = vcmp.gt.s32.totalorder %v3598, %v3599
        %v3601 = vsel %vm3600, %v3598, %v3599
        %v3602 = vrot.slane %v3601, 1
        %vm3603 = vcmp.gt.s32.totalorder %v3601, %v3602
        %v3604 = vsel %vm3603, %v3601, %v3602
        %vm3605 = vcmp.gt.s32.totalorder %v2926, %v3604
        %v3606 = vsel %vm3605, %v2926, %v3604
        %vm3607 = vcmp.eq.s32.totalorder %v3002, %v886
        %vm3608 = vcmp.eq.s32.totalorder %v3005, %v886
        %vm3609 = vcmp.eq.s32.totalorder %v3008, %v886
        %vm3610 = vcmp.eq.s32.totalorder %v3011, %v886
        %vm3611 = vcmp.eq.s32.totalorder %v3014, %v886
        %vm3612 = vcmp.eq.s32.totalorder %v3017, %v886
        %vm3613 = vcmp.eq.s32.totalorder %v3020, %v886
        %vm3614 = vcmp.eq.s32.totalorder %v3023, %v886
        %vm3615 = vcmp.eq.s32.totalorder %v3026, %v886
        %vm3616 = vcmp.eq.s32.totalorder %v3029, %v886
        %vm3617 = vcmp.eq.s32.totalorder %v3032, %v886
        %vm3618 = vcmp.eq.s32.totalorder %v3035, %v886
        %vm3619 = vcmp.eq.s32.totalorder %v3038, %v886
        %vm3620 = vcmp.eq.s32.totalorder %v3041, %v886
        %vm3621 = vcmp.eq.s32.totalorder %v3044, %v886
        %vm3622 = vcmp.eq.s32.totalorder %v3047, %v886
        %v3623 = vsel %vm3607, %v3066, 4294967295
        %v3624 = vsel %vm3608, %v3069, 4294967295
        %v3625 = vsel %vm3609, %v3072, 4294967295
        %v3626 = vsel %vm3610, %v3075, 4294967295
        %v3627 = vsel %vm3611, %v3078, 4294967295
        %v3628 = vsel %vm3612, %v3081, 4294967295
        %v3629 = vsel %vm3613, %v3084, 4294967295
        %v3630 = vsel %vm3614, %v3087, 4294967295
        %v3631 = vsel %vm3615, %v3090, 4294967295
        %v3632 = vsel %vm3616, %v3093, 4294967295
        %v3633 = vsel %vm3617, %v3096, 4294967295
        %v3634 = vsel %vm3618, %v3099, 4294967295
        %v3635 = vsel %vm3619, %v3102, 4294967295
        %v3636 = vsel %vm3620, %v3105, 4294967295
        %v3637 = vsel %vm3621, %v3108, 4294967295
        %v3638 = vsel %vm3622, %v3111, 4294967295
        %vm3639 = vcmp.gt.s32.totalorder %v3623, %v3627
        %v3640 = vsel %vm3639, %v3623, %v3627
        %vm3641 = vcmp.gt.s32.totalorder %v3624, %v3628
        %v3642 = vsel %vm3641, %v3624, %v3628
        %vm3643 = vcmp.gt.s32.totalorder %v3625, %v3629
        %v3644 = vsel %vm3643, %v3625, %v3629
        %vm3645 = vcmp.gt.s32.totalorder %v3626, %v3630
        %v3646 = vsel %vm3645, %v3626, %v3630
        %vm3647 = vcmp.gt.s32.totalorder %v3640, %v3631
        %v3648 = vsel %vm3647, %v3640, %v3631
        %vm3649 = vcmp.gt.s32.totalorder %v3642, %v3632
        %v3650 = vsel %vm3649, %v3642, %v3632
        %vm3651 = vcmp.gt.s32.totalorder %v3644, %v3633
        %v3652 = vsel %vm3651, %v3644, %v3633
        %vm3653 = vcmp.gt.s32.totalorder %v3646, %v3634
        %v3654 = vsel %vm3653, %v3646, %v3634
        %vm3655 = vcmp.gt.s32.totalorder %v3648, %v3635
        %v3656 = vsel %vm3655, %v3648, %v3635
        %vm3657 = vcmp.gt.s32.totalorder %v3650, %v3636
        %v3658 = vsel %vm3657, %v3650, %v3636
        %vm3659 = vcmp.gt.s32.totalorder %v3652, %v3637
        %v3660 = vsel %vm3659, %v3652, %v3637
        %vm3661 = vcmp.gt.s32.totalorder %v3654, %v3638
        %v3662 = vsel %vm3661, %v3654, %v3638
        %vm3663 = vcmp.gt.s32.totalorder %v3656, %v3658
        %v3664 = vsel %vm3663, %v3656, %v3658
        %vm3665 = vcmp.gt.s32.totalorder %v3660, %v3662
        %v3666 = vsel %vm3665, %v3660, %v3662
        %vm3667 = vcmp.gt.s32.totalorder %v3664, %v3666
        %v3668 = vsel %vm3667, %v3664, %v3666
        %v3669 = vrot.slane %v3668, 4
        %vm3670 = vcmp.gt.s32.totalorder %v3668, %v3669
        %v3671 = vsel %vm3670, %v3668, %v3669
        %v3672 = vrot.slane %v3671, 2
        %vm3673 = vcmp.gt.s32.totalorder %v3671, %v3672
        %v3674 = vsel %vm3673, %v3671, %v3672
        %v3675 = vrot.slane %v3674, 1
        %vm3676 = vcmp.gt.s32.totalorder %v3674, %v3675
        %v3677 = vsel %vm3676, %v3674, %v3675
        %vm3678 = vcmp.gt.s32.totalorder %v2999, %v3677
        %v3679 = vsel %vm3678, %v2999, %v3677
        %3680 = vset.pattern.permute.xlu0 5
        %3681 = vperm.xlu0 %3680, %v257
        %v3682 = vpop.permute.xlu0 %3681
        %3683 = vset.pattern.permute.xlu0 5
        %3684 = vperm.xlu0 %3683, %v258
        %v3685 = vpop.permute.xlu0 %3684
        %3686 = vset.pattern.permute.xlu0 5
        %3687 = vperm.xlu0 %3686, %v259
        %v3688 = vpop.permute.xlu0 %3687
        %3689 = vset.pattern.permute.xlu0 5
        %3690 = vperm.xlu0 %3689, %v260
        %v3691 = vpop.permute.xlu0 %3690
        %3692 = vset.pattern.permute.xlu0 5
        %3693 = vperm.xlu0 %3692, %v261
        %v3694 = vpop.permute.xlu0 %3693
        %3695 = vset.pattern.permute.xlu0 5
        %3696 = vperm.xlu0 %3695, %v262
        %v3697 = vpop.permute.xlu0 %3696
        %3698 = vset.pattern.permute.xlu0 5
        %3699 = vperm.xlu0 %3698, %v263
        %v3700 = vpop.permute.xlu0 %3699
        %3701 = vset.pattern.permute.xlu0 5
        %3702 = vperm.xlu0 %3701, %v264
        %v3703 = vpop.permute.xlu0 %3702
        %3704 = vset.pattern.permute.xlu0 5
        %3705 = vperm.xlu0 %3704, %v265
        %v3706 = vpop.permute.xlu0 %3705
        %3707 = vset.pattern.permute.xlu0 5
        %3708 = vperm.xlu0 %3707, %v266
        %v3709 = vpop.permute.xlu0 %3708
        %3710 = vset.pattern.permute.xlu0 5
        %3711 = vperm.xlu0 %3710, %v267
        %v3712 = vpop.permute.xlu0 %3711
        %3713 = vset.pattern.permute.xlu0 5
        %3714 = vperm.xlu0 %3713, %v268
        %v3715 = vpop.permute.xlu0 %3714
        %3716 = vset.pattern.permute.xlu0 5
        %3717 = vperm.xlu0 %3716, %v269
        %v3718 = vpop.permute.xlu0 %3717
        %3719 = vset.pattern.permute.xlu0 5
        %3720 = vperm.xlu0 %3719, %v270
        %v3721 = vpop.permute.xlu0 %3720
        %3722 = vset.pattern.permute.xlu0 5
        %3723 = vperm.xlu0 %3722, %v271
        %v3724 = vpop.permute.xlu0 %3723
        %3725 = vset.pattern.permute.xlu0 5
        %3726 = vperm.xlu0 %3725, %v272
        %v3727 = vpop.permute.xlu0 %3726
        %vm3728 = vcmp.eq.s32.totalorder %v3682, %v254
        %vm3729 = vcmp.eq.s32.totalorder %v3685, %v254
        %vm3730 = vcmp.eq.s32.totalorder %v3688, %v254
        %vm3731 = vcmp.eq.s32.totalorder %v3691, %v254
        %vm3732 = vcmp.eq.s32.totalorder %v3694, %v254
        %vm3733 = vcmp.eq.s32.totalorder %v3697, %v254
        %vm3734 = vcmp.eq.s32.totalorder %v3700, %v254
        %vm3735 = vcmp.eq.s32.totalorder %v3703, %v254
        %vm3736 = vcmp.eq.s32.totalorder %v3706, %v254
        %vm3737 = vcmp.eq.s32.totalorder %v3709, %v254
        %vm3738 = vcmp.eq.s32.totalorder %v3712, %v254
        %vm3739 = vcmp.eq.s32.totalorder %v3715, %v254
        %vm3740 = vcmp.eq.s32.totalorder %v3718, %v254
        %vm3741 = vcmp.eq.s32.totalorder %v3721, %v254
        %vm3742 = vcmp.eq.s32.totalorder %v3724, %v254
        %vm3743 = vcmp.eq.s32.totalorder %v3727, %v254
        %3744 = vset.pattern.permute.xlu0 5
        %3745 = vperm.xlu0 %3744, %v236
        %v3746 = vpop.permute.xlu0 %3745
        %3747 = vset.pattern.permute.xlu0 5
        %3748 = vperm.xlu0 %3747, %v237
        %v3749 = vpop.permute.xlu0 %3748
        %3750 = vset.pattern.permute.xlu0 5
        %3751 = vperm.xlu0 %3750, %v238
        %v3752 = vpop.permute.xlu0 %3751
        %3753 = vset.pattern.permute.xlu0 5
        %3754 = vperm.xlu0 %3753, %v239
        %v3755 = vpop.permute.xlu0 %3754
        %3756 = vset.pattern.permute.xlu0 5
        %3757 = vperm.xlu0 %3756, %v240
        %v3758 = vpop.permute.xlu0 %3757
        %3759 = vset.pattern.permute.xlu0 5
        %3760 = vperm.xlu0 %3759, %v241
        %v3761 = vpop.permute.xlu0 %3760
        %3762 = vset.pattern.permute.xlu0 5
        %3763 = vperm.xlu0 %3762, %v242
        %v3764 = vpop.permute.xlu0 %3763
        %3765 = vset.pattern.permute.xlu0 5
        %3766 = vperm.xlu0 %3765, %v243
        %v3767 = vpop.permute.xlu0 %3766
        %3768 = vset.pattern.permute.xlu0 5
        %3769 = vperm.xlu0 %3768, %v244
        %v3770 = vpop.permute.xlu0 %3769
        %3771 = vset.pattern.permute.xlu0 5
        %3772 = vperm.xlu0 %3771, %v245
        %v3773 = vpop.permute.xlu0 %3772
        %3774 = vset.pattern.permute.xlu0 5
        %3775 = vperm.xlu0 %3774, %v246
        %v3776 = vpop.permute.xlu0 %3775
        %3777 = vset.pattern.permute.xlu0 5
        %3778 = vperm.xlu0 %3777, %v247
        %v3779 = vpop.permute.xlu0 %3778
        %3780 = vset.pattern.permute.xlu0 5
        %3781 = vperm.xlu0 %3780, %v248
        %v3782 = vpop.permute.xlu0 %3781
        %3783 = vset.pattern.permute.xlu0 5
        %3784 = vperm.xlu0 %3783, %v249
        %v3785 = vpop.permute.xlu0 %3784
        %3786 = vset.pattern.permute.xlu0 5
        %3787 = vperm.xlu0 %3786, %v250
        %v3788 = vpop.permute.xlu0 %3787
        %3789 = vset.pattern.permute.xlu0 5
        %3790 = vperm.xlu0 %3789, %v251
        %v3791 = vpop.permute.xlu0 %3790
        %v3792 = vsel %vm3728, %v3746, 4294967295
        %v3793 = vsel %vm3729, %v3749, 4294967295
        %v3794 = vsel %vm3730, %v3752, 4294967295
        %v3795 = vsel %vm3731, %v3755, 4294967295
        %v3796 = vsel %vm3732, %v3758, 4294967295
        %v3797 = vsel %vm3733, %v3761, 4294967295
        %v3798 = vsel %vm3734, %v3764, 4294967295
        %v3799 = vsel %vm3735, %v3767, 4294967295
        %v3800 = vsel %vm3736, %v3770, 4294967295
        %v3801 = vsel %vm3737, %v3773, 4294967295
        %v3802 = vsel %vm3738, %v3776, 4294967295
        %v3803 = vsel %vm3739, %v3779, 4294967295
        %v3804 = vsel %vm3740, %v3782, 4294967295
        %v3805 = vsel %vm3741, %v3785, 4294967295
        %v3806 = vsel %vm3742, %v3788, 4294967295
        %v3807 = vsel %vm3743, %v3791, 4294967295
        %vm3808 = vcmp.gt.s32.totalorder %v3792, %v3796
        %v3809 = vsel %vm3808, %v3792, %v3796
        %vm3810 = vcmp.gt.s32.totalorder %v3793, %v3797
        %v3811 = vsel %vm3810, %v3793, %v3797
        %vm3812 = vcmp.gt.s32.totalorder %v3794, %v3798
        %v3813 = vsel %vm3812, %v3794, %v3798
        %vm3814 = vcmp.gt.s32.totalorder %v3795, %v3799
        %v3815 = vsel %vm3814, %v3795, %v3799
        %vm3816 = vcmp.gt.s32.totalorder %v3809, %v3800
        %v3817 = vsel %vm3816, %v3809, %v3800
        %vm3818 = vcmp.gt.s32.totalorder %v3811, %v3801
        %v3819 = vsel %vm3818, %v3811, %v3801
        %vm3820 = vcmp.gt.s32.totalorder %v3813, %v3802
        %v3821 = vsel %vm3820, %v3813, %v3802
        %vm3822 = vcmp.gt.s32.totalorder %v3815, %v3803
        %v3823 = vsel %vm3822, %v3815, %v3803
        %vm3824 = vcmp.gt.s32.totalorder %v3817, %v3804
        %v3825 = vsel %vm3824, %v3817, %v3804
        %vm3826 = vcmp.gt.s32.totalorder %v3819, %v3805
        %v3827 = vsel %vm3826, %v3819, %v3805
        %vm3828 = vcmp.gt.s32.totalorder %v3821, %v3806
        %v3829 = vsel %vm3828, %v3821, %v3806
        %vm3830 = vcmp.gt.s32.totalorder %v3823, %v3807
        %v3831 = vsel %vm3830, %v3823, %v3807
        %vm3832 = vcmp.gt.s32.totalorder %v3825, %v3827
        %v3833 = vsel %vm3832, %v3825, %v3827
        %vm3834 = vcmp.gt.s32.totalorder %v3829, %v3831
        %v3835 = vsel %vm3834, %v3829, %v3831
        %vm3836 = vcmp.gt.s32.totalorder %v3833, %v3835
        %v3837 = vsel %vm3836, %v3833, %v3835
        %v3838 = vrot.slane %v3837, 4
        %vm3839 = vcmp.gt.s32.totalorder %v3837, %v3838
        %v3840 = vsel %vm3839, %v3837, %v3838
        %v3841 = vrot.slane %v3840, 2
        %vm3842 = vcmp.gt.s32.totalorder %v3840, %v3841
        %v3843 = vsel %vm3842, %v3840, %v3841
        %v3844 = vrot.slane %v3843, 1
        %vm3845 = vcmp.gt.s32.totalorder %v3843, %v3844
        %v3846 = vsel %vm3845, %v3843, %v3844
        %vm3847 = vcmp.gt.s32.totalorder %v3168, %v3846
        %v3848 = vsel %vm3847, %v3168, %v3846
        %vm3849 = vcmp.eq.s32.totalorder %v3682, %v442
        %vm3850 = vcmp.eq.s32.totalorder %v3685, %v442
        %vm3851 = vcmp.eq.s32.totalorder %v3688, %v442
        %vm3852 = vcmp.eq.s32.totalorder %v3691, %v442
        %vm3853 = vcmp.eq.s32.totalorder %v3694, %v442
        %vm3854 = vcmp.eq.s32.totalorder %v3697, %v442
        %vm3855 = vcmp.eq.s32.totalorder %v3700, %v442
        %vm3856 = vcmp.eq.s32.totalorder %v3703, %v442
        %vm3857 = vcmp.eq.s32.totalorder %v3706, %v442
        %vm3858 = vcmp.eq.s32.totalorder %v3709, %v442
        %vm3859 = vcmp.eq.s32.totalorder %v3712, %v442
        %vm3860 = vcmp.eq.s32.totalorder %v3715, %v442
        %vm3861 = vcmp.eq.s32.totalorder %v3718, %v442
        %vm3862 = vcmp.eq.s32.totalorder %v3721, %v442
        %vm3863 = vcmp.eq.s32.totalorder %v3724, %v442
        %vm3864 = vcmp.eq.s32.totalorder %v3727, %v442
        %v3865 = vsel %vm3849, %v3746, 4294967295
        %v3866 = vsel %vm3850, %v3749, 4294967295
        %v3867 = vsel %vm3851, %v3752, 4294967295
        %v3868 = vsel %vm3852, %v3755, 4294967295
        %v3869 = vsel %vm3853, %v3758, 4294967295
        %v3870 = vsel %vm3854, %v3761, 4294967295
        %v3871 = vsel %vm3855, %v3764, 4294967295
        %v3872 = vsel %vm3856, %v3767, 4294967295
        %v3873 = vsel %vm3857, %v3770, 4294967295
        %v3874 = vsel %vm3858, %v3773, 4294967295
        %v3875 = vsel %vm3859, %v3776, 4294967295
        %v3876 = vsel %vm3860, %v3779, 4294967295
        %v3877 = vsel %vm3861, %v3782, 4294967295
        %v3878 = vsel %vm3862, %v3785, 4294967295
        %v3879 = vsel %vm3863, %v3788, 4294967295
        %v3880 = vsel %vm3864, %v3791, 4294967295
        %vm3881 = vcmp.gt.s32.totalorder %v3865, %v3869
        %v3882 = vsel %vm3881, %v3865, %v3869
        %vm3883 = vcmp.gt.s32.totalorder %v3866, %v3870
        %v3884 = vsel %vm3883, %v3866, %v3870
        %vm3885 = vcmp.gt.s32.totalorder %v3867, %v3871
        %v3886 = vsel %vm3885, %v3867, %v3871
        %vm3887 = vcmp.gt.s32.totalorder %v3868, %v3872
        %v3888 = vsel %vm3887, %v3868, %v3872
        %vm3889 = vcmp.gt.s32.totalorder %v3882, %v3873
        %v3890 = vsel %vm3889, %v3882, %v3873
        %vm3891 = vcmp.gt.s32.totalorder %v3884, %v3874
        %v3892 = vsel %vm3891, %v3884, %v3874
        %vm3893 = vcmp.gt.s32.totalorder %v3886, %v3875
        %v3894 = vsel %vm3893, %v3886, %v3875
        %vm3895 = vcmp.gt.s32.totalorder %v3888, %v3876
        %v3896 = vsel %vm3895, %v3888, %v3876
        %vm3897 = vcmp.gt.s32.totalorder %v3890, %v3877
        %v3898 = vsel %vm3897, %v3890, %v3877
        %vm3899 = vcmp.gt.s32.totalorder %v3892, %v3878
        %v3900 = vsel %vm3899, %v3892, %v3878
        %vm3901 = vcmp.gt.s32.totalorder %v3894, %v3879
        %v3902 = vsel %vm3901, %v3894, %v3879
        %vm3903 = vcmp.gt.s32.totalorder %v3896, %v3880
        %v3904 = vsel %vm3903, %v3896, %v3880
        %vm3905 = vcmp.gt.s32.totalorder %v3898, %v3900
        %v3906 = vsel %vm3905, %v3898, %v3900
        %vm3907 = vcmp.gt.s32.totalorder %v3902, %v3904
        %v3908 = vsel %vm3907, %v3902, %v3904
        %vm3909 = vcmp.gt.s32.totalorder %v3906, %v3908
        %v3910 = vsel %vm3909, %v3906, %v3908
        %v3911 = vrot.slane %v3910, 4
        %vm3912 = vcmp.gt.s32.totalorder %v3910, %v3911
        %v3913 = vsel %vm3912, %v3910, %v3911
        %v3914 = vrot.slane %v3913, 2
        %vm3915 = vcmp.gt.s32.totalorder %v3913, %v3914
        %v3916 = vsel %vm3915, %v3913, %v3914
        %v3917 = vrot.slane %v3916, 1
        %vm3918 = vcmp.gt.s32.totalorder %v3916, %v3917
        %v3919 = vsel %vm3918, %v3916, %v3917
        %vm3920 = vcmp.gt.s32.totalorder %v3241, %v3919
        %v3921 = vsel %vm3920, %v3241, %v3919
        %vm3922 = vcmp.eq.s32.totalorder %v3682, %v516
        %vm3923 = vcmp.eq.s32.totalorder %v3685, %v516
        %vm3924 = vcmp.eq.s32.totalorder %v3688, %v516
        %vm3925 = vcmp.eq.s32.totalorder %v3691, %v516
        %vm3926 = vcmp.eq.s32.totalorder %v3694, %v516
        %vm3927 = vcmp.eq.s32.totalorder %v3697, %v516
        %vm3928 = vcmp.eq.s32.totalorder %v3700, %v516
        %vm3929 = vcmp.eq.s32.totalorder %v3703, %v516
        %vm3930 = vcmp.eq.s32.totalorder %v3706, %v516
        %vm3931 = vcmp.eq.s32.totalorder %v3709, %v516
        %vm3932 = vcmp.eq.s32.totalorder %v3712, %v516
        %vm3933 = vcmp.eq.s32.totalorder %v3715, %v516
        %vm3934 = vcmp.eq.s32.totalorder %v3718, %v516
        %vm3935 = vcmp.eq.s32.totalorder %v3721, %v516
        %vm3936 = vcmp.eq.s32.totalorder %v3724, %v516
        %vm3937 = vcmp.eq.s32.totalorder %v3727, %v516
        %v3938 = vsel %vm3922, %v3746, 4294967295
        %v3939 = vsel %vm3923, %v3749, 4294967295
        %v3940 = vsel %vm3924, %v3752, 4294967295
        %v3941 = vsel %vm3925, %v3755, 4294967295
        %v3942 = vsel %vm3926, %v3758, 4294967295
        %v3943 = vsel %vm3927, %v3761, 4294967295
        %v3944 = vsel %vm3928, %v3764, 4294967295
        %v3945 = vsel %vm3929, %v3767, 4294967295
        %v3946 = vsel %vm3930, %v3770, 4294967295
        %v3947 = vsel %vm3931, %v3773, 4294967295
        %v3948 = vsel %vm3932, %v3776, 4294967295
        %v3949 = vsel %vm3933, %v3779, 4294967295
        %v3950 = vsel %vm3934, %v3782, 4294967295
        %v3951 = vsel %vm3935, %v3785, 4294967295
        %v3952 = vsel %vm3936, %v3788, 4294967295
        %v3953 = vsel %vm3937, %v3791, 4294967295
        %vm3954 = vcmp.gt.s32.totalorder %v3938, %v3942
        %v3955 = vsel %vm3954, %v3938, %v3942
        %vm3956 = vcmp.gt.s32.totalorder %v3939, %v3943
        %v3957 = vsel %vm3956, %v3939, %v3943
        %vm3958 = vcmp.gt.s32.totalorder %v3940, %v3944
        %v3959 = vsel %vm3958, %v3940, %v3944
        %vm3960 = vcmp.gt.s32.totalorder %v3941, %v3945
        %v3961 = vsel %vm3960, %v3941, %v3945
        %vm3962 = vcmp.gt.s32.totalorder %v3955, %v3946
        %v3963 = vsel %vm3962, %v3955, %v3946
        %vm3964 = vcmp.gt.s32.totalorder %v3957, %v3947
        %v3965 = vsel %vm3964, %v3957, %v3947
        %vm3966 = vcmp.gt.s32.totalorder %v3959, %v3948
        %v3967 = vsel %vm3966, %v3959, %v3948
        %vm3968 = vcmp.gt.s32.totalorder %v3961, %v3949
        %v3969 = vsel %vm3968, %v3961, %v3949
        %vm3970 = vcmp.gt.s32.totalorder %v3963, %v3950
        %v3971 = vsel %vm3970, %v3963, %v3950
        %vm3972 = vcmp.gt.s32.totalorder %v3965, %v3951
        %v3973 = vsel %vm3972, %v3965, %v3951
        %vm3974 = vcmp.gt.s32.totalorder %v3967, %v3952
        %v3975 = vsel %vm3974, %v3967, %v3952
        %vm3976 = vcmp.gt.s32.totalorder %v3969, %v3953
        %v3977 = vsel %vm3976, %v3969, %v3953
        %vm3978 = vcmp.gt.s32.totalorder %v3971, %v3973
        %v3979 = vsel %vm3978, %v3971, %v3973
        %vm3980 = vcmp.gt.s32.totalorder %v3975, %v3977
        %v3981 = vsel %vm3980, %v3975, %v3977
        %vm3982 = vcmp.gt.s32.totalorder %v3979, %v3981
        %v3983 = vsel %vm3982, %v3979, %v3981
        %v3984 = vrot.slane %v3983, 4
        %vm3985 = vcmp.gt.s32.totalorder %v3983, %v3984
        %v3986 = vsel %vm3985, %v3983, %v3984
        %v3987 = vrot.slane %v3986, 2
        %vm3988 = vcmp.gt.s32.totalorder %v3986, %v3987
        %v3989 = vsel %vm3988, %v3986, %v3987
        %v3990 = vrot.slane %v3989, 1
        %vm3991 = vcmp.gt.s32.totalorder %v3989, %v3990
        %v3992 = vsel %vm3991, %v3989, %v3990
        %vm3993 = vcmp.gt.s32.totalorder %v3314, %v3992
        %v3994 = vsel %vm3993, %v3314, %v3992
        %vm3995 = vcmp.eq.s32.totalorder %v3682, %v590
        %vm3996 = vcmp.eq.s32.totalorder %v3685, %v590
        %vm3997 = vcmp.eq.s32.totalorder %v3688, %v590
        %vm3998 = vcmp.eq.s32.totalorder %v3691, %v590
        %vm3999 = vcmp.eq.s32.totalorder %v3694, %v590
        %vm4000 = vcmp.eq.s32.totalorder %v3697, %v590
        %vm4001 = vcmp.eq.s32.totalorder %v3700, %v590
        %vm4002 = vcmp.eq.s32.totalorder %v3703, %v590
        %vm4003 = vcmp.eq.s32.totalorder %v3706, %v590
        %vm4004 = vcmp.eq.s32.totalorder %v3709, %v590
        %vm4005 = vcmp.eq.s32.totalorder %v3712, %v590
        %vm4006 = vcmp.eq.s32.totalorder %v3715, %v590
        %vm4007 = vcmp.eq.s32.totalorder %v3718, %v590
        %vm4008 = vcmp.eq.s32.totalorder %v3721, %v590
        %vm4009 = vcmp.eq.s32.totalorder %v3724, %v590
        %vm4010 = vcmp.eq.s32.totalorder %v3727, %v590
        %v4011 = vsel %vm3995, %v3746, 4294967295
        %v4012 = vsel %vm3996, %v3749, 4294967295
        %v4013 = vsel %vm3997, %v3752, 4294967295
        %v4014 = vsel %vm3998, %v3755, 4294967295
        %v4015 = vsel %vm3999, %v3758, 4294967295
        %v4016 = vsel %vm4000, %v3761, 4294967295
        %v4017 = vsel %vm4001, %v3764, 4294967295
        %v4018 = vsel %vm4002, %v3767, 4294967295
        %v4019 = vsel %vm4003, %v3770, 4294967295
        %v4020 = vsel %vm4004, %v3773, 4294967295
        %v4021 = vsel %vm4005, %v3776, 4294967295
        %v4022 = vsel %vm4006, %v3779, 4294967295
        %v4023 = vsel %vm4007, %v3782, 4294967295
        %v4024 = vsel %vm4008, %v3785, 4294967295
        %v4025 = vsel %vm4009, %v3788, 4294967295
        %v4026 = vsel %vm4010, %v3791, 4294967295
        %vm4027 = vcmp.gt.s32.totalorder %v4011, %v4015
        %v4028 = vsel %vm4027, %v4011, %v4015
        %vm4029 = vcmp.gt.s32.totalorder %v4012, %v4016
        %v4030 = vsel %vm4029, %v4012, %v4016
        %vm4031 = vcmp.gt.s32.totalorder %v4013, %v4017
        %v4032 = vsel %vm4031, %v4013, %v4017
        %vm4033 = vcmp.gt.s32.totalorder %v4014, %v4018
        %v4034 = vsel %vm4033, %v4014, %v4018
        %vm4035 = vcmp.gt.s32.totalorder %v4028, %v4019
        %v4036 = vsel %vm4035, %v4028, %v4019
        %vm4037 = vcmp.gt.s32.totalorder %v4030, %v4020
        %v4038 = vsel %vm4037, %v4030, %v4020
        %vm4039 = vcmp.gt.s32.totalorder %v4032, %v4021
        %v4040 = vsel %vm4039, %v4032, %v4021
        %vm4041 = vcmp.gt.s32.totalorder %v4034, %v4022
        %v4042 = vsel %vm4041, %v4034, %v4022
        %vm4043 = vcmp.gt.s32.totalorder %v4036, %v4023
        %v4044 = vsel %vm4043, %v4036, %v4023
        %vm4045 = vcmp.gt.s32.totalorder %v4038, %v4024
        %v4046 = vsel %vm4045, %v4038, %v4024
        %vm4047 = vcmp.gt.s32.totalorder %v4040, %v4025
        %v4048 = vsel %vm4047, %v4040, %v4025
        %vm4049 = vcmp.gt.s32.totalorder %v4042, %v4026
        %v4050 = vsel %vm4049, %v4042, %v4026
        %vm4051 = vcmp.gt.s32.totalorder %v4044, %v4046
        %v4052 = vsel %vm4051, %v4044, %v4046
        %vm4053 = vcmp.gt.s32.totalorder %v4048, %v4050
        %v4054 = vsel %vm4053, %v4048, %v4050
        %vm4055 = vcmp.gt.s32.totalorder %v4052, %v4054
        %v4056 = vsel %vm4055, %v4052, %v4054
        %v4057 = vrot.slane %v4056, 4
        %vm4058 = vcmp.gt.s32.totalorder %v4056, %v4057
        %v4059 = vsel %vm4058, %v4056, %v4057
        %v4060 = vrot.slane %v4059, 2
        %vm4061 = vcmp.gt.s32.totalorder %v4059, %v4060
        %v4062 = vsel %vm4061, %v4059, %v4060
        %v4063 = vrot.slane %v4062, 1
        %vm4064 = vcmp.gt.s32.totalorder %v4062, %v4063
        %v4065 = vsel %vm4064, %v4062, %v4063
        %vm4066 = vcmp.gt.s32.totalorder %v3387, %v4065
        %v4067 = vsel %vm4066, %v3387, %v4065
        %vm4068 = vcmp.eq.s32.totalorder %v3682, %v664
        %vm4069 = vcmp.eq.s32.totalorder %v3685, %v664
        %vm4070 = vcmp.eq.s32.totalorder %v3688, %v664
        %vm4071 = vcmp.eq.s32.totalorder %v3691, %v664
        %vm4072 = vcmp.eq.s32.totalorder %v3694, %v664
        %vm4073 = vcmp.eq.s32.totalorder %v3697, %v664
        %vm4074 = vcmp.eq.s32.totalorder %v3700, %v664
        %vm4075 = vcmp.eq.s32.totalorder %v3703, %v664
        %vm4076 = vcmp.eq.s32.totalorder %v3706, %v664
        %vm4077 = vcmp.eq.s32.totalorder %v3709, %v664
        %vm4078 = vcmp.eq.s32.totalorder %v3712, %v664
        %vm4079 = vcmp.eq.s32.totalorder %v3715, %v664
        %vm4080 = vcmp.eq.s32.totalorder %v3718, %v664
        %vm4081 = vcmp.eq.s32.totalorder %v3721, %v664
        %vm4082 = vcmp.eq.s32.totalorder %v3724, %v664
        %vm4083 = vcmp.eq.s32.totalorder %v3727, %v664
        %v4084 = vsel %vm4068, %v3746, 4294967295
        %v4085 = vsel %vm4069, %v3749, 4294967295
        %v4086 = vsel %vm4070, %v3752, 4294967295
        %v4087 = vsel %vm4071, %v3755, 4294967295
        %v4088 = vsel %vm4072, %v3758, 4294967295
        %v4089 = vsel %vm4073, %v3761, 4294967295
        %v4090 = vsel %vm4074, %v3764, 4294967295
        %v4091 = vsel %vm4075, %v3767, 4294967295
        %v4092 = vsel %vm4076, %v3770, 4294967295
        %v4093 = vsel %vm4077, %v3773, 4294967295
        %v4094 = vsel %vm4078, %v3776, 4294967295
        %v4095 = vsel %vm4079, %v3779, 4294967295
        %v4096 = vsel %vm4080, %v3782, 4294967295
        %v4097 = vsel %vm4081, %v3785, 4294967295
        %v4098 = vsel %vm4082, %v3788, 4294967295
        %v4099 = vsel %vm4083, %v3791, 4294967295
        %vm4100 = vcmp.gt.s32.totalorder %v4084, %v4088
        %v4101 = vsel %vm4100, %v4084, %v4088
        %vm4102 = vcmp.gt.s32.totalorder %v4085, %v4089
        %v4103 = vsel %vm4102, %v4085, %v4089
        %vm4104 = vcmp.gt.s32.totalorder %v4086, %v4090
        %v4105 = vsel %vm4104, %v4086, %v4090
        %vm4106 = vcmp.gt.s32.totalorder %v4087, %v4091
        %v4107 = vsel %vm4106, %v4087, %v4091
        %vm4108 = vcmp.gt.s32.totalorder %v4101, %v4092
        %v4109 = vsel %vm4108, %v4101, %v4092
        %vm4110 = vcmp.gt.s32.totalorder %v4103, %v4093
        %v4111 = vsel %vm4110, %v4103, %v4093
        %vm4112 = vcmp.gt.s32.totalorder %v4105, %v4094
        %v4113 = vsel %vm4112, %v4105, %v4094
        %vm4114 = vcmp.gt.s32.totalorder %v4107, %v4095
        %v4115 = vsel %vm4114, %v4107, %v4095
        %vm4116 = vcmp.gt.s32.totalorder %v4109, %v4096
        %v4117 = vsel %vm4116, %v4109, %v4096
        %vm4118 = vcmp.gt.s32.totalorder %v4111, %v4097
        %v4119 = vsel %vm4118, %v4111, %v4097
        %vm4120 = vcmp.gt.s32.totalorder %v4113, %v4098
        %v4121 = vsel %vm4120, %v4113, %v4098
        %vm4122 = vcmp.gt.s32.totalorder %v4115, %v4099
        %v4123 = vsel %vm4122, %v4115, %v4099
        %vm4124 = vcmp.gt.s32.totalorder %v4117, %v4119
        %v4125 = vsel %vm4124, %v4117, %v4119
        %vm4126 = vcmp.gt.s32.totalorder %v4121, %v4123
        %v4127 = vsel %vm4126, %v4121, %v4123
        %vm4128 = vcmp.gt.s32.totalorder %v4125, %v4127
        %v4129 = vsel %vm4128, %v4125, %v4127
        %v4130 = vrot.slane %v4129, 4
        %vm4131 = vcmp.gt.s32.totalorder %v4129, %v4130
        %v4132 = vsel %vm4131, %v4129, %v4130
        %v4133 = vrot.slane %v4132, 2
        %vm4134 = vcmp.gt.s32.totalorder %v4132, %v4133
        %v4135 = vsel %vm4134, %v4132, %v4133
        %v4136 = vrot.slane %v4135, 1
        %vm4137 = vcmp.gt.s32.totalorder %v4135, %v4136
        %v4138 = vsel %vm4137, %v4135, %v4136
        %vm4139 = vcmp.gt.s32.totalorder %v3460, %v4138
        %v4140 = vsel %vm4139, %v3460, %v4138
        %vm4141 = vcmp.eq.s32.totalorder %v3682, %v738
        %vm4142 = vcmp.eq.s32.totalorder %v3685, %v738
        %vm4143 = vcmp.eq.s32.totalorder %v3688, %v738
        %vm4144 = vcmp.eq.s32.totalorder %v3691, %v738
        %vm4145 = vcmp.eq.s32.totalorder %v3694, %v738
        %vm4146 = vcmp.eq.s32.totalorder %v3697, %v738
        %vm4147 = vcmp.eq.s32.totalorder %v3700, %v738
        %vm4148 = vcmp.eq.s32.totalorder %v3703, %v738
        %vm4149 = vcmp.eq.s32.totalorder %v3706, %v738
        %vm4150 = vcmp.eq.s32.totalorder %v3709, %v738
        %vm4151 = vcmp.eq.s32.totalorder %v3712, %v738
        %vm4152 = vcmp.eq.s32.totalorder %v3715, %v738
        %vm4153 = vcmp.eq.s32.totalorder %v3718, %v738
        %vm4154 = vcmp.eq.s32.totalorder %v3721, %v738
        %vm4155 = vcmp.eq.s32.totalorder %v3724, %v738
        %vm4156 = vcmp.eq.s32.totalorder %v3727, %v738
        %v4157 = vsel %vm4141, %v3746, 4294967295
        %v4158 = vsel %vm4142, %v3749, 4294967295
        %v4159 = vsel %vm4143, %v3752, 4294967295
        %v4160 = vsel %vm4144, %v3755, 4294967295
        %v4161 = vsel %vm4145, %v3758, 4294967295
        %v4162 = vsel %vm4146, %v3761, 4294967295
        %v4163 = vsel %vm4147, %v3764, 4294967295
        %v4164 = vsel %vm4148, %v3767, 4294967295
        %v4165 = vsel %vm4149, %v3770, 4294967295
        %v4166 = vsel %vm4150, %v3773, 4294967295
        %v4167 = vsel %vm4151, %v3776, 4294967295
        %v4168 = vsel %vm4152, %v3779, 4294967295
        %v4169 = vsel %vm4153, %v3782, 4294967295
        %v4170 = vsel %vm4154, %v3785, 4294967295
        %v4171 = vsel %vm4155, %v3788, 4294967295
        %v4172 = vsel %vm4156, %v3791, 4294967295
        %vm4173 = vcmp.gt.s32.totalorder %v4157, %v4161
        %v4174 = vsel %vm4173, %v4157, %v4161
        %vm4175 = vcmp.gt.s32.totalorder %v4158, %v4162
        %v4176 = vsel %vm4175, %v4158, %v4162
        %vm4177 = vcmp.gt.s32.totalorder %v4159, %v4163
        %v4178 = vsel %vm4177, %v4159, %v4163
        %vm4179 = vcmp.gt.s32.totalorder %v4160, %v4164
        %v4180 = vsel %vm4179, %v4160, %v4164
        %vm4181 = vcmp.gt.s32.totalorder %v4174, %v4165
        %v4182 = vsel %vm4181, %v4174, %v4165
        %vm4183 = vcmp.gt.s32.totalorder %v4176, %v4166
        %v4184 = vsel %vm4183, %v4176, %v4166
        %vm4185 = vcmp.gt.s32.totalorder %v4178, %v4167
        %v4186 = vsel %vm4185, %v4178, %v4167
        %vm4187 = vcmp.gt.s32.totalorder %v4180, %v4168
        %v4188 = vsel %vm4187, %v4180, %v4168
        %vm4189 = vcmp.gt.s32.totalorder %v4182, %v4169
        %v4190 = vsel %vm4189, %v4182, %v4169
        %vm4191 = vcmp.gt.s32.totalorder %v4184, %v4170
        %v4192 = vsel %vm4191, %v4184, %v4170
        %vm4193 = vcmp.gt.s32.totalorder %v4186, %v4171
        %v4194 = vsel %vm4193, %v4186, %v4171
        %vm4195 = vcmp.gt.s32.totalorder %v4188, %v4172
        %v4196 = vsel %vm4195, %v4188, %v4172
        %vm4197 = vcmp.gt.s32.totalorder %v4190, %v4192
        %v4198 = vsel %vm4197, %v4190, %v4192
        %vm4199 = vcmp.gt.s32.totalorder %v4194, %v4196
        %v4200 = vsel %vm4199, %v4194, %v4196
        %vm4201 = vcmp.gt.s32.totalorder %v4198, %v4200
        %v4202 = vsel %vm4201, %v4198, %v4200
        %v4203 = vrot.slane %v4202, 4
        %vm4204 = vcmp.gt.s32.totalorder %v4202, %v4203
        %v4205 = vsel %vm4204, %v4202, %v4203
        %v4206 = vrot.slane %v4205, 2
        %vm4207 = vcmp.gt.s32.totalorder %v4205, %v4206
        %v4208 = vsel %vm4207, %v4205, %v4206
        %v4209 = vrot.slane %v4208, 1
        %vm4210 = vcmp.gt.s32.totalorder %v4208, %v4209
        %v4211 = vsel %vm4210, %v4208, %v4209
        %vm4212 = vcmp.gt.s32.totalorder %v3533, %v4211
        %v4213 = vsel %vm4212, %v3533, %v4211
        %vm4214 = vcmp.eq.s32.totalorder %v3682, %v812
        %vm4215 = vcmp.eq.s32.totalorder %v3685, %v812
        %vm4216 = vcmp.eq.s32.totalorder %v3688, %v812
        %vm4217 = vcmp.eq.s32.totalorder %v3691, %v812
        %vm4218 = vcmp.eq.s32.totalorder %v3694, %v812
        %vm4219 = vcmp.eq.s32.totalorder %v3697, %v812
        %vm4220 = vcmp.eq.s32.totalorder %v3700, %v812
        %vm4221 = vcmp.eq.s32.totalorder %v3703, %v812
        %vm4222 = vcmp.eq.s32.totalorder %v3706, %v812
        %vm4223 = vcmp.eq.s32.totalorder %v3709, %v812
        %vm4224 = vcmp.eq.s32.totalorder %v3712, %v812
        %vm4225 = vcmp.eq.s32.totalorder %v3715, %v812
        %vm4226 = vcmp.eq.s32.totalorder %v3718, %v812
        %vm4227 = vcmp.eq.s32.totalorder %v3721, %v812
        %vm4228 = vcmp.eq.s32.totalorder %v3724, %v812
        %vm4229 = vcmp.eq.s32.totalorder %v3727, %v812
        %v4230 = vsel %vm4214, %v3746, 4294967295
        %v4231 = vsel %vm4215, %v3749, 4294967295
        %v4232 = vsel %vm4216, %v3752, 4294967295
        %v4233 = vsel %vm4217, %v3755, 4294967295
        %v4234 = vsel %vm4218, %v3758, 4294967295
        %v4235 = vsel %vm4219, %v3761, 4294967295
        %v4236 = vsel %vm4220, %v3764, 4294967295
        %v4237 = vsel %vm4221, %v3767, 4294967295
        %v4238 = vsel %vm4222, %v3770, 4294967295
        %v4239 = vsel %vm4223, %v3773, 4294967295
        %v4240 = vsel %vm4224, %v3776, 4294967295
        %v4241 = vsel %vm4225, %v3779, 4294967295
        %v4242 = vsel %vm4226, %v3782, 4294967295
        %v4243 = vsel %vm4227, %v3785, 4294967295
        %v4244 = vsel %vm4228, %v3788, 4294967295
        %v4245 = vsel %vm4229, %v3791, 4294967295
        %vm4246 = vcmp.gt.s32.totalorder %v4230, %v4234
        %v4247 = vsel %vm4246, %v4230, %v4234
        %vm4248 = vcmp.gt.s32.totalorder %v4231, %v4235
        %v4249 = vsel %vm4248, %v4231, %v4235
        %vm4250 = vcmp.gt.s32.totalorder %v4232, %v4236
        %v4251 = vsel %vm4250, %v4232, %v4236
        %vm4252 = vcmp.gt.s32.totalorder %v4233, %v4237
        %v4253 = vsel %vm4252, %v4233, %v4237
        %vm4254 = vcmp.gt.s32.totalorder %v4247, %v4238
        %v4255 = vsel %vm4254, %v4247, %v4238
        %vm4256 = vcmp.gt.s32.totalorder %v4249, %v4239
        %v4257 = vsel %vm4256, %v4249, %v4239
        %vm4258 = vcmp.gt.s32.totalorder %v4251, %v4240
        %v4259 = vsel %vm4258, %v4251, %v4240
        %vm4260 = vcmp.gt.s32.totalorder %v4253, %v4241
        %v4261 = vsel %vm4260, %v4253, %v4241
        %vm4262 = vcmp.gt.s32.totalorder %v4255, %v4242
        %v4263 = vsel %vm4262, %v4255, %v4242
        %vm4264 = vcmp.gt.s32.totalorder %v4257, %v4243
        %v4265 = vsel %vm4264, %v4257, %v4243
        %vm4266 = vcmp.gt.s32.totalorder %v4259, %v4244
        %v4267 = vsel %vm4266, %v4259, %v4244
        %vm4268 = vcmp.gt.s32.totalorder %v4261, %v4245
        %v4269 = vsel %vm4268, %v4261, %v4245
        %vm4270 = vcmp.gt.s32.totalorder %v4263, %v4265
        %v4271 = vsel %vm4270, %v4263, %v4265
        %vm4272 = vcmp.gt.s32.totalorder %v4267, %v4269
        %v4273 = vsel %vm4272, %v4267, %v4269
        %vm4274 = vcmp.gt.s32.totalorder %v4271, %v4273
        %v4275 = vsel %vm4274, %v4271, %v4273
        %v4276 = vrot.slane %v4275, 4
        %vm4277 = vcmp.gt.s32.totalorder %v4275, %v4276
        %v4278 = vsel %vm4277, %v4275, %v4276
        %v4279 = vrot.slane %v4278, 2
        %vm4280 = vcmp.gt.s32.totalorder %v4278, %v4279
        %v4281 = vsel %vm4280, %v4278, %v4279
        %v4282 = vrot.slane %v4281, 1
        %vm4283 = vcmp.gt.s32.totalorder %v4281, %v4282
        %v4284 = vsel %vm4283, %v4281, %v4282
        %vm4285 = vcmp.gt.s32.totalorder %v3606, %v4284
        %v4286 = vsel %vm4285, %v3606, %v4284
        %vm4287 = vcmp.eq.s32.totalorder %v3682, %v886
        %vm4288 = vcmp.eq.s32.totalorder %v3685, %v886
        %vm4289 = vcmp.eq.s32.totalorder %v3688, %v886
        %vm4290 = vcmp.eq.s32.totalorder %v3691, %v886
        %vm4291 = vcmp.eq.s32.totalorder %v3694, %v886
        %vm4292 = vcmp.eq.s32.totalorder %v3697, %v886
        %vm4293 = vcmp.eq.s32.totalorder %v3700, %v886
        %vm4294 = vcmp.eq.s32.totalorder %v3703, %v886
        %vm4295 = vcmp.eq.s32.totalorder %v3706, %v886
        %vm4296 = vcmp.eq.s32.totalorder %v3709, %v886
        %vm4297 = vcmp.eq.s32.totalorder %v3712, %v886
        %vm4298 = vcmp.eq.s32.totalorder %v3715, %v886
        %vm4299 = vcmp.eq.s32.totalorder %v3718, %v886
        %vm4300 = vcmp.eq.s32.totalorder %v3721, %v886
        %vm4301 = vcmp.eq.s32.totalorder %v3724, %v886
        %vm4302 = vcmp.eq.s32.totalorder %v3727, %v886
        %v4303 = vsel %vm4287, %v3746, 4294967295
        %v4304 = vsel %vm4288, %v3749, 4294967295
        %v4305 = vsel %vm4289, %v3752, 4294967295
        %v4306 = vsel %vm4290, %v3755, 4294967295
        %v4307 = vsel %vm4291, %v3758, 4294967295
        %v4308 = vsel %vm4292, %v3761, 4294967295
        %v4309 = vsel %vm4293, %v3764, 4294967295
        %v4310 = vsel %vm4294, %v3767, 4294967295
        %v4311 = vsel %vm4295, %v3770, 4294967295
        %v4312 = vsel %vm4296, %v3773, 4294967295
        %v4313 = vsel %vm4297, %v3776, 4294967295
        %v4314 = vsel %vm4298, %v3779, 4294967295
        %v4315 = vsel %vm4299, %v3782, 4294967295
        %v4316 = vsel %vm4300, %v3785, 4294967295
        %v4317 = vsel %vm4301, %v3788, 4294967295
        %v4318 = vsel %vm4302, %v3791, 4294967295
        %vm4319 = vcmp.gt.s32.totalorder %v4303, %v4307
        %v4320 = vsel %vm4319, %v4303, %v4307
        %vm4321 = vcmp.gt.s32.totalorder %v4304, %v4308
        %v4322 = vsel %vm4321, %v4304, %v4308
        %vm4323 = vcmp.gt.s32.totalorder %v4305, %v4309
        %v4324 = vsel %vm4323, %v4305, %v4309
        %vm4325 = vcmp.gt.s32.totalorder %v4306, %v4310
        %v4326 = vsel %vm4325, %v4306, %v4310
        %vm4327 = vcmp.gt.s32.totalorder %v4320, %v4311
        %v4328 = vsel %vm4327, %v4320, %v4311
        %vm4329 = vcmp.gt.s32.totalorder %v4322, %v4312
        %v4330 = vsel %vm4329, %v4322, %v4312
        %vm4331 = vcmp.gt.s32.totalorder %v4324, %v4313
        %v4332 = vsel %vm4331, %v4324, %v4313
        %vm4333 = vcmp.gt.s32.totalorder %v4326, %v4314
        %v4334 = vsel %vm4333, %v4326, %v4314
        %vm4335 = vcmp.gt.s32.totalorder %v4328, %v4315
        %v4336 = vsel %vm4335, %v4328, %v4315
        %vm4337 = vcmp.gt.s32.totalorder %v4330, %v4316
        %v4338 = vsel %vm4337, %v4330, %v4316
        %vm4339 = vcmp.gt.s32.totalorder %v4332, %v4317
        %v4340 = vsel %vm4339, %v4332, %v4317
        %vm4341 = vcmp.gt.s32.totalorder %v4334, %v4318
        %v4342 = vsel %vm4341, %v4334, %v4318
        %vm4343 = vcmp.gt.s32.totalorder %v4336, %v4338
        %v4344 = vsel %vm4343, %v4336, %v4338
        %vm4345 = vcmp.gt.s32.totalorder %v4340, %v4342
        %v4346 = vsel %vm4345, %v4340, %v4342
        %vm4347 = vcmp.gt.s32.totalorder %v4344, %v4346
        %v4348 = vsel %vm4347, %v4344, %v4346
        %v4349 = vrot.slane %v4348, 4
        %vm4350 = vcmp.gt.s32.totalorder %v4348, %v4349
        %v4351 = vsel %vm4350, %v4348, %v4349
        %v4352 = vrot.slane %v4351, 2
        %vm4353 = vcmp.gt.s32.totalorder %v4351, %v4352
        %v4354 = vsel %vm4353, %v4351, %v4352
        %v4355 = vrot.slane %v4354, 1
        %vm4356 = vcmp.gt.s32.totalorder %v4354, %v4355
        %v4357 = vsel %vm4356, %v4354, %v4355
        %vm4358 = vcmp.gt.s32.totalorder %v3679, %v4357
        %v4359 = vsel %vm4358, %v3679, %v4357
        %4360 = vset.pattern.permute.xlu0 6
        %4361 = vperm.xlu0 %4360, %v257
        %v4362 = vpop.permute.xlu0 %4361
        %4363 = vset.pattern.permute.xlu0 6
        %4364 = vperm.xlu0 %4363, %v258
        %v4365 = vpop.permute.xlu0 %4364
        %4366 = vset.pattern.permute.xlu0 6
        %4367 = vperm.xlu0 %4366, %v259
        %v4368 = vpop.permute.xlu0 %4367
        %4369 = vset.pattern.permute.xlu0 6
        %4370 = vperm.xlu0 %4369, %v260
        %v4371 = vpop.permute.xlu0 %4370
        %4372 = vset.pattern.permute.xlu0 6
        %4373 = vperm.xlu0 %4372, %v261
        %v4374 = vpop.permute.xlu0 %4373
        %4375 = vset.pattern.permute.xlu0 6
        %4376 = vperm.xlu0 %4375, %v262
        %v4377 = vpop.permute.xlu0 %4376
        %4378 = vset.pattern.permute.xlu0 6
        %4379 = vperm.xlu0 %4378, %v263
        %v4380 = vpop.permute.xlu0 %4379
        %4381 = vset.pattern.permute.xlu0 6
        %4382 = vperm.xlu0 %4381, %v264
        %v4383 = vpop.permute.xlu0 %4382
        %4384 = vset.pattern.permute.xlu0 6
        %4385 = vperm.xlu0 %4384, %v265
        %v4386 = vpop.permute.xlu0 %4385
        %4387 = vset.pattern.permute.xlu0 6
        %4388 = vperm.xlu0 %4387, %v266
        %v4389 = vpop.permute.xlu0 %4388
        %4390 = vset.pattern.permute.xlu0 6
        %4391 = vperm.xlu0 %4390, %v267
        %v4392 = vpop.permute.xlu0 %4391
        %4393 = vset.pattern.permute.xlu0 6
        %4394 = vperm.xlu0 %4393, %v268
        %v4395 = vpop.permute.xlu0 %4394
        %4396 = vset.pattern.permute.xlu0 6
        %4397 = vperm.xlu0 %4396, %v269
        %v4398 = vpop.permute.xlu0 %4397
        %4399 = vset.pattern.permute.xlu0 6
        %4400 = vperm.xlu0 %4399, %v270
        %v4401 = vpop.permute.xlu0 %4400
        %4402 = vset.pattern.permute.xlu0 6
        %4403 = vperm.xlu0 %4402, %v271
        %v4404 = vpop.permute.xlu0 %4403
        %4405 = vset.pattern.permute.xlu0 6
        %4406 = vperm.xlu0 %4405, %v272
        %v4407 = vpop.permute.xlu0 %4406
        %vm4408 = vcmp.eq.s32.totalorder %v4362, %v254
        %vm4409 = vcmp.eq.s32.totalorder %v4365, %v254
        %vm4410 = vcmp.eq.s32.totalorder %v4368, %v254
        %vm4411 = vcmp.eq.s32.totalorder %v4371, %v254
        %vm4412 = vcmp.eq.s32.totalorder %v4374, %v254
        %vm4413 = vcmp.eq.s32.totalorder %v4377, %v254
        %vm4414 = vcmp.eq.s32.totalorder %v4380, %v254
        %vm4415 = vcmp.eq.s32.totalorder %v4383, %v254
        %vm4416 = vcmp.eq.s32.totalorder %v4386, %v254
        %vm4417 = vcmp.eq.s32.totalorder %v4389, %v254
        %vm4418 = vcmp.eq.s32.totalorder %v4392, %v254
        %vm4419 = vcmp.eq.s32.totalorder %v4395, %v254
        %vm4420 = vcmp.eq.s32.totalorder %v4398, %v254
        %vm4421 = vcmp.eq.s32.totalorder %v4401, %v254
        %vm4422 = vcmp.eq.s32.totalorder %v4404, %v254
        %vm4423 = vcmp.eq.s32.totalorder %v4407, %v254
        %4424 = vset.pattern.permute.xlu0 6
        %4425 = vperm.xlu0 %4424, %v236
        %v4426 = vpop.permute.xlu0 %4425
        %4427 = vset.pattern.permute.xlu0 6
        %4428 = vperm.xlu0 %4427, %v237
        %v4429 = vpop.permute.xlu0 %4428
        %4430 = vset.pattern.permute.xlu0 6
        %4431 = vperm.xlu0 %4430, %v238
        %v4432 = vpop.permute.xlu0 %4431
        %4433 = vset.pattern.permute.xlu0 6
        %4434 = vperm.xlu0 %4433, %v239
        %v4435 = vpop.permute.xlu0 %4434
        %4436 = vset.pattern.permute.xlu0 6
        %4437 = vperm.xlu0 %4436, %v240
        %v4438 = vpop.permute.xlu0 %4437
        %4439 = vset.pattern.permute.xlu0 6
        %4440 = vperm.xlu0 %4439, %v241
        %v4441 = vpop.permute.xlu0 %4440
        %4442 = vset.pattern.permute.xlu0 6
        %4443 = vperm.xlu0 %4442, %v242
        %v4444 = vpop.permute.xlu0 %4443
        %4445 = vset.pattern.permute.xlu0 6
        %4446 = vperm.xlu0 %4445, %v243
        %v4447 = vpop.permute.xlu0 %4446
        %4448 = vset.pattern.permute.xlu0 6
        %4449 = vperm.xlu0 %4448, %v244
        %v4450 = vpop.permute.xlu0 %4449
        %4451 = vset.pattern.permute.xlu0 6
        %4452 = vperm.xlu0 %4451, %v245
        %v4453 = vpop.permute.xlu0 %4452
        %4454 = vset.pattern.permute.xlu0 6
        %4455 = vperm.xlu0 %4454, %v246
        %v4456 = vpop.permute.xlu0 %4455
        %4457 = vset.pattern.permute.xlu0 6
        %4458 = vperm.xlu0 %4457, %v247
        %v4459 = vpop.permute.xlu0 %4458
        %4460 = vset.pattern.permute.xlu0 6
        %4461 = vperm.xlu0 %4460, %v248
        %v4462 = vpop.permute.xlu0 %4461
        %4463 = vset.pattern.permute.xlu0 6
        %4464 = vperm.xlu0 %4463, %v249
        %v4465 = vpop.permute.xlu0 %4464
        %4466 = vset.pattern.permute.xlu0 6
        %4467 = vperm.xlu0 %4466, %v250
        %v4468 = vpop.permute.xlu0 %4467
        %4469 = vset.pattern.permute.xlu0 6
        %4470 = vperm.xlu0 %4469, %v251
        %v4471 = vpop.permute.xlu0 %4470
        %v4472 = vsel %vm4408, %v4426, 4294967295
        %v4473 = vsel %vm4409, %v4429, 4294967295
        %v4474 = vsel %vm4410, %v4432, 4294967295
        %v4475 = vsel %vm4411, %v4435, 4294967295
        %v4476 = vsel %vm4412, %v4438, 4294967295
        %v4477 = vsel %vm4413, %v4441, 4294967295
        %v4478 = vsel %vm4414, %v4444, 4294967295
        %v4479 = vsel %vm4415, %v4447, 4294967295
        %v4480 = vsel %vm4416, %v4450, 4294967295
        %v4481 = vsel %vm4417, %v4453, 4294967295
        %v4482 = vsel %vm4418, %v4456, 4294967295
        %v4483 = vsel %vm4419, %v4459, 4294967295
        %v4484 = vsel %vm4420, %v4462, 4294967295
        %v4485 = vsel %vm4421, %v4465, 4294967295
        %v4486 = vsel %vm4422, %v4468, 4294967295
        %v4487 = vsel %vm4423, %v4471, 4294967295
        %vm4488 = vcmp.gt.s32.totalorder %v4472, %v4476
        %v4489 = vsel %vm4488, %v4472, %v4476
        %vm4490 = vcmp.gt.s32.totalorder %v4473, %v4477
        %v4491 = vsel %vm4490, %v4473, %v4477
        %vm4492 = vcmp.gt.s32.totalorder %v4474, %v4478
        %v4493 = vsel %vm4492, %v4474, %v4478
        %vm4494 = vcmp.gt.s32.totalorder %v4475, %v4479
        %v4495 = vsel %vm4494, %v4475, %v4479
        %vm4496 = vcmp.gt.s32.totalorder %v4489, %v4480
        %v4497 = vsel %vm4496, %v4489, %v4480
        %vm4498 = vcmp.gt.s32.totalorder %v4491, %v4481
        %v4499 = vsel %vm4498, %v4491, %v4481
        %vm4500 = vcmp.gt.s32.totalorder %v4493, %v4482
        %v4501 = vsel %vm4500, %v4493, %v4482
        %vm4502 = vcmp.gt.s32.totalorder %v4495, %v4483
        %v4503 = vsel %vm4502, %v4495, %v4483
        %vm4504 = vcmp.gt.s32.totalorder %v4497, %v4484
        %v4505 = vsel %vm4504, %v4497, %v4484
        %vm4506 = vcmp.gt.s32.totalorder %v4499, %v4485
        %v4507 = vsel %vm4506, %v4499, %v4485
        %vm4508 = vcmp.gt.s32.totalorder %v4501, %v4486
        %v4509 = vsel %vm4508, %v4501, %v4486
        %vm4510 = vcmp.gt.s32.totalorder %v4503, %v4487
        %v4511 = vsel %vm4510, %v4503, %v4487
        %vm4512 = vcmp.gt.s32.totalorder %v4505, %v4507
        %v4513 = vsel %vm4512, %v4505, %v4507
        %vm4514 = vcmp.gt.s32.totalorder %v4509, %v4511
        %v4515 = vsel %vm4514, %v4509, %v4511
        %vm4516 = vcmp.gt.s32.totalorder %v4513, %v4515
        %v4517 = vsel %vm4516, %v4513, %v4515
        %v4518 = vrot.slane %v4517, 4
        %vm4519 = vcmp.gt.s32.totalorder %v4517, %v4518
        %v4520 = vsel %vm4519, %v4517, %v4518
        %v4521 = vrot.slane %v4520, 2
        %vm4522 = vcmp.gt.s32.totalorder %v4520, %v4521
        %v4523 = vsel %vm4522, %v4520, %v4521
        %v4524 = vrot.slane %v4523, 1
        %vm4525 = vcmp.gt.s32.totalorder %v4523, %v4524
        %v4526 = vsel %vm4525, %v4523, %v4524
        %vm4527 = vcmp.gt.s32.totalorder %v3848, %v4526
        %v4528 = vsel %vm4527, %v3848, %v4526
        %vm4529 = vcmp.eq.s32.totalorder %v4362, %v442
        %vm4530 = vcmp.eq.s32.totalorder %v4365, %v442
        %vm4531 = vcmp.eq.s32.totalorder %v4368, %v442
        %vm4532 = vcmp.eq.s32.totalorder %v4371, %v442
        %vm4533 = vcmp.eq.s32.totalorder %v4374, %v442
        %vm4534 = vcmp.eq.s32.totalorder %v4377, %v442
        %vm4535 = vcmp.eq.s32.totalorder %v4380, %v442
        %vm4536 = vcmp.eq.s32.totalorder %v4383, %v442
        %vm4537 = vcmp.eq.s32.totalorder %v4386, %v442
        %vm4538 = vcmp.eq.s32.totalorder %v4389, %v442
        %vm4539 = vcmp.eq.s32.totalorder %v4392, %v442
        %vm4540 = vcmp.eq.s32.totalorder %v4395, %v442
        %vm4541 = vcmp.eq.s32.totalorder %v4398, %v442
        %vm4542 = vcmp.eq.s32.totalorder %v4401, %v442
        %vm4543 = vcmp.eq.s32.totalorder %v4404, %v442
        %vm4544 = vcmp.eq.s32.totalorder %v4407, %v442
        %v4545 = vsel %vm4529, %v4426, 4294967295
        %v4546 = vsel %vm4530, %v4429, 4294967295
        %v4547 = vsel %vm4531, %v4432, 4294967295
        %v4548 = vsel %vm4532, %v4435, 4294967295
        %v4549 = vsel %vm4533, %v4438, 4294967295
        %v4550 = vsel %vm4534, %v4441, 4294967295
        %v4551 = vsel %vm4535, %v4444, 4294967295
        %v4552 = vsel %vm4536, %v4447, 4294967295
        %v4553 = vsel %vm4537, %v4450, 4294967295
        %v4554 = vsel %vm4538, %v4453, 4294967295
        %v4555 = vsel %vm4539, %v4456, 4294967295
        %v4556 = vsel %vm4540, %v4459, 4294967295
        %v4557 = vsel %vm4541, %v4462, 4294967295
        %v4558 = vsel %vm4542, %v4465, 4294967295
        %v4559 = vsel %vm4543, %v4468, 4294967295
        %v4560 = vsel %vm4544, %v4471, 4294967295
        %vm4561 = vcmp.gt.s32.totalorder %v4545, %v4549
        %v4562 = vsel %vm4561, %v4545, %v4549
        %vm4563 = vcmp.gt.s32.totalorder %v4546, %v4550
        %v4564 = vsel %vm4563, %v4546, %v4550
        %vm4565 = vcmp.gt.s32.totalorder %v4547, %v4551
        %v4566 = vsel %vm4565, %v4547, %v4551
        %vm4567 = vcmp.gt.s32.totalorder %v4548, %v4552
        %v4568 = vsel %vm4567, %v4548, %v4552
        %vm4569 = vcmp.gt.s32.totalorder %v4562, %v4553
        %v4570 = vsel %vm4569, %v4562, %v4553
        %vm4571 = vcmp.gt.s32.totalorder %v4564, %v4554
        %v4572 = vsel %vm4571, %v4564, %v4554
        %vm4573 = vcmp.gt.s32.totalorder %v4566, %v4555
        %v4574 = vsel %vm4573, %v4566, %v4555
        %vm4575 = vcmp.gt.s32.totalorder %v4568, %v4556
        %v4576 = vsel %vm4575, %v4568, %v4556
        %vm4577 = vcmp.gt.s32.totalorder %v4570, %v4557
        %v4578 = vsel %vm4577, %v4570, %v4557
        %vm4579 = vcmp.gt.s32.totalorder %v4572, %v4558
        %v4580 = vsel %vm4579, %v4572, %v4558
        %vm4581 = vcmp.gt.s32.totalorder %v4574, %v4559
        %v4582 = vsel %vm4581, %v4574, %v4559
        %vm4583 = vcmp.gt.s32.totalorder %v4576, %v4560
        %v4584 = vsel %vm4583, %v4576, %v4560
        %vm4585 = vcmp.gt.s32.totalorder %v4578, %v4580
        %v4586 = vsel %vm4585, %v4578, %v4580
        %vm4587 = vcmp.gt.s32.totalorder %v4582, %v4584
        %v4588 = vsel %vm4587, %v4582, %v4584
        %vm4589 = vcmp.gt.s32.totalorder %v4586, %v4588
        %v4590 = vsel %vm4589, %v4586, %v4588
        %v4591 = vrot.slane %v4590, 4
        %vm4592 = vcmp.gt.s32.totalorder %v4590, %v4591
        %v4593 = vsel %vm4592, %v4590, %v4591
        %v4594 = vrot.slane %v4593, 2
        %vm4595 = vcmp.gt.s32.totalorder %v4593, %v4594
        %v4596 = vsel %vm4595, %v4593, %v4594
        %v4597 = vrot.slane %v4596, 1
        %vm4598 = vcmp.gt.s32.totalorder %v4596, %v4597
        %v4599 = vsel %vm4598, %v4596, %v4597
        %vm4600 = vcmp.gt.s32.totalorder %v3921, %v4599
        %v4601 = vsel %vm4600, %v3921, %v4599
        %vm4602 = vcmp.eq.s32.totalorder %v4362, %v516
        %vm4603 = vcmp.eq.s32.totalorder %v4365, %v516
        %vm4604 = vcmp.eq.s32.totalorder %v4368, %v516
        %vm4605 = vcmp.eq.s32.totalorder %v4371, %v516
        %vm4606 = vcmp.eq.s32.totalorder %v4374, %v516
        %vm4607 = vcmp.eq.s32.totalorder %v4377, %v516
        %vm4608 = vcmp.eq.s32.totalorder %v4380, %v516
        %vm4609 = vcmp.eq.s32.totalorder %v4383, %v516
        %vm4610 = vcmp.eq.s32.totalorder %v4386, %v516
        %vm4611 = vcmp.eq.s32.totalorder %v4389, %v516
        %vm4612 = vcmp.eq.s32.totalorder %v4392, %v516
        %vm4613 = vcmp.eq.s32.totalorder %v4395, %v516
        %vm4614 = vcmp.eq.s32.totalorder %v4398, %v516
        %vm4615 = vcmp.eq.s32.totalorder %v4401, %v516
        %vm4616 = vcmp.eq.s32.totalorder %v4404, %v516
        %vm4617 = vcmp.eq.s32.totalorder %v4407, %v516
        %v4618 = vsel %vm4602, %v4426, 4294967295
        %v4619 = vsel %vm4603, %v4429, 4294967295
        %v4620 = vsel %vm4604, %v4432, 4294967295
        %v4621 = vsel %vm4605, %v4435, 4294967295
        %v4622 = vsel %vm4606, %v4438, 4294967295
        %v4623 = vsel %vm4607, %v4441, 4294967295
        %v4624 = vsel %vm4608, %v4444, 4294967295
        %v4625 = vsel %vm4609, %v4447, 4294967295
        %v4626 = vsel %vm4610, %v4450, 4294967295
        %v4627 = vsel %vm4611, %v4453, 4294967295
        %v4628 = vsel %vm4612, %v4456, 4294967295
        %v4629 = vsel %vm4613, %v4459, 4294967295
        %v4630 = vsel %vm4614, %v4462, 4294967295
        %v4631 = vsel %vm4615, %v4465, 4294967295
        %v4632 = vsel %vm4616, %v4468, 4294967295
        %v4633 = vsel %vm4617, %v4471, 4294967295
        %vm4634 = vcmp.gt.s32.totalorder %v4618, %v4622
        %v4635 = vsel %vm4634, %v4618, %v4622
        %vm4636 = vcmp.gt.s32.totalorder %v4619, %v4623
        %v4637 = vsel %vm4636, %v4619, %v4623
        %vm4638 = vcmp.gt.s32.totalorder %v4620, %v4624
        %v4639 = vsel %vm4638, %v4620, %v4624
        %vm4640 = vcmp.gt.s32.totalorder %v4621, %v4625
        %v4641 = vsel %vm4640, %v4621, %v4625
        %vm4642 = vcmp.gt.s32.totalorder %v4635, %v4626
        %v4643 = vsel %vm4642, %v4635, %v4626
        %vm4644 = vcmp.gt.s32.totalorder %v4637, %v4627
        %v4645 = vsel %vm4644, %v4637, %v4627
        %vm4646 = vcmp.gt.s32.totalorder %v4639, %v4628
        %v4647 = vsel %vm4646, %v4639, %v4628
        %vm4648 = vcmp.gt.s32.totalorder %v4641, %v4629
        %v4649 = vsel %vm4648, %v4641, %v4629
        %vm4650 = vcmp.gt.s32.totalorder %v4643, %v4630
        %v4651 = vsel %vm4650, %v4643, %v4630
        %vm4652 = vcmp.gt.s32.totalorder %v4645, %v4631
        %v4653 = vsel %vm4652, %v4645, %v4631
        %vm4654 = vcmp.gt.s32.totalorder %v4647, %v4632
        %v4655 = vsel %vm4654, %v4647, %v4632
        %vm4656 = vcmp.gt.s32.totalorder %v4649, %v4633
        %v4657 = vsel %vm4656, %v4649, %v4633
        %vm4658 = vcmp.gt.s32.totalorder %v4651, %v4653
        %v4659 = vsel %vm4658, %v4651, %v4653
        %vm4660 = vcmp.gt.s32.totalorder %v4655, %v4657
        %v4661 = vsel %vm4660, %v4655, %v4657
        %vm4662 = vcmp.gt.s32.totalorder %v4659, %v4661
        %v4663 = vsel %vm4662, %v4659, %v4661
        %v4664 = vrot.slane %v4663, 4
        %vm4665 = vcmp.gt.s32.totalorder %v4663, %v4664
        %v4666 = vsel %vm4665, %v4663, %v4664
        %v4667 = vrot.slane %v4666, 2
        %vm4668 = vcmp.gt.s32.totalorder %v4666, %v4667
        %v4669 = vsel %vm4668, %v4666, %v4667
        %v4670 = vrot.slane %v4669, 1
        %vm4671 = vcmp.gt.s32.totalorder %v4669, %v4670
        %v4672 = vsel %vm4671, %v4669, %v4670
        %vm4673 = vcmp.gt.s32.totalorder %v3994, %v4672
        %v4674 = vsel %vm4673, %v3994, %v4672
        %vm4675 = vcmp.eq.s32.totalorder %v4362, %v590
        %vm4676 = vcmp.eq.s32.totalorder %v4365, %v590
        %vm4677 = vcmp.eq.s32.totalorder %v4368, %v590
        %vm4678 = vcmp.eq.s32.totalorder %v4371, %v590
        %vm4679 = vcmp.eq.s32.totalorder %v4374, %v590
        %vm4680 = vcmp.eq.s32.totalorder %v4377, %v590
        %vm4681 = vcmp.eq.s32.totalorder %v4380, %v590
        %vm4682 = vcmp.eq.s32.totalorder %v4383, %v590
        %vm4683 = vcmp.eq.s32.totalorder %v4386, %v590
        %vm4684 = vcmp.eq.s32.totalorder %v4389, %v590
        %vm4685 = vcmp.eq.s32.totalorder %v4392, %v590
        %vm4686 = vcmp.eq.s32.totalorder %v4395, %v590
        %vm4687 = vcmp.eq.s32.totalorder %v4398, %v590
        %vm4688 = vcmp.eq.s32.totalorder %v4401, %v590
        %vm4689 = vcmp.eq.s32.totalorder %v4404, %v590
        %vm4690 = vcmp.eq.s32.totalorder %v4407, %v590
        %v4691 = vsel %vm4675, %v4426, 4294967295
        %v4692 = vsel %vm4676, %v4429, 4294967295
        %v4693 = vsel %vm4677, %v4432, 4294967295
        %v4694 = vsel %vm4678, %v4435, 4294967295
        %v4695 = vsel %vm4679, %v4438, 4294967295
        %v4696 = vsel %vm4680, %v4441, 4294967295
        %v4697 = vsel %vm4681, %v4444, 4294967295
        %v4698 = vsel %vm4682, %v4447, 4294967295
        %v4699 = vsel %vm4683, %v4450, 4294967295
        %v4700 = vsel %vm4684, %v4453, 4294967295
        %v4701 = vsel %vm4685, %v4456, 4294967295
        %v4702 = vsel %vm4686, %v4459, 4294967295
        %v4703 = vsel %vm4687, %v4462, 4294967295
        %v4704 = vsel %vm4688, %v4465, 4294967295
        %v4705 = vsel %vm4689, %v4468, 4294967295
        %v4706 = vsel %vm4690, %v4471, 4294967295
        %vm4707 = vcmp.gt.s32.totalorder %v4691, %v4695
        %v4708 = vsel %vm4707, %v4691, %v4695
        %vm4709 = vcmp.gt.s32.totalorder %v4692, %v4696
        %v4710 = vsel %vm4709, %v4692, %v4696
        %vm4711 = vcmp.gt.s32.totalorder %v4693, %v4697
        %v4712 = vsel %vm4711, %v4693, %v4697
        %vm4713 = vcmp.gt.s32.totalorder %v4694, %v4698
        %v4714 = vsel %vm4713, %v4694, %v4698
        %vm4715 = vcmp.gt.s32.totalorder %v4708, %v4699
        %v4716 = vsel %vm4715, %v4708, %v4699
        %vm4717 = vcmp.gt.s32.totalorder %v4710, %v4700
        %v4718 = vsel %vm4717, %v4710, %v4700
        %vm4719 = vcmp.gt.s32.totalorder %v4712, %v4701
        %v4720 = vsel %vm4719, %v4712, %v4701
        %vm4721 = vcmp.gt.s32.totalorder %v4714, %v4702
        %v4722 = vsel %vm4721, %v4714, %v4702
        %vm4723 = vcmp.gt.s32.totalorder %v4716, %v4703
        %v4724 = vsel %vm4723, %v4716, %v4703
        %vm4725 = vcmp.gt.s32.totalorder %v4718, %v4704
        %v4726 = vsel %vm4725, %v4718, %v4704
        %vm4727 = vcmp.gt.s32.totalorder %v4720, %v4705
        %v4728 = vsel %vm4727, %v4720, %v4705
        %vm4729 = vcmp.gt.s32.totalorder %v4722, %v4706
        %v4730 = vsel %vm4729, %v4722, %v4706
        %vm4731 = vcmp.gt.s32.totalorder %v4724, %v4726
        %v4732 = vsel %vm4731, %v4724, %v4726
        %vm4733 = vcmp.gt.s32.totalorder %v4728, %v4730
        %v4734 = vsel %vm4733, %v4728, %v4730
        %vm4735 = vcmp.gt.s32.totalorder %v4732, %v4734
        %v4736 = vsel %vm4735, %v4732, %v4734
        %v4737 = vrot.slane %v4736, 4
        %vm4738 = vcmp.gt.s32.totalorder %v4736, %v4737
        %v4739 = vsel %vm4738, %v4736, %v4737
        %v4740 = vrot.slane %v4739, 2
        %vm4741 = vcmp.gt.s32.totalorder %v4739, %v4740
        %v4742 = vsel %vm4741, %v4739, %v4740
        %v4743 = vrot.slane %v4742, 1
        %vm4744 = vcmp.gt.s32.totalorder %v4742, %v4743
        %v4745 = vsel %vm4744, %v4742, %v4743
        %vm4746 = vcmp.gt.s32.totalorder %v4067, %v4745
        %v4747 = vsel %vm4746, %v4067, %v4745
        %vm4748 = vcmp.eq.s32.totalorder %v4362, %v664
        %vm4749 = vcmp.eq.s32.totalorder %v4365, %v664
        %vm4750 = vcmp.eq.s32.totalorder %v4368, %v664
        %vm4751 = vcmp.eq.s32.totalorder %v4371, %v664
        %vm4752 = vcmp.eq.s32.totalorder %v4374, %v664
        %vm4753 = vcmp.eq.s32.totalorder %v4377, %v664
        %vm4754 = vcmp.eq.s32.totalorder %v4380, %v664
        %vm4755 = vcmp.eq.s32.totalorder %v4383, %v664
        %vm4756 = vcmp.eq.s32.totalorder %v4386, %v664
        %vm4757 = vcmp.eq.s32.totalorder %v4389, %v664
        %vm4758 = vcmp.eq.s32.totalorder %v4392, %v664
        %vm4759 = vcmp.eq.s32.totalorder %v4395, %v664
        %vm4760 = vcmp.eq.s32.totalorder %v4398, %v664
        %vm4761 = vcmp.eq.s32.totalorder %v4401, %v664
        %vm4762 = vcmp.eq.s32.totalorder %v4404, %v664
        %vm4763 = vcmp.eq.s32.totalorder %v4407, %v664
        %v4764 = vsel %vm4748, %v4426, 4294967295
        %v4765 = vsel %vm4749, %v4429, 4294967295
        %v4766 = vsel %vm4750, %v4432, 4294967295
        %v4767 = vsel %vm4751, %v4435, 4294967295
        %v4768 = vsel %vm4752, %v4438, 4294967295
        %v4769 = vsel %vm4753, %v4441, 4294967295
        %v4770 = vsel %vm4754, %v4444, 4294967295
        %v4771 = vsel %vm4755, %v4447, 4294967295
        %v4772 = vsel %vm4756, %v4450, 4294967295
        %v4773 = vsel %vm4757, %v4453, 4294967295
        %v4774 = vsel %vm4758, %v4456, 4294967295
        %v4775 = vsel %vm4759, %v4459, 4294967295
        %v4776 = vsel %vm4760, %v4462, 4294967295
        %v4777 = vsel %vm4761, %v4465, 4294967295
        %v4778 = vsel %vm4762, %v4468, 4294967295
        %v4779 = vsel %vm4763, %v4471, 4294967295
        %vm4780 = vcmp.gt.s32.totalorder %v4764, %v4768
        %v4781 = vsel %vm4780, %v4764, %v4768
        %vm4782 = vcmp.gt.s32.totalorder %v4765, %v4769
        %v4783 = vsel %vm4782, %v4765, %v4769
        %vm4784 = vcmp.gt.s32.totalorder %v4766, %v4770
        %v4785 = vsel %vm4784, %v4766, %v4770
        %vm4786 = vcmp.gt.s32.totalorder %v4767, %v4771
        %v4787 = vsel %vm4786, %v4767, %v4771
        %vm4788 = vcmp.gt.s32.totalorder %v4781, %v4772
        %v4789 = vsel %vm4788, %v4781, %v4772
        %vm4790 = vcmp.gt.s32.totalorder %v4783, %v4773
        %v4791 = vsel %vm4790, %v4783, %v4773
        %vm4792 = vcmp.gt.s32.totalorder %v4785, %v4774
        %v4793 = vsel %vm4792, %v4785, %v4774
        %vm4794 = vcmp.gt.s32.totalorder %v4787, %v4775
        %v4795 = vsel %vm4794, %v4787, %v4775
        %vm4796 = vcmp.gt.s32.totalorder %v4789, %v4776
        %v4797 = vsel %vm4796, %v4789, %v4776
        %vm4798 = vcmp.gt.s32.totalorder %v4791, %v4777
        %v4799 = vsel %vm4798, %v4791, %v4777
        %vm4800 = vcmp.gt.s32.totalorder %v4793, %v4778
        %v4801 = vsel %vm4800, %v4793, %v4778
        %vm4802 = vcmp.gt.s32.totalorder %v4795, %v4779
        %v4803 = vsel %vm4802, %v4795, %v4779
        %vm4804 = vcmp.gt.s32.totalorder %v4797, %v4799
        %v4805 = vsel %vm4804, %v4797, %v4799
        %vm4806 = vcmp.gt.s32.totalorder %v4801, %v4803
        %v4807 = vsel %vm4806, %v4801, %v4803
        %vm4808 = vcmp.gt.s32.totalorder %v4805, %v4807
        %v4809 = vsel %vm4808, %v4805, %v4807
        %v4810 = vrot.slane %v4809, 4
        %vm4811 = vcmp.gt.s32.totalorder %v4809, %v4810
        %v4812 = vsel %vm4811, %v4809, %v4810
        %v4813 = vrot.slane %v4812, 2
        %vm4814 = vcmp.gt.s32.totalorder %v4812, %v4813
        %v4815 = vsel %vm4814, %v4812, %v4813
        %v4816 = vrot.slane %v4815, 1
        %vm4817 = vcmp.gt.s32.totalorder %v4815, %v4816
        %v4818 = vsel %vm4817, %v4815, %v4816
        %vm4819 = vcmp.gt.s32.totalorder %v4140, %v4818
        %v4820 = vsel %vm4819, %v4140, %v4818
        %vm4821 = vcmp.eq.s32.totalorder %v4362, %v738
        %vm4822 = vcmp.eq.s32.totalorder %v4365, %v738
        %vm4823 = vcmp.eq.s32.totalorder %v4368, %v738
        %vm4824 = vcmp.eq.s32.totalorder %v4371, %v738
        %vm4825 = vcmp.eq.s32.totalorder %v4374, %v738
        %vm4826 = vcmp.eq.s32.totalorder %v4377, %v738
        %vm4827 = vcmp.eq.s32.totalorder %v4380, %v738
        %vm4828 = vcmp.eq.s32.totalorder %v4383, %v738
        %vm4829 = vcmp.eq.s32.totalorder %v4386, %v738
        %vm4830 = vcmp.eq.s32.totalorder %v4389, %v738
        %vm4831 = vcmp.eq.s32.totalorder %v4392, %v738
        %vm4832 = vcmp.eq.s32.totalorder %v4395, %v738
        %vm4833 = vcmp.eq.s32.totalorder %v4398, %v738
        %vm4834 = vcmp.eq.s32.totalorder %v4401, %v738
        %vm4835 = vcmp.eq.s32.totalorder %v4404, %v738
        %vm4836 = vcmp.eq.s32.totalorder %v4407, %v738
        %v4837 = vsel %vm4821, %v4426, 4294967295
        %v4838 = vsel %vm4822, %v4429, 4294967295
        %v4839 = vsel %vm4823, %v4432, 4294967295
        %v4840 = vsel %vm4824, %v4435, 4294967295
        %v4841 = vsel %vm4825, %v4438, 4294967295
        %v4842 = vsel %vm4826, %v4441, 4294967295
        %v4843 = vsel %vm4827, %v4444, 4294967295
        %v4844 = vsel %vm4828, %v4447, 4294967295
        %v4845 = vsel %vm4829, %v4450, 4294967295
        %v4846 = vsel %vm4830, %v4453, 4294967295
        %v4847 = vsel %vm4831, %v4456, 4294967295
        %v4848 = vsel %vm4832, %v4459, 4294967295
        %v4849 = vsel %vm4833, %v4462, 4294967295
        %v4850 = vsel %vm4834, %v4465, 4294967295
        %v4851 = vsel %vm4835, %v4468, 4294967295
        %v4852 = vsel %vm4836, %v4471, 4294967295
        %vm4853 = vcmp.gt.s32.totalorder %v4837, %v4841
        %v4854 = vsel %vm4853, %v4837, %v4841
        %vm4855 = vcmp.gt.s32.totalorder %v4838, %v4842
        %v4856 = vsel %vm4855, %v4838, %v4842
        %vm4857 = vcmp.gt.s32.totalorder %v4839, %v4843
        %v4858 = vsel %vm4857, %v4839, %v4843
        %vm4859 = vcmp.gt.s32.totalorder %v4840, %v4844
        %v4860 = vsel %vm4859, %v4840, %v4844
        %vm4861 = vcmp.gt.s32.totalorder %v4854, %v4845
        %v4862 = vsel %vm4861, %v4854, %v4845
        %vm4863 = vcmp.gt.s32.totalorder %v4856, %v4846
        %v4864 = vsel %vm4863, %v4856, %v4846
        %vm4865 = vcmp.gt.s32.totalorder %v4858, %v4847
        %v4866 = vsel %vm4865, %v4858, %v4847
        %vm4867 = vcmp.gt.s32.totalorder %v4860, %v4848
        %v4868 = vsel %vm4867, %v4860, %v4848
        %vm4869 = vcmp.gt.s32.totalorder %v4862, %v4849
        %v4870 = vsel %vm4869, %v4862, %v4849
        %vm4871 = vcmp.gt.s32.totalorder %v4864, %v4850
        %v4872 = vsel %vm4871, %v4864, %v4850
        %vm4873 = vcmp.gt.s32.totalorder %v4866, %v4851
        %v4874 = vsel %vm4873, %v4866, %v4851
        %vm4875 = vcmp.gt.s32.totalorder %v4868, %v4852
        %v4876 = vsel %vm4875, %v4868, %v4852
        %vm4877 = vcmp.gt.s32.totalorder %v4870, %v4872
        %v4878 = vsel %vm4877, %v4870, %v4872
        %vm4879 = vcmp.gt.s32.totalorder %v4874, %v4876
        %v4880 = vsel %vm4879, %v4874, %v4876
        %vm4881 = vcmp.gt.s32.totalorder %v4878, %v4880
        %v4882 = vsel %vm4881, %v4878, %v4880
        %v4883 = vrot.slane %v4882, 4
        %vm4884 = vcmp.gt.s32.totalorder %v4882, %v4883
        %v4885 = vsel %vm4884, %v4882, %v4883
        %v4886 = vrot.slane %v4885, 2
        %vm4887 = vcmp.gt.s32.totalorder %v4885, %v4886
        %v4888 = vsel %vm4887, %v4885, %v4886
        %v4889 = vrot.slane %v4888, 1
        %vm4890 = vcmp.gt.s32.totalorder %v4888, %v4889
        %v4891 = vsel %vm4890, %v4888, %v4889
        %vm4892 = vcmp.gt.s32.totalorder %v4213, %v4891
        %v4893 = vsel %vm4892, %v4213, %v4891
        %vm4894 = vcmp.eq.s32.totalorder %v4362, %v812
        %vm4895 = vcmp.eq.s32.totalorder %v4365, %v812
        %vm4896 = vcmp.eq.s32.totalorder %v4368, %v812
        %vm4897 = vcmp.eq.s32.totalorder %v4371, %v812
        %vm4898 = vcmp.eq.s32.totalorder %v4374, %v812
        %vm4899 = vcmp.eq.s32.totalorder %v4377, %v812
        %vm4900 = vcmp.eq.s32.totalorder %v4380, %v812
        %vm4901 = vcmp.eq.s32.totalorder %v4383, %v812
        %vm4902 = vcmp.eq.s32.totalorder %v4386, %v812
        %vm4903 = vcmp.eq.s32.totalorder %v4389, %v812
        %vm4904 = vcmp.eq.s32.totalorder %v4392, %v812
        %vm4905 = vcmp.eq.s32.totalorder %v4395, %v812
        %vm4906 = vcmp.eq.s32.totalorder %v4398, %v812
        %vm4907 = vcmp.eq.s32.totalorder %v4401, %v812
        %vm4908 = vcmp.eq.s32.totalorder %v4404, %v812
        %vm4909 = vcmp.eq.s32.totalorder %v4407, %v812
        %v4910 = vsel %vm4894, %v4426, 4294967295
        %v4911 = vsel %vm4895, %v4429, 4294967295
        %v4912 = vsel %vm4896, %v4432, 4294967295
        %v4913 = vsel %vm4897, %v4435, 4294967295
        %v4914 = vsel %vm4898, %v4438, 4294967295
        %v4915 = vsel %vm4899, %v4441, 4294967295
        %v4916 = vsel %vm4900, %v4444, 4294967295
        %v4917 = vsel %vm4901, %v4447, 4294967295
        %v4918 = vsel %vm4902, %v4450, 4294967295
        %v4919 = vsel %vm4903, %v4453, 4294967295
        %v4920 = vsel %vm4904, %v4456, 4294967295
        %v4921 = vsel %vm4905, %v4459, 4294967295
        %v4922 = vsel %vm4906, %v4462, 4294967295
        %v4923 = vsel %vm4907, %v4465, 4294967295
        %v4924 = vsel %vm4908, %v4468, 4294967295
        %v4925 = vsel %vm4909, %v4471, 4294967295
        %vm4926 = vcmp.gt.s32.totalorder %v4910, %v4914
        %v4927 = vsel %vm4926, %v4910, %v4914
        %vm4928 = vcmp.gt.s32.totalorder %v4911, %v4915
        %v4929 = vsel %vm4928, %v4911, %v4915
        %vm4930 = vcmp.gt.s32.totalorder %v4912, %v4916
        %v4931 = vsel %vm4930, %v4912, %v4916
        %vm4932 = vcmp.gt.s32.totalorder %v4913, %v4917
        %v4933 = vsel %vm4932, %v4913, %v4917
        %vm4934 = vcmp.gt.s32.totalorder %v4927, %v4918
        %v4935 = vsel %vm4934, %v4927, %v4918
        %vm4936 = vcmp.gt.s32.totalorder %v4929, %v4919
        %v4937 = vsel %vm4936, %v4929, %v4919
        %vm4938 = vcmp.gt.s32.totalorder %v4931, %v4920
        %v4939 = vsel %vm4938, %v4931, %v4920
        %vm4940 = vcmp.gt.s32.totalorder %v4933, %v4921
        %v4941 = vsel %vm4940, %v4933, %v4921
        %vm4942 = vcmp.gt.s32.totalorder %v4935, %v4922
        %v4943 = vsel %vm4942, %v4935, %v4922
        %vm4944 = vcmp.gt.s32.totalorder %v4937, %v4923
        %v4945 = vsel %vm4944, %v4937, %v4923
        %vm4946 = vcmp.gt.s32.totalorder %v4939, %v4924
        %v4947 = vsel %vm4946, %v4939, %v4924
        %vm4948 = vcmp.gt.s32.totalorder %v4941, %v4925
        %v4949 = vsel %vm4948, %v4941, %v4925
        %vm4950 = vcmp.gt.s32.totalorder %v4943, %v4945
        %v4951 = vsel %vm4950, %v4943, %v4945
        %vm4952 = vcmp.gt.s32.totalorder %v4947, %v4949
        %v4953 = vsel %vm4952, %v4947, %v4949
        %vm4954 = vcmp.gt.s32.totalorder %v4951, %v4953
        %v4955 = vsel %vm4954, %v4951, %v4953
        %v4956 = vrot.slane %v4955, 4
        %vm4957 = vcmp.gt.s32.totalorder %v4955, %v4956
        %v4958 = vsel %vm4957, %v4955, %v4956
        %v4959 = vrot.slane %v4958, 2
        %vm4960 = vcmp.gt.s32.totalorder %v4958, %v4959
        %v4961 = vsel %vm4960, %v4958, %v4959
        %v4962 = vrot.slane %v4961, 1
        %vm4963 = vcmp.gt.s32.totalorder %v4961, %v4962
        %v4964 = vsel %vm4963, %v4961, %v4962
        %vm4965 = vcmp.gt.s32.totalorder %v4286, %v4964
        %v4966 = vsel %vm4965, %v4286, %v4964
        %vm4967 = vcmp.eq.s32.totalorder %v4362, %v886
        %vm4968 = vcmp.eq.s32.totalorder %v4365, %v886
        %vm4969 = vcmp.eq.s32.totalorder %v4368, %v886
        %vm4970 = vcmp.eq.s32.totalorder %v4371, %v886
        %vm4971 = vcmp.eq.s32.totalorder %v4374, %v886
        %vm4972 = vcmp.eq.s32.totalorder %v4377, %v886
        %vm4973 = vcmp.eq.s32.totalorder %v4380, %v886
        %vm4974 = vcmp.eq.s32.totalorder %v4383, %v886
        %vm4975 = vcmp.eq.s32.totalorder %v4386, %v886
        %vm4976 = vcmp.eq.s32.totalorder %v4389, %v886
        %vm4977 = vcmp.eq.s32.totalorder %v4392, %v886
        %vm4978 = vcmp.eq.s32.totalorder %v4395, %v886
        %vm4979 = vcmp.eq.s32.totalorder %v4398, %v886
        %vm4980 = vcmp.eq.s32.totalorder %v4401, %v886
        %vm4981 = vcmp.eq.s32.totalorder %v4404, %v886
        %vm4982 = vcmp.eq.s32.totalorder %v4407, %v886
        %v4983 = vsel %vm4967, %v4426, 4294967295
        %v4984 = vsel %vm4968, %v4429, 4294967295
        %v4985 = vsel %vm4969, %v4432, 4294967295
        %v4986 = vsel %vm4970, %v4435, 4294967295
        %v4987 = vsel %vm4971, %v4438, 4294967295
        %v4988 = vsel %vm4972, %v4441, 4294967295
        %v4989 = vsel %vm4973, %v4444, 4294967295
        %v4990 = vsel %vm4974, %v4447, 4294967295
        %v4991 = vsel %vm4975, %v4450, 4294967295
        %v4992 = vsel %vm4976, %v4453, 4294967295
        %v4993 = vsel %vm4977, %v4456, 4294967295
        %v4994 = vsel %vm4978, %v4459, 4294967295
        %v4995 = vsel %vm4979, %v4462, 4294967295
        %v4996 = vsel %vm4980, %v4465, 4294967295
        %v4997 = vsel %vm4981, %v4468, 4294967295
        %v4998 = vsel %vm4982, %v4471, 4294967295
        %vm4999 = vcmp.gt.s32.totalorder %v4983, %v4987
        %v5000 = vsel %vm4999, %v4983, %v4987
        %vm5001 = vcmp.gt.s32.totalorder %v4984, %v4988
        %v5002 = vsel %vm5001, %v4984, %v4988
        %vm5003 = vcmp.gt.s32.totalorder %v4985, %v4989
        %v5004 = vsel %vm5003, %v4985, %v4989
        %vm5005 = vcmp.gt.s32.totalorder %v4986, %v4990
        %v5006 = vsel %vm5005, %v4986, %v4990
        %vm5007 = vcmp.gt.s32.totalorder %v5000, %v4991
        %v5008 = vsel %vm5007, %v5000, %v4991
        %vm5009 = vcmp.gt.s32.totalorder %v5002, %v4992
        %v5010 = vsel %vm5009, %v5002, %v4992
        %vm5011 = vcmp.gt.s32.totalorder %v5004, %v4993
        %v5012 = vsel %vm5011, %v5004, %v4993
        %vm5013 = vcmp.gt.s32.totalorder %v5006, %v4994
        %v5014 = vsel %vm5013, %v5006, %v4994
        %vm5015 = vcmp.gt.s32.totalorder %v5008, %v4995
        %v5016 = vsel %vm5015, %v5008, %v4995
        %vm5017 = vcmp.gt.s32.totalorder %v5010, %v4996
        %v5018 = vsel %vm5017, %v5010, %v4996
        %vm5019 = vcmp.gt.s32.totalorder %v5012, %v4997
        %v5020 = vsel %vm5019, %v5012, %v4997
        %vm5021 = vcmp.gt.s32.totalorder %v5014, %v4998
        %v5022 = vsel %vm5021, %v5014, %v4998
        %vm5023 = vcmp.gt.s32.totalorder %v5016, %v5018
        %v5024 = vsel %vm5023, %v5016, %v5018
        %vm5025 = vcmp.gt.s32.totalorder %v5020, %v5022
        %v5026 = vsel %vm5025, %v5020, %v5022
        %vm5027 = vcmp.gt.s32.totalorder %v5024, %v5026
        %v5028 = vsel %vm5027, %v5024, %v5026
        %v5029 = vrot.slane %v5028, 4
        %vm5030 = vcmp.gt.s32.totalorder %v5028, %v5029
        %v5031 = vsel %vm5030, %v5028, %v5029
        %v5032 = vrot.slane %v5031, 2
        %vm5033 = vcmp.gt.s32.totalorder %v5031, %v5032
        %v5034 = vsel %vm5033, %v5031, %v5032
        %v5035 = vrot.slane %v5034, 1
        %vm5036 = vcmp.gt.s32.totalorder %v5034, %v5035
        %v5037 = vsel %vm5036, %v5034, %v5035
        %vm5038 = vcmp.gt.s32.totalorder %v4359, %v5037
        %v5039 = vsel %vm5038, %v4359, %v5037
        %5040 = vset.pattern.permute.xlu0 7
        %5041 = vperm.xlu0 %5040, %v257
        %v5042 = vpop.permute.xlu0 %5041
        %5043 = vset.pattern.permute.xlu0 7
        %5044 = vperm.xlu0 %5043, %v258
        %v5045 = vpop.permute.xlu0 %5044
        %5046 = vset.pattern.permute.xlu0 7
        %5047 = vperm.xlu0 %5046, %v259
        %v5048 = vpop.permute.xlu0 %5047
        %5049 = vset.pattern.permute.xlu0 7
        %5050 = vperm.xlu0 %5049, %v260
        %v5051 = vpop.permute.xlu0 %5050
        %5052 = vset.pattern.permute.xlu0 7
        %5053 = vperm.xlu0 %5052, %v261
        %v5054 = vpop.permute.xlu0 %5053
        %5055 = vset.pattern.permute.xlu0 7
        %5056 = vperm.xlu0 %5055, %v262
        %v5057 = vpop.permute.xlu0 %5056
        %5058 = vset.pattern.permute.xlu0 7
        %5059 = vperm.xlu0 %5058, %v263
        %v5060 = vpop.permute.xlu0 %5059
        %5061 = vset.pattern.permute.xlu0 7
        %5062 = vperm.xlu0 %5061, %v264
        %v5063 = vpop.permute.xlu0 %5062
        %5064 = vset.pattern.permute.xlu0 7
        %5065 = vperm.xlu0 %5064, %v265
        %v5066 = vpop.permute.xlu0 %5065
        %5067 = vset.pattern.permute.xlu0 7
        %5068 = vperm.xlu0 %5067, %v266
        %v5069 = vpop.permute.xlu0 %5068
        %5070 = vset.pattern.permute.xlu0 7
        %5071 = vperm.xlu0 %5070, %v267
        %v5072 = vpop.permute.xlu0 %5071
        %5073 = vset.pattern.permute.xlu0 7
        %5074 = vperm.xlu0 %5073, %v268
        %v5075 = vpop.permute.xlu0 %5074
        %5076 = vset.pattern.permute.xlu0 7
        %5077 = vperm.xlu0 %5076, %v269
        %v5078 = vpop.permute.xlu0 %5077
        %5079 = vset.pattern.permute.xlu0 7
        %5080 = vperm.xlu0 %5079, %v270
        %v5081 = vpop.permute.xlu0 %5080
        %5082 = vset.pattern.permute.xlu0 7
        %5083 = vperm.xlu0 %5082, %v271
        %v5084 = vpop.permute.xlu0 %5083
        %5085 = vset.pattern.permute.xlu0 7
        %5086 = vperm.xlu0 %5085, %v272
        %v5087 = vpop.permute.xlu0 %5086
        %vm5088 = vcmp.eq.s32.totalorder %v5042, %v254
        %vm5089 = vcmp.eq.s32.totalorder %v5045, %v254
        %vm5090 = vcmp.eq.s32.totalorder %v5048, %v254
        %vm5091 = vcmp.eq.s32.totalorder %v5051, %v254
        %vm5092 = vcmp.eq.s32.totalorder %v5054, %v254
        %vm5093 = vcmp.eq.s32.totalorder %v5057, %v254
        %vm5094 = vcmp.eq.s32.totalorder %v5060, %v254
        %vm5095 = vcmp.eq.s32.totalorder %v5063, %v254
        %vm5096 = vcmp.eq.s32.totalorder %v5066, %v254
        %vm5097 = vcmp.eq.s32.totalorder %v5069, %v254
        %vm5098 = vcmp.eq.s32.totalorder %v5072, %v254
        %vm5099 = vcmp.eq.s32.totalorder %v5075, %v254
        %vm5100 = vcmp.eq.s32.totalorder %v5078, %v254
        %vm5101 = vcmp.eq.s32.totalorder %v5081, %v254
        %vm5102 = vcmp.eq.s32.totalorder %v5084, %v254
        %vm5103 = vcmp.eq.s32.totalorder %v5087, %v254
        %5104 = vset.pattern.permute.xlu0 7
        %5105 = vperm.xlu0 %5104, %v236
        %v5106 = vpop.permute.xlu0 %5105
        %5107 = vset.pattern.permute.xlu0 7
        %5108 = vperm.xlu0 %5107, %v237
        %v5109 = vpop.permute.xlu0 %5108
        %5110 = vset.pattern.permute.xlu0 7
        %5111 = vperm.xlu0 %5110, %v238
        %v5112 = vpop.permute.xlu0 %5111
        %5113 = vset.pattern.permute.xlu0 7
        %5114 = vperm.xlu0 %5113, %v239
        %v5115 = vpop.permute.xlu0 %5114
        %5116 = vset.pattern.permute.xlu0 7
        %5117 = vperm.xlu0 %5116, %v240
        %v5118 = vpop.permute.xlu0 %5117
        %5119 = vset.pattern.permute.xlu0 7
        %5120 = vperm.xlu0 %5119, %v241
        %v5121 = vpop.permute.xlu0 %5120
        %5122 = vset.pattern.permute.xlu0 7
        %5123 = vperm.xlu0 %5122, %v242
        %v5124 = vpop.permute.xlu0 %5123
        %5125 = vset.pattern.permute.xlu0 7
        %5126 = vperm.xlu0 %5125, %v243
        %v5127 = vpop.permute.xlu0 %5126
        %5128 = vset.pattern.permute.xlu0 7
        %5129 = vperm.xlu0 %5128, %v244
        %v5130 = vpop.permute.xlu0 %5129
        %5131 = vset.pattern.permute.xlu0 7
        %5132 = vperm.xlu0 %5131, %v245
        %v5133 = vpop.permute.xlu0 %5132
        %5134 = vset.pattern.permute.xlu0 7
        %5135 = vperm.xlu0 %5134, %v246
        %v5136 = vpop.permute.xlu0 %5135
        %5137 = vset.pattern.permute.xlu0 7
        %5138 = vperm.xlu0 %5137, %v247
        %v5139 = vpop.permute.xlu0 %5138
        %5140 = vset.pattern.permute.xlu0 7
        %5141 = vperm.xlu0 %5140, %v248
        %v5142 = vpop.permute.xlu0 %5141
        %5143 = vset.pattern.permute.xlu0 7
        %5144 = vperm.xlu0 %5143, %v249
        %v5145 = vpop.permute.xlu0 %5144
        %5146 = vset.pattern.permute.xlu0 7
        %5147 = vperm.xlu0 %5146, %v250
        %v5148 = vpop.permute.xlu0 %5147
        %5149 = vset.pattern.permute.xlu0 7
        %5150 = vperm.xlu0 %5149, %v251
        %v5151 = vpop.permute.xlu0 %5150
        %v5152 = vsel %vm5088, %v5106, 4294967295
        %v5153 = vsel %vm5089, %v5109, 4294967295
        %v5154 = vsel %vm5090, %v5112, 4294967295
        %v5155 = vsel %vm5091, %v5115, 4294967295
        %v5156 = vsel %vm5092, %v5118, 4294967295
        %v5157 = vsel %vm5093, %v5121, 4294967295
        %v5158 = vsel %vm5094, %v5124, 4294967295
        %v5159 = vsel %vm5095, %v5127, 4294967295
        %v5160 = vsel %vm5096, %v5130, 4294967295
        %v5161 = vsel %vm5097, %v5133, 4294967295
        %v5162 = vsel %vm5098, %v5136, 4294967295
        %v5163 = vsel %vm5099, %v5139, 4294967295
        %v5164 = vsel %vm5100, %v5142, 4294967295
        %v5165 = vsel %vm5101, %v5145, 4294967295
        %v5166 = vsel %vm5102, %v5148, 4294967295
        %v5167 = vsel %vm5103, %v5151, 4294967295
        %vm5168 = vcmp.gt.s32.totalorder %v5152, %v5156
        %v5169 = vsel %vm5168, %v5152, %v5156
        %vm5170 = vcmp.gt.s32.totalorder %v5153, %v5157
        %v5171 = vsel %vm5170, %v5153, %v5157
        %vm5172 = vcmp.gt.s32.totalorder %v5154, %v5158
        %v5173 = vsel %vm5172, %v5154, %v5158
        %vm5174 = vcmp.gt.s32.totalorder %v5155, %v5159
        %v5175 = vsel %vm5174, %v5155, %v5159
        %vm5176 = vcmp.gt.s32.totalorder %v5169, %v5160
        %v5177 = vsel %vm5176, %v5169, %v5160
        %vm5178 = vcmp.gt.s32.totalorder %v5171, %v5161
        %v5179 = vsel %vm5178, %v5171, %v5161
        %vm5180 = vcmp.gt.s32.totalorder %v5173, %v5162
        %v5181 = vsel %vm5180, %v5173, %v5162
        %vm5182 = vcmp.gt.s32.totalorder %v5175, %v5163
        %v5183 = vsel %vm5182, %v5175, %v5163
        %vm5184 = vcmp.gt.s32.totalorder %v5177, %v5164
        %v5185 = vsel %vm5184, %v5177, %v5164
        %vm5186 = vcmp.gt.s32.totalorder %v5179, %v5165
        %v5187 = vsel %vm5186, %v5179, %v5165
        %vm5188 = vcmp.gt.s32.totalorder %v5181, %v5166
        %v5189 = vsel %vm5188, %v5181, %v5166
        %vm5190 = vcmp.gt.s32.totalorder %v5183, %v5167
        %v5191 = vsel %vm5190, %v5183, %v5167
        %vm5192 = vcmp.gt.s32.totalorder %v5185, %v5187
        %v5193 = vsel %vm5192, %v5185, %v5187
        %vm5194 = vcmp.gt.s32.totalorder %v5189, %v5191
        %v5195 = vsel %vm5194, %v5189, %v5191
        %vm5196 = vcmp.gt.s32.totalorder %v5193, %v5195
        %v5197 = vsel %vm5196, %v5193, %v5195
        %v5198 = vrot.slane %v5197, 4
        %vm5199 = vcmp.gt.s32.totalorder %v5197, %v5198
        %v5200 = vsel %vm5199, %v5197, %v5198
        %v5201 = vrot.slane %v5200, 2
        %vm5202 = vcmp.gt.s32.totalorder %v5200, %v5201
        %v5203 = vsel %vm5202, %v5200, %v5201
        %v5204 = vrot.slane %v5203, 1
        %vm5205 = vcmp.gt.s32.totalorder %v5203, %v5204
        %v5206 = vsel %vm5205, %v5203, %v5204
        %vm5207 = vcmp.gt.s32.totalorder %v4528, %v5206
        %v5208 = vsel %vm5207, %v4528, %v5206
        %vm5209 = vcmp.eq.s32.totalorder %v5042, %v442
        %vm5210 = vcmp.eq.s32.totalorder %v5045, %v442
        %vm5211 = vcmp.eq.s32.totalorder %v5048, %v442
        %vm5212 = vcmp.eq.s32.totalorder %v5051, %v442
        %vm5213 = vcmp.eq.s32.totalorder %v5054, %v442
        %vm5214 = vcmp.eq.s32.totalorder %v5057, %v442
        %vm5215 = vcmp.eq.s32.totalorder %v5060, %v442
        %vm5216 = vcmp.eq.s32.totalorder %v5063, %v442
        %vm5217 = vcmp.eq.s32.totalorder %v5066, %v442
        %vm5218 = vcmp.eq.s32.totalorder %v5069, %v442
        %vm5219 = vcmp.eq.s32.totalorder %v5072, %v442
        %vm5220 = vcmp.eq.s32.totalorder %v5075, %v442
        %vm5221 = vcmp.eq.s32.totalorder %v5078, %v442
        %vm5222 = vcmp.eq.s32.totalorder %v5081, %v442
        %vm5223 = vcmp.eq.s32.totalorder %v5084, %v442
        %vm5224 = vcmp.eq.s32.totalorder %v5087, %v442
        %v5225 = vsel %vm5209, %v5106, 4294967295
        %v5226 = vsel %vm5210, %v5109, 4294967295
        %v5227 = vsel %vm5211, %v5112, 4294967295
        %v5228 = vsel %vm5212, %v5115, 4294967295
        %v5229 = vsel %vm5213, %v5118, 4294967295
        %v5230 = vsel %vm5214, %v5121, 4294967295
        %v5231 = vsel %vm5215, %v5124, 4294967295
        %v5232 = vsel %vm5216, %v5127, 4294967295
        %v5233 = vsel %vm5217, %v5130, 4294967295
        %v5234 = vsel %vm5218, %v5133, 4294967295
        %v5235 = vsel %vm5219, %v5136, 4294967295
        %v5236 = vsel %vm5220, %v5139, 4294967295
        %v5237 = vsel %vm5221, %v5142, 4294967295
        %v5238 = vsel %vm5222, %v5145, 4294967295
        %v5239 = vsel %vm5223, %v5148, 4294967295
        %v5240 = vsel %vm5224, %v5151, 4294967295
        %vm5241 = vcmp.gt.s32.totalorder %v5225, %v5229
        %v5242 = vsel %vm5241, %v5225, %v5229
        %vm5243 = vcmp.gt.s32.totalorder %v5226, %v5230
        %v5244 = vsel %vm5243, %v5226, %v5230
        %vm5245 = vcmp.gt.s32.totalorder %v5227, %v5231
        %v5246 = vsel %vm5245, %v5227, %v5231
        %vm5247 = vcmp.gt.s32.totalorder %v5228, %v5232
        %v5248 = vsel %vm5247, %v5228, %v5232
        %vm5249 = vcmp.gt.s32.totalorder %v5242, %v5233
        %v5250 = vsel %vm5249, %v5242, %v5233
        %vm5251 = vcmp.gt.s32.totalorder %v5244, %v5234
        %v5252 = vsel %vm5251, %v5244, %v5234
        %vm5253 = vcmp.gt.s32.totalorder %v5246, %v5235
        %v5254 = vsel %vm5253, %v5246, %v5235
        %vm5255 = vcmp.gt.s32.totalorder %v5248, %v5236
        %v5256 = vsel %vm5255, %v5248, %v5236
        %vm5257 = vcmp.gt.s32.totalorder %v5250, %v5237
        %v5258 = vsel %vm5257, %v5250, %v5237
        %vm5259 = vcmp.gt.s32.totalorder %v5252, %v5238
        %v5260 = vsel %vm5259, %v5252, %v5238
        %vm5261 = vcmp.gt.s32.totalorder %v5254, %v5239
        %v5262 = vsel %vm5261, %v5254, %v5239
        %vm5263 = vcmp.gt.s32.totalorder %v5256, %v5240
        %v5264 = vsel %vm5263, %v5256, %v5240
        %vm5265 = vcmp.gt.s32.totalorder %v5258, %v5260
        %v5266 = vsel %vm5265, %v5258, %v5260
        %vm5267 = vcmp.gt.s32.totalorder %v5262, %v5264
        %v5268 = vsel %vm5267, %v5262, %v5264
        %vm5269 = vcmp.gt.s32.totalorder %v5266, %v5268
        %v5270 = vsel %vm5269, %v5266, %v5268
        %v5271 = vrot.slane %v5270, 4
        %vm5272 = vcmp.gt.s32.totalorder %v5270, %v5271
        %v5273 = vsel %vm5272, %v5270, %v5271
        %v5274 = vrot.slane %v5273, 2
        %vm5275 = vcmp.gt.s32.totalorder %v5273, %v5274
        %v5276 = vsel %vm5275, %v5273, %v5274
        %v5277 = vrot.slane %v5276, 1
        %vm5278 = vcmp.gt.s32.totalorder %v5276, %v5277
        %v5279 = vsel %vm5278, %v5276, %v5277
        %vm5280 = vcmp.gt.s32.totalorder %v4601, %v5279
        %v5281 = vsel %vm5280, %v4601, %v5279
        %vm5282 = vcmp.eq.s32.totalorder %v5042, %v516
        %vm5283 = vcmp.eq.s32.totalorder %v5045, %v516
        %vm5284 = vcmp.eq.s32.totalorder %v5048, %v516
        %vm5285 = vcmp.eq.s32.totalorder %v5051, %v516
        %vm5286 = vcmp.eq.s32.totalorder %v5054, %v516
        %vm5287 = vcmp.eq.s32.totalorder %v5057, %v516
        %vm5288 = vcmp.eq.s32.totalorder %v5060, %v516
        %vm5289 = vcmp.eq.s32.totalorder %v5063, %v516
        %vm5290 = vcmp.eq.s32.totalorder %v5066, %v516
        %vm5291 = vcmp.eq.s32.totalorder %v5069, %v516
        %vm5292 = vcmp.eq.s32.totalorder %v5072, %v516
        %vm5293 = vcmp.eq.s32.totalorder %v5075, %v516
        %vm5294 = vcmp.eq.s32.totalorder %v5078, %v516
        %vm5295 = vcmp.eq.s32.totalorder %v5081, %v516
        %vm5296 = vcmp.eq.s32.totalorder %v5084, %v516
        %vm5297 = vcmp.eq.s32.totalorder %v5087, %v516
        %v5298 = vsel %vm5282, %v5106, 4294967295
        %v5299 = vsel %vm5283, %v5109, 4294967295
        %v5300 = vsel %vm5284, %v5112, 4294967295
        %v5301 = vsel %vm5285, %v5115, 4294967295
        %v5302 = vsel %vm5286, %v5118, 4294967295
        %v5303 = vsel %vm5287, %v5121, 4294967295
        %v5304 = vsel %vm5288, %v5124, 4294967295
        %v5305 = vsel %vm5289, %v5127, 4294967295
        %v5306 = vsel %vm5290, %v5130, 4294967295
        %v5307 = vsel %vm5291, %v5133, 4294967295
        %v5308 = vsel %vm5292, %v5136, 4294967295
        %v5309 = vsel %vm5293, %v5139, 4294967295
        %v5310 = vsel %vm5294, %v5142, 4294967295
        %v5311 = vsel %vm5295, %v5145, 4294967295
        %v5312 = vsel %vm5296, %v5148, 4294967295
        %v5313 = vsel %vm5297, %v5151, 4294967295
        %vm5314 = vcmp.gt.s32.totalorder %v5298, %v5302
        %v5315 = vsel %vm5314, %v5298, %v5302
        %vm5316 = vcmp.gt.s32.totalorder %v5299, %v5303
        %v5317 = vsel %vm5316, %v5299, %v5303
        %vm5318 = vcmp.gt.s32.totalorder %v5300, %v5304
        %v5319 = vsel %vm5318, %v5300, %v5304
        %vm5320 = vcmp.gt.s32.totalorder %v5301, %v5305
        %v5321 = vsel %vm5320, %v5301, %v5305
        %vm5322 = vcmp.gt.s32.totalorder %v5315, %v5306
        %v5323 = vsel %vm5322, %v5315, %v5306
        %vm5324 = vcmp.gt.s32.totalorder %v5317, %v5307
        %v5325 = vsel %vm5324, %v5317, %v5307
        %vm5326 = vcmp.gt.s32.totalorder %v5319, %v5308
        %v5327 = vsel %vm5326, %v5319, %v5308
        %vm5328 = vcmp.gt.s32.totalorder %v5321, %v5309
        %v5329 = vsel %vm5328, %v5321, %v5309
        %vm5330 = vcmp.gt.s32.totalorder %v5323, %v5310
        %v5331 = vsel %vm5330, %v5323, %v5310
        %vm5332 = vcmp.gt.s32.totalorder %v5325, %v5311
        %v5333 = vsel %vm5332, %v5325, %v5311
        %vm5334 = vcmp.gt.s32.totalorder %v5327, %v5312
        %v5335 = vsel %vm5334, %v5327, %v5312
        %vm5336 = vcmp.gt.s32.totalorder %v5329, %v5313
        %v5337 = vsel %vm5336, %v5329, %v5313
        %vm5338 = vcmp.gt.s32.totalorder %v5331, %v5333
        %v5339 = vsel %vm5338, %v5331, %v5333
        %vm5340 = vcmp.gt.s32.totalorder %v5335, %v5337
        %v5341 = vsel %vm5340, %v5335, %v5337
        %vm5342 = vcmp.gt.s32.totalorder %v5339, %v5341
        %v5343 = vsel %vm5342, %v5339, %v5341
        %v5344 = vrot.slane %v5343, 4
        %vm5345 = vcmp.gt.s32.totalorder %v5343, %v5344
        %v5346 = vsel %vm5345, %v5343, %v5344
        %v5347 = vrot.slane %v5346, 2
        %vm5348 = vcmp.gt.s32.totalorder %v5346, %v5347
        %v5349 = vsel %vm5348, %v5346, %v5347
        %v5350 = vrot.slane %v5349, 1
        %vm5351 = vcmp.gt.s32.totalorder %v5349, %v5350
        %v5352 = vsel %vm5351, %v5349, %v5350
        %vm5353 = vcmp.gt.s32.totalorder %v4674, %v5352
        %v5354 = vsel %vm5353, %v4674, %v5352
        %vm5355 = vcmp.eq.s32.totalorder %v5042, %v590
        %vm5356 = vcmp.eq.s32.totalorder %v5045, %v590
        %vm5357 = vcmp.eq.s32.totalorder %v5048, %v590
        %vm5358 = vcmp.eq.s32.totalorder %v5051, %v590
        %vm5359 = vcmp.eq.s32.totalorder %v5054, %v590
        %vm5360 = vcmp.eq.s32.totalorder %v5057, %v590
        %vm5361 = vcmp.eq.s32.totalorder %v5060, %v590
        %vm5362 = vcmp.eq.s32.totalorder %v5063, %v590
        %vm5363 = vcmp.eq.s32.totalorder %v5066, %v590
        %vm5364 = vcmp.eq.s32.totalorder %v5069, %v590
        %vm5365 = vcmp.eq.s32.totalorder %v5072, %v590
        %vm5366 = vcmp.eq.s32.totalorder %v5075, %v590
        %vm5367 = vcmp.eq.s32.totalorder %v5078, %v590
        %vm5368 = vcmp.eq.s32.totalorder %v5081, %v590
        %vm5369 = vcmp.eq.s32.totalorder %v5084, %v590
        %vm5370 = vcmp.eq.s32.totalorder %v5087, %v590
        %v5371 = vsel %vm5355, %v5106, 4294967295
        %v5372 = vsel %vm5356, %v5109, 4294967295
        %v5373 = vsel %vm5357, %v5112, 4294967295
        %v5374 = vsel %vm5358, %v5115, 4294967295
        %v5375 = vsel %vm5359, %v5118, 4294967295
        %v5376 = vsel %vm5360, %v5121, 4294967295
        %v5377 = vsel %vm5361, %v5124, 4294967295
        %v5378 = vsel %vm5362, %v5127, 4294967295
        %v5379 = vsel %vm5363, %v5130, 4294967295
        %v5380 = vsel %vm5364, %v5133, 4294967295
        %v5381 = vsel %vm5365, %v5136, 4294967295
        %v5382 = vsel %vm5366, %v5139, 4294967295
        %v5383 = vsel %vm5367, %v5142, 4294967295
        %v5384 = vsel %vm5368, %v5145, 4294967295
        %v5385 = vsel %vm5369, %v5148, 4294967295
        %v5386 = vsel %vm5370, %v5151, 4294967295
        %vm5387 = vcmp.gt.s32.totalorder %v5371, %v5375
        %v5388 = vsel %vm5387, %v5371, %v5375
        %vm5389 = vcmp.gt.s32.totalorder %v5372, %v5376
        %v5390 = vsel %vm5389, %v5372, %v5376
        %vm5391 = vcmp.gt.s32.totalorder %v5373, %v5377
        %v5392 = vsel %vm5391, %v5373, %v5377
        %vm5393 = vcmp.gt.s32.totalorder %v5374, %v5378
        %v5394 = vsel %vm5393, %v5374, %v5378
        %vm5395 = vcmp.gt.s32.totalorder %v5388, %v5379
        %v5396 = vsel %vm5395, %v5388, %v5379
        %vm5397 = vcmp.gt.s32.totalorder %v5390, %v5380
        %v5398 = vsel %vm5397, %v5390, %v5380
        %vm5399 = vcmp.gt.s32.totalorder %v5392, %v5381
        %v5400 = vsel %vm5399, %v5392, %v5381
        %vm5401 = vcmp.gt.s32.totalorder %v5394, %v5382
        %v5402 = vsel %vm5401, %v5394, %v5382
        %vm5403 = vcmp.gt.s32.totalorder %v5396, %v5383
        %v5404 = vsel %vm5403, %v5396, %v5383
        %vm5405 = vcmp.gt.s32.totalorder %v5398, %v5384
        %v5406 = vsel %vm5405, %v5398, %v5384
        %vm5407 = vcmp.gt.s32.totalorder %v5400, %v5385
        %v5408 = vsel %vm5407, %v5400, %v5385
        %vm5409 = vcmp.gt.s32.totalorder %v5402, %v5386
        %v5410 = vsel %vm5409, %v5402, %v5386
        %vm5411 = vcmp.gt.s32.totalorder %v5404, %v5406
        %v5412 = vsel %vm5411, %v5404, %v5406
        %vm5413 = vcmp.gt.s32.totalorder %v5408, %v5410
        %v5414 = vsel %vm5413, %v5408, %v5410
        %vm5415 = vcmp.gt.s32.totalorder %v5412, %v5414
        %v5416 = vsel %vm5415, %v5412, %v5414
        %v5417 = vrot.slane %v5416, 4
        %vm5418 = vcmp.gt.s32.totalorder %v5416, %v5417
        %v5419 = vsel %vm5418, %v5416, %v5417
        %v5420 = vrot.slane %v5419, 2
        %vm5421 = vcmp.gt.s32.totalorder %v5419, %v5420
        %v5422 = vsel %vm5421, %v5419, %v5420
        %v5423 = vrot.slane %v5422, 1
        %vm5424 = vcmp.gt.s32.totalorder %v5422, %v5423
        %v5425 = vsel %vm5424, %v5422, %v5423
        %vm5426 = vcmp.gt.s32.totalorder %v4747, %v5425
        %v5427 = vsel %vm5426, %v4747, %v5425
        %vm5428 = vcmp.eq.s32.totalorder %v5042, %v664
        %vm5429 = vcmp.eq.s32.totalorder %v5045, %v664
        %vm5430 = vcmp.eq.s32.totalorder %v5048, %v664
        %vm5431 = vcmp.eq.s32.totalorder %v5051, %v664
        %vm5432 = vcmp.eq.s32.totalorder %v5054, %v664
        %vm5433 = vcmp.eq.s32.totalorder %v5057, %v664
        %vm5434 = vcmp.eq.s32.totalorder %v5060, %v664
        %vm5435 = vcmp.eq.s32.totalorder %v5063, %v664
        %vm5436 = vcmp.eq.s32.totalorder %v5066, %v664
        %vm5437 = vcmp.eq.s32.totalorder %v5069, %v664
        %vm5438 = vcmp.eq.s32.totalorder %v5072, %v664
        %vm5439 = vcmp.eq.s32.totalorder %v5075, %v664
        %vm5440 = vcmp.eq.s32.totalorder %v5078, %v664
        %vm5441 = vcmp.eq.s32.totalorder %v5081, %v664
        %vm5442 = vcmp.eq.s32.totalorder %v5084, %v664
        %vm5443 = vcmp.eq.s32.totalorder %v5087, %v664
        %v5444 = vsel %vm5428, %v5106, 4294967295
        %v5445 = vsel %vm5429, %v5109, 4294967295
        %v5446 = vsel %vm5430, %v5112, 4294967295
        %v5447 = vsel %vm5431, %v5115, 4294967295
        %v5448 = vsel %vm5432, %v5118, 4294967295
        %v5449 = vsel %vm5433, %v5121, 4294967295
        %v5450 = vsel %vm5434, %v5124, 4294967295
        %v5451 = vsel %vm5435, %v5127, 4294967295
        %v5452 = vsel %vm5436, %v5130, 4294967295
        %v5453 = vsel %vm5437, %v5133, 4294967295
        %v5454 = vsel %vm5438, %v5136, 4294967295
        %v5455 = vsel %vm5439, %v5139, 4294967295
        %v5456 = vsel %vm5440, %v5142, 4294967295
        %v5457 = vsel %vm5441, %v5145, 4294967295
        %v5458 = vsel %vm5442, %v5148, 4294967295
        %v5459 = vsel %vm5443, %v5151, 4294967295
        %vm5460 = vcmp.gt.s32.totalorder %v5444, %v5448
        %v5461 = vsel %vm5460, %v5444, %v5448
        %vm5462 = vcmp.gt.s32.totalorder %v5445, %v5449
        %v5463 = vsel %vm5462, %v5445, %v5449
        %vm5464 = vcmp.gt.s32.totalorder %v5446, %v5450
        %v5465 = vsel %vm5464, %v5446, %v5450
        %vm5466 = vcmp.gt.s32.totalorder %v5447, %v5451
        %v5467 = vsel %vm5466, %v5447, %v5451
        %vm5468 = vcmp.gt.s32.totalorder %v5461, %v5452
        %v5469 = vsel %vm5468, %v5461, %v5452
        %vm5470 = vcmp.gt.s32.totalorder %v5463, %v5453
        %v5471 = vsel %vm5470, %v5463, %v5453
        %vm5472 = vcmp.gt.s32.totalorder %v5465, %v5454
        %v5473 = vsel %vm5472, %v5465, %v5454
        %vm5474 = vcmp.gt.s32.totalorder %v5467, %v5455
        %v5475 = vsel %vm5474, %v5467, %v5455
        %vm5476 = vcmp.gt.s32.totalorder %v5469, %v5456
        %v5477 = vsel %vm5476, %v5469, %v5456
        %vm5478 = vcmp.gt.s32.totalorder %v5471, %v5457
        %v5479 = vsel %vm5478, %v5471, %v5457
        %vm5480 = vcmp.gt.s32.totalorder %v5473, %v5458
        %v5481 = vsel %vm5480, %v5473, %v5458
        %vm5482 = vcmp.gt.s32.totalorder %v5475, %v5459
        %v5483 = vsel %vm5482, %v5475, %v5459
        %vm5484 = vcmp.gt.s32.totalorder %v5477, %v5479
        %v5485 = vsel %vm5484, %v5477, %v5479
        %vm5486 = vcmp.gt.s32.totalorder %v5481, %v5483
        %v5487 = vsel %vm5486, %v5481, %v5483
        %vm5488 = vcmp.gt.s32.totalorder %v5485, %v5487
        %v5489 = vsel %vm5488, %v5485, %v5487
        %v5490 = vrot.slane %v5489, 4
        %vm5491 = vcmp.gt.s32.totalorder %v5489, %v5490
        %v5492 = vsel %vm5491, %v5489, %v5490
        %v5493 = vrot.slane %v5492, 2
        %vm5494 = vcmp.gt.s32.totalorder %v5492, %v5493
        %v5495 = vsel %vm5494, %v5492, %v5493
        %v5496 = vrot.slane %v5495, 1
        %vm5497 = vcmp.gt.s32.totalorder %v5495, %v5496
        %v5498 = vsel %vm5497, %v5495, %v5496
        %vm5499 = vcmp.gt.s32.totalorder %v4820, %v5498
        %v5500 = vsel %vm5499, %v4820, %v5498
        %vm5501 = vcmp.eq.s32.totalorder %v5042, %v738
        %vm5502 = vcmp.eq.s32.totalorder %v5045, %v738
        %vm5503 = vcmp.eq.s32.totalorder %v5048, %v738
        %vm5504 = vcmp.eq.s32.totalorder %v5051, %v738
        %vm5505 = vcmp.eq.s32.totalorder %v5054, %v738
        %vm5506 = vcmp.eq.s32.totalorder %v5057, %v738
        %vm5507 = vcmp.eq.s32.totalorder %v5060, %v738
        %vm5508 = vcmp.eq.s32.totalorder %v5063, %v738
        %vm5509 = vcmp.eq.s32.totalorder %v5066, %v738
        %vm5510 = vcmp.eq.s32.totalorder %v5069, %v738
        %vm5511 = vcmp.eq.s32.totalorder %v5072, %v738
        %vm5512 = vcmp.eq.s32.totalorder %v5075, %v738
        %vm5513 = vcmp.eq.s32.totalorder %v5078, %v738
        %vm5514 = vcmp.eq.s32.totalorder %v5081, %v738
        %vm5515 = vcmp.eq.s32.totalorder %v5084, %v738
        %vm5516 = vcmp.eq.s32.totalorder %v5087, %v738
        %v5517 = vsel %vm5501, %v5106, 4294967295
        %v5518 = vsel %vm5502, %v5109, 4294967295
        %v5519 = vsel %vm5503, %v5112, 4294967295
        %v5520 = vsel %vm5504, %v5115, 4294967295
        %v5521 = vsel %vm5505, %v5118, 4294967295
        %v5522 = vsel %vm5506, %v5121, 4294967295
        %v5523 = vsel %vm5507, %v5124, 4294967295
        %v5524 = vsel %vm5508, %v5127, 4294967295
        %v5525 = vsel %vm5509, %v5130, 4294967295
        %v5526 = vsel %vm5510, %v5133, 4294967295
        %v5527 = vsel %vm5511, %v5136, 4294967295
        %v5528 = vsel %vm5512, %v5139, 4294967295
        %v5529 = vsel %vm5513, %v5142, 4294967295
        %v5530 = vsel %vm5514, %v5145, 4294967295
        %v5531 = vsel %vm5515, %v5148, 4294967295
        %v5532 = vsel %vm5516, %v5151, 4294967295
        %vm5533 = vcmp.gt.s32.totalorder %v5517, %v5521
        %v5534 = vsel %vm5533, %v5517, %v5521
        %vm5535 = vcmp.gt.s32.totalorder %v5518, %v5522
        %v5536 = vsel %vm5535, %v5518, %v5522
        %vm5537 = vcmp.gt.s32.totalorder %v5519, %v5523
        %v5538 = vsel %vm5537, %v5519, %v5523
        %vm5539 = vcmp.gt.s32.totalorder %v5520, %v5524
        %v5540 = vsel %vm5539, %v5520, %v5524
        %vm5541 = vcmp.gt.s32.totalorder %v5534, %v5525
        %v5542 = vsel %vm5541, %v5534, %v5525
        %vm5543 = vcmp.gt.s32.totalorder %v5536, %v5526
        %v5544 = vsel %vm5543, %v5536, %v5526
        %vm5545 = vcmp.gt.s32.totalorder %v5538, %v5527
        %v5546 = vsel %vm5545, %v5538, %v5527
        %vm5547 = vcmp.gt.s32.totalorder %v5540, %v5528
        %v5548 = vsel %vm5547, %v5540, %v5528
        %vm5549 = vcmp.gt.s32.totalorder %v5542, %v5529
        %v5550 = vsel %vm5549, %v5542, %v5529
        %vm5551 = vcmp.gt.s32.totalorder %v5544, %v5530
        %v5552 = vsel %vm5551, %v5544, %v5530
        %vm5553 = vcmp.gt.s32.totalorder %v5546, %v5531
        %v5554 = vsel %vm5553, %v5546, %v5531
        %vm5555 = vcmp.gt.s32.totalorder %v5548, %v5532
        %v5556 = vsel %vm5555, %v5548, %v5532
        %vm5557 = vcmp.gt.s32.totalorder %v5550, %v5552
        %v5558 = vsel %vm5557, %v5550, %v5552
        %vm5559 = vcmp.gt.s32.totalorder %v5554, %v5556
        %v5560 = vsel %vm5559, %v5554, %v5556
        %vm5561 = vcmp.gt.s32.totalorder %v5558, %v5560
        %v5562 = vsel %vm5561, %v5558, %v5560
        %v5563 = vrot.slane %v5562, 4
        %vm5564 = vcmp.gt.s32.totalorder %v5562, %v5563
        %v5565 = vsel %vm5564, %v5562, %v5563
        %v5566 = vrot.slane %v5565, 2
        %vm5567 = vcmp.gt.s32.totalorder %v5565, %v5566
        %v5568 = vsel %vm5567, %v5565, %v5566
        %v5569 = vrot.slane %v5568, 1
        %vm5570 = vcmp.gt.s32.totalorder %v5568, %v5569
        %v5571 = vsel %vm5570, %v5568, %v5569
        %vm5572 = vcmp.gt.s32.totalorder %v4893, %v5571
        %v5573 = vsel %vm5572, %v4893, %v5571
        %vm5574 = vcmp.eq.s32.totalorder %v5042, %v812
        %vm5575 = vcmp.eq.s32.totalorder %v5045, %v812
        %vm5576 = vcmp.eq.s32.totalorder %v5048, %v812
        %vm5577 = vcmp.eq.s32.totalorder %v5051, %v812
        %vm5578 = vcmp.eq.s32.totalorder %v5054, %v812
        %vm5579 = vcmp.eq.s32.totalorder %v5057, %v812
        %vm5580 = vcmp.eq.s32.totalorder %v5060, %v812
        %vm5581 = vcmp.eq.s32.totalorder %v5063, %v812
        %vm5582 = vcmp.eq.s32.totalorder %v5066, %v812
        %vm5583 = vcmp.eq.s32.totalorder %v5069, %v812
        %vm5584 = vcmp.eq.s32.totalorder %v5072, %v812
        %vm5585 = vcmp.eq.s32.totalorder %v5075, %v812
        %vm5586 = vcmp.eq.s32.totalorder %v5078, %v812
        %vm5587 = vcmp.eq.s32.totalorder %v5081, %v812
        %vm5588 = vcmp.eq.s32.totalorder %v5084, %v812
        %vm5589 = vcmp.eq.s32.totalorder %v5087, %v812
        %v5590 = vsel %vm5574, %v5106, 4294967295
        %v5591 = vsel %vm5575, %v5109, 4294967295
        %v5592 = vsel %vm5576, %v5112, 4294967295
        %v5593 = vsel %vm5577, %v5115, 4294967295
        %v5594 = vsel %vm5578, %v5118, 4294967295
        %v5595 = vsel %vm5579, %v5121, 4294967295
        %v5596 = vsel %vm5580, %v5124, 4294967295
        %v5597 = vsel %vm5581, %v5127, 4294967295
        %v5598 = vsel %vm5582, %v5130, 4294967295
        %v5599 = vsel %vm5583, %v5133, 4294967295
        %v5600 = vsel %vm5584, %v5136, 4294967295
        %v5601 = vsel %vm5585, %v5139, 4294967295
        %v5602 = vsel %vm5586, %v5142, 4294967295
        %v5603 = vsel %vm5587, %v5145, 4294967295
        %v5604 = vsel %vm5588, %v5148, 4294967295
        %v5605 = vsel %vm5589, %v5151, 4294967295
        %vm5606 = vcmp.gt.s32.totalorder %v5590, %v5594
        %v5607 = vsel %vm5606, %v5590, %v5594
        %vm5608 = vcmp.gt.s32.totalorder %v5591, %v5595
        %v5609 = vsel %vm5608, %v5591, %v5595
        %vm5610 = vcmp.gt.s32.totalorder %v5592, %v5596
        %v5611 = vsel %vm5610, %v5592, %v5596
        %vm5612 = vcmp.gt.s32.totalorder %v5593, %v5597
        %v5613 = vsel %vm5612, %v5593, %v5597
        %vm5614 = vcmp.gt.s32.totalorder %v5607, %v5598
        %v5615 = vsel %vm5614, %v5607, %v5598
        %vm5616 = vcmp.gt.s32.totalorder %v5609, %v5599
        %v5617 = vsel %vm5616, %v5609, %v5599
        %vm5618 = vcmp.gt.s32.totalorder %v5611, %v5600
        %v5619 = vsel %vm5618, %v5611, %v5600
        %vm5620 = vcmp.gt.s32.totalorder %v5613, %v5601
        %v5621 = vsel %vm5620, %v5613, %v5601
        %vm5622 = vcmp.gt.s32.totalorder %v5615, %v5602
        %v5623 = vsel %vm5622, %v5615, %v5602
        %vm5624 = vcmp.gt.s32.totalorder %v5617, %v5603
        %v5625 = vsel %vm5624, %v5617, %v5603
        %vm5626 = vcmp.gt.s32.totalorder %v5619, %v5604
        %v5627 = vsel %vm5626, %v5619, %v5604
        %vm5628 = vcmp.gt.s32.totalorder %v5621, %v5605
        %v5629 = vsel %vm5628, %v5621, %v5605
        %vm5630 = vcmp.gt.s32.totalorder %v5623, %v5625
        %v5631 = vsel %vm5630, %v5623, %v5625
        %vm5632 = vcmp.gt.s32.totalorder %v5627, %v5629
        %v5633 = vsel %vm5632, %v5627, %v5629
        %vm5634 = vcmp.gt.s32.totalorder %v5631, %v5633
        %v5635 = vsel %vm5634, %v5631, %v5633
        %v5636 = vrot.slane %v5635, 4
        %vm5637 = vcmp.gt.s32.totalorder %v5635, %v5636
        %v5638 = vsel %vm5637, %v5635, %v5636
        %v5639 = vrot.slane %v5638, 2
        %vm5640 = vcmp.gt.s32.totalorder %v5638, %v5639
        %v5641 = vsel %vm5640, %v5638, %v5639
        %v5642 = vrot.slane %v5641, 1
        %vm5643 = vcmp.gt.s32.totalorder %v5641, %v5642
        %v5644 = vsel %vm5643, %v5641, %v5642
        %vm5645 = vcmp.gt.s32.totalorder %v4966, %v5644
        %v5646 = vsel %vm5645, %v4966, %v5644
        %vm5647 = vcmp.eq.s32.totalorder %v5042, %v886
        %vm5648 = vcmp.eq.s32.totalorder %v5045, %v886
        %vm5649 = vcmp.eq.s32.totalorder %v5048, %v886
        %vm5650 = vcmp.eq.s32.totalorder %v5051, %v886
        %vm5651 = vcmp.eq.s32.totalorder %v5054, %v886
        %vm5652 = vcmp.eq.s32.totalorder %v5057, %v886
        %vm5653 = vcmp.eq.s32.totalorder %v5060, %v886
        %vm5654 = vcmp.eq.s32.totalorder %v5063, %v886
        %vm5655 = vcmp.eq.s32.totalorder %v5066, %v886
        %vm5656 = vcmp.eq.s32.totalorder %v5069, %v886
        %vm5657 = vcmp.eq.s32.totalorder %v5072, %v886
        %vm5658 = vcmp.eq.s32.totalorder %v5075, %v886
        %vm5659 = vcmp.eq.s32.totalorder %v5078, %v886
        %vm5660 = vcmp.eq.s32.totalorder %v5081, %v886
        %vm5661 = vcmp.eq.s32.totalorder %v5084, %v886
        %vm5662 = vcmp.eq.s32.totalorder %v5087, %v886
        %v5663 = vsel %vm5647, %v5106, 4294967295
        %v5664 = vsel %vm5648, %v5109, 4294967295
        %v5665 = vsel %vm5649, %v5112, 4294967295
        %v5666 = vsel %vm5650, %v5115, 4294967295
        %v5667 = vsel %vm5651, %v5118, 4294967295
        %v5668 = vsel %vm5652, %v5121, 4294967295
        %v5669 = vsel %vm5653, %v5124, 4294967295
        %v5670 = vsel %vm5654, %v5127, 4294967295
        %v5671 = vsel %vm5655, %v5130, 4294967295
        %v5672 = vsel %vm5656, %v5133, 4294967295
        %v5673 = vsel %vm5657, %v5136, 4294967295
        %v5674 = vsel %vm5658, %v5139, 4294967295
        %v5675 = vsel %vm5659, %v5142, 4294967295
        %v5676 = vsel %vm5660, %v5145, 4294967295
        %v5677 = vsel %vm5661, %v5148, 4294967295
        %v5678 = vsel %vm5662, %v5151, 4294967295
        %vm5679 = vcmp.gt.s32.totalorder %v5663, %v5667
        %v5680 = vsel %vm5679, %v5663, %v5667
        %vm5681 = vcmp.gt.s32.totalorder %v5664, %v5668
        %v5682 = vsel %vm5681, %v5664, %v5668
        %vm5683 = vcmp.gt.s32.totalorder %v5665, %v5669
        %v5684 = vsel %vm5683, %v5665, %v5669
        %vm5685 = vcmp.gt.s32.totalorder %v5666, %v5670
        %v5686 = vsel %vm5685, %v5666, %v5670
        %vm5687 = vcmp.gt.s32.totalorder %v5680, %v5671
        %v5688 = vsel %vm5687, %v5680, %v5671
        %vm5689 = vcmp.gt.s32.totalorder %v5682, %v5672
        %v5690 = vsel %vm5689, %v5682, %v5672
        %vm5691 = vcmp.gt.s32.totalorder %v5684, %v5673
        %v5692 = vsel %vm5691, %v5684, %v5673
        %vm5693 = vcmp.gt.s32.totalorder %v5686, %v5674
        %v5694 = vsel %vm5693, %v5686, %v5674
        %vm5695 = vcmp.gt.s32.totalorder %v5688, %v5675
        %v5696 = vsel %vm5695, %v5688, %v5675
        %vm5697 = vcmp.gt.s32.totalorder %v5690, %v5676
        %v5698 = vsel %vm5697, %v5690, %v5676
        %vm5699 = vcmp.gt.s32.totalorder %v5692, %v5677
        %v5700 = vsel %vm5699, %v5692, %v5677
        %vm5701 = vcmp.gt.s32.totalorder %v5694, %v5678
        %v5702 = vsel %vm5701, %v5694, %v5678
        %vm5703 = vcmp.gt.s32.totalorder %v5696, %v5698
        %v5704 = vsel %vm5703, %v5696, %v5698
        %vm5705 = vcmp.gt.s32.totalorder %v5700, %v5702
        %v5706 = vsel %vm5705, %v5700, %v5702
        %vm5707 = vcmp.gt.s32.totalorder %v5704, %v5706
        %v5708 = vsel %vm5707, %v5704, %v5706
        %v5709 = vrot.slane %v5708, 4
        %vm5710 = vcmp.gt.s32.totalorder %v5708, %v5709
        %v5711 = vsel %vm5710, %v5708, %v5709
        %v5712 = vrot.slane %v5711, 2
        %vm5713 = vcmp.gt.s32.totalorder %v5711, %v5712
        %v5714 = vsel %vm5713, %v5711, %v5712
        %v5715 = vrot.slane %v5714, 1
        %vm5716 = vcmp.gt.s32.totalorder %v5714, %v5715
        %v5717 = vsel %vm5716, %v5714, %v5715
        %vm5718 = vcmp.gt.s32.totalorder %v5039, %v5717
        %v5719 = vsel %vm5718, %v5039, %v5717
        %vm5720 = vcmask 1040384
        %v5721 = vsel %vm5720, %v5208, %v5281
        %vm5722 = vcmask 1041408
        %v5723 = vsel %vm5722, %v5721, %v5354
        %vm5724 = vcmask 1042432
        %v5725 = vsel %vm5724, %v5723, %v5427
        %vm5726 = vcmask 1043456
        %v5727 = vsel %vm5726, %v5725, %v5500
        %vm5728 = vcmask 1044480
        %v5729 = vsel %vm5728, %v5727, %v5573
        %vm5730 = vcmask 1045504
        %v5731 = vsel %vm5730, %v5729, %v5646
        %vm5732 = vcmask 1046528
        %v5733 = vsel %vm5732, %v5731, %v5719
        %5734 = vst [vmem:[#allocation2] sm:$0xff] %v5733
        // Predicated region
        $region33: #{tpu_custom_call.1} parent=27 // pred_check
          %p5735 = pneg %p215
        $region34: #{tpu_custom_call.1} parent=27 // pred_check_branch
          %5737 = sbr.rel (%p5735) target = $region36
        $region35: #{tpu_custom_call.1} parent=27 // pred_region
          %vm5738 = vcmp.ge.s32.totalorder %v5733, 0
          %v5739 = vand.u32 %v5733, 255
          %v5740 = vsel %vm5738, %v5739, 255
          %5741 = vst [vmem:[%s194] sm:$0xff] %v5740
        $region36: #{tpu_custom_call.1} parent=27 // pred_fallthru
          _
        %s5742 = sand.u32 %s101, 1
        %s5743 = scalar_lea.sflag [#allocation4], %s5742
        %s5744 = sand.u32 %s101, 1
        %s5745 = smul.addr %s5744, 8
        %s5746 = scalar_lea.vmem [#allocation3], %s5745
        // Predicated region
        $region37: #{tpu_custom_call.1} parent=27 // pred_check
          %p5747 = pneg %p111
        $region38: #{tpu_custom_call.1} parent=27 // pred_check_branch
          %5749 = sbr.rel (%p5747) target = $region40
        $region39: #{tpu_custom_call.1} parent=27 // pred_region
          %s5751 = ssub.s32 128, 128
          %5752 = vsyncadd %s5743, %s5751
          %s5753 = sadd.s32 %s22, %s21
          %s5754 = smul.addr %s5753, 128
          %s5755 = scalar_lea.hbm %s2, %s5754
          %s5757 = sshll.u32 %s5746, 4
          %s5758 = int_to_ptr.vmem [resolvable:$true] %s5757
          %5760 = dma.vmem_to_hbm [thread:$0]  %s5758, 128, %s5755, %s5743
        $region40: #{tpu_custom_call.1} parent=27 // pred_fallthru
          _
      $region28: #{tpu_custom_call.1} parent=5 // pred_fallthru
        _
      %p5761 = scmp.le.s32.totalorder 2, %s11
      // Predicated region
      $region41: #{tpu_custom_call.1} parent=5 // pred_check
        %p5762 = pneg %p5761
      $region42: #{tpu_custom_call.1} parent=5 // pred_check_branch
        %5764 = sbr.rel (%p5762) target = $region44
      $region43: #{tpu_custom_call.1} parent=5 // pred_region
        %s5765 = ssub.s32 %s11, 2
        // Predicated region
        $region45: #{tpu_custom_call.1} parent=43 // pred_check
          %p5766 = pneg %p117
        $region46: #{tpu_custom_call.1} parent=43 // pred_check_branch
          %5768 = sbr.rel (%p5766) target = $region48
        $region47: #{tpu_custom_call.1} parent=43 // pred_region
          %s5769 = sand.u32 %s102, 1
          %s5770 = scalar_lea.sflag [#allocation4], %s5769
          %s5771 = sand.u32 %s102, 1
          %s5772 = smul.addr %s5771, 8
          %s5773 = scalar_lea.vmem [#allocation3], %s5772
          %5774 = dma.done %s5770, 128
        $region48: #{tpu_custom_call.1} parent=43 // pred_fallthru
          _
      $region44: #{tpu_custom_call.1} parent=5 // pred_fallthru
        _
    $region6: #{tpu_custom_call.1} parent=1 // loop_footer
      %s15 = sadd.s32 1, %s11
    $region7: #{tpu_custom_call.1} parent=1 // loop_footer_branch
      %10 = sbr.rel target = $region3
    $region8: #{tpu_custom_call.1} parent=1 // loop_exit
      _
    %5775 = vsyncpa [#allocation4], 1
    %s5776 = scalar_lea.sflag [#allocation4], 1
    %5777 = vsyncpa %s5776, 1

</llo_original>
